<compile_context>
chip_gen: v7x
topology: tpu7x:2x2x1
jax: 0.10.0
libtpu: 0.0.40
codegen_flags: <defaults>
</compile_context>

<pallas_src>
import math
import functools

import jax
import jax.numpy as jnp
from jax import lax
from jax.experimental import pallas as pl
from jax.experimental.pallas import tpu as pltpu


# ----------------------------------------------------------------------------
# Tiling helpers
# ----------------------------------------------------------------------------

def _pick_tile(n, prefs):
    for c in prefs:
        if n % c == 0:
            return c
    return n  # fall back to full extent (allowed by the (8,128) rule)


_VMEM_LIMIT = 48 * 1024 * 1024  # leave headroom under v7x's 64 MiB physical VMEM


# ----------------------------------------------------------------------------
# Fused (LayerNorm?) -> matmul -> (+bias) -> (GELU?) -> (+residual?) kernel
# ----------------------------------------------------------------------------

def _fused_linear_kernel(x_ref, *refs, ln, has_bias, has_residual, activation,
                         eps):
    i = 0
    if ln:
        g_ref, bt_ref = refs[i], refs[i + 1]
        i += 2
    w_ref = refs[i]
    i += 1
    b_ref = None
    if has_bias:
        b_ref = refs[i]
        i += 1
    r_ref = None
    if has_residual:
        r_ref = refs[i]
        i += 1
    o_ref = refs[i]

    x = x_ref[...]
    if ln:
        # LayerNorm statistics in f32 (full feature dim lives in this block).
        xf = x.astype(jnp.float32)
        mu = jnp.mean(xf, axis=-1, keepdims=True)
        var = jnp.mean((xf - mu) * (xf - mu), axis=-1, keepdims=True)
        x = (xf - mu) * lax.rsqrt(var + eps) * g_ref[...] + bt_ref[...]

    # bf16 operands into the MXU, f32 accumulation.
    acc = jnp.dot(x.astype(jnp.bfloat16), w_ref[...],
                  preferred_element_type=jnp.float32)
    if has_bias:
        acc = acc + b_ref[...]
    if activation == "gelu_tanh":
        c = math.sqrt(2.0 / math.pi)
        acc = 0.5 * acc * (1.0 + jnp.tanh(c * (acc + 0.044715 * acc * acc * acc)))
    if has_residual:
        acc = acc + r_ref[...].astype(jnp.float32)
    o_ref[...] = acc.astype(o_ref.dtype)


def fused_linear(x, w, b=None, *, gamma=None, beta=None, residual=None,
                 activation="none", out_dtype=jnp.float32, eps=1e-5):
    """y = [LN?](x) @ w + b, optional tanh-GELU, optional residual add.

    x: (M, K) f32/bf16, w: (K, N) (cast to bf16), b: (N,), residual: (M, N).
    """
    M, K = x.shape
    Kw, N = w.shape
    assert K == Kw
    tm = _pick_tile(M, (256, 128, 64, 32, 16, 8))
    # 256-wide N tiles: fill the 256x256 MXU (v6e/v7x) and keep >=2 grid steps
    # when N allows (keeps both v7x TensorCores busy).
    tn = _pick_tile(N, (256, 128))

    ln = gamma is not None
    has_bias = b is not None
    has_residual = residual is not None

    inputs = [x]
    in_specs = [pl.BlockSpec((tm, K), lambda i, j: (i, 0))]
    if ln:
        inputs += [gamma.reshape(1, K).astype(jnp.float32),
                   beta.reshape(1, K).astype(jnp.float32)]
        in_specs += [pl.BlockSpec((1, K), lambda i, j: (0, 0)),
                     pl.BlockSpec((1, K), lambda i, j: (0, 0))]
    inputs.append(w.astype(jnp.bfloat16))
    in_specs.append(pl.BlockSpec((K, tn), lambda i, j: (0, j)))
    if has_bias:
        inputs.append(b.reshape(1, N).astype(jnp.float32))
        in_specs.append(pl.BlockSpec((1, tn), lambda i, j: (0, j)))
    if has_residual:
        assert residual.shape == (M, N)
        inputs.append(residual)
        in_specs.append(pl.BlockSpec((tm, tn), lambda i, j: (i, j)))

    kern = functools.partial(_fused_linear_kernel, ln=ln, has_bias=has_bias,
                             has_residual=has_residual, activation=activation,
                             eps=eps)
    # TODO(synk): add a K grid axis (f32 VMEM accumulator + pl.when init/finalize)
    # for model-scale K/N (4C MLP, 50k vocab) where un-tiled K would blow VMEM.
    return pl.pallas_call(
        kern,
        out_shape=jax.ShapeDtypeStruct((M, N), out_dtype),
        grid_spec=pltpu.PrefetchScalarGridSpec(
            num_scalar_prefetch=0,
            grid=(M // tm, N // tn),
            in_specs=in_specs,
            out_specs=pl.BlockSpec((tm, tn), lambda i, j: (i, j)),
        ),
        compiler_params=pltpu.CompilerParams(
            dimension_semantics=("parallel", "parallel"),
            vmem_limit_bytes=_VMEM_LIMIT),
    )(*inputs)


# ----------------------------------------------------------------------------
# Causal self-attention: one grid step per batch element, fused QKV input,
# in-kernel head split, lane-dense (T, C) output (no transpose glue).
# ----------------------------------------------------------------------------

def _attention_kernel(qkv_ref, o_ref, *, n_head, scale):
    qkv = qkv_ref[0]                      # (T, 3C) bf16
    T = qkv.shape[0]
    C = qkv.shape[1] // 3
    Dh = C // n_head

    row = lax.broadcasted_iota(jnp.int32, (T, T), 0)
    col = lax.broadcasted_iota(jnp.int32, (T, T), 1)
    causal = col <= row

    outs = []
    for h in range(n_head):               # static unroll over heads
        q = qkv[:, h * Dh:(h + 1) * Dh]
        k = qkv[:, C + h * Dh:C + (h + 1) * Dh]
        v = qkv[:, 2 * C + h * Dh:2 * C + (h + 1) * Dh]
        # contract last dims directly (no explicit transpose), bf16 -> f32 acc
        s = lax.dot_general(q, k, (((1,), (1,)), ((), ())),
                            preferred_element_type=jnp.float32) * scale
        # large-negative fill (robust even for fully-masked rows)
        s = jnp.where(causal, s, -1e30)
        m = jnp.max(s, axis=-1, keepdims=True)
        p = jnp.exp(s - m)
        p = p * pl.reciprocal(jnp.sum(p, axis=-1, keepdims=True), approx=True)
        outs.append(jnp.dot(p.astype(v.dtype), v,
                            preferred_element_type=jnp.float32))
    # head-major -> token-major lane-dense (T, C) in one unmasked store
    o_ref[0] = jnp.concatenate(outs, axis=-1).astype(o_ref.dtype)


def causal_attention_from_qkv(qkv, *, n_head, out_dtype=jnp.bfloat16):
    """qkv: (B, T, 3C) bf16 -> attention output (B, T, C)."""
    B, T, C3 = qkv.shape
    C = C3 // 3
    Dh = C // n_head
    kern = functools.partial(_attention_kernel, n_head=n_head,
                             scale=1.0 / math.sqrt(Dh))
    return pl.pallas_call(
        kern,
        out_shape=jax.ShapeDtypeStruct((B, T, C), out_dtype),
        grid_spec=pltpu.PrefetchScalarGridSpec(
            num_scalar_prefetch=0,
            grid=(B,),
            in_specs=[pl.BlockSpec((1, T, C3), lambda b: (b, 0, 0))],
            out_specs=pl.BlockSpec((1, T, C), lambda b: (b, 0, 0)),
        ),
        compiler_params=pltpu.CompilerParams(
            dimension_semantics=("parallel",),
            vmem_limit_bytes=_VMEM_LIMIT),
    )(qkv)


# ----------------------------------------------------------------------------
# Per-row cross-entropy (logsumexp + one-hot gather)
# ----------------------------------------------------------------------------

def _cross_entropy_kernel(logits_ref, tgt_ref, loss_ref):
    l = logits_ref[...]                    # (tm, V) f32
    t = tgt_ref[...]                       # (tm, 1) int32
    m = jnp.max(l, axis=-1, keepdims=True)
    lse = m + jnp.log(jnp.sum(jnp.exp(l - m), axis=-1, keepdims=True))
    col = lax.broadcasted_iota(jnp.int32, l.shape, 1)
    tgt_logit = jnp.sum(jnp.where(col == t, l, 0.0), axis=-1, keepdims=True)
    loss_ref[...] = (lse - tgt_logit).astype(loss_ref.dtype)


def cross_entropy_per_row(logits, targets):
    """logits: (M, V) f32, targets: (M,) int32 -> per-row NLL (M, 1)."""
    M, V = logits.shape
    tm = _pick_tile(M, (256, 128, 64, 32, 16, 8))
    t2 = targets.reshape(M, 1).astype(jnp.int32)
    # TODO(synk): for realistic vocab (50k) fuse this with the lm_head matmul
    # (online logsumexp over N tiles) so (M, V) f32 logits never hit HBM.
    return pl.pallas_call(
        _cross_entropy_kernel,
        out_shape=jax.ShapeDtypeStruct((M, 1), jnp.float32),
        grid_spec=pltpu.PrefetchScalarGridSpec(
            num_scalar_prefetch=0,
            grid=(M // tm,),
            in_specs=[
                pl.BlockSpec((tm, V), lambda i: (i, 0)),
                pl.BlockSpec((tm, 1), lambda i: (i, 0)),
            ],
            out_specs=pl.BlockSpec((tm, 1), lambda i: (i, 0)),
        ),
        compiler_params=pltpu.CompilerParams(
            dimension_semantics=("parallel",),
            vmem_limit_bytes=_VMEM_LIMIT),
    )(logits, t2)


# ----------------------------------------------------------------------------
# GPT model (parameters + forward)
# ----------------------------------------------------------------------------

class GPTConfig:
    def __init__(self, block_size=64, vocab_size=512, n_layer=2, n_head=4,
                 n_embd=128):
        self.block_size = block_size
        self.vocab_size = vocab_size
        self.n_layer = n_layer
        self.n_head = n_head
        self.n_embd = n_embd


def init_params(config, key):
    """Deterministic init mirroring GPT._init_weights (std=0.02, scaled proj)."""
    C = config.n_embd
    V = config.vocab_size
    std = 0.02
    proj_std = 0.02 * (2 * config.n_layer) ** (-0.5)

    n_keys = 2 + config.n_layer * 4
    keys = iter(jax.random.split(key, n_keys))

    params = {
        "wte": jax.random.normal(next(keys), (V, C), jnp.float32) * std,
        "wpe": jax.random.normal(next(keys), (config.block_size, C),
                                 jnp.float32) * std,
        "ln_f_g": jnp.ones((C,), jnp.float32),
        "ln_f_b": jnp.zeros((C,), jnp.float32),
        "blocks": [],
    }
    for _ in range(config.n_layer):
        blk = {
            "ln1_g": jnp.ones((C,), jnp.float32),
            "ln1_b": jnp.zeros((C,), jnp.float32),
            # weights stored as (in, out) = torch weight transposed
            "attn_w": jax.random.normal(next(keys), (C, 3 * C), jnp.float32) * std,
            "attn_b": jnp.zeros((3 * C,), jnp.float32),
            "attn_proj_w": jax.random.normal(next(keys), (C, C),
                                             jnp.float32) * proj_std,
            "attn_proj_b": jnp.zeros((C,), jnp.float32),
            "ln2_g": jnp.ones((C,), jnp.float32),
            "ln2_b": jnp.zeros((C,), jnp.float32),
            "fc_w": jax.random.normal(next(keys), (C, 4 * C), jnp.float32) * std,
            "fc_b": jnp.zeros((4 * C,), jnp.float32),
            "mlp_proj_w": jax.random.normal(next(keys), (4 * C, C),
                                            jnp.float32) * proj_std,
            "mlp_proj_b": jnp.zeros((C,), jnp.float32),
        }
        params["blocks"].append(blk)
    return params


def prepare_params(params, config):
    """One-time prep: bf16 matmul weights, pre-transposed tied lm_head weight."""
    C = config.n_embd
    fp = {
        "wte": params["wte"],                                  # f32 (V, C), gather
        "wpe": params["wpe"],                                  # f32 (T, C)
        "lm_w": params["wte"].T.astype(jnp.bfloat16),          # bf16 (C, V), tied
        "ln_f_g": params["ln_f_g"].reshape(1, C),
        "ln_f_b": params["ln_f_b"].reshape(1, C),
        "blocks": [],
    }
    for blk in params["blocks"]:
        fp["blocks"].append({
            "ln1_g": blk["ln1_g"].reshape(1, C),
            "ln1_b": blk["ln1_b"].reshape(1, C),
            "attn_w": blk["attn_w"].astype(jnp.bfloat16),
            "attn_b": blk["attn_b"],
            "attn_proj_w": blk["attn_proj_w"].astype(jnp.bfloat16),
            "attn_proj_b": blk["attn_proj_b"],
            "ln2_g": blk["ln2_g"].reshape(1, C),
            "ln2_b": blk["ln2_b"].reshape(1, C),
            "fc_w": blk["fc_w"].astype(jnp.bfloat16),
            "fc_b": blk["fc_b"],
            "mlp_proj_w": blk["mlp_proj_w"].astype(jnp.bfloat16),
            "mlp_proj_b": blk["mlp_proj_b"],
        })
    return fp


def gpt_forward(fp, config, idx, targets=None):
    """idx: (B, T) int32 token ids. Returns (logits (B,T,V), loss or None)."""
    B, T = idx.shape
    assert T <= config.block_size
    C = config.n_embd
    H = config.n_head
    V = config.vocab_size
    M = B * T

    # Embeddings (gathers stay in plain JAX glue).
    pos = jnp.arange(T, dtype=jnp.int32)
    x = (fp["wte"][idx] + fp["wpe"][pos][None, :, :]).astype(jnp.float32)
    x = x.reshape(M, C)                    # f32 residual stream

    for blk in fp["blocks"]:
        # --- attention sub-block: LN fused into qkv linear, residual fused into proj ---
        qkv = fused_linear(x, blk["attn_w"], blk["attn_b"],
                           gamma=blk["ln1_g"], beta=blk["ln1_b"],
                           out_dtype=jnp.bfloat16)             # (M, 3C) bf16
        y = causal_attention_from_qkv(qkv.reshape(B, T, 3 * C),
                                      n_head=H)                # (B, T, C) bf16
        x = fused_linear(y.reshape(M, C), blk["attn_proj_w"], blk["attn_proj_b"],
                         residual=x, out_dtype=jnp.float32)    # (M, C) f32

        # --- MLP sub-block: LN + GELU fused into fc, residual fused into proj ---
        h = fused_linear(x, blk["fc_w"], blk["fc_b"],
                         gamma=blk["ln2_g"], beta=blk["ln2_b"],
                         activation="gelu_tanh",
                         out_dtype=jnp.bfloat16)               # (M, 4C) bf16
        x = fused_linear(h, blk["mlp_proj_w"], blk["mlp_proj_b"],
                         residual=x, out_dtype=jnp.float32)    # (M, C) f32

    # Final LN fused into the (bias-free, weight-tied) lm_head matmul.
    logits = fused_linear(x, fp["lm_w"], None,
                          gamma=fp["ln_f_g"], beta=fp["ln_f_b"],
                          out_dtype=jnp.float32)               # (M, V) f32

    loss = None
    if targets is not None:
        t = targets.reshape(-1).astype(jnp.int32)
        per_row = cross_entropy_per_row(logits, t)[:, 0]       # (M,)
        valid = (t >= 0).astype(jnp.float32)                   # ignore_index handling
        loss = jnp.sum(per_row * valid) / jnp.maximum(jnp.sum(valid), 1.0)

    return logits.reshape(B, T, V), loss


# ----------------------------------------------------------------------------
# Main
# ----------------------------------------------------------------------------

if __name__ == "__main__":
    config = GPTConfig(block_size=64, vocab_size=512, n_layer=2, n_head=4,
                       n_embd=128)
    B, T = 2, 64

    key = jax.random.PRNGKey(0)
    k_params, k_idx, k_tgt = jax.random.split(key, 3)
    params = init_params(config, k_params)
    fparams = prepare_params(params, config)

    idx = jax.random.randint(k_idx, (B, T), 0, config.vocab_size, dtype=jnp.int32)
    targets = jax.random.randint(k_tgt, (B, T), 0, config.vocab_size,
                                 dtype=jnp.int32)

    fwd = jax.jit(functools.partial(gpt_forward, fparams, config))
    logits, loss = fwd(idx, targets)
    jax.block_until_ready((logits, loss))

    assert logits.shape == (B, T, config.vocab_size)
    assert bool(jnp.isfinite(loss))
    print("KERNEL_OK")
</pallas_src>

<mosaic_0001>
module attributes {stable_mosaic.version = 11 : i64} {
  func.func @_fused_linear_kernel(%arg0: i32, %arg1: i32, %arg2: memref<128x128xf32, #tpu.memory_space<vmem>>, %arg3: memref<1x128xf32, #tpu.memory_space<vmem>>, %arg4: memref<1x128xf32, #tpu.memory_space<vmem>>, %arg5: memref<128x128xbf16, #tpu.memory_space<vmem>>, %arg6: memref<1x128xf32, #tpu.memory_space<vmem>>, %arg7: memref<128x128xbf16, #tpu.memory_space<vmem>>) attributes {dimension_semantics = [#tpu.dimension_semantics<parallel>, #tpu.dimension_semantics<parallel>], iteration_bounds = array<i64: 1, 3>, scalar_prefetch = 0 : i64, scratch_operands = 0 : i64, tpu.core_type = #tpu.core_type<tc>, window_params = [{transform_indices = @transform_0, window_bounds = array<i64: 128, 128>}, {pipeline_mode = #tpu.pipeline_mode<synchronous>, transform_indices = @transform_1, window_bounds = array<i64: 1, 128>}, {pipeline_mode = #tpu.pipeline_mode<synchronous>, transform_indices = @transform_2, window_bounds = array<i64: 1, 128>}, {transform_indices = @transform_3, window_bounds = array<i64: 128, 128>}, {transform_indices = @transform_4, window_bounds = array<i64: 1, 128>}, {transform_indices = @transform_5, window_bounds = array<i64: 128, 128>}]} {
    %c0 = arith.constant 0 : index
    %c0_0 = arith.constant 0 : index
    %0 = vector.load %arg2[%c0, %c0_0] : memref<128x128xf32, #tpu.memory_space<vmem>>, vector<128x128xf32>
    %cst = arith.constant dense<0.000000e+00> : vector<128xf32>
    %1 = vector.multi_reduction <add>, %0, %cst [1] : vector<128x128xf32> to vector<128xf32>
    %2 = vector.shape_cast %1 : vector<128xf32> to vector<128x1xf32>
    %cst_1 = arith.constant 1.280000e+02 : f32
    %3 = vector.broadcast %cst_1 : f32 to vector<128x1xf32>
    %4 = arith.divf %2, %3 : vector<128x1xf32>
    %5 = vector.broadcast %4 : vector<128x1xf32> to vector<128x128xf32>
    %6 = arith.subf %0, %5 : vector<128x128xf32>
    %7 = vector.broadcast %4 : vector<128x1xf32> to vector<128x128xf32>
    %8 = arith.subf %0, %7 : vector<128x128xf32>
    %9 = arith.mulf %6, %8 : vector<128x128xf32>
    %cst_2 = arith.constant dense<0.000000e+00> : vector<128xf32>
    %10 = vector.multi_reduction <add>, %9, %cst_2 [1] : vector<128x128xf32> to vector<128xf32>
    %11 = vector.shape_cast %10 : vector<128xf32> to vector<128x1xf32>
    %cst_3 = arith.constant 1.280000e+02 : f32
    %12 = vector.broadcast %cst_3 : f32 to vector<128x1xf32>
    %13 = arith.divf %11, %12 : vector<128x1xf32>
    %14 = vector.broadcast %4 : vector<128x1xf32> to vector<128x128xf32>
    %15 = arith.subf %0, %14 : vector<128x128xf32>
    %cst_4 = arith.constant 9.99999974E-6 : f32
    %16 = vector.broadcast %cst_4 : f32 to vector<128x1xf32>
    %17 = arith.addf %13, %16 : vector<128x1xf32>
    %18 = math.rsqrt %17 : vector<128x1xf32>
    %19 = vector.broadcast %18 : vector<128x1xf32> to vector<128x128xf32>
    %20 = arith.mulf %15, %19 : vector<128x128xf32>
    %c0_5 = arith.constant 0 : index
    %c0_6 = arith.constant 0 : index
    %21 = vector.load %arg3[%c0_5, %c0_6] : memref<1x128xf32, #tpu.memory_space<vmem>>, vector<1x128xf32>
    %22 = vector.broadcast %21 : vector<1x128xf32> to vector<128x128xf32>
    %23 = arith.mulf %20, %22 : vector<128x128xf32>
    %c0_7 = arith.constant 0 : index
    %c0_8 = arith.constant 0 : index
    %24 = vector.load %arg4[%c0_7, %c0_8] : memref<1x128xf32, #tpu.memory_space<vmem>>, vector<1x128xf32>
    %25 = vector.broadcast %24 : vector<1x128xf32> to vector<128x128xf32>
    %26 = arith.addf %23, %25 : vector<128x128xf32>
    %27 = arith.truncf %26 : vector<128x128xf32> to vector<128x128xbf16>
    %c0_9 = arith.constant 0 : index
    %c0_10 = arith.constant 0 : index
    %28 = vector.load %arg5[%c0_9, %c0_10] : memref<128x128xbf16, #tpu.memory_space<vmem>>, vector<128x128xbf16>
    %cst_11 = arith.constant dense<0.000000e+00> : vector<128x128xf32>
    %29 = tpu.matmul %27, %28, %cst_11 {dimension_numbers = #tpu.dot_dimension_numbers<[1], [0], [0], [1], [0, 0, 1, 1], [], []>} : vector<128x128xbf16>, vector<128x128xbf16>, vector<128x128xf32> -> vector<128x128xf32>
    %c0_12 = arith.constant 0 : index
    %c0_13 = arith.constant 0 : index
    %30 = vector.load %arg6[%c0_12, %c0_13] : memref<1x128xf32, #tpu.memory_space<vmem>>, vector<1x128xf32>
    %31 = vector.broadcast %30 : vector<1x128xf32> to vector<128x128xf32>
    %32 = arith.addf %29, %31 : vector<128x128xf32>
    %33 = arith.truncf %32 : vector<128x128xf32> to vector<128x128xbf16>
    %c0_14 = arith.constant 0 : index
    %c0_15 = arith.constant 0 : index
    %34 = vector.load %arg7[%c0_14, %c0_15] : memref<128x128xbf16, #tpu.memory_space<vmem>>, vector<128x128xbf16>
    tpu.vector_store %arg7[%c0_14, %c0_15], %33 {strides = array<i32>} : memref<128x128xbf16, #tpu.memory_space<vmem>>, vector<128x128xbf16>,
    return
  }
  func.func @transform_0(%arg0: i32, %arg1: i32) -> (i32, i32) {
    %c0_i32 = arith.constant 0 : i32
    %c0_i32_0 = arith.constant 0 : i32
    return %arg0, %c0_i32 : i32, i32
  }
  func.func @transform_1(%arg0: i32, %arg1: i32) -> (i32, i32) {
    %c0_i32 = arith.constant 0 : i32
    %c0_i32_0 = arith.constant 0 : i32
    %c0_i32_1 = arith.constant 0 : i32
    return %c0_i32, %c0_i32_0 : i32, i32
  }
  func.func @transform_2(%arg0: i32, %arg1: i32) -> (i32, i32) {
    %c0_i32 = arith.constant 0 : i32
    %c0_i32_0 = arith.constant 0 : i32
    %c0_i32_1 = arith.constant 0 : i32
    return %c0_i32, %c0_i32_0 : i32, i32
  }
  func.func @transform_3(%arg0: i32, %arg1: i32) -> (i32, i32) {
    %c0_i32 = arith.constant 0 : i32
    %c0_i32_0 = arith.constant 0 : i32
    return %c0_i32, %arg1 : i32, i32
  }
  func.func @transform_4(%arg0: i32, %arg1: i32) -> (i32, i32) {
    %c0_i32 = arith.constant 0 : i32
    %c0_i32_0 = arith.constant 0 : i32
    return %c0_i32, %arg1 : i32, i32
  }
  func.func @transform_5(%arg0: i32, %arg1: i32) -> (i32, i32) {
    %c0_i32 = arith.constant 0 : i32
    return %arg0, %arg1 : i32, i32
  }
}

module attributes {stable_mosaic.version = 11 : i64} {
  func.func @_attention_kernel(%arg0: i32, %arg1: memref<1x64x384xbf16, #tpu.memory_space<vmem>>, %arg2: memref<1x64x128xbf16, #tpu.memory_space<vmem>>) attributes {dimension_semantics = [#tpu.dimension_semantics<parallel>], iteration_bounds = array<i64: 2>, scalar_prefetch = 0 : i64, scratch_operands = 0 : i64, tpu.core_type = #tpu.core_type<tc>, window_params = [{transform_indices = @transform_0, window_bounds = array<i64: 1, 64, 384>}, {transform_indices = @transform_1, window_bounds = array<i64: 1, 64, 128>}]} {
    %c0 = arith.constant 0 : index
    %c0_0 = arith.constant 0 : index
    %c0_1 = arith.constant 0 : index
    %0 = vector.load %arg1[%c0, %c0_0, %c0_1] : memref<1x64x384xbf16, #tpu.memory_space<vmem>>, vector<1x64x384xbf16>
    %1 = vector.shape_cast %0 : vector<1x64x384xbf16> to vector<64x384xbf16>
    %2 = tpu.iota {dimensions = array<i32: 0>} : vector<64x64xi32>
    %3 = tpu.iota {dimensions = array<i32: 1>} : vector<64x64xi32>
    %4 = arith.cmpi sle, %3, %2 : vector<64x64xi32>
    %5 = vector.extract_strided_slice %1 {offsets = [0, 0], sizes = [64, 32], strides = [1, 1]} : vector<64x384xbf16> to vector<64x32xbf16>
    %6 = vector.extract_strided_slice %1 {offsets = [0, 128], sizes = [64, 32], strides = [1, 1]} : vector<64x384xbf16> to vector<64x32xbf16>
    %7 = vector.extract_strided_slice %1 {offsets = [0, 256], sizes = [64, 32], strides = [1, 1]} : vector<64x384xbf16> to vector<64x32xbf16>
    %cst = arith.constant dense<0.000000e+00> : vector<64x64xf32>
    %8 = tpu.matmul %5, %6, %cst {dimension_numbers = #tpu.dot_dimension_numbers<[1], [1], [0], [0], [0, 0, 1, 0], [], []>} : vector<64x32xbf16>, vector<64x32xbf16>, vector<64x64xf32> -> vector<64x64xf32>
    %cst_2 = arith.constant 0.176776692 : f32
    %9 = vector.broadcast %cst_2 : f32 to vector<64x64xf32>
    %10 = arith.mulf %8, %9 : vector<64x64xf32>
    %cst_3 = arith.constant -1.000000e+30 : f32
    %11 = vector.broadcast %cst_3 : f32 to vector<64x64xf32>
    %12 = arith.select %4, %10, %11 : vector<64x64xi1>, vector<64x64xf32>
    %cst_4 = arith.constant dense<0xFF800000> : vector<64xf32>
    %13 = vector.multi_reduction <maximumf>, %12, %cst_4 [1] : vector<64x64xf32> to vector<64xf32>
    %14 = vector.shape_cast %13 : vector<64xf32> to vector<64x1xf32>
    %15 = vector.broadcast %14 : vector<64x1xf32> to vector<64x64xf32>
    %16 = arith.subf %12, %15 : vector<64x64xf32>
    %17 = math.exp %16 : vector<64x64xf32>
    %cst_5 = arith.constant dense<0.000000e+00> : vector<64xf32>
    %18 = vector.multi_reduction <add>, %17, %cst_5 [1] : vector<64x64xf32> to vector<64xf32>
    %19 = vector.shape_cast %18 : vector<64xf32> to vector<64x1xf32>
    %20 = tpu.reciprocal %19 {approx = true} : vector<64x1xf32> -> vector<64x1xf32>
    %21 = vector.broadcast %20 : vector<64x1xf32> to vector<64x64xf32>
    %22 = arith.mulf %17, %21 : vector<64x64xf32>
    %23 = arith.truncf %22 : vector<64x64xf32> to vector<64x64xbf16>
    %cst_6 = arith.constant dense<0.000000e+00> : vector<64x32xf32>
    %24 = tpu.matmul %23, %7, %cst_6 {dimension_numbers = #tpu.dot_dimension_numbers<[1], [0], [0], [1], [0, 0, 1, 1], [], []>} : vector<64x64xbf16>, vector<64x32xbf16>, vector<64x32xf32> -> vector<64x32xf32>
    %25 = vector.extract_strided_slice %1 {offsets = [0, 32], sizes = [64, 32], strides = [1, 1]} : vector<64x384xbf16> to vector<64x32xbf16>
    %26 = vector.extract_strided_slice %1 {offsets = [0, 160], sizes = [64, 32], strides = [1, 1]} : vector<64x384xbf16> to vector<64x32xbf16>
    %27 = vector.extract_strided_slice %1 {offsets = [0, 288], sizes = [64, 32], strides = [1, 1]} : vector<64x384xbf16> to vector<64x32xbf16>
    %cst_7 = arith.constant dense<0.000000e+00> : vector<64x64xf32>
    %28 = tpu.matmul %25, %26, %cst_7 {dimension_numbers = #tpu.dot_dimension_numbers<[1], [1], [0], [0], [0, 0, 1, 0], [], []>} : vector<64x32xbf16>, vector<64x32xbf16>, vector<64x64xf32> -> vector<64x64xf32>
    %cst_8 = arith.constant 0.176776692 : f32
    %29 = vector.broadcast %cst_8 : f32 to vector<64x64xf32>
    %30 = arith.mulf %28, %29 : vector<64x64xf32>
    %cst_9 = arith.constant -1.000000e+30 : f32
    %31 = vector.broadcast %cst_9 : f32 to vector<64x64xf32>
    %32 = arith.select %4, %30, %31 : vector<64x64xi1>, vector<64x64xf32>
    %cst_10 = arith.constant dense<0xFF800000> : vector<64xf32>
    %33 = vector.multi_reduction <maximumf>, %32, %cst_10 [1] : vector<64x64xf32> to vector<64xf32>
    %34 = vector.shape_cast %33 : vector<64xf32> to vector<64x1xf32>
    %35 = vector.broadcast %34 : vector<64x1xf32> to vector<64x64xf32>
    %36 = arith.subf %32, %35 : vector<64x64xf32>
    %37 = math.exp %36 : vector<64x64xf32>
    %cst_11 = arith.constant dense<0.000000e+00> : vector<64xf32>
    %38 = vector.multi_reduction <add>, %37, %cst_11 [1] : vector<64x64xf32> to vector<64xf32>
    %39 = vector.shape_cast %38 : vector<64xf32> to vector<64x1xf32>
    %40 = tpu.reciprocal %39 {approx = true} : vector<64x1xf32> -> vector<64x1xf32>
    %41 = vector.broadcast %40 : vector<64x1xf32> to vector<64x64xf32>
    %42 = arith.mulf %37, %41 : vector<64x64xf32>
    %43 = arith.truncf %42 : vector<64x64xf32> to vector<64x64xbf16>
    %cst_12 = arith.constant dense<0.000000e+00> : vector<64x32xf32>
    %44 = tpu.matmul %43, %27, %cst_12 {dimension_numbers = #tpu.dot_dimension_numbers<[1], [0], [0], [1], [0, 0, 1, 1], [], []>} : vector<64x64xbf16>, vector<64x32xbf16>, vector<64x32xf32> -> vector<64x32xf32>
    %45 = vector.extract_strided_slice %1 {offsets = [0, 64], sizes = [64, 32], strides = [1, 1]} : vector<64x384xbf16> to vector<64x32xbf16>
    %46 = vector.extract_strided_slice %1 {offsets = [0, 192], sizes = [64, 32], strides = [1, 1]} : vector<64x384xbf16> to vector<64x32xbf16>
    %47 = vector.extract_strided_slice %1 {offsets = [0, 320], sizes = [64, 32], strides = [1, 1]} : vector<64x384xbf16> to vector<64x32xbf16>
    %cst_13 = arith.constant dense<0.000000e+00> : vector<64x64xf32>
    %48 = tpu.matmul %45, %46, %cst_13 {dimension_numbers = #tpu.dot_dimension_numbers<[1], [1], [0], [0], [0, 0, 1, 0], [], []>} : vector<64x32xbf16>, vector<64x32xbf16>, vector<64x64xf32> -> vector<64x64xf32>
    %cst_14 = arith.constant 0.176776692 : f32
    %49 = vector.broadcast %cst_14 : f32 to vector<64x64xf32>
    %50 = arith.mulf %48, %49 : vector<64x64xf32>
    %cst_15 = arith.constant -1.000000e+30 : f32
    %51 = vector.broadcast %cst_15 : f32 to vector<64x64xf32>
    %52 = arith.select %4, %50, %51 : vector<64x64xi1>, vector<64x64xf32>
    %cst_16 = arith.constant dense<0xFF800000> : vector<64xf32>
    %53 = vector.multi_reduction <maximumf>, %52, %cst_16 [1] : vector<64x64xf32> to vector<64xf32>
    %54 = vector.shape_cast %53 : vector<64xf32> to vector<64x1xf32>
    %55 = vector.broadcast %54 : vector<64x1xf32> to vector<64x64xf32>
    %56 = arith.subf %52, %55 : vector<64x64xf32>
    %57 = math.exp %56 : vector<64x64xf32>
    %cst_17 = arith.constant dense<0.000000e+00> : vector<64xf32>
    %58 = vector.multi_reduction <add>, %57, %cst_17 [1] : vector<64x64xf32> to vector<64xf32>
    %59 = vector.shape_cast %58 : vector<64xf32> to vector<64x1xf32>
    %60 = tpu.reciprocal %59 {approx = true} : vector<64x1xf32> -> vector<64x1xf32>
    %61 = vector.broadcast %60 : vector<64x1xf32> to vector<64x64xf32>
    %62 = arith.mulf %57, %61 : vector<64x64xf32>
    %63 = arith.truncf %62 : vector<64x64xf32> to vector<64x64xbf16>
    %cst_18 = arith.constant dense<0.000000e+00> : vector<64x32xf32>
    %64 = tpu.matmul %63, %47, %cst_18 {dimension_numbers = #tpu.dot_dimension_numbers<[1], [0], [0], [1], [0, 0, 1, 1], [], []>} : vector<64x64xbf16>, vector<64x32xbf16>, vector<64x32xf32> -> vector<64x32xf32>
    %65 = vector.extract_strided_slice %1 {offsets = [0, 96], sizes = [64, 32], strides = [1, 1]} : vector<64x384xbf16> to vector<64x32xbf16>
    %66 = vector.extract_strided_slice %1 {offsets = [0, 224], sizes = [64, 32], strides = [1, 1]} : vector<64x384xbf16> to vector<64x32xbf16>
    %67 = vector.extract_strided_slice %1 {offsets = [0, 352], sizes = [64, 32], strides = [1, 1]} : vector<64x384xbf16> to vector<64x32xbf16>
    %cst_19 = arith.constant dense<0.000000e+00> : vector<64x64xf32>
    %68 = tpu.matmul %65, %66, %cst_19 {dimension_numbers = #tpu.dot_dimension_numbers<[1], [1], [0], [0], [0, 0, 1, 0], [], []>} : vector<64x32xbf16>, vector<64x32xbf16>, vector<64x64xf32> -> vector<64x64xf32>
    %cst_20 = arith.constant 0.176776692 : f32
    %69 = vector.broadcast %cst_20 : f32 to vector<64x64xf32>
    %70 = arith.mulf %68, %69 : vector<64x64xf32>
    %cst_21 = arith.constant -1.000000e+30 : f32
    %71 = vector.broadcast %cst_21 : f32 to vector<64x64xf32>
    %72 = arith.select %4, %70, %71 : vector<64x64xi1>, vector<64x64xf32>
    %cst_22 = arith.constant dense<0xFF800000> : vector<64xf32>
    %73 = vector.multi_reduction <maximumf>, %72, %cst_22 [1] : vector<64x64xf32> to vector<64xf32>
    %74 = vector.shape_cast %73 : vector<64xf32> to vector<64x1xf32>
    %75 = vector.broadcast %74 : vector<64x1xf32> to vector<64x64xf32>
    %76 = arith.subf %72, %75 : vector<64x64xf32>
    %77 = math.exp %76 : vector<64x64xf32>
    %cst_23 = arith.constant dense<0.000000e+00> : vector<64xf32>
    %78 = vector.multi_reduction <add>, %77, %cst_23 [1] : vector<64x64xf32> to vector<64xf32>
    %79 = vector.shape_cast %78 : vector<64xf32> to vector<64x1xf32>
    %80 = tpu.reciprocal %79 {approx = true} : vector<64x1xf32> -> vector<64x1xf32>
    %81 = vector.broadcast %80 : vector<64x1xf32> to vector<64x64xf32>
    %82 = arith.mulf %77, %81 : vector<64x64xf32>
    %83 = arith.truncf %82 : vector<64x64xf32> to vector<64x64xbf16>
    %cst_24 = arith.constant dense<0.000000e+00> : vector<64x32xf32>
    %84 = tpu.matmul %83, %67, %cst_24 {dimension_numbers = #tpu.dot_dimension_numbers<[1], [0], [0], [1], [0, 0, 1, 1], [], []>} : vector<64x64xbf16>, vector<64x32xbf16>, vector<64x32xf32> -> vector<64x32xf32>
    %85 = tpu.concatenate %24, %44, %64, %84 in 1 : vector<64x32xf32>, vector<64x32xf32>, vector<64x32xf32>, vector<64x32xf32> -> vector<64x128xf32>
    %86 = arith.truncf %85 : vector<64x128xf32> to vector<64x128xbf16>
    %c0_25 = arith.constant 0 : index
    %c0_26 = arith.constant 0 : index
    %c0_27 = arith.constant 0 : index
    %87 = vector.load %arg2[%c0_25, %c0_26, %c0_27] : memref<1x64x128xbf16, #tpu.memory_space<vmem>>, vector<1x64x128xbf16>
    %88 = vector.shape_cast %87 : vector<1x64x128xbf16> to vector<64x128xbf16>
    %89 = vector.shape_cast %86 : vector<64x128xbf16> to vector<1x64x128xbf16>
    tpu.vector_store %arg2[%c0_25, %c0_26, %c0_27], %89 {strides = array<i32>} : memref<1x64x128xbf16, #tpu.memory_space<vmem>>, vector<1x64x128xbf16>,
    return
  }
  func.func @transform_0(%arg0: i32) -> (i32, i32, i32) {
    %c0_i32 = arith.constant 0 : i32
    %c0_i32_0 = arith.constant 0 : i32
    %c0_i32_1 = arith.constant 0 : i32
    return %arg0, %c0_i32, %c0_i32_0 : i32, i32, i32
  }
  func.func @transform_1(%arg0: i32) -> (i32, i32, i32) {
    %c0_i32 = arith.constant 0 : i32
    %c0_i32_0 = arith.constant 0 : i32
    %c0_i32_1 = arith.constant 0 : i32
    return %arg0, %c0_i32, %c0_i32_0 : i32, i32, i32
  }
}

module attributes {stable_mosaic.version = 11 : i64} {
  func.func @_fused_linear_kernel(%arg0: i32, %arg1: i32, %arg2: memref<128x128xbf16, #tpu.memory_space<vmem>>, %arg3: memref<128x128xbf16, #tpu.memory_space<vmem>>, %arg4: memref<1x128xf32, #tpu.memory_space<vmem>>, %arg5: memref<128x128xf32, #tpu.memory_space<vmem>>, %arg6: memref<128x128xf32, #tpu.memory_space<vmem>>) attributes {dimension_semantics = [#tpu.dimension_semantics<parallel>, #tpu.dimension_semantics<parallel>], iteration_bounds = array<i64: 1, 1>, scalar_prefetch = 0 : i64, scratch_operands = 0 : i64, tpu.core_type = #tpu.core_type<tc>, window_params = [{transform_indices = @transform_0, window_bounds = array<i64: 128, 128>}, {transform_indices = @transform_1, window_bounds = array<i64: 128, 128>}, {transform_indices = @transform_2, window_bounds = array<i64: 1, 128>}, {transform_indices = @transform_3, window_bounds = array<i64: 128, 128>}, {transform_indices = @transform_4, window_bounds = array<i64: 128, 128>}]} {
    %c0 = arith.constant 0 : index
    %c0_0 = arith.constant 0 : index
    %0 = vector.load %arg2[%c0, %c0_0] : memref<128x128xbf16, #tpu.memory_space<vmem>>, vector<128x128xbf16>
    %c0_1 = arith.constant 0 : index
    %c0_2 = arith.constant 0 : index
    %1 = vector.load %arg3[%c0_1, %c0_2] : memref<128x128xbf16, #tpu.memory_space<vmem>>, vector<128x128xbf16>
    %cst = arith.constant dense<0.000000e+00> : vector<128x128xf32>
    %2 = tpu.matmul %0, %1, %cst {dimension_numbers = #tpu.dot_dimension_numbers<[1], [0], [0], [1], [0, 0, 1, 1], [], []>} : vector<128x128xbf16>, vector<128x128xbf16>, vector<128x128xf32> -> vector<128x128xf32>
    %c0_3 = arith.constant 0 : index
    %c0_4 = arith.constant 0 : index
    %3 = vector.load %arg4[%c0_3, %c0_4] : memref<1x128xf32, #tpu.memory_space<vmem>>, vector<1x128xf32>
    %4 = vector.broadcast %3 : vector<1x128xf32> to vector<128x128xf32>
    %5 = arith.addf %2, %4 : vector<128x128xf32>
    %c0_5 = arith.constant 0 : index
    %c0_6 = arith.constant 0 : index
    %6 = vector.load %arg5[%c0_5, %c0_6] : memref<128x128xf32, #tpu.memory_space<vmem>>, vector<128x128xf32>
    %7 = arith.addf %5, %6 : vector<128x128xf32>
    %c0_7 = arith.constant 0 : index
    %c0_8 = arith.constant 0 : index
    %8 = vector.load %arg6[%c0_7, %c0_8] : memref<128x128xf32, #tpu.memory_space<vmem>>, vector<128x128xf32>
    tpu.vector_store %arg6[%c0_7, %c0_8], %7 {strides = array<i32>} : memref<128x128xf32, #tpu.memory_space<vmem>>, vector<128x128xf32>,
    return
  }
  func.func @transform_0(%arg0: i32, %arg1: i32) -> (i32, i32) {
    %c0_i32 = arith.constant 0 : i32
    %c0_i32_0 = arith.constant 0 : i32
    return %arg0, %c0_i32 : i32, i32
  }
  func.func @transform_1(%arg0: i32, %arg1: i32) -> (i32, i32) {
    %c0_i32 = arith.constant 0 : i32
    %c0_i32_0 = arith.constant 0 : i32
    return %c0_i32, %arg1 : i32, i32
  }
  func.func @transform_2(%arg0: i32, %arg1: i32) -> (i32, i32) {
    %c0_i32 = arith.constant 0 : i32
    %c0_i32_0 = arith.constant 0 : i32
    return %c0_i32, %arg1 : i32, i32
  }
  func.func @transform_3(%arg0: i32, %arg1: i32) -> (i32, i32) {
    %c0_i32 = arith.constant 0 : i32
    return %arg0, %arg1 : i32, i32
  }
  func.func @transform_4(%arg0: i32, %arg1: i32) -> (i32, i32) {
    %c0_i32 = arith.constant 0 : i32
    return %arg0, %arg1 : i32, i32
  }
}

module attributes {stable_mosaic.version = 11 : i64} {
  func.func @_fused_linear_kernel(%arg0: i32, %arg1: i32, %arg2: memref<128x128xf32, #tpu.memory_space<vmem>>, %arg3: memref<1x128xf32, #tpu.memory_space<vmem>>, %arg4: memref<1x128xf32, #tpu.memory_space<vmem>>, %arg5: memref<128x256xbf16, #tpu.memory_space<vmem>>, %arg6: memref<1x256xf32, #tpu.memory_space<vmem>>, %arg7: memref<128x256xbf16, #tpu.memory_space<vmem>>) attributes {dimension_semantics = [#tpu.dimension_semantics<parallel>, #tpu.dimension_semantics<parallel>], iteration_bounds = array<i64: 1, 2>, scalar_prefetch = 0 : i64, scratch_operands = 0 : i64, tpu.core_type = #tpu.core_type<tc>, window_params = [{transform_indices = @transform_0, window_bounds = array<i64: 128, 128>}, {pipeline_mode = #tpu.pipeline_mode<synchronous>, transform_indices = @transform_1, window_bounds = array<i64: 1, 128>}, {pipeline_mode = #tpu.pipeline_mode<synchronous>, transform_indices = @transform_2, window_bounds = array<i64: 1, 128>}, {transform_indices = @transform_3, window_bounds = array<i64: 128, 256>}, {transform_indices = @transform_4, window_bounds = array<i64: 1, 256>}, {transform_indices = @transform_5, window_bounds = array<i64: 128, 256>}]} {
    %c0 = arith.constant 0 : index
    %c0_0 = arith.constant 0 : index
    %0 = vector.load %arg2[%c0, %c0_0] : memref<128x128xf32, #tpu.memory_space<vmem>>, vector<128x128xf32>
    %cst = arith.constant dense<0.000000e+00> : vector<128xf32>
    %1 = vector.multi_reduction <add>, %0, %cst [1] : vector<128x128xf32> to vector<128xf32>
    %2 = vector.shape_cast %1 : vector<128xf32> to vector<128x1xf32>
    %cst_1 = arith.constant 1.280000e+02 : f32
    %3 = vector.broadcast %cst_1 : f32 to vector<128x1xf32>
    %4 = arith.divf %2, %3 : vector<128x1xf32>
    %5 = vector.broadcast %4 : vector<128x1xf32> to vector<128x128xf32>
    %6 = arith.subf %0, %5 : vector<128x128xf32>
    %7 = vector.broadcast %4 : vector<128x1xf32> to vector<128x128xf32>
    %8 = arith.subf %0, %7 : vector<128x128xf32>
    %9 = arith.mulf %6, %8 : vector<128x128xf32>
    %cst_2 = arith.constant dense<0.000000e+00> : vector<128xf32>
    %10 = vector.multi_reduction <add>, %9, %cst_2 [1] : vector<128x128xf32> to vector<128xf32>
    %11 = vector.shape_cast %10 : vector<128xf32> to vector<128x1xf32>
    %cst_3 = arith.constant 1.280000e+02 : f32
    %12 = vector.broadcast %cst_3 : f32 to vector<128x1xf32>
    %13 = arith.divf %11, %12 : vector<128x1xf32>
    %14 = vector.broadcast %4 : vector<128x1xf32> to vector<128x128xf32>
    %15 = arith.subf %0, %14 : vector<128x128xf32>
    %cst_4 = arith.constant 9.99999974E-6 : f32
    %16 = vector.broadcast %cst_4 : f32 to vector<128x1xf32>
    %17 = arith.addf %13, %16 : vector<128x1xf32>
    %18 = math.rsqrt %17 : vector<128x1xf32>
    %19 = vector.broadcast %18 : vector<128x1xf32> to vector<128x128xf32>
    %20 = arith.mulf %15, %19 : vector<128x128xf32>
    %c0_5 = arith.constant 0 : index
    %c0_6 = arith.constant 0 : index
    %21 = vector.load %arg3[%c0_5, %c0_6] : memref<1x128xf32, #tpu.memory_space<vmem>>, vector<1x128xf32>
    %22 = vector.broadcast %21 : vector<1x128xf32> to vector<128x128xf32>
    %23 = arith.mulf %20, %22 : vector<128x128xf32>
    %c0_7 = arith.constant 0 : index
    %c0_8 = arith.constant 0 : index
    %24 = vector.load %arg4[%c0_7, %c0_8] : memref<1x128xf32, #tpu.memory_space<vmem>>, vector<1x128xf32>
    %25 = vector.broadcast %24 : vector<1x128xf32> to vector<128x128xf32>
    %26 = arith.addf %23, %25 : vector<128x128xf32>
    %27 = arith.truncf %26 : vector<128x128xf32> to vector<128x128xbf16>
    %c0_9 = arith.constant 0 : index
    %c0_10 = arith.constant 0 : index
    %28 = vector.load %arg5[%c0_9, %c0_10] : memref<128x256xbf16, #tpu.memory_space<vmem>>, vector<128x256xbf16>
    %cst_11 = arith.constant dense<0.000000e+00> : vector<128x256xf32>
    %29 = tpu.matmul %27, %28, %cst_11 {dimension_numbers = #tpu.dot_dimension_numbers<[1], [0], [0], [1], [0, 0, 1, 1], [], []>} : vector<128x128xbf16>, vector<128x256xbf16>, vector<128x256xf32> -> vector<128x256xf32>
    %c0_12 = arith.constant 0 : index
    %c0_13 = arith.constant 0 : index
    %30 = vector.load %arg6[%c0_12, %c0_13] : memref<1x256xf32, #tpu.memory_space<vmem>>, vector<1x256xf32>
    %31 = vector.broadcast %30 : vector<1x256xf32> to vector<128x256xf32>
    %32 = arith.addf %29, %31 : vector<128x256xf32>
    %cst_14 = arith.constant 5.000000e-01 : f32
    %33 = vector.broadcast %cst_14 : f32 to vector<128x256xf32>
    %34 = arith.mulf %33, %32 : vector<128x256xf32>
    %cst_15 = arith.constant 4.471500e-02 : f32
    %35 = vector.broadcast %cst_15 : f32 to vector<128x256xf32>
    %36 = arith.mulf %35, %32 : vector<128x256xf32>
    %37 = arith.mulf %36, %32 : vector<128x256xf32>
    %38 = arith.mulf %37, %32 : vector<128x256xf32>
    %39 = arith.addf %32, %38 : vector<128x256xf32>
    %cst_16 = arith.constant 0.797884583 : f32
    %40 = vector.broadcast %cst_16 : f32 to vector<128x256xf32>
    %41 = arith.mulf %40, %39 : vector<128x256xf32>
    %42 = math.tanh %41 : vector<128x256xf32>
    %cst_17 = arith.constant 1.000000e+00 : f32
    %43 = vector.broadcast %cst_17 : f32 to vector<128x256xf32>
    %44 = arith.addf %43, %42 : vector<128x256xf32>
    %45 = arith.mulf %34, %44 : vector<128x256xf32>
    %46 = arith.truncf %45 : vector<128x256xf32> to vector<128x256xbf16>
    %c0_18 = arith.constant 0 : index
    %c0_19 = arith.constant 0 : index
    %47 = vector.load %arg7[%c0_18, %c0_19] : memref<128x256xbf16, #tpu.memory_space<vmem>>, vector<128x256xbf16>
    tpu.vector_store %arg7[%c0_18, %c0_19], %46 {strides = array<i32>} : memref<128x256xbf16, #tpu.memory_space<vmem>>, vector<128x256xbf16>,
    return
  }
  func.func @transform_0(%arg0: i32, %arg1: i32) -> (i32, i32) {
    %c0_i32 = arith.constant 0 : i32
    %c0_i32_0 = arith.constant 0 : i32
    return %arg0, %c0_i32 : i32, i32
  }
  func.func @transform_1(%arg0: i32, %arg1: i32) -> (i32, i32) {
    %c0_i32 = arith.constant 0 : i32
    %c0_i32_0 = arith.constant 0 : i32
    %c0_i32_1 = arith.constant 0 : i32
    return %c0_i32, %c0_i32_0 : i32, i32
  }
  func.func @transform_2(%arg0: i32, %arg1: i32) -> (i32, i32) {
    %c0_i32 = arith.constant 0 : i32
    %c0_i32_0 = arith.constant 0 : i32
    %c0_i32_1 = arith.constant 0 : i32
    return %c0_i32, %c0_i32_0 : i32, i32
  }
  func.func @transform_3(%arg0: i32, %arg1: i32) -> (i32, i32) {
    %c0_i32 = arith.constant 0 : i32
    %c0_i32_0 = arith.constant 0 : i32
    return %c0_i32, %arg1 : i32, i32
  }
  func.func @transform_4(%arg0: i32, %arg1: i32) -> (i32, i32) {
    %c0_i32 = arith.constant 0 : i32
    %c0_i32_0 = arith.constant 0 : i32
    return %c0_i32, %arg1 : i32, i32
  }
  func.func @transform_5(%arg0: i32, %arg1: i32) -> (i32, i32) {
    %c0_i32 = arith.constant 0 : i32
    return %arg0, %arg1 : i32, i32
  }
}

module attributes {stable_mosaic.version = 11 : i64} {
  func.func @_fused_linear_kernel(%arg0: i32, %arg1: i32, %arg2: memref<128x128xf32, #tpu.memory_space<vmem>>, %arg3: memref<1x128xf32, #tpu.memory_space<vmem>>, %arg4: memref<1x128xf32, #tpu.memory_space<vmem>>, %arg5: memref<128x256xbf16, #tpu.memory_space<vmem>>, %arg6: memref<128x256xf32, #tpu.memory_space<vmem>>) attributes {dimension_semantics = [#tpu.dimension_semantics<parallel>, #tpu.dimension_semantics<parallel>], iteration_bounds = array<i64: 1, 2>, scalar_prefetch = 0 : i64, scratch_operands = 0 : i64, tpu.core_type = #tpu.core_type<tc>, window_params = [{transform_indices = @transform_0, window_bounds = array<i64: 128, 128>}, {pipeline_mode = #tpu.pipeline_mode<synchronous>, transform_indices = @transform_1, window_bounds = array<i64: 1, 128>}, {pipeline_mode = #tpu.pipeline_mode<synchronous>, transform_indices = @transform_2, window_bounds = array<i64: 1, 128>}, {transform_indices = @transform_3, window_bounds = array<i64: 128, 256>}, {transform_indices = @transform_4, window_bounds = array<i64: 128, 256>}]} {
    %c0 = arith.constant 0 : index
    %c0_0 = arith.constant 0 : index
    %0 = vector.load %arg2[%c0, %c0_0] : memref<128x128xf32, #tpu.memory_space<vmem>>, vector<128x128xf32>
    %cst = arith.constant dense<0.000000e+00> : vector<128xf32>
    %1 = vector.multi_reduction <add>, %0, %cst [1] : vector<128x128xf32> to vector<128xf32>
    %2 = vector.shape_cast %1 : vector<128xf32> to vector<128x1xf32>
    %cst_1 = arith.constant 1.280000e+02 : f32
    %3 = vector.broadcast %cst_1 : f32 to vector<128x1xf32>
    %4 = arith.divf %2, %3 : vector<128x1xf32>
    %5 = vector.broadcast %4 : vector<128x1xf32> to vector<128x128xf32>
    %6 = arith.subf %0, %5 : vector<128x128xf32>
    %7 = vector.broadcast %4 : vector<128x1xf32> to vector<128x128xf32>
    %8 = arith.subf %0, %7 : vector<128x128xf32>
    %9 = arith.mulf %6, %8 : vector<128x128xf32>
    %cst_2 = arith.constant dense<0.000000e+00> : vector<128xf32>
    %10 = vector.multi_reduction <add>, %9, %cst_2 [1] : vector<128x128xf32> to vector<128xf32>
    %11 = vector.shape_cast %10 : vector<128xf32> to vector<128x1xf32>
    %cst_3 = arith.constant 1.280000e+02 : f32
    %12 = vector.broadcast %cst_3 : f32 to vector<128x1xf32>
    %13 = arith.divf %11, %12 : vector<128x1xf32>
    %14 = vector.broadcast %4 : vector<128x1xf32> to vector<128x128xf32>
    %15 = arith.subf %0, %14 : vector<128x128xf32>
    %cst_4 = arith.constant 9.99999974E-6 : f32
    %16 = vector.broadcast %cst_4 : f32 to vector<128x1xf32>
    %17 = arith.addf %13, %16 : vector<128x1xf32>
    %18 = math.rsqrt %17 : vector<128x1xf32>
    %19 = vector.broadcast %18 : vector<128x1xf32> to vector<128x128xf32>
    %20 = arith.mulf %15, %19 : vector<128x128xf32>
    %c0_5 = arith.constant 0 : index
    %c0_6 = arith.constant 0 : index
    %21 = vector.load %arg3[%c0_5, %c0_6] : memref<1x128xf32, #tpu.memory_space<vmem>>, vector<1x128xf32>
    %22 = vector.broadcast %21 : vector<1x128xf32> to vector<128x128xf32>
    %23 = arith.mulf %20, %22 : vector<128x128xf32>
    %c0_7 = arith.constant 0 : index
    %c0_8 = arith.constant 0 : index
    %24 = vector.load %arg4[%c0_7, %c0_8] : memref<1x128xf32, #tpu.memory_space<vmem>>, vector<1x128xf32>
    %25 = vector.broadcast %24 : vector<1x128xf32> to vector<128x128xf32>
    %26 = arith.addf %23, %25 : vector<128x128xf32>
    %27 = arith.truncf %26 : vector<128x128xf32> to vector<128x128xbf16>
    %c0_9 = arith.constant 0 : index
    %c0_10 = arith.constant 0 : index
    %28 = vector.load %arg5[%c0_9, %c0_10] : memref<128x256xbf16, #tpu.memory_space<vmem>>, vector<128x256xbf16>
    %cst_11 = arith.constant dense<0.000000e+00> : vector<128x256xf32>
    %29 = tpu.matmul %27, %28, %cst_11 {dimension_numbers = #tpu.dot_dimension_numbers<[1], [0], [0], [1], [0, 0, 1, 1], [], []>} : vector<128x128xbf16>, vector<128x256xbf16>, vector<128x256xf32> -> vector<128x256xf32>
    %c0_12 = arith.constant 0 : index
    %c0_13 = arith.constant 0 : index
    %30 = vector.load %arg6[%c0_12, %c0_13] : memref<128x256xf32, #tpu.memory_space<vmem>>, vector<128x256xf32>
    tpu.vector_store %arg6[%c0_12, %c0_13], %29 {strides = array<i32>} : memref<128x256xf32, #tpu.memory_space<vmem>>, vector<128x256xf32>,
    return
  }
  func.func @transform_0(%arg0: i32, %arg1: i32) -> (i32, i32) {
    %c0_i32 = arith.constant 0 : i32
    %c0_i32_0 = arith.constant 0 : i32
    return %arg0, %c0_i32 : i32, i32
  }
  func.func @transform_1(%arg0: i32, %arg1: i32) -> (i32, i32) {
    %c0_i32 = arith.constant 0 : i32
    %c0_i32_0 = arith.constant 0 : i32
    %c0_i32_1 = arith.constant 0 : i32
    return %c0_i32, %c0_i32_0 : i32, i32
  }
  func.func @transform_2(%arg0: i32, %arg1: i32) -> (i32, i32) {
    %c0_i32 = arith.constant 0 : i32
    %c0_i32_0 = arith.constant 0 : i32
    %c0_i32_1 = arith.constant 0 : i32
    return %c0_i32, %c0_i32_0 : i32, i32
  }
  func.func @transform_3(%arg0: i32, %arg1: i32) -> (i32, i32) {
    %c0_i32 = arith.constant 0 : i32
    %c0_i32_0 = arith.constant 0 : i32
    return %c0_i32, %arg1 : i32, i32
  }
  func.func @transform_4(%arg0: i32, %arg1: i32) -> (i32, i32) {
    %c0_i32 = arith.constant 0 : i32
    return %arg0, %arg1 : i32, i32
  }
}

module attributes {stable_mosaic.version = 11 : i64} {
  func.func @_fused_linear_kernel(%arg0: i32, %arg1: i32, %arg2: memref<128x512xbf16, #tpu.memory_space<vmem>>, %arg3: memref<512x128xbf16, #tpu.memory_space<vmem>>, %arg4: memref<1x128xf32, #tpu.memory_space<vmem>>, %arg5: memref<128x128xf32, #tpu.memory_space<vmem>>, %arg6: memref<128x128xf32, #tpu.memory_space<vmem>>) attributes {dimension_semantics = [#tpu.dimension_semantics<parallel>, #tpu.dimension_semantics<parallel>], iteration_bounds = array<i64: 1, 1>, scalar_prefetch = 0 : i64, scratch_operands = 0 : i64, tpu.core_type = #tpu.core_type<tc>, window_params = [{transform_indices = @transform_0, window_bounds = array<i64: 128, 512>}, {transform_indices = @transform_1, window_bounds = array<i64: 512, 128>}, {transform_indices = @transform_2, window_bounds = array<i64: 1, 128>}, {transform_indices = @transform_3, window_bounds = array<i64: 128, 128>}, {transform_indices = @transform_4, window_bounds = array<i64: 128, 128>}]} {
    %c0 = arith.constant 0 : index
    %c0_0 = arith.constant 0 : index
    %0 = vector.load %arg2[%c0, %c0_0] : memref<128x512xbf16, #tpu.memory_space<vmem>>, vector<128x512xbf16>
    %c0_1 = arith.constant 0 : index
    %c0_2 = arith.constant 0 : index
    %1 = vector.load %arg3[%c0_1, %c0_2] : memref<512x128xbf16, #tpu.memory_space<vmem>>, vector<512x128xbf16>
    %cst = arith.constant dense<0.000000e+00> : vector<128x128xf32>
    %2 = tpu.matmul %0, %1, %cst {dimension_numbers = #tpu.dot_dimension_numbers<[1], [0], [0], [1], [0, 0, 1, 1], [], []>} : vector<128x512xbf16>, vector<512x128xbf16>, vector<128x128xf32> -> vector<128x128xf32>
    %c0_3 = arith.constant 0 : index
    %c0_4 = arith.constant 0 : index
    %3 = vector.load %arg4[%c0_3, %c0_4] : memref<1x128xf32, #tpu.memory_space<vmem>>, vector<1x128xf32>
    %4 = vector.broadcast %3 : vector<1x128xf32> to vector<128x128xf32>
    %5 = arith.addf %2, %4 : vector<128x128xf32>
    %c0_5 = arith.constant 0 : index
    %c0_6 = arith.constant 0 : index
    %6 = vector.load %arg5[%c0_5, %c0_6] : memref<128x128xf32, #tpu.memory_space<vmem>>, vector<128x128xf32>
    %7 = arith.addf %5, %6 : vector<128x128xf32>
    %c0_7 = arith.constant 0 : index
    %c0_8 = arith.constant 0 : index
    %8 = vector.load %arg6[%c0_7, %c0_8] : memref<128x128xf32, #tpu.memory_space<vmem>>, vector<128x128xf32>
    tpu.vector_store %arg6[%c0_7, %c0_8], %7 {strides = array<i32>} : memref<128x128xf32, #tpu.memory_space<vmem>>, vector<128x128xf32>,
    return
  }
  func.func @transform_0(%arg0: i32, %arg1: i32) -> (i32, i32) {
    %c0_i32 = arith.constant 0 : i32
    %c0_i32_0 = arith.constant 0 : i32
    return %arg0, %c0_i32 : i32, i32
  }
  func.func @transform_1(%arg0: i32, %arg1: i32) -> (i32, i32) {
    %c0_i32 = arith.constant 0 : i32
    %c0_i32_0 = arith.constant 0 : i32
    return %c0_i32, %arg1 : i32, i32
  }
  func.func @transform_2(%arg0: i32, %arg1: i32) -> (i32, i32) {
    %c0_i32 = arith.constant 0 : i32
    %c0_i32_0 = arith.constant 0 : i32
    return %c0_i32, %arg1 : i32, i32
  }
  func.func @transform_3(%arg0: i32, %arg1: i32) -> (i32, i32) {
    %c0_i32 = arith.constant 0 : i32
    return %arg0, %arg1 : i32, i32
  }
  func.func @transform_4(%arg0: i32, %arg1: i32) -> (i32, i32) {
    %c0_i32 = arith.constant 0 : i32
    return %arg0, %arg1 : i32, i32
  }
}

module attributes {stable_mosaic.version = 11 : i64} {
  func.func @_cross_entropy_kernel(%arg0: i32, %arg1: memref<128x512xf32, #tpu.memory_space<vmem>>, %arg2: memref<128x1xi32, #tpu.memory_space<vmem>>, %arg3: memref<128x1xf32, #tpu.memory_space<vmem>>) attributes {dimension_semantics = [#tpu.dimension_semantics<parallel>], iteration_bounds = array<i64: 1>, scalar_prefetch = 0 : i64, scratch_operands = 0 : i64, tpu.core_type = #tpu.core_type<tc>, window_params = [{transform_indices = @transform_0, window_bounds = array<i64: 128, 512>}, {transform_indices = @transform_1, window_bounds = array<i64: 128, 1>}, {transform_indices = @transform_2, window_bounds = array<i64: 128, 1>}]} {
    %c0 = arith.constant 0 : index
    %c0_0 = arith.constant 0 : index
    %0 = vector.load %arg1[%c0, %c0_0] : memref<128x512xf32, #tpu.memory_space<vmem>>, vector<128x512xf32>
    %c0_1 = arith.constant 0 : index
    %c0_2 = arith.constant 0 : index
    %1 = vector.load %arg2[%c0_1, %c0_2] : memref<128x1xi32, #tpu.memory_space<vmem>>, vector<128x1xi32>
    %cst = arith.constant dense<0xFF800000> : vector<128xf32>
    %2 = vector.multi_reduction <maximumf>, %0, %cst [1] : vector<128x512xf32> to vector<128xf32>
    %3 = vector.shape_cast %2 : vector<128xf32> to vector<128x1xf32>
    %4 = vector.broadcast %3 : vector<128x1xf32> to vector<128x512xf32>
    %5 = arith.subf %0, %4 : vector<128x512xf32>
    %6 = math.exp %5 : vector<128x512xf32>
    %cst_3 = arith.constant dense<0.000000e+00> : vector<128xf32>
    %7 = vector.multi_reduction <add>, %6, %cst_3 [1] : vector<128x512xf32> to vector<128xf32>
    %8 = vector.shape_cast %7 : vector<128xf32> to vector<128x1xf32>
    %9 = math.log %8 : vector<128x1xf32>
    %10 = arith.addf %3, %9 : vector<128x1xf32>
    %11 = tpu.iota {dimensions = array<i32: 1>} : vector<128x512xi32>
    %12 = vector.broadcast %1 : vector<128x1xi32> to vector<128x512xi32>
    %13 = arith.cmpi eq, %11, %12 : vector<128x512xi32>
    %cst_4 = arith.constant 0.000000e+00 : f32
    %14 = vector.broadcast %cst_4 : f32 to vector<128x512xf32>
    %15 = arith.select %13, %0, %14 : vector<128x512xi1>, vector<128x512xf32>
    %cst_5 = arith.constant dense<0.000000e+00> : vector<128xf32>
    %16 = vector.multi_reduction <add>, %15, %cst_5 [1] : vector<128x512xf32> to vector<128xf32>
    %17 = vector.shape_cast %16 : vector<128xf32> to vector<128x1xf32>
    %18 = arith.subf %10, %17 : vector<128x1xf32>
    %c0_6 = arith.constant 0 : index
    %c0_7 = arith.constant 0 : index
    %19 = vector.load %arg3[%c0_6, %c0_7] : memref<128x1xf32, #tpu.memory_space<vmem>>, vector<128x1xf32>
    tpu.vector_store %arg3[%c0_6, %c0_7], %18 {strides = array<i32>} : memref<128x1xf32, #tpu.memory_space<vmem>>, vector<128x1xf32>,
    return
  }
  func.func @transform_0(%arg0: i32) -> (i32, i32) {
    %c0_i32 = arith.constant 0 : i32
    %c0_i32_0 = arith.constant 0 : i32
    return %arg0, %c0_i32 : i32, i32
  }
  func.func @transform_1(%arg0: i32) -> (i32, i32) {
    %c0_i32 = arith.constant 0 : i32
    %c0_i32_0 = arith.constant 0 : i32
    return %arg0, %c0_i32 : i32, i32
  }
  func.func @transform_2(%arg0: i32) -> (i32, i32) {
    %c0_i32 = arith.constant 0 : i32
    %c0_i32_0 = arith.constant 0 : i32
    return %arg0, %c0_i32 : i32, i32
  }
}

</mosaic_0001>

<llo_original>
// kernel: gpt_forward.14
$region0: #{gpt_forward.14}
  #allocation0 [shape = 'u32[]', space=smem, size = 0x4, offset = 0x4, fixed_abs, tag = 'smem constant byte address 0x4 - core index']
  #allocation1 [shape = 'u32[144,128]{1,0:T(1,128)}', space=vmem, size = 0x12000, scoped, tag = 'internal scratch']
  %s0 = inlined_call_operand.vmem [shape: bf16[128,128], index: 0, kind: input, shape index: {}]
  %s1 = inlined_call_operand.vmem [shape: bf16[128,128], index: 1, kind: input, shape index: {}]
  %s2 = inlined_call_operand.vmem [shape: f32[1,128], index: 2, kind: input, shape index: {}]
  %s3 = inlined_call_operand.vmem [shape: f32[128,128], index: 3, kind: input, shape index: {}]
  %s4 = inlined_call_operand.vmem [shape: f32[128,128], index: 4, kind: output, shape index: {}]
  %s5 = sld [smem:[#allocation0]]
  $region26: #{gpt_forward.14} parent=0
    _
  %s7 = ssub.s32 1, %s5
  %s8 = scalar_select 0, %s7, %s5
  // Predicated region
  $region2: #{gpt_forward.14} parent=0 // pred_check
    _
  $region3: #{gpt_forward.14} parent=0 // pred_check_branch
    %10 = sbr.rel (0) target = $region5
  $region4: #{gpt_forward.14} parent=0 // pred_region
    _
  $region5: #{gpt_forward.14} parent=0 // pred_fallthru
    _
  // Predicated region
  $region6: #{gpt_forward.14} parent=0 // pred_check
    _
  $region7: #{gpt_forward.14} parent=0 // pred_check_branch
    %12 = sbr.rel (0) target = $region9
  $region8: #{gpt_forward.14} parent=0 // pred_region
    _
  $region9: #{gpt_forward.14} parent=0 // pred_fallthru
    _
  // Predicated region
  $region10: #{gpt_forward.14} parent=0 // pred_check
    _
  $region11: #{gpt_forward.14} parent=0 // pred_check_branch
    %14 = sbr.rel (0) target = $region13
  $region12: #{gpt_forward.14} parent=0 // pred_region
    _
  $region13: #{gpt_forward.14} parent=0 // pred_fallthru
    _
  // Predicated region
  $region14: #{gpt_forward.14} parent=0 // pred_check
    _
  $region15: #{gpt_forward.14} parent=0 // pred_check_branch
    %16 = sbr.rel (0) target = $region17
  $region16: #{gpt_forward.14} parent=0 // pred_region
    _
  $region17: #{gpt_forward.14} parent=0 // pred_fallthru
    _
  %v18 = vld [vmem:[%s0] sm:$0xf]
  %v19 = vld [vmem:[%s0 + $0x4] sm:$0xf]
  %v20 = vld [vmem:[%s0 + $0x8] sm:$0xf]
  %v21 = vld [vmem:[%s0 + $0xc] sm:$0xf]
  %v22 = vld [vmem:[%s0 + $0x10] sm:$0xf]
  %v23 = vld [vmem:[%s0 + $0x14] sm:$0xf]
  %v24 = vld [vmem:[%s0 + $0x18] sm:$0xf]
  %v25 = vld [vmem:[%s0 + $0x1c] sm:$0xf]
  %v26 = vld [vmem:[%s0 + $0x20] sm:$0xf]
  %v27 = vld [vmem:[%s0 + $0x24] sm:$0xf]
  %v28 = vld [vmem:[%s0 + $0x28] sm:$0xf]
  %v29 = vld [vmem:[%s0 + $0x2c] sm:$0xf]
  %v30 = vld [vmem:[%s0 + $0x30] sm:$0xf]
  %v31 = vld [vmem:[%s0 + $0x34] sm:$0xf]
  %v32 = vld [vmem:[%s0 + $0x38] sm:$0xf]
  %v33 = vld [vmem:[%s0 + $0x3c] sm:$0xf]
  %v34 = vld [vmem:[%s1] sm:$0xf]
  %v35 = vld [vmem:[%s1 + $0x4] sm:$0xf]
  %v36 = vld [vmem:[%s1 + $0x8] sm:$0xf]
  %v37 = vld [vmem:[%s1 + $0xc] sm:$0xf]
  %v38 = vld [vmem:[%s1 + $0x10] sm:$0xf]
  %v39 = vld [vmem:[%s1 + $0x14] sm:$0xf]
  %v40 = vld [vmem:[%s1 + $0x18] sm:$0xf]
  %v41 = vld [vmem:[%s1 + $0x1c] sm:$0xf]
  %v42 = vld [vmem:[%s1 + $0x20] sm:$0xf]
  %v43 = vld [vmem:[%s1 + $0x24] sm:$0xf]
  %v44 = vld [vmem:[%s1 + $0x28] sm:$0xf]
  %v45 = vld [vmem:[%s1 + $0x2c] sm:$0xf]
  %v46 = vld [vmem:[%s1 + $0x30] sm:$0xf]
  %v47 = vld [vmem:[%s1 + $0x34] sm:$0xf]
  %v48 = vld [vmem:[%s1 + $0x38] sm:$0xf]
  %v49 = vld [vmem:[%s1 + $0x3c] sm:$0xf]
  %v50 = vld [vmem:[%s2] sm:$0x1]
  %v52 = vlaneseq
  %v53 = vshrl.u32 %v52, 7
  %v54 = vsub.s32 0, %v53
  %v55 = vrot.slane %v50, %v54
  %v73 = vunpack.c.l.b16 %v18
  %v74 = vunpack.c.l.b16 %v19
  %v75 = vunpack.c.l.b16 %v20
  %v76 = vunpack.c.l.b16 %v21
  %v77 = vunpack.c.l.b16 %v22
  %v78 = vunpack.c.l.b16 %v23
  %v79 = vunpack.c.l.b16 %v24
  %v80 = vunpack.c.l.b16 %v25
  %v81 = vunpack.c.l.b16 %v26
  %v82 = vunpack.c.l.b16 %v27
  %v83 = vunpack.c.l.b16 %v28
  %v84 = vunpack.c.l.b16 %v29
  %v85 = vunpack.c.l.b16 %v30
  %v86 = vunpack.c.l.b16 %v31
  %v87 = vunpack.c.l.b16 %v32
  %v88 = vunpack.c.l.b16 %v33
  %v89 = vpack.c.b16 %v74, %v73
  %v90 = vpack.c.b16 %v76, %v75
  %v91 = vpack.c.b16 %v78, %v77
  %v92 = vpack.c.b16 %v80, %v79
  %v93 = vpack.c.b16 %v82, %v81
  %v94 = vpack.c.b16 %v84, %v83
  %v95 = vpack.c.b16 %v86, %v85
  %v96 = vpack.c.b16 %v88, %v87
  %v121 = vunpack.c.l.b16 %v34
  %v122 = vunpack.c.l.b16 %v35
  %v123 = vunpack.c.l.b16 %v36
  %v124 = vunpack.c.l.b16 %v37
  %v125 = vunpack.c.l.b16 %v38
  %v126 = vunpack.c.l.b16 %v39
  %v127 = vunpack.c.l.b16 %v40
  %v128 = vunpack.c.l.b16 %v41
  %v129 = vunpack.c.l.b16 %v42
  %v130 = vunpack.c.l.b16 %v43
  %v131 = vunpack.c.l.b16 %v44
  %v132 = vunpack.c.l.b16 %v45
  %v133 = vunpack.c.l.b16 %v46
  %v134 = vunpack.c.l.b16 %v47
  %v135 = vunpack.c.l.b16 %v48
  %v136 = vunpack.c.l.b16 %v49
  %v137 = vpack.c.b16 %v122, %v121
  %v138 = vpack.c.b16 %v124, %v123
  %v139 = vpack.c.b16 %v126, %v125
  %v140 = vpack.c.b16 %v128, %v127
  %v141 = vpack.c.b16 %v130, %v129
  %v142 = vpack.c.b16 %v132, %v131
  %v143 = vpack.c.b16 %v134, %v133
  %v144 = vpack.c.b16 %v136, %v135
  %153 = vmatprep.subr.bf16.mxu0 0
  %154 = vmatpush1.bf16.msra.mxu0 %v137
  %155 = vmatprep.subr.bf16.mxu0 0
  %156 = vmatpush1.bf16.msra.mxu0 %v138
  %157 = vmatprep.subr.bf16.mxu0 0
  %158 = vmatpush1.bf16.msra.mxu0 %v139
  %159 = vmatprep.subr.bf16.mxu0 0
  %160 = vmatpush1.bf16.msra.mxu0 %v140
  %161 = vmatprep.subr.bf16.mxu0 0
  %162 = vmatpush1.bf16.msra.mxu0 %v141
  %163 = vmatprep.subr.bf16.mxu0 0
  %164 = vmatpush1.bf16.msra.mxu0 %v142
  %165 = vmatprep.subr.bf16.mxu0 0
  %166 = vmatpush1.bf16.msra.mxu0 %v143
  %167 = vmatprep.subr.bf16.mxu0 0
  %168 = vmatpush1.bf16.msra.mxu0 %v144
  %169 = vmatprep.subr.bf16.mxu0 0
  %170 = vmatpush1.bf16.msra.mxu0 0
  %171 = vmatprep.subr.bf16.mxu0 0
  %172 = vmatpush1.bf16.msra.mxu0 0
  %173 = vmatprep.subr.bf16.mxu0 0
  %174 = vmatpush1.bf16.msra.mxu0 0
  %175 = vmatprep.subr.bf16.mxu0 0
  %176 = vmatpush1.bf16.msra.mxu0 0
  %177 = vmatprep.subr.bf16.mxu0 0
  %178 = vmatpush1.bf16.msra.mxu0 0
  %179 = vmatprep.subr.bf16.mxu0 0
  %180 = vmatpush1.bf16.msra.mxu0 0
  %181 = vmatprep.subr.bf16.mxu0 0
  %182 = vmatpush1.bf16.msra.mxu0 0
  %183 = vmatprep.subr.bf16.mxu0 0
  %184 = vmatpush1.bf16.msra.mxu0 0
  %185 = vmatprep.mubr.bf16.mxu0 0
  %186 = vmatmul.mubr.bf16.gmra.mrb[0].mxu0 %v89
  %v187 = vpop.f32.mrb[0].mxu0
  %v188 = vadd.f32 %v55, %v187
  %v189 = vpop.f32.mrb[0].mxu0
  %v190 = vpop.f32.mrb[0].mxu0
  %v191 = vadd.f32 %v55, %v190
  %v192 = vpop.f32.mrb[0].mxu0
  %193 = vmatprep.mubr.bf16.mxu0 0
  %194 = vmatmul.mubr.bf16.gmra.mrb[0].mxu0 %v90
  %v195 = vpop.f32.mrb[0].mxu0
  %v196 = vadd.f32 %v55, %v195
  %v197 = vpop.f32.mrb[0].mxu0
  %v198 = vpop.f32.mrb[0].mxu0
  %v199 = vadd.f32 %v55, %v198
  %v200 = vpop.f32.mrb[0].mxu0
  %201 = vmatprep.mubr.bf16.mxu0 0
  %202 = vmatmul.mubr.bf16.gmra.mrb[0].mxu0 %v91
  %v203 = vpop.f32.mrb[0].mxu0
  %v204 = vadd.f32 %v55, %v203
  %v205 = vpop.f32.mrb[0].mxu0
  %v206 = vpop.f32.mrb[0].mxu0
  %v207 = vadd.f32 %v55, %v206
  %v208 = vpop.f32.mrb[0].mxu0
  %209 = vmatprep.mubr.bf16.mxu0 0
  %210 = vmatmul.mubr.bf16.gmra.mrb[0].mxu0 %v92
  %v211 = vpop.f32.mrb[0].mxu0
  %v212 = vadd.f32 %v55, %v211
  %v213 = vpop.f32.mrb[0].mxu0
  %v214 = vpop.f32.mrb[0].mxu0
  %v215 = vadd.f32 %v55, %v214
  %v216 = vpop.f32.mrb[0].mxu0
  %217 = vmatprep.mubr.bf16.mxu0 0
  %218 = vmatmul.mubr.bf16.gmra.mrb[0].mxu0 %v93
  %v219 = vpop.f32.mrb[0].mxu0
  %v220 = vadd.f32 %v55, %v219
  %v221 = vpop.f32.mrb[0].mxu0
  %v222 = vpop.f32.mrb[0].mxu0
  %v223 = vadd.f32 %v55, %v222
  %v224 = vpop.f32.mrb[0].mxu0
  %225 = vmatprep.mubr.bf16.mxu0 0
  %226 = vmatmul.mubr.bf16.gmra.mrb[0].mxu0 %v94
  %v227 = vpop.f32.mrb[0].mxu0
  %v228 = vadd.f32 %v55, %v227
  %v229 = vpop.f32.mrb[0].mxu0
  %v230 = vpop.f32.mrb[0].mxu0
  %v231 = vadd.f32 %v55, %v230
  %v232 = vpop.f32.mrb[0].mxu0
  %233 = vmatprep.mubr.bf16.mxu0 0
  %234 = vmatmul.mubr.bf16.gmra.mrb[0].mxu0 %v95
  %v235 = vpop.f32.mrb[0].mxu0
  %v236 = vadd.f32 %v55, %v235
  %v237 = vpop.f32.mrb[0].mxu0
  %v238 = vpop.f32.mrb[0].mxu0
  %v239 = vadd.f32 %v55, %v238
  %v240 = vpop.f32.mrb[0].mxu0
  %241 = vmatprep.mubr.bf16.mxu0 0
  %242 = vmatmul.mubr.bf16.gmra.mrb[0].mxu0 %v96
  %v243 = vpop.f32.mrb[0].mxu0
  %v244 = vadd.f32 %v55, %v243
  %v245 = vpop.f32.mrb[0].mxu0
  %v246 = vpop.f32.mrb[0].mxu0
  %v247 = vadd.f32 %v55, %v246
  %v248 = vpop.f32.mrb[0].mxu0
  %249 = vdwg.mxu0
  %v250 = vld [vmem:[%s3] sm:$0xff]
  %v251 = vld [vmem:[%s3 + $0x8] sm:$0xff]
  %v252 = vld [vmem:[%s3 + $0x10] sm:$0xff]
  %v253 = vld [vmem:[%s3 + $0x18] sm:$0xff]
  %v254 = vld [vmem:[%s3 + $0x20] sm:$0xff]
  %v255 = vld [vmem:[%s3 + $0x28] sm:$0xff]
  %v256 = vld [vmem:[%s3 + $0x30] sm:$0xff]
  %v257 = vld [vmem:[%s3 + $0x38] sm:$0xff]
  %v258 = vld [vmem:[%s3 + $0x40] sm:$0xff]
  %v259 = vld [vmem:[%s3 + $0x48] sm:$0xff]
  %v260 = vld [vmem:[%s3 + $0x50] sm:$0xff]
  %v261 = vld [vmem:[%s3 + $0x58] sm:$0xff]
  %v262 = vld [vmem:[%s3 + $0x60] sm:$0xff]
  %v263 = vld [vmem:[%s3 + $0x68] sm:$0xff]
  %v264 = vld [vmem:[%s3 + $0x70] sm:$0xff]
  %v265 = vld [vmem:[%s3 + $0x78] sm:$0xff]
  %v266 = vadd.f32 %v188, %v250
  %v267 = vadd.f32 %v191, %v251
  %v268 = vadd.f32 %v196, %v252
  %v269 = vadd.f32 %v199, %v253
  %v270 = vadd.f32 %v204, %v254
  %v271 = vadd.f32 %v207, %v255
  %v272 = vadd.f32 %v212, %v256
  %v273 = vadd.f32 %v215, %v257
  %v274 = vadd.f32 %v220, %v258
  %v275 = vadd.f32 %v223, %v259
  %v276 = vadd.f32 %v228, %v260
  %v277 = vadd.f32 %v231, %v261
  %v278 = vadd.f32 %v236, %v262
  %v279 = vadd.f32 %v239, %v263
  %v280 = vadd.f32 %v244, %v264
  %v281 = vadd.f32 %v247, %v265
  %282 = vst [vmem:[%s4] sm:$0xff] %v266
  %283 = vst [vmem:[%s4 + $0x8] sm:$0xff] %v267
  %284 = vst [vmem:[%s4 + $0x10] sm:$0xff] %v268
  %285 = vst [vmem:[%s4 + $0x18] sm:$0xff] %v269
  %286 = vst [vmem:[%s4 + $0x20] sm:$0xff] %v270
  %287 = vst [vmem:[%s4 + $0x28] sm:$0xff] %v271
  %288 = vst [vmem:[%s4 + $0x30] sm:$0xff] %v272
  %289 = vst [vmem:[%s4 + $0x38] sm:$0xff] %v273
  %290 = vst [vmem:[%s4 + $0x40] sm:$0xff] %v274
  %291 = vst [vmem:[%s4 + $0x48] sm:$0xff] %v275
  %292 = vst [vmem:[%s4 + $0x50] sm:$0xff] %v276
  %293 = vst [vmem:[%s4 + $0x58] sm:$0xff] %v277
  %294 = vst [vmem:[%s4 + $0x60] sm:$0xff] %v278
  %295 = vst [vmem:[%s4 + $0x68] sm:$0xff] %v279
  %296 = vst [vmem:[%s4 + $0x70] sm:$0xff] %v280
  %297 = vst [vmem:[%s4 + $0x78] sm:$0xff] %v281
  // Predicated region
  $region18: #{gpt_forward.14} parent=0 // pred_check
    _
  $region19: #{gpt_forward.14} parent=0 // pred_check_branch
    %299 = sbr.rel (0) target = $region21
  $region20: #{gpt_forward.14} parent=0 // pred_region
    _
  $region21: #{gpt_forward.14} parent=0 // pred_fallthru
    _
  // Predicated region
  $region22: #{gpt_forward.14} parent=0 // pred_check
    _
  $region23: #{gpt_forward.14} parent=0 // pred_check_branch
    %301 = sbr.rel (0) target = $region25
  $region24: #{gpt_forward.14} parent=0 // pred_region
    _
  $region25: #{gpt_forward.14} parent=0 // pred_fallthru
    _

// kernel: gpt_forward.12
$region0: #{gpt_forward.12}
  #allocation0 [shape = 'u32[]', space=smem, size = 0x4, offset = 0x4, fixed_abs, tag = 'smem constant byte address 0x4 - core index']
  #allocation1 [shape = 'u32[144,128]{1,0:T(1,128)}', space=vmem, size = 0x12000, scoped, tag = 'internal scratch']
  %s0 = inlined_call_operand.vmem [shape: f32[128,128], index: 0, kind: input, shape index: {}]
  %s1 = inlined_call_operand.vmem [shape: f32[1,128], index: 1, kind: input, shape index: {}]
  %s2 = inlined_call_operand.vmem [shape: f32[1,128], index: 2, kind: input, shape index: {}]
  %s3 = inlined_call_operand.vmem [shape: bf16[128,384], index: 3, kind: input, shape index: {}]
  %s4 = inlined_call_operand.vmem [shape: f32[1,384], index: 4, kind: input, shape index: {}]
  %s5 = inlined_call_operand.vmem [shape: bf16[128,384], index: 5, kind: output, shape index: {}]
  %s6 = sld [smem:[#allocation0]]
  $region131: #{gpt_forward.12} parent=0
    _
  %s8 = ssub.s32 1, %s6
  %s9 = scalar_select 0, %s8, %s6
  $region1: #{gpt_forward.12} parent=0
    #allocation2 [shape = 'u8[65536]{0}', space=vmem, size = 0x10000, scoped, tag = 'input window, operand 3']
    #allocation3 [shape = 'u8[65536]{0}', space=vmem, size = 0x10000, scoped, tag = 'output window, operand 0']
    loop: start=0, step=1, limit=5
    $region2: #{gpt_forward.12} parent=1 // loop_pre_header
      _
    $region3: #{gpt_forward.12} parent=1 // loop_header
      %s11 = sphi 0, %s15
      %p12 = scmp.ge.s32.totalorder %s11, 5
      %s18 = sphi 0, %s30
      %s19 = sphi 0, %s26
      %s20 = sphi 0, %s18
      %s21 = sphi 0, %s19
      %s22 = sphi 0, %s20
      %s23 = sphi 0, %s21
      %s33 = sphi 0, %s35
      %s36 = sphi 0, %s33
      %s37 = sphi 0, %s36
      %s53 = sphi 0, %s37
      %s57 = sphi 0, %s57
      %s59 = sphi 0, %s57
      %s60 = sphi 0, %s59
      %s74 = sphi 0, %s60
      %s78 = sphi 0, %s78
      %s80 = sphi 0, %s78
      %s81 = sphi 0, %s80
      %s95 = sphi 0, %s81
      %s101 = sphi 0, %s103
      %s104 = sphi 0, %s101
      %s105 = sphi 0, %s104
      %s121 = sphi 0, %s105
      %s127 = sphi 0, %s129
      %s130 = sphi 0, %s127
      %s131 = sphi 0, %s130
      %s147 = sphi 0, %s131
      %s155 = sphi 0, %s157
      %s158 = sphi 0, %s155
      %s159 = sphi 0, %s158
      %s175 = sphi 0, %s159
    $region4: #{gpt_forward.12} parent=1 // loop_header_branch
      %14 = sbr.rel (%p12) target = $region8
    $region5: #{gpt_forward.12} parent=1 // loop_body
      %s16 = ssub.s32 %s11, 1
      %s17 = ssub.s32 %s11, 2
      %s24 = sadd.s32 1, %s19
      %p25 = scmp.ge.s32.totalorder %s24, 3
      %s26 = scalar_select %p25, 0, %s24
      %s27 = sadd.s32 1, %s18
      %s28 = scalar_select %p25, %s27, %s18
      %p29 = scmp.ge.s32.totalorder %s28, 1
      %s30 = scalar_select %p29, 0, %s28
      %s31 = ssub.s32 %s18, %s30
      %p32 = scmp.eq.s32.totalorder %s31, 0
      %s34 = sadd.s32 %s33, 1
      %s35 = scalar_select %p32, %s33, %s34
      %p38 = pneg %p32
      %p39 = scmp.eq.s32.totalorder %s11, 2
      %p40 = por %p38, %p39
      %p41 = scmp.ne.s32.totalorder %s33, %s36
      %p42 = scmp.eq.s32.totalorder %s11, 0
      %p43 = por %p41, %p42
      %p44 = scmp.ne.s32.totalorder %s33, %s36
      %p45 = scmp.eq.s32.totalorder %s16, 2
      %p46 = por %p44, %p45
      %p47 = scmp.ne.s32.totalorder %s36, %s37
      %p48 = scmp.eq.s32.totalorder %s16, 0
      %p49 = por %p47, %p48
      %p50 = scmp.ne.s32.totalorder %s36, %s37
      %p51 = scmp.eq.s32.totalorder %s17, 2
      %p52 = por %p50, %p51
      %p54 = scmp.ne.s32.totalorder %s37, %s53
      %p55 = scmp.eq.s32.totalorder %s17, 0
      %p56 = por %p54, %p55
      %s58 = sadd.s32 %s57, 1
      %p61 = scmp.eq.s32.totalorder %s11, 2
      %p62 = scmp.ne.s32.totalorder %s57, %s59
      %p63 = scmp.eq.s32.totalorder %s11, 0
      %p64 = por %p62, %p63
      %p65 = scmp.ne.s32.totalorder %s57, %s59
      %p66 = scmp.eq.s32.totalorder %s16, 2
      %p67 = por %p65, %p66
      %p68 = scmp.ne.s32.totalorder %s59, %s60
      %p69 = scmp.eq.s32.totalorder %s16, 0
      %p70 = por %p68, %p69
      %p71 = scmp.ne.s32.totalorder %s59, %s60
      %p72 = scmp.eq.s32.totalorder %s17, 2
      %p73 = por %p71, %p72
      %p75 = scmp.ne.s32.totalorder %s60, %s74
      %p76 = scmp.eq.s32.totalorder %s17, 0
      %p77 = por %p75, %p76
      %s79 = sadd.s32 %s78, 1
      %p82 = scmp.eq.s32.totalorder %s11, 2
      %p83 = scmp.ne.s32.totalorder %s78, %s80
      %p84 = scmp.eq.s32.totalorder %s11, 0
      %p85 = por %p83, %p84
      %p86 = scmp.ne.s32.totalorder %s78, %s80
      %p87 = scmp.eq.s32.totalorder %s16, 2
      %p88 = por %p86, %p87
      %p89 = scmp.ne.s32.totalorder %s80, %s81
      %p90 = scmp.eq.s32.totalorder %s16, 0
      %p91 = por %p89, %p90
      %p92 = scmp.ne.s32.totalorder %s80, %s81
      %p93 = scmp.eq.s32.totalorder %s17, 2
      %p94 = por %p92, %p93
      %p96 = scmp.ne.s32.totalorder %s81, %s95
      %p97 = scmp.eq.s32.totalorder %s17, 0
      %p98 = por %p96, %p97
      %s99 = ssub.s32 %s19, %s26
      %p100 = scmp.eq.s32.totalorder %s99, 0
      %s102 = sadd.s32 %s101, 1
      %s103 = scalar_select %p100, %s101, %s102
      %p106 = pneg %p100
      %p107 = scmp.eq.s32.totalorder %s11, 2
      %p108 = por %p106, %p107
      %p109 = scmp.ne.s32.totalorder %s101, %s104
      %p110 = scmp.eq.s32.totalorder %s11, 0
      %p111 = por %p109, %p110
      %p112 = scmp.ne.s32.totalorder %s101, %s104
      %p113 = scmp.eq.s32.totalorder %s16, 2
      %p114 = por %p112, %p113
      %p115 = scmp.ne.s32.totalorder %s104, %s105
      %p116 = scmp.eq.s32.totalorder %s16, 0
      %p117 = por %p115, %p116
      %p118 = scmp.ne.s32.totalorder %s104, %s105
      %p119 = scmp.eq.s32.totalorder %s17, 2
      %p120 = por %p118, %p119
      %p122 = scmp.ne.s32.totalorder %s105, %s121
      %p123 = scmp.eq.s32.totalorder %s17, 0
      %p124 = por %p122, %p123
      %s125 = ssub.s32 %s19, %s26
      %p126 = scmp.eq.s32.totalorder %s125, 0
      %s128 = sadd.s32 %s127, 1
      %s129 = scalar_select %p126, %s127, %s128
      %p132 = pneg %p126
      %p133 = scmp.eq.s32.totalorder %s11, 2
      %p134 = por %p132, %p133
      %p135 = scmp.ne.s32.totalorder %s127, %s130
      %p136 = scmp.eq.s32.totalorder %s11, 0
      %p137 = por %p135, %p136
      %p138 = scmp.ne.s32.totalorder %s127, %s130
      %p139 = scmp.eq.s32.totalorder %s16, 2
      %p140 = por %p138, %p139
      %p141 = scmp.ne.s32.totalorder %s130, %s131
      %p142 = scmp.eq.s32.totalorder %s16, 0
      %p143 = por %p141, %p142
      %p144 = scmp.ne.s32.totalorder %s130, %s131
      %p145 = scmp.eq.s32.totalorder %s17, 2
      %p146 = por %p144, %p145
      %p148 = scmp.ne.s32.totalorder %s131, %s147
      %p149 = scmp.eq.s32.totalorder %s17, 0
      %p150 = por %p148, %p149
      %s151 = ssub.s32 %s18, %s30
      %s152 = ssub.s32 %s19, %s26
      %s153 = sor.u32 %s151, %s152
      %p154 = scmp.eq.s32.totalorder %s153, 0
      %s156 = sadd.s32 %s155, 1
      %s157 = scalar_select %p154, %s155, %s156
      %p160 = pneg %p154
      %p161 = scmp.eq.s32.totalorder %s11, 2
      %p162 = por %p160, %p161
      %p163 = scmp.ne.s32.totalorder %s155, %s158
      %p164 = scmp.eq.s32.totalorder %s11, 0
      %p165 = por %p163, %p164
      %p166 = scmp.ne.s32.totalorder %s155, %s158
      %p167 = scmp.eq.s32.totalorder %s16, 2
      %p168 = por %p166, %p167
      %p169 = scmp.ne.s32.totalorder %s158, %s159
      %p170 = scmp.eq.s32.totalorder %s16, 0
      %p171 = por %p169, %p170
      %p172 = scmp.ne.s32.totalorder %s158, %s159
      %p173 = scmp.eq.s32.totalorder %s17, 2
      %p174 = por %p172, %p173
      %p176 = scmp.ne.s32.totalorder %s159, %s175
      %p177 = scmp.eq.s32.totalorder %s17, 0
      %p178 = por %p176, %p177
      %p179 = scmp.le.s32.totalorder 1, %s11
      %p180 = scmp.lt.s32.totalorder %s11, 4
      %p181 = pnand %p179, %p180
      %p182 = pneg %p181
      // Predicated region
      $region9: #{gpt_forward.12} parent=5 // pred_check
        _
      $region10: #{gpt_forward.12} parent=5 // pred_check_branch
        %184 = sbr.rel (%p181) target = $region12
      $region11: #{gpt_forward.12} parent=5 // pred_region
        %s185 = ssub.s32 %s11, 1
        // Predicated region
        $region13: #{gpt_forward.12} parent=11 // pred_check
          %p186 = pneg %p49
        $region14: #{gpt_forward.12} parent=11 // pred_check_branch
          %188 = sbr.rel (%p186) target = $region16
        $region15: #{gpt_forward.12} parent=11 // pred_region
          %s189 = smul.u32 16, %s20
          %p190 = scmp.lt.s32.totalorder %s189, 15
          %s191 = scalar_select %p190, %s189, 15
          %s192 = smul.addr %s191, 8
          %s193 = scalar_lea.vmem %s0, %s192
          %s194 = smul.u32 16, %s20
        $region16: #{gpt_forward.12} parent=11 // pred_fallthru
          _
        // Predicated region
        $region17: #{gpt_forward.12} parent=11 // pred_check
          %p195 = pneg %p70
        $region18: #{gpt_forward.12} parent=11 // pred_check_branch
          %197 = sbr.rel (%p195) target = $region20
        $region19: #{gpt_forward.12} parent=11 // pred_region
          _
        $region20: #{gpt_forward.12} parent=11 // pred_fallthru
          _
        // Predicated region
        $region21: #{gpt_forward.12} parent=11 // pred_check
          %p198 = pneg %p91
        $region22: #{gpt_forward.12} parent=11 // pred_check_branch
          %200 = sbr.rel (%p198) target = $region24
        $region23: #{gpt_forward.12} parent=11 // pred_region
          _
        $region24: #{gpt_forward.12} parent=11 // pred_fallthru
          _
      $region12: #{gpt_forward.12} parent=5 // pred_fallthru
        _
      %p201 = scmp.lt.s32.totalorder %s11, 3
      // Predicated region
      $region25: #{gpt_forward.12} parent=5 // pred_check
        %p202 = pneg %p201
      $region26: #{gpt_forward.12} parent=5 // pred_check_branch
        %204 = sbr.rel (%p202) target = $region28
      $region27: #{gpt_forward.12} parent=5 // pred_region
        // Predicated region
        $region29: #{gpt_forward.12} parent=27 // pred_check
          %p205 = pneg %p111
        $region30: #{gpt_forward.12} parent=27 // pred_check_branch
          %207 = sbr.rel (%p205) target = $region32
        $region31: #{gpt_forward.12} parent=27 // pred_region
          %s208 = sand.u32 %s101, 1
          %s209 = sand.u32 %s101, 1
          %s210 = smul.addr %s209, 64
          %s211 = scalar_lea.vmem [#allocation2], %s210
          %s212 = smul.addr %s19, 4
          %s213 = scalar_lea.vmem %s3, %s212
          // Predicated region
          $region33: #{gpt_forward.12} parent=31 // pred_check
            _
          $region34: #{gpt_forward.12} parent=31 // pred_check_branch
            %215 = sbr.rel (0) target = $region36
          $region35: #{gpt_forward.12} parent=31 // pred_region
            // Predicated region
            $region37: #{gpt_forward.12} parent=35 // pred_check
              _
            $region38: #{gpt_forward.12} parent=35 // pred_check_branch
              %217 = sbr.rel target = $region40
            $region39: #{gpt_forward.12} parent=35 // pred_region
              // Predicated region
              $region52: #{gpt_forward.12} parent=39 // pred_check
                _
              $region53: #{gpt_forward.12} parent=39 // pred_check_branch
                %262 = sbr.rel (0) target = $region55
              $region54: #{gpt_forward.12} parent=39 // pred_region
                loop: start=0, step=1, limit=1
                $region56: #{gpt_forward.12} parent=54 // loop_pre_header
                  _
                $region57: #{gpt_forward.12} parent=54 // loop_header
                  %s264 = sphi 0, %s268
                  %p265 = scmp.ge.s32.totalorder %s264, 1
                  %s269 = sphi %s213, %s213
                  %s270 = sphi %s211, %s211
                $region58: #{gpt_forward.12} parent=54 // loop_header_branch
                  %267 = sbr.rel (%p265) target = $region62
                $region59: #{gpt_forward.12} parent=54 // loop_body
                  _
                $region60: #{gpt_forward.12} parent=54 // loop_footer
                  %s268 = sadd.s32 1, %s264
                $region61: #{gpt_forward.12} parent=54 // loop_footer_branch
                  %263 = sbr.rel target = $region57
                $region62: #{gpt_forward.12} parent=54 // loop_exit
                  _
                loop: start=0, step=1, limit=1
                $region63: #{gpt_forward.12} parent=54 // loop_pre_header
                  _
                $region64: #{gpt_forward.12} parent=54 // loop_header
                  %s273 = sphi 0, %s277
                  %p274 = scmp.ge.s32.totalorder %s273, 1
                  %s278 = sphi %s213, %s213
                  %s279 = sphi %s211, %s211
                $region65: #{gpt_forward.12} parent=54 // loop_header_branch
                  %276 = sbr.rel (%p274) target = $region69
                $region66: #{gpt_forward.12} parent=54 // loop_body
                  %v280 = vld [vmem:[%s278] sm:$0xf]
                  %281 = vst [vmem:[%s279] sm:$0xf] %v280
                  %v282 = vld [vmem:[%s278 + $0xc] sm:$0xf]
                  %283 = vst [vmem:[%s279 + $0x4] sm:$0xf] %v282
                  %v284 = vld [vmem:[%s278 + $0x18] sm:$0xf]
                  %285 = vst [vmem:[%s279 + $0x8] sm:$0xf] %v284
                  %v286 = vld [vmem:[%s278 + $0x24] sm:$0xf]
                  %287 = vst [vmem:[%s279 + $0xc] sm:$0xf] %v286
                  %v288 = vld [vmem:[%s278 + $0x30] sm:$0xf]
                  %289 = vst [vmem:[%s279 + $0x10] sm:$0xf] %v288
                  %v290 = vld [vmem:[%s278 + $0x3c] sm:$0xf]
                  %291 = vst [vmem:[%s279 + $0x14] sm:$0xf] %v290
                  %v292 = vld [vmem:[%s278 + $0x48] sm:$0xf]
                  %293 = vst [vmem:[%s279 + $0x18] sm:$0xf] %v292
                  %v294 = vld [vmem:[%s278 + $0x54] sm:$0xf]
                  %295 = vst [vmem:[%s279 + $0x1c] sm:$0xf] %v294
                  %v296 = vld [vmem:[%s278 + $0x60] sm:$0xf]
                  %297 = vst [vmem:[%s279 + $0x20] sm:$0xf] %v296
                  %v298 = vld [vmem:[%s278 + $0x6c] sm:$0xf]
                  %299 = vst [vmem:[%s279 + $0x24] sm:$0xf] %v298
                  %v300 = vld [vmem:[%s278 + $0x78] sm:$0xf]
                  %301 = vst [vmem:[%s279 + $0x28] sm:$0xf] %v300
                  %v302 = vld [vmem:[%s278 + $0x84] sm:$0xf]
                  %303 = vst [vmem:[%s279 + $0x2c] sm:$0xf] %v302
                  %v304 = vld [vmem:[%s278 + $0x90] sm:$0xf]
                  %305 = vst [vmem:[%s279 + $0x30] sm:$0xf] %v304
                  %v306 = vld [vmem:[%s278 + $0x9c] sm:$0xf]
                  %307 = vst [vmem:[%s279 + $0x34] sm:$0xf] %v306
                  %v308 = vld [vmem:[%s278 + $0xa8] sm:$0xf]
                  %309 = vst [vmem:[%s279 + $0x38] sm:$0xf] %v308
                  %v310 = vld [vmem:[%s278 + $0xb4] sm:$0xf]
                  %311 = vst [vmem:[%s279 + $0x3c] sm:$0xf] %v310
                $region67: #{gpt_forward.12} parent=54 // loop_footer
                  %s277 = sadd.s32 1, %s273
                $region68: #{gpt_forward.12} parent=54 // loop_footer_branch
                  %272 = sbr.rel target = $region64
                $region69: #{gpt_forward.12} parent=54 // loop_exit
                  _
              $region55: #{gpt_forward.12} parent=39 // pred_fallthru
                _
            $region40: #{gpt_forward.12} parent=35 // pred_fallthru
              _
            // Predicated region
            $region41: #{gpt_forward.12} parent=35 // pred_check
              _
            $region42: #{gpt_forward.12} parent=35 // pred_check_branch
              %219 = sbr.rel (0) target = $region44
            $region43: #{gpt_forward.12} parent=35 // pred_region
              loop: start=0, step=1, limit=1
              $region45: #{gpt_forward.12} parent=43 // loop_pre_header
                _
              $region46: #{gpt_forward.12} parent=43 // loop_header
                %s222 = sphi 0, %s226
                %p223 = scmp.ge.s32.totalorder %s222, 1
                %s227 = sphi %s213, %s213
                %s228 = sphi %s211, %s211
              $region47: #{gpt_forward.12} parent=43 // loop_header_branch
                %225 = sbr.rel (%p223) target = $region51
              $region48: #{gpt_forward.12} parent=43 // loop_body
                %v229 = vld [vmem:[%s227] sm:$0xf]
                %230 = vst [vmem:[%s228] sm:$0xf] %v229
                %v231 = vld [vmem:[%s227 + $0xc] sm:$0xf]
                %232 = vst [vmem:[%s228 + $0x4] sm:$0xf] %v231
                %v233 = vld [vmem:[%s227 + $0x18] sm:$0xf]
                %234 = vst [vmem:[%s228 + $0x8] sm:$0xf] %v233
                %v235 = vld [vmem:[%s227 + $0x24] sm:$0xf]
                %236 = vst [vmem:[%s228 + $0xc] sm:$0xf] %v235
                %v237 = vld [vmem:[%s227 + $0x30] sm:$0xf]
                %238 = vst [vmem:[%s228 + $0x10] sm:$0xf] %v237
                %v239 = vld [vmem:[%s227 + $0x3c] sm:$0xf]
                %240 = vst [vmem:[%s228 + $0x14] sm:$0xf] %v239
                %v241 = vld [vmem:[%s227 + $0x48] sm:$0xf]
                %242 = vst [vmem:[%s228 + $0x18] sm:$0xf] %v241
                %v243 = vld [vmem:[%s227 + $0x54] sm:$0xf]
                %244 = vst [vmem:[%s228 + $0x1c] sm:$0xf] %v243
                %v245 = vld [vmem:[%s227 + $0x60] sm:$0xf]
                %246 = vst [vmem:[%s228 + $0x20] sm:$0xf] %v245
                %v247 = vld [vmem:[%s227 + $0x6c] sm:$0xf]
                %248 = vst [vmem:[%s228 + $0x24] sm:$0xf] %v247
                %v249 = vld [vmem:[%s227 + $0x78] sm:$0xf]
                %250 = vst [vmem:[%s228 + $0x28] sm:$0xf] %v249
                %v251 = vld [vmem:[%s227 + $0x84] sm:$0xf]
                %252 = vst [vmem:[%s228 + $0x2c] sm:$0xf] %v251
                %v253 = vld [vmem:[%s227 + $0x90] sm:$0xf]
                %254 = vst [vmem:[%s228 + $0x30] sm:$0xf] %v253
                %v255 = vld [vmem:[%s227 + $0x9c] sm:$0xf]
                %256 = vst [vmem:[%s228 + $0x34] sm:$0xf] %v255
                %v257 = vld [vmem:[%s227 + $0xa8] sm:$0xf]
                %258 = vst [vmem:[%s228 + $0x38] sm:$0xf] %v257
                %v259 = vld [vmem:[%s227 + $0xb4] sm:$0xf]
                %260 = vst [vmem:[%s228 + $0x3c] sm:$0xf] %v259
              $region49: #{gpt_forward.12} parent=43 // loop_footer
                %s226 = sadd.s32 1, %s222
              $region50: #{gpt_forward.12} parent=43 // loop_footer_branch
                %221 = sbr.rel target = $region46
              $region51: #{gpt_forward.12} parent=43 // loop_exit
                _
            $region44: #{gpt_forward.12} parent=35 // pred_fallthru
              _
          $region36: #{gpt_forward.12} parent=31 // pred_fallthru
            _
          %312 = vnop
        $region32: #{gpt_forward.12} parent=27 // pred_fallthru
          _
        // Predicated region
        $region70: #{gpt_forward.12} parent=27 // pred_check
          %p313 = pneg %p137
        $region71: #{gpt_forward.12} parent=27 // pred_check_branch
          %315 = sbr.rel (%p313) target = $region73
        $region72: #{gpt_forward.12} parent=27 // pred_region
          %p316 = scmp.lt.s32.totalorder %s19, 2
          %s317 = scalar_select %p316, %s19, 2
          %s318 = scalar_lea.vmem %s4, %s317
        $region73: #{gpt_forward.12} parent=27 // pred_fallthru
          _
      $region28: #{gpt_forward.12} parent=5 // pred_fallthru
        _
      %p319 = scmp.le.s32.totalorder 1, %s11
      %p320 = scmp.lt.s32.totalorder %s11, 4
      %p321 = pnand %p319, %p320
      %p322 = pneg %p321
      // Predicated region
      $region74: #{gpt_forward.12} parent=5 // pred_check
        _
      $region75: #{gpt_forward.12} parent=5 // pred_check_branch
        %324 = sbr.rel (%p321) target = $region77
      $region76: #{gpt_forward.12} parent=5 // pred_region
        %s325 = ssub.s32 %s11, 1
        %s326 = sand.u32 %s104, 1
        %s327 = sand.u32 %s104, 1
        %s328 = smul.addr %s327, 64
        %s329 = scalar_lea.vmem [#allocation2], %s328
        // Predicated region
        $region78: #{gpt_forward.12} parent=76 // pred_check
          %p330 = pneg %p117
        $region79: #{gpt_forward.12} parent=76 // pred_check_branch
          %332 = sbr.rel (%p330) target = $region81
        $region80: #{gpt_forward.12} parent=76 // pred_region
          _
        $region81: #{gpt_forward.12} parent=76 // pred_fallthru
          _
        %s333 = smul.u32 16, %s20
        %p334 = scmp.lt.s32.totalorder %s333, 15
        %s335 = scalar_select %p334, %s333, 15
        %s336 = smul.addr %s335, 8
        %s337 = scalar_lea.vmem %s0, %s336
        %p338 = pneg %p49
        %p339 = pneg %p46
        %p340 = pneg %p70
        %p341 = pneg %p67
        %p342 = pneg %p91
        %p343 = pneg %p88
        %s344 = sand.u32 %s104, 1
        %s345 = sand.u32 %s104, 1
        %s346 = smul.addr %s345, 64
        %s347 = scalar_lea.vmem [#allocation2], %s346
        %p348 = pneg %p117
        %p349 = pneg %p114
        %p350 = scmp.lt.s32.totalorder %s21, 2
        %s351 = scalar_select %p350, %s21, 2
        %s352 = scalar_lea.vmem %s4, %s351
        %p353 = pneg %p143
        %p354 = pneg %p140
        %p355 = pneg %p171
        %p356 = pneg %p168
        %s357 = sand.u32 %s158, 1
        %s358 = sand.u32 %s158, 1
        %s359 = smul.addr %s358, 64
        %s360 = scalar_lea.vmem [#allocation3], %s359
        %s361 = smul.u32 16, %s20
        %p362 = scmp.lt.s32.totalorder %s361, 15
        %s363 = scalar_select %p362, %s361, 15
        %s364 = smul.addr %s363, 8
        %s365 = scalar_lea.vmem %s0, %s364
        %s366 = smul.u32 16, %s20
        %p367 = scmp.lt.s32.totalorder %s21, 2
        %s368 = scalar_select %p367, %s21, 2
        %s369 = scalar_lea.vmem %s4, %s368
        %s370 = smul.u32 16, %s20
        %v372 = vld [vmem:[%s365] sm:$0xff]
        %v373 = vld [vmem:[%s365 + $0x8] sm:$0xff]
        %v374 = vld [vmem:[%s365 + $0x10] sm:$0xff]
        %v375 = vld [vmem:[%s365 + $0x18] sm:$0xff]
        %v376 = vld [vmem:[%s365 + $0x20] sm:$0xff]
        %v377 = vld [vmem:[%s365 + $0x28] sm:$0xff]
        %v378 = vld [vmem:[%s365 + $0x30] sm:$0xff]
        %v379 = vld [vmem:[%s365 + $0x38] sm:$0xff]
        %v380 = vld [vmem:[%s365 + $0x40] sm:$0xff]
        %v381 = vld [vmem:[%s365 + $0x48] sm:$0xff]
        %v382 = vld [vmem:[%s365 + $0x50] sm:$0xff]
        %v383 = vld [vmem:[%s365 + $0x58] sm:$0xff]
        %v384 = vld [vmem:[%s365 + $0x60] sm:$0xff]
        %v385 = vld [vmem:[%s365 + $0x68] sm:$0xff]
        %v386 = vld [vmem:[%s365 + $0x70] sm:$0xff]
        %v387 = vld [vmem:[%s365 + $0x78] sm:$0xff]
        %388 = vadd.xlane.f32.xlu0 %v372
        %v389 = vpop.xlane.xlu0 %388
        %390 = vadd.xlane.f32.xlu0 %v373
        %v391 = vpop.xlane.xlu0 %390
        %392 = vadd.xlane.f32.xlu0 %v374
        %v393 = vpop.xlane.xlu0 %392
        %394 = vadd.xlane.f32.xlu0 %v375
        %v395 = vpop.xlane.xlu0 %394
        %396 = vadd.xlane.f32.xlu0 %v376
        %v397 = vpop.xlane.xlu0 %396
        %398 = vadd.xlane.f32.xlu0 %v377
        %v399 = vpop.xlane.xlu0 %398
        %400 = vadd.xlane.f32.xlu0 %v378
        %v401 = vpop.xlane.xlu0 %400
        %402 = vadd.xlane.f32.xlu0 %v379
        %v403 = vpop.xlane.xlu0 %402
        %404 = vadd.xlane.f32.xlu0 %v380
        %v405 = vpop.xlane.xlu0 %404
        %406 = vadd.xlane.f32.xlu0 %v381
        %v407 = vpop.xlane.xlu0 %406
        %408 = vadd.xlane.f32.xlu0 %v382
        %v409 = vpop.xlane.xlu0 %408
        %410 = vadd.xlane.f32.xlu0 %v383
        %v411 = vpop.xlane.xlu0 %410
        %412 = vadd.xlane.f32.xlu0 %v384
        %v413 = vpop.xlane.xlu0 %412
        %414 = vadd.xlane.f32.xlu0 %v385
        %v415 = vpop.xlane.xlu0 %414
        %416 = vadd.xlane.f32.xlu0 %v386
        %v417 = vpop.xlane.xlu0 %416
        %418 = vadd.xlane.f32.xlu0 %v387
        %v419 = vpop.xlane.xlu0 %418
        %v420 = vrcp.pop 128.0
        %v421 = vmul.f32 %v389, %v420
        %v422 = vmul.f32 %v391, %v420
        %v423 = vmul.f32 %v393, %v420
        %v424 = vmul.f32 %v395, %v420
        %v425 = vmul.f32 %v397, %v420
        %v426 = vmul.f32 %v399, %v420
        %v427 = vmul.f32 %v401, %v420
        %v428 = vmul.f32 %v403, %v420
        %v429 = vmul.f32 %v405, %v420
        %v430 = vmul.f32 %v407, %v420
        %v431 = vmul.f32 %v409, %v420
        %v432 = vmul.f32 %v411, %v420
        %v433 = vmul.f32 %v413, %v420
        %v434 = vmul.f32 %v415, %v420
        %v435 = vmul.f32 %v417, %v420
        %v436 = vmul.f32 %v419, %v420
        %v437 = vsub.f32 %v372, %v421
        %v438 = vsub.f32 %v373, %v422
        %v439 = vsub.f32 %v374, %v423
        %v440 = vsub.f32 %v375, %v424
        %v441 = vsub.f32 %v376, %v425
        %v442 = vsub.f32 %v377, %v426
        %v443 = vsub.f32 %v378, %v427
        %v444 = vsub.f32 %v379, %v428
        %v445 = vsub.f32 %v380, %v429
        %v446 = vsub.f32 %v381, %v430
        %v447 = vsub.f32 %v382, %v431
        %v448 = vsub.f32 %v383, %v432
        %v449 = vsub.f32 %v384, %v433
        %v450 = vsub.f32 %v385, %v434
        %v451 = vsub.f32 %v386, %v435
        %v452 = vsub.f32 %v387, %v436
        %v453 = vmul.f32 %v437, %v437
        %v454 = vmul.f32 %v438, %v438
        %v455 = vmul.f32 %v439, %v439
        %v456 = vmul.f32 %v440, %v440
        %v457 = vmul.f32 %v441, %v441
        %v458 = vmul.f32 %v442, %v442
        %v459 = vmul.f32 %v443, %v443
        %v460 = vmul.f32 %v444, %v444
        %v461 = vmul.f32 %v445, %v445
        %v462 = vmul.f32 %v446, %v446
        %v463 = vmul.f32 %v447, %v447
        %v464 = vmul.f32 %v448, %v448
        %v465 = vmul.f32 %v449, %v449
        %v466 = vmul.f32 %v450, %v450
        %v467 = vmul.f32 %v451, %v451
        %v468 = vmul.f32 %v452, %v452
        %469 = vadd.xlane.f32.xlu0 %v453
        %v470 = vpop.xlane.xlu0 %469
        %471 = vadd.xlane.f32.xlu0 %v454
        %v472 = vpop.xlane.xlu0 %471
        %473 = vadd.xlane.f32.xlu0 %v455
        %v474 = vpop.xlane.xlu0 %473
        %475 = vadd.xlane.f32.xlu0 %v456
        %v476 = vpop.xlane.xlu0 %475
        %477 = vadd.xlane.f32.xlu0 %v457
        %v478 = vpop.xlane.xlu0 %477
        %479 = vadd.xlane.f32.xlu0 %v458
        %v480 = vpop.xlane.xlu0 %479
        %481 = vadd.xlane.f32.xlu0 %v459
        %v482 = vpop.xlane.xlu0 %481
        %483 = vadd.xlane.f32.xlu0 %v460
        %v484 = vpop.xlane.xlu0 %483
        %485 = vadd.xlane.f32.xlu0 %v461
        %v486 = vpop.xlane.xlu0 %485
        %487 = vadd.xlane.f32.xlu0 %v462
        %v488 = vpop.xlane.xlu0 %487
        %489 = vadd.xlane.f32.xlu0 %v463
        %v490 = vpop.xlane.xlu0 %489
        %491 = vadd.xlane.f32.xlu0 %v464
        %v492 = vpop.xlane.xlu0 %491
        %493 = vadd.xlane.f32.xlu0 %v465
        %v494 = vpop.xlane.xlu0 %493
        %495 = vadd.xlane.f32.xlu0 %v466
        %v496 = vpop.xlane.xlu0 %495
        %497 = vadd.xlane.f32.xlu0 %v467
        %v498 = vpop.xlane.xlu0 %497
        %499 = vadd.xlane.f32.xlu0 %v468
        %v500 = vpop.xlane.xlu0 %499
        %v501 = vmul.f32 %v470, %v420
        %v502 = vmul.f32 %v472, %v420
        %v503 = vmul.f32 %v474, %v420
        %v504 = vmul.f32 %v476, %v420
        %v505 = vmul.f32 %v478, %v420
        %v506 = vmul.f32 %v480, %v420
        %v507 = vmul.f32 %v482, %v420
        %v508 = vmul.f32 %v484, %v420
        %v509 = vmul.f32 %v486, %v420
        %v510 = vmul.f32 %v488, %v420
        %v511 = vmul.f32 %v490, %v420
        %v512 = vmul.f32 %v492, %v420
        %v513 = vmul.f32 %v494, %v420
        %v514 = vmul.f32 %v496, %v420
        %v515 = vmul.f32 %v498, %v420
        %v516 = vmul.f32 %v500, %v420
        %v517 = vadd.f32 %v501, 1e-05
        %v518 = vadd.f32 %v502, 1e-05
        %v519 = vadd.f32 %v503, 1e-05
        %v520 = vadd.f32 %v504, 1e-05
        %v521 = vadd.f32 %v505, 1e-05
        %v522 = vadd.f32 %v506, 1e-05
        %v523 = vadd.f32 %v507, 1e-05
        %v524 = vadd.f32 %v508, 1e-05
        %v525 = vadd.f32 %v509, 1e-05
        %v526 = vadd.f32 %v510, 1e-05
        %v527 = vadd.f32 %v511, 1e-05
        %v528 = vadd.f32 %v512, 1e-05
        %v529 = vadd.f32 %v513, 1e-05
        %v530 = vadd.f32 %v514, 1e-05
        %v531 = vadd.f32 %v515, 1e-05
        %v532 = vadd.f32 %v516, 1e-05
        %v533 = vrsqrt.pop %v517
        %v534 = vrsqrt.pop %v518
        %v535 = vrsqrt.pop %v519
        %v536 = vrsqrt.pop %v520
        %v537 = vrsqrt.pop %v521
        %v538 = vrsqrt.pop %v522
        %v539 = vrsqrt.pop %v523
        %v540 = vrsqrt.pop %v524
        %v541 = vrsqrt.pop %v525
        %v542 = vrsqrt.pop %v526
        %v543 = vrsqrt.pop %v527
        %v544 = vrsqrt.pop %v528
        %v545 = vrsqrt.pop %v529
        %v546 = vrsqrt.pop %v530
        %v547 = vrsqrt.pop %v531
        %v548 = vrsqrt.pop %v532
        %v549 = vmul.f32 %v437, %v533
        %v550 = vmul.f32 %v438, %v534
        %v551 = vmul.f32 %v439, %v535
        %v552 = vmul.f32 %v440, %v536
        %v553 = vmul.f32 %v441, %v537
        %v554 = vmul.f32 %v442, %v538
        %v555 = vmul.f32 %v443, %v539
        %v556 = vmul.f32 %v444, %v540
        %v557 = vmul.f32 %v445, %v541
        %v558 = vmul.f32 %v446, %v542
        %v559 = vmul.f32 %v447, %v543
        %v560 = vmul.f32 %v448, %v544
        %v561 = vmul.f32 %v449, %v545
        %v562 = vmul.f32 %v450, %v546
        %v563 = vmul.f32 %v451, %v547
        %v564 = vmul.f32 %v452, %v548
        %v565 = vld [vmem:[%s1] sm:$0x1]
        %v567 = vlaneseq
        %v568 = vshrl.u32 %v567, 7
        %v569 = vsub.s32 0, %v568
        %v570 = vrot.slane %v565, %v569
        %v572 = vmul.f32 %v549, %v570
        %v573 = vmul.f32 %v550, %v570
        %v574 = vmul.f32 %v551, %v570
        %v575 = vmul.f32 %v552, %v570
        %v576 = vmul.f32 %v553, %v570
        %v577 = vmul.f32 %v554, %v570
        %v578 = vmul.f32 %v555, %v570
        %v579 = vmul.f32 %v556, %v570
        %v580 = vmul.f32 %v557, %v570
        %v581 = vmul.f32 %v558, %v570
        %v582 = vmul.f32 %v559, %v570
        %v583 = vmul.f32 %v560, %v570
        %v584 = vmul.f32 %v561, %v570
        %v585 = vmul.f32 %v562, %v570
        %v586 = vmul.f32 %v563, %v570
        %v587 = vmul.f32 %v564, %v570
        %v588 = vld [vmem:[%s2] sm:$0x1]
        %v590 = vlaneseq
        %v591 = vshrl.u32 %v590, 7
        %v592 = vsub.s32 0, %v591
        %v593 = vrot.slane %v588, %v592
        %v595 = vadd.f32 %v572, %v593
        %v596 = vadd.f32 %v573, %v593
        %v597 = vadd.f32 %v574, %v593
        %v598 = vadd.f32 %v575, %v593
        %v599 = vadd.f32 %v576, %v593
        %v600 = vadd.f32 %v577, %v593
        %v601 = vadd.f32 %v578, %v593
        %v602 = vadd.f32 %v579, %v593
        %v603 = vadd.f32 %v580, %v593
        %v604 = vadd.f32 %v581, %v593
        %v605 = vadd.f32 %v582, %v593
        %v606 = vadd.f32 %v583, %v593
        %v607 = vadd.f32 %v584, %v593
        %v608 = vadd.f32 %v585, %v593
        %v609 = vadd.f32 %v586, %v593
        %v610 = vadd.f32 %v587, %v593
        %v611 = vpack.c.bf16 %v596, %v595
        %v612 = vpack.c.bf16 %v598, %v597
        %v613 = vpack.c.bf16 %v600, %v599
        %v614 = vpack.c.bf16 %v602, %v601
        %v615 = vpack.c.bf16 %v604, %v603
        %v616 = vpack.c.bf16 %v606, %v605
        %v617 = vpack.c.bf16 %v608, %v607
        %v618 = vpack.c.bf16 %v610, %v609
        %v619 = vld [vmem:[%s329] sm:$0xf]
        %v620 = vld [vmem:[%s329 + $0x4] sm:$0xf]
        %v621 = vld [vmem:[%s329 + $0x8] sm:$0xf]
        %v622 = vld [vmem:[%s329 + $0xc] sm:$0xf]
        %v623 = vld [vmem:[%s329 + $0x10] sm:$0xf]
        %v624 = vld [vmem:[%s329 + $0x14] sm:$0xf]
        %v625 = vld [vmem:[%s329 + $0x18] sm:$0xf]
        %v626 = vld [vmem:[%s329 + $0x1c] sm:$0xf]
        %v627 = vld [vmem:[%s329 + $0x20] sm:$0xf]
        %v628 = vld [vmem:[%s329 + $0x24] sm:$0xf]
        %v629 = vld [vmem:[%s329 + $0x28] sm:$0xf]
        %v630 = vld [vmem:[%s329 + $0x2c] sm:$0xf]
        %v631 = vld [vmem:[%s329 + $0x30] sm:$0xf]
        %v632 = vld [vmem:[%s329 + $0x34] sm:$0xf]
        %v633 = vld [vmem:[%s329 + $0x38] sm:$0xf]
        %v634 = vld [vmem:[%s329 + $0x3c] sm:$0xf]
        %v635 = vld [vmem:[%s369] sm:$0x1]
        %v637 = vlaneseq
        %v638 = vshrl.u32 %v637, 7
        %v639 = vsub.s32 0, %v638
        %v640 = vrot.slane %v635, %v639
        %v658 = vunpack.c.l.b16 %v619
        %v659 = vunpack.c.l.b16 %v620
        %v660 = vunpack.c.l.b16 %v621
        %v661 = vunpack.c.l.b16 %v622
        %v662 = vunpack.c.l.b16 %v623
        %v663 = vunpack.c.l.b16 %v624
        %v664 = vunpack.c.l.b16 %v625
        %v665 = vunpack.c.l.b16 %v626
        %v666 = vunpack.c.l.b16 %v627
        %v667 = vunpack.c.l.b16 %v628
        %v668 = vunpack.c.l.b16 %v629
        %v669 = vunpack.c.l.b16 %v630
        %v670 = vunpack.c.l.b16 %v631
        %v671 = vunpack.c.l.b16 %v632
        %v672 = vunpack.c.l.b16 %v633
        %v673 = vunpack.c.l.b16 %v634
        %v674 = vpack.c.b16 %v659, %v658
        %v675 = vpack.c.b16 %v661, %v660
        %v676 = vpack.c.b16 %v663, %v662
        %v677 = vpack.c.b16 %v665, %v664
        %v678 = vpack.c.b16 %v667, %v666
        %v679 = vpack.c.b16 %v669, %v668
        %v680 = vpack.c.b16 %v671, %v670
        %v681 = vpack.c.b16 %v673, %v672
        %690 = vmatprep.subr.bf16.mxu0 0
        %691 = vmatpush1.bf16.msra.mxu0 %v674
        %692 = vmatprep.subr.bf16.mxu0 0
        %693 = vmatpush1.bf16.msra.mxu0 %v675
        %694 = vmatprep.subr.bf16.mxu0 0
        %695 = vmatpush1.bf16.msra.mxu0 %v676
        %696 = vmatprep.subr.bf16.mxu0 0
        %697 = vmatpush1.bf16.msra.mxu0 %v677
        %698 = vmatprep.subr.bf16.mxu0 0
        %699 = vmatpush1.bf16.msra.mxu0 %v678
        %700 = vmatprep.subr.bf16.mxu0 0
        %701 = vmatpush1.bf16.msra.mxu0 %v679
        %702 = vmatprep.subr.bf16.mxu0 0
        %703 = vmatpush1.bf16.msra.mxu0 %v680
        %704 = vmatprep.subr.bf16.mxu0 0
        %705 = vmatpush1.bf16.msra.mxu0 %v681
        %706 = vmatprep.subr.bf16.mxu0 0
        %707 = vmatpush1.bf16.msra.mxu0 0
        %708 = vmatprep.subr.bf16.mxu0 0
        %709 = vmatpush1.bf16.msra.mxu0 0
        %710 = vmatprep.subr.bf16.mxu0 0
        %711 = vmatpush1.bf16.msra.mxu0 0
        %712 = vmatprep.subr.bf16.mxu0 0
        %713 = vmatpush1.bf16.msra.mxu0 0
        %714 = vmatprep.subr.bf16.mxu0 0
        %715 = vmatpush1.bf16.msra.mxu0 0
        %716 = vmatprep.subr.bf16.mxu0 0
        %717 = vmatpush1.bf16.msra.mxu0 0
        %718 = vmatprep.subr.bf16.mxu0 0
        %719 = vmatpush1.bf16.msra.mxu0 0
        %720 = vmatprep.subr.bf16.mxu0 0
        %721 = vmatpush1.bf16.msra.mxu0 0
        %722 = vmatprep.mubr.bf16.mxu0 0
        %723 = vmatmul.mubr.bf16.gmra.mrb[0].mxu0 %v611
        %v724 = vpop.f32.mrb[0].mxu0
        %v725 = vadd.f32 %v640, %v724
        %v726 = vpop.f32.mrb[0].mxu0
        %v727 = vpop.f32.mrb[0].mxu0
        %v728 = vadd.f32 %v640, %v727
        %v729 = vpop.f32.mrb[0].mxu0
        %730 = vmatprep.mubr.bf16.mxu0 0
        %731 = vmatmul.mubr.bf16.gmra.mrb[0].mxu0 %v612
        %v732 = vpop.f32.mrb[0].mxu0
        %v733 = vadd.f32 %v640, %v732
        %v734 = vpop.f32.mrb[0].mxu0
        %v735 = vpop.f32.mrb[0].mxu0
        %v736 = vadd.f32 %v640, %v735
        %v737 = vpop.f32.mrb[0].mxu0
        %738 = vmatprep.mubr.bf16.mxu0 0
        %739 = vmatmul.mubr.bf16.gmra.mrb[0].mxu0 %v613
        %v740 = vpop.f32.mrb[0].mxu0
        %v741 = vadd.f32 %v640, %v740
        %v742 = vpop.f32.mrb[0].mxu0
        %v743 = vpop.f32.mrb[0].mxu0
        %v744 = vadd.f32 %v640, %v743
        %v745 = vpop.f32.mrb[0].mxu0
        %746 = vmatprep.mubr.bf16.mxu0 0
        %747 = vmatmul.mubr.bf16.gmra.mrb[0].mxu0 %v614
        %v748 = vpop.f32.mrb[0].mxu0
        %v749 = vadd.f32 %v640, %v748
        %v750 = vpop.f32.mrb[0].mxu0
        %v751 = vpop.f32.mrb[0].mxu0
        %v752 = vadd.f32 %v640, %v751
        %v753 = vpop.f32.mrb[0].mxu0
        %754 = vmatprep.mubr.bf16.mxu0 0
        %755 = vmatmul.mubr.bf16.gmra.mrb[0].mxu0 %v615
        %v756 = vpop.f32.mrb[0].mxu0
        %v757 = vadd.f32 %v640, %v756
        %v758 = vpop.f32.mrb[0].mxu0
        %v759 = vpop.f32.mrb[0].mxu0
        %v760 = vadd.f32 %v640, %v759
        %v761 = vpop.f32.mrb[0].mxu0
        %762 = vmatprep.mubr.bf16.mxu0 0
        %763 = vmatmul.mubr.bf16.gmra.mrb[0].mxu0 %v616
        %v764 = vpop.f32.mrb[0].mxu0
        %v765 = vadd.f32 %v640, %v764
        %v766 = vpop.f32.mrb[0].mxu0
        %v767 = vpop.f32.mrb[0].mxu0
        %v768 = vadd.f32 %v640, %v767
        %v769 = vpop.f32.mrb[0].mxu0
        %770 = vmatprep.mubr.bf16.mxu0 0
        %771 = vmatmul.mubr.bf16.gmra.mrb[0].mxu0 %v617
        %v772 = vpop.f32.mrb[0].mxu0
        %v773 = vadd.f32 %v640, %v772
        %v774 = vpop.f32.mrb[0].mxu0
        %v775 = vpop.f32.mrb[0].mxu0
        %v776 = vadd.f32 %v640, %v775
        %v777 = vpop.f32.mrb[0].mxu0
        %778 = vmatprep.mubr.bf16.mxu0 0
        %779 = vmatmul.mubr.bf16.gmra.mrb[0].mxu0 %v618
        %v780 = vpop.f32.mrb[0].mxu0
        %v781 = vadd.f32 %v640, %v780
        %v782 = vpop.f32.mrb[0].mxu0
        %v783 = vpop.f32.mrb[0].mxu0
        %v784 = vadd.f32 %v640, %v783
        %v785 = vpop.f32.mrb[0].mxu0
        %786 = vdwg.mxu0
        %v787 = vpack.c.bf16 %v728, %v725
        %v788 = vpack.c.bf16 %v736, %v733
        %v789 = vpack.c.bf16 %v744, %v741
        %v790 = vpack.c.bf16 %v752, %v749
        %v791 = vpack.c.bf16 %v760, %v757
        %v792 = vpack.c.bf16 %v768, %v765
        %v793 = vpack.c.bf16 %v776, %v773
        %v794 = vpack.c.bf16 %v784, %v781
        %v803 = vunpack.c.l.b16 %v787
        %v804 = vunpack.c.h.b16 %v787
        %v805 = vunpack.c.l.b16 %v788
        %v806 = vunpack.c.h.b16 %v788
        %v807 = vunpack.c.l.b16 %v789
        %v808 = vunpack.c.h.b16 %v789
        %v809 = vunpack.c.l.b16 %v790
        %v810 = vunpack.c.h.b16 %v790
        %v811 = vunpack.c.l.b16 %v791
        %v812 = vunpack.c.h.b16 %v791
        %v813 = vunpack.c.l.b16 %v792
        %v814 = vunpack.c.h.b16 %v792
        %v815 = vunpack.c.l.b16 %v793
        %v816 = vunpack.c.h.b16 %v793
        %v817 = vunpack.c.l.b16 %v794
        %v818 = vunpack.c.h.b16 %v794
        %v819 = vpack.c.b16 %v803, %v803
        %v820 = vpack.c.b16 %v804, %v804
        %v821 = vpack.c.b16 %v805, %v805
        %v822 = vpack.c.b16 %v806, %v806
        %v823 = vpack.c.b16 %v807, %v807
        %v824 = vpack.c.b16 %v808, %v808
        %v825 = vpack.c.b16 %v809, %v809
        %v826 = vpack.c.b16 %v810, %v810
        %v827 = vpack.c.b16 %v811, %v811
        %v828 = vpack.c.b16 %v812, %v812
        %v829 = vpack.c.b16 %v813, %v813
        %v830 = vpack.c.b16 %v814, %v814
        %v831 = vpack.c.b16 %v815, %v815
        %v832 = vpack.c.b16 %v816, %v816
        %v833 = vpack.c.b16 %v817, %v817
        %v834 = vpack.c.b16 %v818, %v818
        %851 = vst [vmem:[%s360] sm:$0xf] %v819
        %852 = vst [vmem:[%s360 + $0x4] sm:$0xf] %v820
        %853 = vst [vmem:[%s360 + $0x8] sm:$0xf] %v821
        %854 = vst [vmem:[%s360 + $0xc] sm:$0xf] %v822
        %855 = vst [vmem:[%s360 + $0x10] sm:$0xf] %v823
        %856 = vst [vmem:[%s360 + $0x14] sm:$0xf] %v824
        %857 = vst [vmem:[%s360 + $0x18] sm:$0xf] %v825
        %858 = vst [vmem:[%s360 + $0x1c] sm:$0xf] %v826
        %859 = vst [vmem:[%s360 + $0x20] sm:$0xf] %v827
        %860 = vst [vmem:[%s360 + $0x24] sm:$0xf] %v828
        %861 = vst [vmem:[%s360 + $0x28] sm:$0xf] %v829
        %862 = vst [vmem:[%s360 + $0x2c] sm:$0xf] %v830
        %863 = vst [vmem:[%s360 + $0x30] sm:$0xf] %v831
        %864 = vst [vmem:[%s360 + $0x34] sm:$0xf] %v832
        %865 = vst [vmem:[%s360 + $0x38] sm:$0xf] %v833
        %866 = vst [vmem:[%s360 + $0x3c] sm:$0xf] %v834
        %s867 = sand.u32 %s158, 1
        %s868 = sand.u32 %s158, 1
        %s869 = smul.addr %s868, 64
        %s870 = scalar_lea.vmem [#allocation3], %s869
        // Predicated region
        $region82: #{gpt_forward.12} parent=76 // pred_check
          %p871 = pneg %p168
        $region83: #{gpt_forward.12} parent=76 // pred_check_branch
          %873 = sbr.rel (%p871) target = $region85
        $region84: #{gpt_forward.12} parent=76 // pred_region
          %s874 = smul.u32 16, %s20
          %s875 = smul.addr %s874, 3
          %s876 = sadd.s32 %s21, %s875
          %s877 = smul.addr %s876, 4
          %s878 = scalar_lea.vmem %s5, %s877
          // Predicated region
          $region86: #{gpt_forward.12} parent=84 // pred_check
            _
          $region87: #{gpt_forward.12} parent=84 // pred_check_branch
            %880 = sbr.rel (0) target = $region89
          $region88: #{gpt_forward.12} parent=84 // pred_region
            // Predicated region
            $region90: #{gpt_forward.12} parent=88 // pred_check
              _
            $region91: #{gpt_forward.12} parent=88 // pred_check_branch
              %882 = sbr.rel target = $region93
            $region92: #{gpt_forward.12} parent=88 // pred_region
              // Predicated region
              $region105: #{gpt_forward.12} parent=92 // pred_check
                _
              $region106: #{gpt_forward.12} parent=92 // pred_check_branch
                %927 = sbr.rel (0) target = $region108
              $region107: #{gpt_forward.12} parent=92 // pred_region
                loop: start=0, step=1, limit=1
                $region109: #{gpt_forward.12} parent=107 // loop_pre_header
                  _
                $region110: #{gpt_forward.12} parent=107 // loop_header
                  %s929 = sphi 0, %s933
                  %p930 = scmp.ge.s32.totalorder %s929, 1
                  %s934 = sphi %s870, %s870
                  %s935 = sphi %s878, %s878
                $region111: #{gpt_forward.12} parent=107 // loop_header_branch
                  %932 = sbr.rel (%p930) target = $region115
                $region112: #{gpt_forward.12} parent=107 // loop_body
                  _
                $region113: #{gpt_forward.12} parent=107 // loop_footer
                  %s933 = sadd.s32 1, %s929
                $region114: #{gpt_forward.12} parent=107 // loop_footer_branch
                  %928 = sbr.rel target = $region110
                $region115: #{gpt_forward.12} parent=107 // loop_exit
                  _
                loop: start=0, step=1, limit=1
                $region116: #{gpt_forward.12} parent=107 // loop_pre_header
                  _
                $region117: #{gpt_forward.12} parent=107 // loop_header
                  %s938 = sphi 0, %s942
                  %p939 = scmp.ge.s32.totalorder %s938, 1
                  %s943 = sphi %s870, %s870
                  %s944 = sphi %s878, %s878
                $region118: #{gpt_forward.12} parent=107 // loop_header_branch
                  %941 = sbr.rel (%p939) target = $region122
                $region119: #{gpt_forward.12} parent=107 // loop_body
                  %v945 = vld [vmem:[%s943] sm:$0xf]
                  %946 = vst [vmem:[%s944] sm:$0xf] %v945
                  %v947 = vld [vmem:[%s943 + $0x4] sm:$0xf]
                  %948 = vst [vmem:[%s944 + $0xc] sm:$0xf] %v947
                  %v949 = vld [vmem:[%s943 + $0x8] sm:$0xf]
                  %950 = vst [vmem:[%s944 + $0x18] sm:$0xf] %v949
                  %v951 = vld [vmem:[%s943 + $0xc] sm:$0xf]
                  %952 = vst [vmem:[%s944 + $0x24] sm:$0xf] %v951
                  %v953 = vld [vmem:[%s943 + $0x10] sm:$0xf]
                  %954 = vst [vmem:[%s944 + $0x30] sm:$0xf] %v953
                  %v955 = vld [vmem:[%s943 + $0x14] sm:$0xf]
                  %956 = vst [vmem:[%s944 + $0x3c] sm:$0xf] %v955
                  %v957 = vld [vmem:[%s943 + $0x18] sm:$0xf]
                  %958 = vst [vmem:[%s944 + $0x48] sm:$0xf] %v957
                  %v959 = vld [vmem:[%s943 + $0x1c] sm:$0xf]
                  %960 = vst [vmem:[%s944 + $0x54] sm:$0xf] %v959
                  %v961 = vld [vmem:[%s943 + $0x20] sm:$0xf]
                  %962 = vst [vmem:[%s944 + $0x60] sm:$0xf] %v961
                  %v963 = vld [vmem:[%s943 + $0x24] sm:$0xf]
                  %964 = vst [vmem:[%s944 + $0x6c] sm:$0xf] %v963
                  %v965 = vld [vmem:[%s943 + $0x28] sm:$0xf]
                  %966 = vst [vmem:[%s944 + $0x78] sm:$0xf] %v965
                  %v967 = vld [vmem:[%s943 + $0x2c] sm:$0xf]
                  %968 = vst [vmem:[%s944 + $0x84] sm:$0xf] %v967
                  %v969 = vld [vmem:[%s943 + $0x30] sm:$0xf]
                  %970 = vst [vmem:[%s944 + $0x90] sm:$0xf] %v969
                  %v971 = vld [vmem:[%s943 + $0x34] sm:$0xf]
                  %972 = vst [vmem:[%s944 + $0x9c] sm:$0xf] %v971
                  %v973 = vld [vmem:[%s943 + $0x38] sm:$0xf]
                  %974 = vst [vmem:[%s944 + $0xa8] sm:$0xf] %v973
                  %v975 = vld [vmem:[%s943 + $0x3c] sm:$0xf]
                  %976 = vst [vmem:[%s944 + $0xb4] sm:$0xf] %v975
                $region120: #{gpt_forward.12} parent=107 // loop_footer
                  %s942 = sadd.s32 1, %s938
                $region121: #{gpt_forward.12} parent=107 // loop_footer_branch
                  %937 = sbr.rel target = $region117
                $region122: #{gpt_forward.12} parent=107 // loop_exit
                  _
              $region108: #{gpt_forward.12} parent=92 // pred_fallthru
                _
            $region93: #{gpt_forward.12} parent=88 // pred_fallthru
              _
            // Predicated region
            $region94: #{gpt_forward.12} parent=88 // pred_check
              _
            $region95: #{gpt_forward.12} parent=88 // pred_check_branch
              %884 = sbr.rel (0) target = $region97
            $region96: #{gpt_forward.12} parent=88 // pred_region
              loop: start=0, step=1, limit=1
              $region98: #{gpt_forward.12} parent=96 // loop_pre_header
                _
              $region99: #{gpt_forward.12} parent=96 // loop_header
                %s887 = sphi 0, %s891
                %p888 = scmp.ge.s32.totalorder %s887, 1
                %s892 = sphi %s870, %s870
                %s893 = sphi %s878, %s878
              $region100: #{gpt_forward.12} parent=96 // loop_header_branch
                %890 = sbr.rel (%p888) target = $region104
              $region101: #{gpt_forward.12} parent=96 // loop_body
                %v894 = vld [vmem:[%s892] sm:$0xf]
                %895 = vst [vmem:[%s893] sm:$0xf] %v894
                %v896 = vld [vmem:[%s892 + $0x4] sm:$0xf]
                %897 = vst [vmem:[%s893 + $0xc] sm:$0xf] %v896
                %v898 = vld [vmem:[%s892 + $0x8] sm:$0xf]
                %899 = vst [vmem:[%s893 + $0x18] sm:$0xf] %v898
                %v900 = vld [vmem:[%s892 + $0xc] sm:$0xf]
                %901 = vst [vmem:[%s893 + $0x24] sm:$0xf] %v900
                %v902 = vld [vmem:[%s892 + $0x10] sm:$0xf]
                %903 = vst [vmem:[%s893 + $0x30] sm:$0xf] %v902
                %v904 = vld [vmem:[%s892 + $0x14] sm:$0xf]
                %905 = vst [vmem:[%s893 + $0x3c] sm:$0xf] %v904
                %v906 = vld [vmem:[%s892 + $0x18] sm:$0xf]
                %907 = vst [vmem:[%s893 + $0x48] sm:$0xf] %v906
                %v908 = vld [vmem:[%s892 + $0x1c] sm:$0xf]
                %909 = vst [vmem:[%s893 + $0x54] sm:$0xf] %v908
                %v910 = vld [vmem:[%s892 + $0x20] sm:$0xf]
                %911 = vst [vmem:[%s893 + $0x60] sm:$0xf] %v910
                %v912 = vld [vmem:[%s892 + $0x24] sm:$0xf]
                %913 = vst [vmem:[%s893 + $0x6c] sm:$0xf] %v912
                %v914 = vld [vmem:[%s892 + $0x28] sm:$0xf]
                %915 = vst [vmem:[%s893 + $0x78] sm:$0xf] %v914
                %v916 = vld [vmem:[%s892 + $0x2c] sm:$0xf]
                %917 = vst [vmem:[%s893 + $0x84] sm:$0xf] %v916
                %v918 = vld [vmem:[%s892 + $0x30] sm:$0xf]
                %919 = vst [vmem:[%s893 + $0x90] sm:$0xf] %v918
                %v920 = vld [vmem:[%s892 + $0x34] sm:$0xf]
                %921 = vst [vmem:[%s893 + $0x9c] sm:$0xf] %v920
                %v922 = vld [vmem:[%s892 + $0x38] sm:$0xf]
                %923 = vst [vmem:[%s893 + $0xa8] sm:$0xf] %v922
                %v924 = vld [vmem:[%s892 + $0x3c] sm:$0xf]
                %925 = vst [vmem:[%s893 + $0xb4] sm:$0xf] %v924
              $region102: #{gpt_forward.12} parent=96 // loop_footer
                %s891 = sadd.s32 1, %s887
              $region103: #{gpt_forward.12} parent=96 // loop_footer_branch
                %886 = sbr.rel target = $region99
              $region104: #{gpt_forward.12} parent=96 // loop_exit
                _
            $region97: #{gpt_forward.12} parent=88 // pred_fallthru
              _
          $region89: #{gpt_forward.12} parent=84 // pred_fallthru
            _
          %977 = vnop
        $region85: #{gpt_forward.12} parent=76 // pred_fallthru
          _
      $region77: #{gpt_forward.12} parent=5 // pred_fallthru
        _
      %p978 = scmp.le.s32.totalorder 2, %s11
      // Predicated region
      $region123: #{gpt_forward.12} parent=5 // pred_check
        %p979 = pneg %p978
      $region124: #{gpt_forward.12} parent=5 // pred_check_branch
        %981 = sbr.rel (%p979) target = $region126
      $region125: #{gpt_forward.12} parent=5 // pred_region
        %s982 = ssub.s32 %s11, 2
        // Predicated region
        $region127: #{gpt_forward.12} parent=125 // pred_check
          %p983 = pneg %p174
        $region128: #{gpt_forward.12} parent=125 // pred_check_branch
          %985 = sbr.rel (%p983) target = $region130
        $region129: #{gpt_forward.12} parent=125 // pred_region
          %s986 = sand.u32 %s159, 1
          %s987 = sand.u32 %s159, 1
          %s988 = smul.addr %s987, 64
          %s989 = scalar_lea.vmem [#allocation3], %s988
        $region130: #{gpt_forward.12} parent=125 // pred_fallthru
          _
      $region126: #{gpt_forward.12} parent=5 // pred_fallthru
        _
    $region6: #{gpt_forward.12} parent=1 // loop_footer
      %s15 = sadd.s32 1, %s11
    $region7: #{gpt_forward.12} parent=1 // loop_footer_branch
      %10 = sbr.rel target = $region3
    $region8: #{gpt_forward.12} parent=1 // loop_exit
      _

// kernel: gpt_forward.15
$region0: #{gpt_forward.15}
  #allocation0 [shape = 'u32[]', space=smem, size = 0x4, offset = 0x4, fixed_abs, tag = 'smem constant byte address 0x4 - core index']
  #allocation1 [shape = 'u32[144,128]{1,0:T(1,128)}', space=vmem, size = 0x12000, scoped, tag = 'internal scratch']
  %s0 = inlined_call_operand.vmem [shape: f32[128,128], index: 0, kind: input, shape index: {}]
  %s1 = inlined_call_operand.vmem [shape: f32[1,128], index: 1, kind: input, shape index: {}]
  %s2 = inlined_call_operand.vmem [shape: f32[1,128], index: 2, kind: input, shape index: {}]
  %s3 = inlined_call_operand.vmem [shape: bf16[128,512], index: 3, kind: input, shape index: {}]
  %s4 = inlined_call_operand.vmem [shape: f32[1,512], index: 4, kind: input, shape index: {}]
  %s5 = inlined_call_operand.vmem [shape: bf16[128,512], index: 5, kind: output, shape index: {}]
  %s6 = sld [smem:[#allocation0]]
  $region125: #{gpt_forward.15} parent=0
    _
  %s8 = ssub.s32 1, %s6
  %s9 = scalar_select 0, %s8, %s6
  $region1: #{gpt_forward.15} parent=0
    #allocation2 [shape = 'u8[131072]{0}', space=vmem, size = 0x20000, scoped, tag = 'input window, operand 3']
    #allocation3 [shape = 'u8[131072]{0}', space=vmem, size = 0x20000, scoped, tag = 'output window, operand 0']
    loop: start=0, step=1, limit=4
    $region2: #{gpt_forward.15} parent=1 // loop_pre_header
      _
    $region3: #{gpt_forward.15} parent=1 // loop_header
      %s11 = sphi 0, %s15
      %p12 = scmp.ge.s32.totalorder %s11, 4
      %s18 = sphi 0, %s30
      %s19 = sphi 0, %s26
      %s20 = sphi 0, %s18
      %s21 = sphi 0, %s19
      %s22 = sphi 0, %s20
      %s23 = sphi 0, %s21
      %s33 = sphi 0, %s35
      %s36 = sphi 0, %s33
      %s37 = sphi 0, %s36
      %s53 = sphi 0, %s37
      %s57 = sphi 0, %s57
      %s59 = sphi 0, %s57
      %s60 = sphi 0, %s59
      %s74 = sphi 0, %s60
      %s78 = sphi 0, %s78
      %s80 = sphi 0, %s78
      %s81 = sphi 0, %s80
      %s95 = sphi 0, %s81
      %s101 = sphi 0, %s103
      %s104 = sphi 0, %s101
      %s105 = sphi 0, %s104
      %s121 = sphi 0, %s105
      %s127 = sphi 0, %s129
      %s130 = sphi 0, %s127
      %s131 = sphi 0, %s130
      %s147 = sphi 0, %s131
      %s155 = sphi 0, %s157
      %s158 = sphi 0, %s155
      %s159 = sphi 0, %s158
      %s175 = sphi 0, %s159
    $region4: #{gpt_forward.15} parent=1 // loop_header_branch
      %14 = sbr.rel (%p12) target = $region8
    $region5: #{gpt_forward.15} parent=1 // loop_body
      %s16 = ssub.s32 %s11, 1
      %s17 = ssub.s32 %s11, 2
      %s24 = sadd.s32 1, %s19
      %p25 = scmp.ge.s32.totalorder %s24, 2
      %s26 = scalar_select %p25, 0, %s24
      %s27 = sadd.s32 1, %s18
      %s28 = scalar_select %p25, %s27, %s18
      %p29 = scmp.ge.s32.totalorder %s28, 1
      %s30 = scalar_select %p29, 0, %s28
      %s31 = ssub.s32 %s18, %s30
      %p32 = scmp.eq.s32.totalorder %s31, 0
      %s34 = sadd.s32 %s33, 1
      %s35 = scalar_select %p32, %s33, %s34
      %p38 = pneg %p32
      %p39 = scmp.eq.s32.totalorder %s11, 1
      %p40 = por %p38, %p39
      %p41 = scmp.ne.s32.totalorder %s33, %s36
      %p42 = scmp.eq.s32.totalorder %s11, 0
      %p43 = por %p41, %p42
      %p44 = scmp.ne.s32.totalorder %s33, %s36
      %p45 = scmp.eq.s32.totalorder %s16, 1
      %p46 = por %p44, %p45
      %p47 = scmp.ne.s32.totalorder %s36, %s37
      %p48 = scmp.eq.s32.totalorder %s16, 0
      %p49 = por %p47, %p48
      %p50 = scmp.ne.s32.totalorder %s36, %s37
      %p51 = scmp.eq.s32.totalorder %s17, 1
      %p52 = por %p50, %p51
      %p54 = scmp.ne.s32.totalorder %s37, %s53
      %p55 = scmp.eq.s32.totalorder %s17, 0
      %p56 = por %p54, %p55
      %s58 = sadd.s32 %s57, 1
      %p61 = scmp.eq.s32.totalorder %s11, 1
      %p62 = scmp.ne.s32.totalorder %s57, %s59
      %p63 = scmp.eq.s32.totalorder %s11, 0
      %p64 = por %p62, %p63
      %p65 = scmp.ne.s32.totalorder %s57, %s59
      %p66 = scmp.eq.s32.totalorder %s16, 1
      %p67 = por %p65, %p66
      %p68 = scmp.ne.s32.totalorder %s59, %s60
      %p69 = scmp.eq.s32.totalorder %s16, 0
      %p70 = por %p68, %p69
      %p71 = scmp.ne.s32.totalorder %s59, %s60
      %p72 = scmp.eq.s32.totalorder %s17, 1
      %p73 = por %p71, %p72
      %p75 = scmp.ne.s32.totalorder %s60, %s74
      %p76 = scmp.eq.s32.totalorder %s17, 0
      %p77 = por %p75, %p76
      %s79 = sadd.s32 %s78, 1
      %p82 = scmp.eq.s32.totalorder %s11, 1
      %p83 = scmp.ne.s32.totalorder %s78, %s80
      %p84 = scmp.eq.s32.totalorder %s11, 0
      %p85 = por %p83, %p84
      %p86 = scmp.ne.s32.totalorder %s78, %s80
      %p87 = scmp.eq.s32.totalorder %s16, 1
      %p88 = por %p86, %p87
      %p89 = scmp.ne.s32.totalorder %s80, %s81
      %p90 = scmp.eq.s32.totalorder %s16, 0
      %p91 = por %p89, %p90
      %p92 = scmp.ne.s32.totalorder %s80, %s81
      %p93 = scmp.eq.s32.totalorder %s17, 1
      %p94 = por %p92, %p93
      %p96 = scmp.ne.s32.totalorder %s81, %s95
      %p97 = scmp.eq.s32.totalorder %s17, 0
      %p98 = por %p96, %p97
      %s99 = ssub.s32 %s19, %s26
      %p100 = scmp.eq.s32.totalorder %s99, 0
      %s102 = sadd.s32 %s101, 1
      %s103 = scalar_select %p100, %s101, %s102
      %p106 = pneg %p100
      %p107 = scmp.eq.s32.totalorder %s11, 1
      %p108 = por %p106, %p107
      %p109 = scmp.ne.s32.totalorder %s101, %s104
      %p110 = scmp.eq.s32.totalorder %s11, 0
      %p111 = por %p109, %p110
      %p112 = scmp.ne.s32.totalorder %s101, %s104
      %p113 = scmp.eq.s32.totalorder %s16, 1
      %p114 = por %p112, %p113
      %p115 = scmp.ne.s32.totalorder %s104, %s105
      %p116 = scmp.eq.s32.totalorder %s16, 0
      %p117 = por %p115, %p116
      %p118 = scmp.ne.s32.totalorder %s104, %s105
      %p119 = scmp.eq.s32.totalorder %s17, 1
      %p120 = por %p118, %p119
      %p122 = scmp.ne.s32.totalorder %s105, %s121
      %p123 = scmp.eq.s32.totalorder %s17, 0
      %p124 = por %p122, %p123
      %s125 = ssub.s32 %s19, %s26
      %p126 = scmp.eq.s32.totalorder %s125, 0
      %s128 = sadd.s32 %s127, 1
      %s129 = scalar_select %p126, %s127, %s128
      %p132 = pneg %p126
      %p133 = scmp.eq.s32.totalorder %s11, 1
      %p134 = por %p132, %p133
      %p135 = scmp.ne.s32.totalorder %s127, %s130
      %p136 = scmp.eq.s32.totalorder %s11, 0
      %p137 = por %p135, %p136
      %p138 = scmp.ne.s32.totalorder %s127, %s130
      %p139 = scmp.eq.s32.totalorder %s16, 1
      %p140 = por %p138, %p139
      %p141 = scmp.ne.s32.totalorder %s130, %s131
      %p142 = scmp.eq.s32.totalorder %s16, 0
      %p143 = por %p141, %p142
      %p144 = scmp.ne.s32.totalorder %s130, %s131
      %p145 = scmp.eq.s32.totalorder %s17, 1
      %p146 = por %p144, %p145
      %p148 = scmp.ne.s32.totalorder %s131, %s147
      %p149 = scmp.eq.s32.totalorder %s17, 0
      %p150 = por %p148, %p149
      %s151 = ssub.s32 %s18, %s30
      %s152 = ssub.s32 %s19, %s26
      %s153 = sor.u32 %s151, %s152
      %p154 = scmp.eq.s32.totalorder %s153, 0
      %s156 = sadd.s32 %s155, 1
      %s157 = scalar_select %p154, %s155, %s156
      %p160 = pneg %p154
      %p161 = scmp.eq.s32.totalorder %s11, 1
      %p162 = por %p160, %p161
      %p163 = scmp.ne.s32.totalorder %s155, %s158
      %p164 = scmp.eq.s32.totalorder %s11, 0
      %p165 = por %p163, %p164
      %p166 = scmp.ne.s32.totalorder %s155, %s158
      %p167 = scmp.eq.s32.totalorder %s16, 1
      %p168 = por %p166, %p167
      %p169 = scmp.ne.s32.totalorder %s158, %s159
      %p170 = scmp.eq.s32.totalorder %s16, 0
      %p171 = por %p169, %p170
      %p172 = scmp.ne.s32.totalorder %s158, %s159
      %p173 = scmp.eq.s32.totalorder %s17, 1
      %p174 = por %p172, %p173
      %p176 = scmp.ne.s32.totalorder %s159, %s175
      %p177 = scmp.eq.s32.totalorder %s17, 0
      %p178 = por %p176, %p177
      %p179 = scmp.le.s32.totalorder 1, %s11
      %p180 = scmp.lt.s32.totalorder %s11, 3
      %p181 = pnand %p179, %p180
      %p182 = pneg %p181
      // Predicated region
      $region9: #{gpt_forward.15} parent=5 // pred_check
        _
      $region10: #{gpt_forward.15} parent=5 // pred_check_branch
        %184 = sbr.rel (%p181) target = $region12
      $region11: #{gpt_forward.15} parent=5 // pred_region
        %s185 = ssub.s32 %s11, 1
        // Predicated region
        $region13: #{gpt_forward.15} parent=11 // pred_check
          %p186 = pneg %p49
        $region14: #{gpt_forward.15} parent=11 // pred_check_branch
          %188 = sbr.rel (%p186) target = $region16
        $region15: #{gpt_forward.15} parent=11 // pred_region
          %s189 = smul.u32 16, %s20
          %p190 = scmp.lt.s32.totalorder %s189, 15
          %s191 = scalar_select %p190, %s189, 15
          %s192 = smul.addr %s191, 8
          %s193 = scalar_lea.vmem %s0, %s192
          %s194 = smul.u32 16, %s20
        $region16: #{gpt_forward.15} parent=11 // pred_fallthru
          _
        // Predicated region
        $region17: #{gpt_forward.15} parent=11 // pred_check
          %p195 = pneg %p70
        $region18: #{gpt_forward.15} parent=11 // pred_check_branch
          %197 = sbr.rel (%p195) target = $region20
        $region19: #{gpt_forward.15} parent=11 // pred_region
          _
        $region20: #{gpt_forward.15} parent=11 // pred_fallthru
          _
        // Predicated region
        $region21: #{gpt_forward.15} parent=11 // pred_check
          %p198 = pneg %p91
        $region22: #{gpt_forward.15} parent=11 // pred_check_branch
          %200 = sbr.rel (%p198) target = $region24
        $region23: #{gpt_forward.15} parent=11 // pred_region
          _
        $region24: #{gpt_forward.15} parent=11 // pred_fallthru
          _
      $region12: #{gpt_forward.15} parent=5 // pred_fallthru
        _
      %p201 = scmp.lt.s32.totalorder %s11, 2
      // Predicated region
      $region25: #{gpt_forward.15} parent=5 // pred_check
        %p202 = pneg %p201
      $region26: #{gpt_forward.15} parent=5 // pred_check_branch
        %204 = sbr.rel (%p202) target = $region28
      $region27: #{gpt_forward.15} parent=5 // pred_region
        // Predicated region
        $region29: #{gpt_forward.15} parent=27 // pred_check
          %p205 = pneg %p111
        $region30: #{gpt_forward.15} parent=27 // pred_check_branch
          %207 = sbr.rel (%p205) target = $region32
        $region31: #{gpt_forward.15} parent=27 // pred_region
          %s208 = sand.u32 %s101, 1
          %s209 = sand.u32 %s101, 1
          %s210 = smul.addr %s209, 128
          %s211 = scalar_lea.vmem [#allocation2], %s210
          %s212 = smul.u32 2, %s19
          %s213 = smul.addr %s212, 4
          %s214 = scalar_lea.vmem %s3, %s213
          // Predicated region
          $region33: #{gpt_forward.15} parent=31 // pred_check
            _
          $region34: #{gpt_forward.15} parent=31 // pred_check_branch
            %216 = sbr.rel (0) target = $region36
          $region35: #{gpt_forward.15} parent=31 // pred_region
            // Predicated region
            $region37: #{gpt_forward.15} parent=35 // pred_check
              _
            $region38: #{gpt_forward.15} parent=35 // pred_check_branch
              %218 = sbr.rel (0) target = $region40
            $region39: #{gpt_forward.15} parent=35 // pred_region
              // Predicated region
              $region52: #{gpt_forward.15} parent=39 // pred_check
                _
              $region53: #{gpt_forward.15} parent=39 // pred_check_branch
                %263 = sbr.rel (0) target = $region55
              $region54: #{gpt_forward.15} parent=39 // pred_region
                loop: start=0, step=1, limit=1
                $region56: #{gpt_forward.15} parent=54 // loop_pre_header
                  _
                $region57: #{gpt_forward.15} parent=54 // loop_header
                  %s265 = sphi 0, %s269
                  %p266 = scmp.ge.s32.totalorder %s265, 1
                  %s270 = sphi %s214, %s214
                  %s271 = sphi %s211, %s211
                $region58: #{gpt_forward.15} parent=54 // loop_header_branch
                  %268 = sbr.rel (%p266) target = $region62
                $region59: #{gpt_forward.15} parent=54 // loop_body
                  %v272 = vld [vmem:[%s270] sm:$0xff]
                  %273 = vst [vmem:[%s271] sm:$0xff] %v272
                  %v274 = vld [vmem:[%s270 + $0x10] sm:$0xff]
                  %275 = vst [vmem:[%s271 + $0x8] sm:$0xff] %v274
                  %v276 = vld [vmem:[%s270 + $0x20] sm:$0xff]
                  %277 = vst [vmem:[%s271 + $0x10] sm:$0xff] %v276
                  %v278 = vld [vmem:[%s270 + $0x30] sm:$0xff]
                  %279 = vst [vmem:[%s271 + $0x18] sm:$0xff] %v278
                  %v280 = vld [vmem:[%s270 + $0x40] sm:$0xff]
                  %281 = vst [vmem:[%s271 + $0x20] sm:$0xff] %v280
                  %v282 = vld [vmem:[%s270 + $0x50] sm:$0xff]
                  %283 = vst [vmem:[%s271 + $0x28] sm:$0xff] %v282
                  %v284 = vld [vmem:[%s270 + $0x60] sm:$0xff]
                  %285 = vst [vmem:[%s271 + $0x30] sm:$0xff] %v284
                  %v286 = vld [vmem:[%s270 + $0x70] sm:$0xff]
                  %287 = vst [vmem:[%s271 + $0x38] sm:$0xff] %v286
                  %v288 = vld [vmem:[%s270 + $0x80] sm:$0xff]
                  %289 = vst [vmem:[%s271 + $0x40] sm:$0xff] %v288
                  %v290 = vld [vmem:[%s270 + $0x90] sm:$0xff]
                  %291 = vst [vmem:[%s271 + $0x48] sm:$0xff] %v290
                  %v292 = vld [vmem:[%s270 + $0xa0] sm:$0xff]
                  %293 = vst [vmem:[%s271 + $0x50] sm:$0xff] %v292
                  %v294 = vld [vmem:[%s270 + $0xb0] sm:$0xff]
                  %295 = vst [vmem:[%s271 + $0x58] sm:$0xff] %v294
                  %v296 = vld [vmem:[%s270 + $0xc0] sm:$0xff]
                  %297 = vst [vmem:[%s271 + $0x60] sm:$0xff] %v296
                  %v298 = vld [vmem:[%s270 + $0xd0] sm:$0xff]
                  %299 = vst [vmem:[%s271 + $0x68] sm:$0xff] %v298
                  %v300 = vld [vmem:[%s270 + $0xe0] sm:$0xff]
                  %301 = vst [vmem:[%s271 + $0x70] sm:$0xff] %v300
                  %v302 = vld [vmem:[%s270 + $0xf0] sm:$0xff]
                  %303 = vst [vmem:[%s271 + $0x78] sm:$0xff] %v302
                $region60: #{gpt_forward.15} parent=54 // loop_footer
                  %s269 = sadd.s32 1, %s265
                $region61: #{gpt_forward.15} parent=54 // loop_footer_branch
                  %264 = sbr.rel target = $region57
                $region62: #{gpt_forward.15} parent=54 // loop_exit
                  _
              $region55: #{gpt_forward.15} parent=39 // pred_fallthru
                _
              // Predicated region
              $region63: #{gpt_forward.15} parent=39 // pred_check
                _
              $region64: #{gpt_forward.15} parent=39 // pred_check_branch
                %305 = sbr.rel target = $region66
              $region65: #{gpt_forward.15} parent=39 // pred_region
                _
              $region66: #{gpt_forward.15} parent=39 // pred_fallthru
                _
            $region40: #{gpt_forward.15} parent=35 // pred_fallthru
              _
            // Predicated region
            $region41: #{gpt_forward.15} parent=35 // pred_check
              _
            $region42: #{gpt_forward.15} parent=35 // pred_check_branch
              %220 = sbr.rel target = $region44
            $region43: #{gpt_forward.15} parent=35 // pred_region
              loop: start=0, step=1, limit=1
              $region45: #{gpt_forward.15} parent=43 // loop_pre_header
                _
              $region46: #{gpt_forward.15} parent=43 // loop_header
                %s223 = sphi 0, %s227
                %p224 = scmp.ge.s32.totalorder %s223, 1
                %s228 = sphi %s214, %s214
                %s229 = sphi %s211, %s211
              $region47: #{gpt_forward.15} parent=43 // loop_header_branch
                %226 = sbr.rel (%p224) target = $region51
              $region48: #{gpt_forward.15} parent=43 // loop_body
                %v230 = vld [vmem:[%s228] sm:$0xff]
                %231 = vst [vmem:[%s229] sm:$0xff] %v230
                %v232 = vld [vmem:[%s228 + $0x10] sm:$0xff]
                %233 = vst [vmem:[%s229 + $0x8] sm:$0xff] %v232
                %v234 = vld [vmem:[%s228 + $0x20] sm:$0xff]
                %235 = vst [vmem:[%s229 + $0x10] sm:$0xff] %v234
                %v236 = vld [vmem:[%s228 + $0x30] sm:$0xff]
                %237 = vst [vmem:[%s229 + $0x18] sm:$0xff] %v236
                %v238 = vld [vmem:[%s228 + $0x40] sm:$0xff]
                %239 = vst [vmem:[%s229 + $0x20] sm:$0xff] %v238
                %v240 = vld [vmem:[%s228 + $0x50] sm:$0xff]
                %241 = vst [vmem:[%s229 + $0x28] sm:$0xff] %v240
                %v242 = vld [vmem:[%s228 + $0x60] sm:$0xff]
                %243 = vst [vmem:[%s229 + $0x30] sm:$0xff] %v242
                %v244 = vld [vmem:[%s228 + $0x70] sm:$0xff]
                %245 = vst [vmem:[%s229 + $0x38] sm:$0xff] %v244
                %v246 = vld [vmem:[%s228 + $0x80] sm:$0xff]
                %247 = vst [vmem:[%s229 + $0x40] sm:$0xff] %v246
                %v248 = vld [vmem:[%s228 + $0x90] sm:$0xff]
                %249 = vst [vmem:[%s229 + $0x48] sm:$0xff] %v248
                %v250 = vld [vmem:[%s228 + $0xa0] sm:$0xff]
                %251 = vst [vmem:[%s229 + $0x50] sm:$0xff] %v250
                %v252 = vld [vmem:[%s228 + $0xb0] sm:$0xff]
                %253 = vst [vmem:[%s229 + $0x58] sm:$0xff] %v252
                %v254 = vld [vmem:[%s228 + $0xc0] sm:$0xff]
                %255 = vst [vmem:[%s229 + $0x60] sm:$0xff] %v254
                %v256 = vld [vmem:[%s228 + $0xd0] sm:$0xff]
                %257 = vst [vmem:[%s229 + $0x68] sm:$0xff] %v256
                %v258 = vld [vmem:[%s228 + $0xe0] sm:$0xff]
                %259 = vst [vmem:[%s229 + $0x70] sm:$0xff] %v258
                %v260 = vld [vmem:[%s228 + $0xf0] sm:$0xff]
                %261 = vst [vmem:[%s229 + $0x78] sm:$0xff] %v260
              $region49: #{gpt_forward.15} parent=43 // loop_footer
                %s227 = sadd.s32 1, %s223
              $region50: #{gpt_forward.15} parent=43 // loop_footer_branch
                %222 = sbr.rel target = $region46
              $region51: #{gpt_forward.15} parent=43 // loop_exit
                _
            $region44: #{gpt_forward.15} parent=35 // pred_fallthru
              _
          $region36: #{gpt_forward.15} parent=31 // pred_fallthru
            _
          %306 = vnop
        $region32: #{gpt_forward.15} parent=27 // pred_fallthru
          _
        // Predicated region
        $region67: #{gpt_forward.15} parent=27 // pred_check
          %p307 = pneg %p137
        $region68: #{gpt_forward.15} parent=27 // pred_check_branch
          %309 = sbr.rel (%p307) target = $region70
        $region69: #{gpt_forward.15} parent=27 // pred_region
          %s310 = smul.u32 2, %s19
          %p311 = scmp.lt.s32.totalorder %s310, 3
          %s312 = scalar_select %p311, %s310, 3
          %s313 = scalar_lea.vmem %s4, %s312
          %s314 = smul.u32 2, %s19
        $region70: #{gpt_forward.15} parent=27 // pred_fallthru
          _
      $region28: #{gpt_forward.15} parent=5 // pred_fallthru
        _
      %p315 = scmp.le.s32.totalorder 1, %s11
      %p316 = scmp.lt.s32.totalorder %s11, 3
      %p317 = pnand %p315, %p316
      %p318 = pneg %p317
      // Predicated region
      $region71: #{gpt_forward.15} parent=5 // pred_check
        _
      $region72: #{gpt_forward.15} parent=5 // pred_check_branch
        %320 = sbr.rel (%p317) target = $region74
      $region73: #{gpt_forward.15} parent=5 // pred_region
        %s321 = ssub.s32 %s11, 1
        %s322 = sand.u32 %s104, 1
        %s323 = sand.u32 %s104, 1
        %s324 = smul.addr %s323, 128
        %s325 = scalar_lea.vmem [#allocation2], %s324
        // Predicated region
        $region75: #{gpt_forward.15} parent=73 // pred_check
          %p326 = pneg %p117
        $region76: #{gpt_forward.15} parent=73 // pred_check_branch
          %328 = sbr.rel (%p326) target = $region78
        $region77: #{gpt_forward.15} parent=73 // pred_region
          _
        $region78: #{gpt_forward.15} parent=73 // pred_fallthru
          _
        %s329 = smul.u32 16, %s20
        %p330 = scmp.lt.s32.totalorder %s329, 15
        %s331 = scalar_select %p330, %s329, 15
        %s332 = smul.addr %s331, 8
        %s333 = scalar_lea.vmem %s0, %s332
        %p334 = pneg %p49
        %p335 = pneg %p46
        %p336 = pneg %p70
        %p337 = pneg %p67
        %p338 = pneg %p91
        %p339 = pneg %p88
        %s340 = sand.u32 %s104, 1
        %s341 = sand.u32 %s104, 1
        %s342 = smul.addr %s341, 128
        %s343 = scalar_lea.vmem [#allocation2], %s342
        %p344 = pneg %p117
        %p345 = pneg %p114
        %s346 = smul.u32 2, %s21
        %p347 = scmp.lt.s32.totalorder %s346, 3
        %s348 = scalar_select %p347, %s346, 3
        %s349 = scalar_lea.vmem %s4, %s348
        %p350 = pneg %p143
        %p351 = pneg %p140
        %p352 = pneg %p171
        %p353 = pneg %p168
        %s354 = sand.u32 %s158, 1
        %s355 = sand.u32 %s158, 1
        %s356 = smul.addr %s355, 128
        %s357 = scalar_lea.vmem [#allocation3], %s356
        %s358 = smul.u32 16, %s20
        %p359 = scmp.lt.s32.totalorder %s358, 15
        %s360 = scalar_select %p359, %s358, 15
        %s361 = smul.addr %s360, 8
        %s362 = scalar_lea.vmem %s0, %s361
        %s363 = smul.u32 16, %s20
        %s364 = smul.u32 2, %s21
        %s365 = smul.u32 2, %s21
        %p366 = scmp.lt.s32.totalorder %s365, 3
        %s367 = scalar_select %p366, %s365, 3
        %s368 = scalar_lea.vmem %s4, %s367
        %s369 = smul.u32 2, %s21
        %s370 = smul.u32 16, %s20
        %s371 = smul.u32 2, %s21
        %v373 = vld [vmem:[%s362] sm:$0xff]
        %v374 = vld [vmem:[%s362 + $0x8] sm:$0xff]
        %v375 = vld [vmem:[%s362 + $0x10] sm:$0xff]
        %v376 = vld [vmem:[%s362 + $0x18] sm:$0xff]
        %v377 = vld [vmem:[%s362 + $0x20] sm:$0xff]
        %v378 = vld [vmem:[%s362 + $0x28] sm:$0xff]
        %v379 = vld [vmem:[%s362 + $0x30] sm:$0xff]
        %v380 = vld [vmem:[%s362 + $0x38] sm:$0xff]
        %v381 = vld [vmem:[%s362 + $0x40] sm:$0xff]
        %v382 = vld [vmem:[%s362 + $0x48] sm:$0xff]
        %v383 = vld [vmem:[%s362 + $0x50] sm:$0xff]
        %v384 = vld [vmem:[%s362 + $0x58] sm:$0xff]
        %v385 = vld [vmem:[%s362 + $0x60] sm:$0xff]
        %v386 = vld [vmem:[%s362 + $0x68] sm:$0xff]
        %v387 = vld [vmem:[%s362 + $0x70] sm:$0xff]
        %v388 = vld [vmem:[%s362 + $0x78] sm:$0xff]
        %389 = vadd.xlane.f32.xlu0 %v373
        %v390 = vpop.xlane.xlu0 %389
        %391 = vadd.xlane.f32.xlu0 %v374
        %v392 = vpop.xlane.xlu0 %391
        %393 = vadd.xlane.f32.xlu0 %v375
        %v394 = vpop.xlane.xlu0 %393
        %395 = vadd.xlane.f32.xlu0 %v376
        %v396 = vpop.xlane.xlu0 %395
        %397 = vadd.xlane.f32.xlu0 %v377
        %v398 = vpop.xlane.xlu0 %397
        %399 = vadd.xlane.f32.xlu0 %v378
        %v400 = vpop.xlane.xlu0 %399
        %401 = vadd.xlane.f32.xlu0 %v379
        %v402 = vpop.xlane.xlu0 %401
        %403 = vadd.xlane.f32.xlu0 %v380
        %v404 = vpop.xlane.xlu0 %403
        %405 = vadd.xlane.f32.xlu0 %v381
        %v406 = vpop.xlane.xlu0 %405
        %407 = vadd.xlane.f32.xlu0 %v382
        %v408 = vpop.xlane.xlu0 %407
        %409 = vadd.xlane.f32.xlu0 %v383
        %v410 = vpop.xlane.xlu0 %409
        %411 = vadd.xlane.f32.xlu0 %v384
        %v412 = vpop.xlane.xlu0 %411
        %413 = vadd.xlane.f32.xlu0 %v385
        %v414 = vpop.xlane.xlu0 %413
        %415 = vadd.xlane.f32.xlu0 %v386
        %v416 = vpop.xlane.xlu0 %415
        %417 = vadd.xlane.f32.xlu0 %v387
        %v418 = vpop.xlane.xlu0 %417
        %419 = vadd.xlane.f32.xlu0 %v388
        %v420 = vpop.xlane.xlu0 %419
        %v421 = vrcp.pop 128.0
        %v422 = vmul.f32 %v390, %v421
        %v423 = vmul.f32 %v392, %v421
        %v424 = vmul.f32 %v394, %v421
        %v425 = vmul.f32 %v396, %v421
        %v426 = vmul.f32 %v398, %v421
        %v427 = vmul.f32 %v400, %v421
        %v428 = vmul.f32 %v402, %v421
        %v429 = vmul.f32 %v404, %v421
        %v430 = vmul.f32 %v406, %v421
        %v431 = vmul.f32 %v408, %v421
        %v432 = vmul.f32 %v410, %v421
        %v433 = vmul.f32 %v412, %v421
        %v434 = vmul.f32 %v414, %v421
        %v435 = vmul.f32 %v416, %v421
        %v436 = vmul.f32 %v418, %v421
        %v437 = vmul.f32 %v420, %v421
        %v438 = vsub.f32 %v373, %v422
        %v439 = vsub.f32 %v374, %v423
        %v440 = vsub.f32 %v375, %v424
        %v441 = vsub.f32 %v376, %v425
        %v442 = vsub.f32 %v377, %v426
        %v443 = vsub.f32 %v378, %v427
        %v444 = vsub.f32 %v379, %v428
        %v445 = vsub.f32 %v380, %v429
        %v446 = vsub.f32 %v381, %v430
        %v447 = vsub.f32 %v382, %v431
        %v448 = vsub.f32 %v383, %v432
        %v449 = vsub.f32 %v384, %v433
        %v450 = vsub.f32 %v385, %v434
        %v451 = vsub.f32 %v386, %v435
        %v452 = vsub.f32 %v387, %v436
        %v453 = vsub.f32 %v388, %v437
        %v454 = vmul.f32 %v438, %v438
        %v455 = vmul.f32 %v439, %v439
        %v456 = vmul.f32 %v440, %v440
        %v457 = vmul.f32 %v441, %v441
        %v458 = vmul.f32 %v442, %v442
        %v459 = vmul.f32 %v443, %v443
        %v460 = vmul.f32 %v444, %v444
        %v461 = vmul.f32 %v445, %v445
        %v462 = vmul.f32 %v446, %v446
        %v463 = vmul.f32 %v447, %v447
        %v464 = vmul.f32 %v448, %v448
        %v465 = vmul.f32 %v449, %v449
        %v466 = vmul.f32 %v450, %v450
        %v467 = vmul.f32 %v451, %v451
        %v468 = vmul.f32 %v452, %v452
        %v469 = vmul.f32 %v453, %v453
        %470 = vadd.xlane.f32.xlu0 %v454
        %v471 = vpop.xlane.xlu0 %470
        %472 = vadd.xlane.f32.xlu0 %v455
        %v473 = vpop.xlane.xlu0 %472
        %474 = vadd.xlane.f32.xlu0 %v456
        %v475 = vpop.xlane.xlu0 %474
        %476 = vadd.xlane.f32.xlu0 %v457
        %v477 = vpop.xlane.xlu0 %476
        %478 = vadd.xlane.f32.xlu0 %v458
        %v479 = vpop.xlane.xlu0 %478
        %480 = vadd.xlane.f32.xlu0 %v459
        %v481 = vpop.xlane.xlu0 %480
        %482 = vadd.xlane.f32.xlu0 %v460
        %v483 = vpop.xlane.xlu0 %482
        %484 = vadd.xlane.f32.xlu0 %v461
        %v485 = vpop.xlane.xlu0 %484
        %486 = vadd.xlane.f32.xlu0 %v462
        %v487 = vpop.xlane.xlu0 %486
        %488 = vadd.xlane.f32.xlu0 %v463
        %v489 = vpop.xlane.xlu0 %488
        %490 = vadd.xlane.f32.xlu0 %v464
        %v491 = vpop.xlane.xlu0 %490
        %492 = vadd.xlane.f32.xlu0 %v465
        %v493 = vpop.xlane.xlu0 %492
        %494 = vadd.xlane.f32.xlu0 %v466
        %v495 = vpop.xlane.xlu0 %494
        %496 = vadd.xlane.f32.xlu0 %v467
        %v497 = vpop.xlane.xlu0 %496
        %498 = vadd.xlane.f32.xlu0 %v468
        %v499 = vpop.xlane.xlu0 %498
        %500 = vadd.xlane.f32.xlu0 %v469
        %v501 = vpop.xlane.xlu0 %500
        %v502 = vmul.f32 %v471, %v421
        %v503 = vmul.f32 %v473, %v421
        %v504 = vmul.f32 %v475, %v421
        %v505 = vmul.f32 %v477, %v421
        %v506 = vmul.f32 %v479, %v421
        %v507 = vmul.f32 %v481, %v421
        %v508 = vmul.f32 %v483, %v421
        %v509 = vmul.f32 %v485, %v421
        %v510 = vmul.f32 %v487, %v421
        %v511 = vmul.f32 %v489, %v421
        %v512 = vmul.f32 %v491, %v421
        %v513 = vmul.f32 %v493, %v421
        %v514 = vmul.f32 %v495, %v421
        %v515 = vmul.f32 %v497, %v421
        %v516 = vmul.f32 %v499, %v421
        %v517 = vmul.f32 %v501, %v421
        %v518 = vadd.f32 %v502, 1e-05
        %v519 = vadd.f32 %v503, 1e-05
        %v520 = vadd.f32 %v504, 1e-05
        %v521 = vadd.f32 %v505, 1e-05
        %v522 = vadd.f32 %v506, 1e-05
        %v523 = vadd.f32 %v507, 1e-05
        %v524 = vadd.f32 %v508, 1e-05
        %v525 = vadd.f32 %v509, 1e-05
        %v526 = vadd.f32 %v510, 1e-05
        %v527 = vadd.f32 %v511, 1e-05
        %v528 = vadd.f32 %v512, 1e-05
        %v529 = vadd.f32 %v513, 1e-05
        %v530 = vadd.f32 %v514, 1e-05
        %v531 = vadd.f32 %v515, 1e-05
        %v532 = vadd.f32 %v516, 1e-05
        %v533 = vadd.f32 %v517, 1e-05
        %v534 = vrsqrt.pop %v518
        %v535 = vrsqrt.pop %v519
        %v536 = vrsqrt.pop %v520
        %v537 = vrsqrt.pop %v521
        %v538 = vrsqrt.pop %v522
        %v539 = vrsqrt.pop %v523
        %v540 = vrsqrt.pop %v524
        %v541 = vrsqrt.pop %v525
        %v542 = vrsqrt.pop %v526
        %v543 = vrsqrt.pop %v527
        %v544 = vrsqrt.pop %v528
        %v545 = vrsqrt.pop %v529
        %v546 = vrsqrt.pop %v530
        %v547 = vrsqrt.pop %v531
        %v548 = vrsqrt.pop %v532
        %v549 = vrsqrt.pop %v533
        %v550 = vmul.f32 %v438, %v534
        %v551 = vmul.f32 %v439, %v535
        %v552 = vmul.f32 %v440, %v536
        %v553 = vmul.f32 %v441, %v537
        %v554 = vmul.f32 %v442, %v538
        %v555 = vmul.f32 %v443, %v539
        %v556 = vmul.f32 %v444, %v540
        %v557 = vmul.f32 %v445, %v541
        %v558 = vmul.f32 %v446, %v542
        %v559 = vmul.f32 %v447, %v543
        %v560 = vmul.f32 %v448, %v544
        %v561 = vmul.f32 %v449, %v545
        %v562 = vmul.f32 %v450, %v546
        %v563 = vmul.f32 %v451, %v547
        %v564 = vmul.f32 %v452, %v548
        %v565 = vmul.f32 %v453, %v549
        %v566 = vld [vmem:[%s1] sm:$0x1]
        %v568 = vlaneseq
        %v569 = vshrl.u32 %v568, 7
        %v570 = vsub.s32 0, %v569
        %v571 = vrot.slane %v566, %v570
        %v573 = vmul.f32 %v550, %v571
        %v574 = vmul.f32 %v551, %v571
        %v575 = vmul.f32 %v552, %v571
        %v576 = vmul.f32 %v553, %v571
        %v577 = vmul.f32 %v554, %v571
        %v578 = vmul.f32 %v555, %v571
        %v579 = vmul.f32 %v556, %v571
        %v580 = vmul.f32 %v557, %v571
        %v581 = vmul.f32 %v558, %v571
        %v582 = vmul.f32 %v559, %v571
        %v583 = vmul.f32 %v560, %v571
        %v584 = vmul.f32 %v561, %v571
        %v585 = vmul.f32 %v562, %v571
        %v586 = vmul.f32 %v563, %v571
        %v587 = vmul.f32 %v564, %v571
        %v588 = vmul.f32 %v565, %v571
        %v589 = vld [vmem:[%s2] sm:$0x1]
        %v591 = vlaneseq
        %v592 = vshrl.u32 %v591, 7
        %v593 = vsub.s32 0, %v592
        %v594 = vrot.slane %v589, %v593
        %v596 = vadd.f32 %v573, %v594
        %v597 = vadd.f32 %v574, %v594
        %v598 = vadd.f32 %v575, %v594
        %v599 = vadd.f32 %v576, %v594
        %v600 = vadd.f32 %v577, %v594
        %v601 = vadd.f32 %v578, %v594
        %v602 = vadd.f32 %v579, %v594
        %v603 = vadd.f32 %v580, %v594
        %v604 = vadd.f32 %v581, %v594
        %v605 = vadd.f32 %v582, %v594
        %v606 = vadd.f32 %v583, %v594
        %v607 = vadd.f32 %v584, %v594
        %v608 = vadd.f32 %v585, %v594
        %v609 = vadd.f32 %v586, %v594
        %v610 = vadd.f32 %v587, %v594
        %v611 = vadd.f32 %v588, %v594
        %v612 = vpack.c.bf16 %v597, %v596
        %v613 = vpack.c.bf16 %v599, %v598
        %v614 = vpack.c.bf16 %v601, %v600
        %v615 = vpack.c.bf16 %v603, %v602
        %v616 = vpack.c.bf16 %v605, %v604
        %v617 = vpack.c.bf16 %v607, %v606
        %v618 = vpack.c.bf16 %v609, %v608
        %v619 = vpack.c.bf16 %v611, %v610
        %v620 = vld [vmem:[%s325] sm:$0xff]
        %v621 = vld [vmem:[%s325 + $0x8] sm:$0xff]
        %v622 = vld [vmem:[%s325 + $0x10] sm:$0xff]
        %v623 = vld [vmem:[%s325 + $0x18] sm:$0xff]
        %v624 = vld [vmem:[%s325 + $0x20] sm:$0xff]
        %v625 = vld [vmem:[%s325 + $0x28] sm:$0xff]
        %v626 = vld [vmem:[%s325 + $0x30] sm:$0xff]
        %v627 = vld [vmem:[%s325 + $0x38] sm:$0xff]
        %v628 = vld [vmem:[%s325 + $0x40] sm:$0xff]
        %v629 = vld [vmem:[%s325 + $0x48] sm:$0xff]
        %v630 = vld [vmem:[%s325 + $0x50] sm:$0xff]
        %v631 = vld [vmem:[%s325 + $0x58] sm:$0xff]
        %v632 = vld [vmem:[%s325 + $0x60] sm:$0xff]
        %v633 = vld [vmem:[%s325 + $0x68] sm:$0xff]
        %v634 = vld [vmem:[%s325 + $0x70] sm:$0xff]
        %v635 = vld [vmem:[%s325 + $0x78] sm:$0xff]
        %v636 = vld [vmem:[%s368] sm:$0x3]
        %v638 = vlaneseq
        %v639 = vshrl.u32 %v638, 7
        %v640 = vsub.s32 0, %v639
        %v641 = vrot.slane %v636, %v640
        %v642 = vlaneseq
        %v643 = vshrl.u32 %v642, 7
        %v644 = vsub.s32 1, %v643
        %v645 = vrot.slane %v636, %v644
        %v664 = vunpack.c.l.b16 %v620
        %v665 = vunpack.c.h.b16 %v620
        %v666 = vunpack.c.l.b16 %v621
        %v667 = vunpack.c.h.b16 %v621
        %v668 = vunpack.c.l.b16 %v622
        %v669 = vunpack.c.h.b16 %v622
        %v670 = vunpack.c.l.b16 %v623
        %v671 = vunpack.c.h.b16 %v623
        %v672 = vunpack.c.l.b16 %v624
        %v673 = vunpack.c.h.b16 %v624
        %v674 = vunpack.c.l.b16 %v625
        %v675 = vunpack.c.h.b16 %v625
        %v676 = vunpack.c.l.b16 %v626
        %v677 = vunpack.c.h.b16 %v626
        %v678 = vunpack.c.l.b16 %v627
        %v679 = vunpack.c.h.b16 %v627
        %v680 = vunpack.c.l.b16 %v628
        %v681 = vunpack.c.h.b16 %v628
        %v682 = vunpack.c.l.b16 %v629
        %v683 = vunpack.c.h.b16 %v629
        %v684 = vunpack.c.l.b16 %v630
        %v685 = vunpack.c.h.b16 %v630
        %v686 = vunpack.c.l.b16 %v631
        %v687 = vunpack.c.h.b16 %v631
        %v688 = vunpack.c.l.b16 %v632
        %v689 = vunpack.c.h.b16 %v632
        %v690 = vunpack.c.l.b16 %v633
        %v691 = vunpack.c.h.b16 %v633
        %v692 = vunpack.c.l.b16 %v634
        %v693 = vunpack.c.h.b16 %v634
        %v694 = vunpack.c.l.b16 %v635
        %v695 = vunpack.c.h.b16 %v635
        %v696 = vpack.c.b16 %v666, %v664
        %v697 = vpack.c.b16 %v667, %v665
        %v698 = vpack.c.b16 %v670, %v668
        %v699 = vpack.c.b16 %v671, %v669
        %v700 = vpack.c.b16 %v674, %v672
        %v701 = vpack.c.b16 %v675, %v673
        %v702 = vpack.c.b16 %v678, %v676
        %v703 = vpack.c.b16 %v679, %v677
        %v704 = vpack.c.b16 %v682, %v680
        %v705 = vpack.c.b16 %v683, %v681
        %v706 = vpack.c.b16 %v686, %v684
        %v707 = vpack.c.b16 %v687, %v685
        %v708 = vpack.c.b16 %v690, %v688
        %v709 = vpack.c.b16 %v691, %v689
        %v710 = vpack.c.b16 %v694, %v692
        %v711 = vpack.c.b16 %v695, %v693
        %728 = vmatprep.subr.bf16.mxu0 %v697
        %729 = vmatpush1.bf16.msra.mxu0 %v696
        %730 = vmatprep.subr.bf16.mxu0 %v699
        %731 = vmatpush1.bf16.msra.mxu0 %v698
        %732 = vmatprep.subr.bf16.mxu0 %v701
        %733 = vmatpush1.bf16.msra.mxu0 %v700
        %734 = vmatprep.subr.bf16.mxu0 %v703
        %735 = vmatpush1.bf16.msra.mxu0 %v702
        %736 = vmatprep.subr.bf16.mxu0 %v705
        %737 = vmatpush1.bf16.msra.mxu0 %v704
        %738 = vmatprep.subr.bf16.mxu0 %v707
        %739 = vmatpush1.bf16.msra.mxu0 %v706
        %740 = vmatprep.subr.bf16.mxu0 %v709
        %741 = vmatpush1.bf16.msra.mxu0 %v708
        %742 = vmatprep.subr.bf16.mxu0 %v711
        %743 = vmatpush1.bf16.msra.mxu0 %v710
        %744 = vmatprep.subr.bf16.mxu0 0
        %745 = vmatpush1.bf16.msra.mxu0 0
        %746 = vmatprep.subr.bf16.mxu0 0
        %747 = vmatpush1.bf16.msra.mxu0 0
        %748 = vmatprep.subr.bf16.mxu0 0
        %749 = vmatpush1.bf16.msra.mxu0 0
        %750 = vmatprep.subr.bf16.mxu0 0
        %751 = vmatpush1.bf16.msra.mxu0 0
        %752 = vmatprep.subr.bf16.mxu0 0
        %753 = vmatpush1.bf16.msra.mxu0 0
        %754 = vmatprep.subr.bf16.mxu0 0
        %755 = vmatpush1.bf16.msra.mxu0 0
        %756 = vmatprep.subr.bf16.mxu0 0
        %757 = vmatpush1.bf16.msra.mxu0 0
        %758 = vmatprep.subr.bf16.mxu0 0
        %759 = vmatpush1.bf16.msra.mxu0 0
        %760 = vmatprep.mubr.bf16.mxu0 0
        %761 = vmatmul.mubr.bf16.gmra.mrb[0].mxu0 %v612
        %v762 = vpop.f32.mrb[0].mxu0
        %v763 = vadd.f32 %v641, %v762
        %v764 = vpop.f32.mrb[0].mxu0
        %v765 = vadd.f32 %v645, %v764
        %v766 = vpop.f32.mrb[0].mxu0
        %v767 = vadd.f32 %v641, %v766
        %v768 = vpop.f32.mrb[0].mxu0
        %v769 = vadd.f32 %v645, %v768
        %770 = vmatprep.mubr.bf16.mxu0 0
        %771 = vmatmul.mubr.bf16.gmra.mrb[0].mxu0 %v613
        %v772 = vpop.f32.mrb[0].mxu0
        %v773 = vadd.f32 %v641, %v772
        %v774 = vpop.f32.mrb[0].mxu0
        %v775 = vadd.f32 %v645, %v774
        %v776 = vpop.f32.mrb[0].mxu0
        %v777 = vadd.f32 %v641, %v776
        %v778 = vpop.f32.mrb[0].mxu0
        %v779 = vadd.f32 %v645, %v778
        %780 = vmatprep.mubr.bf16.mxu0 0
        %781 = vmatmul.mubr.bf16.gmra.mrb[0].mxu0 %v614
        %v782 = vpop.f32.mrb[0].mxu0
        %v783 = vadd.f32 %v641, %v782
        %v784 = vpop.f32.mrb[0].mxu0
        %v785 = vadd.f32 %v645, %v784
        %v786 = vpop.f32.mrb[0].mxu0
        %v787 = vadd.f32 %v641, %v786
        %v788 = vpop.f32.mrb[0].mxu0
        %v789 = vadd.f32 %v645, %v788
        %790 = vmatprep.mubr.bf16.mxu0 0
        %791 = vmatmul.mubr.bf16.gmra.mrb[0].mxu0 %v615
        %v792 = vpop.f32.mrb[0].mxu0
        %v793 = vadd.f32 %v641, %v792
        %v794 = vpop.f32.mrb[0].mxu0
        %v795 = vadd.f32 %v645, %v794
        %v796 = vpop.f32.mrb[0].mxu0
        %v797 = vadd.f32 %v641, %v796
        %v798 = vpop.f32.mrb[0].mxu0
        %v799 = vadd.f32 %v645, %v798
        %800 = vmatprep.mubr.bf16.mxu0 0
        %801 = vmatmul.mubr.bf16.gmra.mrb[0].mxu0 %v616
        %v802 = vpop.f32.mrb[0].mxu0
        %v803 = vadd.f32 %v641, %v802
        %v804 = vpop.f32.mrb[0].mxu0
        %v805 = vadd.f32 %v645, %v804
        %v806 = vpop.f32.mrb[0].mxu0
        %v807 = vadd.f32 %v641, %v806
        %v808 = vpop.f32.mrb[0].mxu0
        %v809 = vadd.f32 %v645, %v808
        %810 = vmatprep.mubr.bf16.mxu0 0
        %811 = vmatmul.mubr.bf16.gmra.mrb[0].mxu0 %v617
        %v812 = vpop.f32.mrb[0].mxu0
        %v813 = vadd.f32 %v641, %v812
        %v814 = vpop.f32.mrb[0].mxu0
        %v815 = vadd.f32 %v645, %v814
        %v816 = vpop.f32.mrb[0].mxu0
        %v817 = vadd.f32 %v641, %v816
        %v818 = vpop.f32.mrb[0].mxu0
        %v819 = vadd.f32 %v645, %v818
        %820 = vmatprep.mubr.bf16.mxu0 0
        %821 = vmatmul.mubr.bf16.gmra.mrb[0].mxu0 %v618
        %v822 = vpop.f32.mrb[0].mxu0
        %v823 = vadd.f32 %v641, %v822
        %v824 = vpop.f32.mrb[0].mxu0
        %v825 = vadd.f32 %v645, %v824
        %v826 = vpop.f32.mrb[0].mxu0
        %v827 = vadd.f32 %v641, %v826
        %v828 = vpop.f32.mrb[0].mxu0
        %v829 = vadd.f32 %v645, %v828
        %830 = vmatprep.mubr.bf16.mxu0 0
        %831 = vmatmul.mubr.bf16.gmra.mrb[0].mxu0 %v619
        %v832 = vpop.f32.mrb[0].mxu0
        %v833 = vadd.f32 %v641, %v832
        %v834 = vpop.f32.mrb[0].mxu0
        %v835 = vadd.f32 %v645, %v834
        %v836 = vpop.f32.mrb[0].mxu0
        %v837 = vadd.f32 %v641, %v836
        %v838 = vpop.f32.mrb[0].mxu0
        %v839 = vadd.f32 %v645, %v838
        %840 = vdwg.mxu0
        %v841 = vmul.f32 %v763, 0.5
        %v842 = vmul.f32 %v765, 0.5
        %v843 = vmul.f32 %v767, 0.5
        %v844 = vmul.f32 %v769, 0.5
        %v845 = vmul.f32 %v773, 0.5
        %v846 = vmul.f32 %v775, 0.5
        %v847 = vmul.f32 %v777, 0.5
        %v848 = vmul.f32 %v779, 0.5
        %v849 = vmul.f32 %v783, 0.5
        %v850 = vmul.f32 %v785, 0.5
        %v851 = vmul.f32 %v787, 0.5
        %v852 = vmul.f32 %v789, 0.5
        %v853 = vmul.f32 %v793, 0.5
        %v854 = vmul.f32 %v795, 0.5
        %v855 = vmul.f32 %v797, 0.5
        %v856 = vmul.f32 %v799, 0.5
        %v857 = vmul.f32 %v803, 0.5
        %v858 = vmul.f32 %v805, 0.5
        %v859 = vmul.f32 %v807, 0.5
        %v860 = vmul.f32 %v809, 0.5
        %v861 = vmul.f32 %v813, 0.5
        %v862 = vmul.f32 %v815, 0.5
        %v863 = vmul.f32 %v817, 0.5
        %v864 = vmul.f32 %v819, 0.5
        %v865 = vmul.f32 %v823, 0.5
        %v866 = vmul.f32 %v825, 0.5
        %v867 = vmul.f32 %v827, 0.5
        %v868 = vmul.f32 %v829, 0.5
        %v869 = vmul.f32 %v833, 0.5
        %v870 = vmul.f32 %v835, 0.5
        %v871 = vmul.f32 %v837, 0.5
        %v872 = vmul.f32 %v839, 0.5
        %v873 = vmul.f32 %v763, 0.044715
        %v874 = vmul.f32 %v765, 0.044715
        %v875 = vmul.f32 %v767, 0.044715
        %v876 = vmul.f32 %v769, 0.044715
        %v877 = vmul.f32 %v773, 0.044715
        %v878 = vmul.f32 %v775, 0.044715
        %v879 = vmul.f32 %v777, 0.044715
        %v880 = vmul.f32 %v779, 0.044715
        %v881 = vmul.f32 %v783, 0.044715
        %v882 = vmul.f32 %v785, 0.044715
        %v883 = vmul.f32 %v787, 0.044715
        %v884 = vmul.f32 %v789, 0.044715
        %v885 = vmul.f32 %v793, 0.044715
        %v886 = vmul.f32 %v795, 0.044715
        %v887 = vmul.f32 %v797, 0.044715
        %v888 = vmul.f32 %v799, 0.044715
        %v889 = vmul.f32 %v803, 0.044715
        %v890 = vmul.f32 %v805, 0.044715
        %v891 = vmul.f32 %v807, 0.044715
        %v892 = vmul.f32 %v809, 0.044715
        %v893 = vmul.f32 %v813, 0.044715
        %v894 = vmul.f32 %v815, 0.044715
        %v895 = vmul.f32 %v817, 0.044715
        %v896 = vmul.f32 %v819, 0.044715
        %v897 = vmul.f32 %v823, 0.044715
        %v898 = vmul.f32 %v825, 0.044715
        %v899 = vmul.f32 %v827, 0.044715
        %v900 = vmul.f32 %v829, 0.044715
        %v901 = vmul.f32 %v833, 0.044715
        %v902 = vmul.f32 %v835, 0.044715
        %v903 = vmul.f32 %v837, 0.044715
        %v904 = vmul.f32 %v839, 0.044715
        %v905 = vmul.f32 %v873, %v763
        %v906 = vmul.f32 %v874, %v765
        %v907 = vmul.f32 %v875, %v767
        %v908 = vmul.f32 %v876, %v769
        %v909 = vmul.f32 %v877, %v773
        %v910 = vmul.f32 %v878, %v775
        %v911 = vmul.f32 %v879, %v777
        %v912 = vmul.f32 %v880, %v779
        %v913 = vmul.f32 %v881, %v783
        %v914 = vmul.f32 %v882, %v785
        %v915 = vmul.f32 %v883, %v787
        %v916 = vmul.f32 %v884, %v789
        %v917 = vmul.f32 %v885, %v793
        %v918 = vmul.f32 %v886, %v795
        %v919 = vmul.f32 %v887, %v797
        %v920 = vmul.f32 %v888, %v799
        %v921 = vmul.f32 %v889, %v803
        %v922 = vmul.f32 %v890, %v805
        %v923 = vmul.f32 %v891, %v807
        %v924 = vmul.f32 %v892, %v809
        %v925 = vmul.f32 %v893, %v813
        %v926 = vmul.f32 %v894, %v815
        %v927 = vmul.f32 %v895, %v817
        %v928 = vmul.f32 %v896, %v819
        %v929 = vmul.f32 %v897, %v823
        %v930 = vmul.f32 %v898, %v825
        %v931 = vmul.f32 %v899, %v827
        %v932 = vmul.f32 %v900, %v829
        %v933 = vmul.f32 %v901, %v833
        %v934 = vmul.f32 %v902, %v835
        %v935 = vmul.f32 %v903, %v837
        %v936 = vmul.f32 %v904, %v839
        %v937 = vmul.f32 %v905, %v763
        %v938 = vmul.f32 %v906, %v765
        %v939 = vmul.f32 %v907, %v767
        %v940 = vmul.f32 %v908, %v769
        %v941 = vmul.f32 %v909, %v773
        %v942 = vmul.f32 %v910, %v775
        %v943 = vmul.f32 %v911, %v777
        %v944 = vmul.f32 %v912, %v779
        %v945 = vmul.f32 %v913, %v783
        %v946 = vmul.f32 %v914, %v785
        %v947 = vmul.f32 %v915, %v787
        %v948 = vmul.f32 %v916, %v789
        %v949 = vmul.f32 %v917, %v793
        %v950 = vmul.f32 %v918, %v795
        %v951 = vmul.f32 %v919, %v797
        %v952 = vmul.f32 %v920, %v799
        %v953 = vmul.f32 %v921, %v803
        %v954 = vmul.f32 %v922, %v805
        %v955 = vmul.f32 %v923, %v807
        %v956 = vmul.f32 %v924, %v809
        %v957 = vmul.f32 %v925, %v813
        %v958 = vmul.f32 %v926, %v815
        %v959 = vmul.f32 %v927, %v817
        %v960 = vmul.f32 %v928, %v819
        %v961 = vmul.f32 %v929, %v823
        %v962 = vmul.f32 %v930, %v825
        %v963 = vmul.f32 %v931, %v827
        %v964 = vmul.f32 %v932, %v829
        %v965 = vmul.f32 %v933, %v833
        %v966 = vmul.f32 %v934, %v835
        %v967 = vmul.f32 %v935, %v837
        %v968 = vmul.f32 %v936, %v839
        %v969 = vadd.f32 %v763, %v937
        %v970 = vadd.f32 %v765, %v938
        %v971 = vadd.f32 %v767, %v939
        %v972 = vadd.f32 %v769, %v940
        %v973 = vadd.f32 %v773, %v941
        %v974 = vadd.f32 %v775, %v942
        %v975 = vadd.f32 %v777, %v943
        %v976 = vadd.f32 %v779, %v944
        %v977 = vadd.f32 %v783, %v945
        %v978 = vadd.f32 %v785, %v946
        %v979 = vadd.f32 %v787, %v947
        %v980 = vadd.f32 %v789, %v948
        %v981 = vadd.f32 %v793, %v949
        %v982 = vadd.f32 %v795, %v950
        %v983 = vadd.f32 %v797, %v951
        %v984 = vadd.f32 %v799, %v952
        %v985 = vadd.f32 %v803, %v953
        %v986 = vadd.f32 %v805, %v954
        %v987 = vadd.f32 %v807, %v955
        %v988 = vadd.f32 %v809, %v956
        %v989 = vadd.f32 %v813, %v957
        %v990 = vadd.f32 %v815, %v958
        %v991 = vadd.f32 %v817, %v959
        %v992 = vadd.f32 %v819, %v960
        %v993 = vadd.f32 %v823, %v961
        %v994 = vadd.f32 %v825, %v962
        %v995 = vadd.f32 %v827, %v963
        %v996 = vadd.f32 %v829, %v964
        %v997 = vadd.f32 %v833, %v965
        %v998 = vadd.f32 %v835, %v966
        %v999 = vadd.f32 %v837, %v967
        %v1000 = vadd.f32 %v839, %v968
        %v1001 = vmul.f32 %v969, 0.7978846
        %v1002 = vmul.f32 %v970, 0.7978846
        %v1003 = vmul.f32 %v971, 0.7978846
        %v1004 = vmul.f32 %v972, 0.7978846
        %v1005 = vmul.f32 %v973, 0.7978846
        %v1006 = vmul.f32 %v974, 0.7978846
        %v1007 = vmul.f32 %v975, 0.7978846
        %v1008 = vmul.f32 %v976, 0.7978846
        %v1009 = vmul.f32 %v977, 0.7978846
        %v1010 = vmul.f32 %v978, 0.7978846
        %v1011 = vmul.f32 %v979, 0.7978846
        %v1012 = vmul.f32 %v980, 0.7978846
        %v1013 = vmul.f32 %v981, 0.7978846
        %v1014 = vmul.f32 %v982, 0.7978846
        %v1015 = vmul.f32 %v983, 0.7978846
        %v1016 = vmul.f32 %v984, 0.7978846
        %v1017 = vmul.f32 %v985, 0.7978846
        %v1018 = vmul.f32 %v986, 0.7978846
        %v1019 = vmul.f32 %v987, 0.7978846
        %v1020 = vmul.f32 %v988, 0.7978846
        %v1021 = vmul.f32 %v989, 0.7978846
        %v1022 = vmul.f32 %v990, 0.7978846
        %v1023 = vmul.f32 %v991, 0.7978846
        %v1024 = vmul.f32 %v992, 0.7978846
        %v1025 = vmul.f32 %v993, 0.7978846
        %v1026 = vmul.f32 %v994, 0.7978846
        %v1027 = vmul.f32 %v995, 0.7978846
        %v1028 = vmul.f32 %v996, 0.7978846
        %v1029 = vmul.f32 %v997, 0.7978846
        %v1030 = vmul.f32 %v998, 0.7978846
        %v1031 = vmul.f32 %v999, 0.7978846
        %v1032 = vmul.f32 %v1000, 0.7978846
        %v1033 = vtanh.pop %v1001
        %v1034 = vtanh.pop %v1002
        %v1035 = vtanh.pop %v1003
        %v1036 = vtanh.pop %v1004
        %v1037 = vtanh.pop %v1005
        %v1038 = vtanh.pop %v1006
        %v1039 = vtanh.pop %v1007
        %v1040 = vtanh.pop %v1008
        %v1041 = vtanh.pop %v1009
        %v1042 = vtanh.pop %v1010
        %v1043 = vtanh.pop %v1011
        %v1044 = vtanh.pop %v1012
        %v1045 = vtanh.pop %v1013
        %v1046 = vtanh.pop %v1014
        %v1047 = vtanh.pop %v1015
        %v1048 = vtanh.pop %v1016
        %v1049 = vtanh.pop %v1017
        %v1050 = vtanh.pop %v1018
        %v1051 = vtanh.pop %v1019
        %v1052 = vtanh.pop %v1020
        %v1053 = vtanh.pop %v1021
        %v1054 = vtanh.pop %v1022
        %v1055 = vtanh.pop %v1023
        %v1056 = vtanh.pop %v1024
        %v1057 = vtanh.pop %v1025
        %v1058 = vtanh.pop %v1026
        %v1059 = vtanh.pop %v1027
        %v1060 = vtanh.pop %v1028
        %v1061 = vtanh.pop %v1029
        %v1062 = vtanh.pop %v1030
        %v1063 = vtanh.pop %v1031
        %v1064 = vtanh.pop %v1032
        %v1065 = vadd.f32 %v1033, 1.0
        %v1066 = vadd.f32 %v1034, 1.0
        %v1067 = vadd.f32 %v1035, 1.0
        %v1068 = vadd.f32 %v1036, 1.0
        %v1069 = vadd.f32 %v1037, 1.0
        %v1070 = vadd.f32 %v1038, 1.0
        %v1071 = vadd.f32 %v1039, 1.0
        %v1072 = vadd.f32 %v1040, 1.0
        %v1073 = vadd.f32 %v1041, 1.0
        %v1074 = vadd.f32 %v1042, 1.0
        %v1075 = vadd.f32 %v1043, 1.0
        %v1076 = vadd.f32 %v1044, 1.0
        %v1077 = vadd.f32 %v1045, 1.0
        %v1078 = vadd.f32 %v1046, 1.0
        %v1079 = vadd.f32 %v1047, 1.0
        %v1080 = vadd.f32 %v1048, 1.0
        %v1081 = vadd.f32 %v1049, 1.0
        %v1082 = vadd.f32 %v1050, 1.0
        %v1083 = vadd.f32 %v1051, 1.0
        %v1084 = vadd.f32 %v1052, 1.0
        %v1085 = vadd.f32 %v1053, 1.0
        %v1086 = vadd.f32 %v1054, 1.0
        %v1087 = vadd.f32 %v1055, 1.0
        %v1088 = vadd.f32 %v1056, 1.0
        %v1089 = vadd.f32 %v1057, 1.0
        %v1090 = vadd.f32 %v1058, 1.0
        %v1091 = vadd.f32 %v1059, 1.0
        %v1092 = vadd.f32 %v1060, 1.0
        %v1093 = vadd.f32 %v1061, 1.0
        %v1094 = vadd.f32 %v1062, 1.0
        %v1095 = vadd.f32 %v1063, 1.0
        %v1096 = vadd.f32 %v1064, 1.0
        %v1097 = vmul.f32 %v841, %v1065
        %v1098 = vmul.f32 %v842, %v1066
        %v1099 = vmul.f32 %v843, %v1067
        %v1100 = vmul.f32 %v844, %v1068
        %v1101 = vmul.f32 %v845, %v1069
        %v1102 = vmul.f32 %v846, %v1070
        %v1103 = vmul.f32 %v847, %v1071
        %v1104 = vmul.f32 %v848, %v1072
        %v1105 = vmul.f32 %v849, %v1073
        %v1106 = vmul.f32 %v850, %v1074
        %v1107 = vmul.f32 %v851, %v1075
        %v1108 = vmul.f32 %v852, %v1076
        %v1109 = vmul.f32 %v853, %v1077
        %v1110 = vmul.f32 %v854, %v1078
        %v1111 = vmul.f32 %v855, %v1079
        %v1112 = vmul.f32 %v856, %v1080
        %v1113 = vmul.f32 %v857, %v1081
        %v1114 = vmul.f32 %v858, %v1082
        %v1115 = vmul.f32 %v859, %v1083
        %v1116 = vmul.f32 %v860, %v1084
        %v1117 = vmul.f32 %v861, %v1085
        %v1118 = vmul.f32 %v862, %v1086
        %v1119 = vmul.f32 %v863, %v1087
        %v1120 = vmul.f32 %v864, %v1088
        %v1121 = vmul.f32 %v865, %v1089
        %v1122 = vmul.f32 %v866, %v1090
        %v1123 = vmul.f32 %v867, %v1091
        %v1124 = vmul.f32 %v868, %v1092
        %v1125 = vmul.f32 %v869, %v1093
        %v1126 = vmul.f32 %v870, %v1094
        %v1127 = vmul.f32 %v871, %v1095
        %v1128 = vmul.f32 %v872, %v1096
        %v1129 = vpack.c.bf16 %v1099, %v1097
        %v1130 = vpack.c.bf16 %v1100, %v1098
        %v1131 = vpack.c.bf16 %v1103, %v1101
        %v1132 = vpack.c.bf16 %v1104, %v1102
        %v1133 = vpack.c.bf16 %v1107, %v1105
        %v1134 = vpack.c.bf16 %v1108, %v1106
        %v1135 = vpack.c.bf16 %v1111, %v1109
        %v1136 = vpack.c.bf16 %v1112, %v1110
        %v1137 = vpack.c.bf16 %v1115, %v1113
        %v1138 = vpack.c.bf16 %v1116, %v1114
        %v1139 = vpack.c.bf16 %v1119, %v1117
        %v1140 = vpack.c.bf16 %v1120, %v1118
        %v1141 = vpack.c.bf16 %v1123, %v1121
        %v1142 = vpack.c.bf16 %v1124, %v1122
        %v1143 = vpack.c.bf16 %v1127, %v1125
        %v1144 = vpack.c.bf16 %v1128, %v1126
        %v1161 = vunpack.c.l.b16 %v1129
        %v1162 = vunpack.c.l.b16 %v1130
        %v1163 = vunpack.c.h.b16 %v1129
        %v1164 = vunpack.c.h.b16 %v1130
        %v1165 = vunpack.c.l.b16 %v1131
        %v1166 = vunpack.c.l.b16 %v1132
        %v1167 = vunpack.c.h.b16 %v1131
        %v1168 = vunpack.c.h.b16 %v1132
        %v1169 = vunpack.c.l.b16 %v1133
        %v1170 = vunpack.c.l.b16 %v1134
        %v1171 = vunpack.c.h.b16 %v1133
        %v1172 = vunpack.c.h.b16 %v1134
        %v1173 = vunpack.c.l.b16 %v1135
        %v1174 = vunpack.c.l.b16 %v1136
        %v1175 = vunpack.c.h.b16 %v1135
        %v1176 = vunpack.c.h.b16 %v1136
        %v1177 = vunpack.c.l.b16 %v1137
        %v1178 = vunpack.c.l.b16 %v1138
        %v1179 = vunpack.c.h.b16 %v1137
        %v1180 = vunpack.c.h.b16 %v1138
        %v1181 = vunpack.c.l.b16 %v1139
        %v1182 = vunpack.c.l.b16 %v1140
        %v1183 = vunpack.c.h.b16 %v1139
        %v1184 = vunpack.c.h.b16 %v1140
        %v1185 = vunpack.c.l.b16 %v1141
        %v1186 = vunpack.c.l.b16 %v1142
        %v1187 = vunpack.c.h.b16 %v1141
        %v1188 = vunpack.c.h.b16 %v1142
        %v1189 = vunpack.c.l.b16 %v1143
        %v1190 = vunpack.c.l.b16 %v1144
        %v1191 = vunpack.c.h.b16 %v1143
        %v1192 = vunpack.c.h.b16 %v1144
        %v1193 = vpack.c.b16 %v1162, %v1161
        %v1194 = vpack.c.b16 %v1164, %v1163
        %v1195 = vpack.c.b16 %v1166, %v1165
        %v1196 = vpack.c.b16 %v1168, %v1167
        %v1197 = vpack.c.b16 %v1170, %v1169
        %v1198 = vpack.c.b16 %v1172, %v1171
        %v1199 = vpack.c.b16 %v1174, %v1173
        %v1200 = vpack.c.b16 %v1176, %v1175
        %v1201 = vpack.c.b16 %v1178, %v1177
        %v1202 = vpack.c.b16 %v1180, %v1179
        %v1203 = vpack.c.b16 %v1182, %v1181
        %v1204 = vpack.c.b16 %v1184, %v1183
        %v1205 = vpack.c.b16 %v1186, %v1185
        %v1206 = vpack.c.b16 %v1188, %v1187
        %v1207 = vpack.c.b16 %v1190, %v1189
        %v1208 = vpack.c.b16 %v1192, %v1191
        %1225 = vst [vmem:[%s357] sm:$0xff] %v1193
        %1226 = vst [vmem:[%s357 + $0x8] sm:$0xff] %v1194
        %1227 = vst [vmem:[%s357 + $0x10] sm:$0xff] %v1195
        %1228 = vst [vmem:[%s357 + $0x18] sm:$0xff] %v1196
        %1229 = vst [vmem:[%s357 + $0x20] sm:$0xff] %v1197
        %1230 = vst [vmem:[%s357 + $0x28] sm:$0xff] %v1198
        %1231 = vst [vmem:[%s357 + $0x30] sm:$0xff] %v1199
        %1232 = vst [vmem:[%s357 + $0x38] sm:$0xff] %v1200
        %1233 = vst [vmem:[%s357 + $0x40] sm:$0xff] %v1201
        %1234 = vst [vmem:[%s357 + $0x48] sm:$0xff] %v1202
        %1235 = vst [vmem:[%s357 + $0x50] sm:$0xff] %v1203
        %1236 = vst [vmem:[%s357 + $0x58] sm:$0xff] %v1204
        %1237 = vst [vmem:[%s357 + $0x60] sm:$0xff] %v1205
        %1238 = vst [vmem:[%s357 + $0x68] sm:$0xff] %v1206
        %1239 = vst [vmem:[%s357 + $0x70] sm:$0xff] %v1207
        %1240 = vst [vmem:[%s357 + $0x78] sm:$0xff] %v1208
        %s1241 = sand.u32 %s158, 1
        %s1242 = sand.u32 %s158, 1
        %s1243 = smul.addr %s1242, 128
        %s1244 = scalar_lea.vmem [#allocation3], %s1243
        // Predicated region
        $region79: #{gpt_forward.15} parent=73 // pred_check
          %p1245 = pneg %p168
        $region80: #{gpt_forward.15} parent=73 // pred_check_branch
          %1247 = sbr.rel (%p1245) target = $region82
        $region81: #{gpt_forward.15} parent=73 // pred_region
          %s1248 = smul.u32 16, %s20
          %s1249 = smul.u32 2, %s21
          %s1250 = smul.addr %s1248, 4
          %s1251 = sadd.s32 %s1249, %s1250
          %s1252 = smul.addr %s1251, 4
          %s1253 = scalar_lea.vmem %s5, %s1252
          // Predicated region
          $region83: #{gpt_forward.15} parent=81 // pred_check
            _
          $region84: #{gpt_forward.15} parent=81 // pred_check_branch
            %1255 = sbr.rel (0) target = $region86
          $region85: #{gpt_forward.15} parent=81 // pred_region
            // Predicated region
            $region87: #{gpt_forward.15} parent=85 // pred_check
              _
            $region88: #{gpt_forward.15} parent=85 // pred_check_branch
              %1257 = sbr.rel (0) target = $region90
            $region89: #{gpt_forward.15} parent=85 // pred_region
              // Predicated region
              $region102: #{gpt_forward.15} parent=89 // pred_check
                _
              $region103: #{gpt_forward.15} parent=89 // pred_check_branch
                %1302 = sbr.rel (0) target = $region105
              $region104: #{gpt_forward.15} parent=89 // pred_region
                loop: start=0, step=1, limit=1
                $region106: #{gpt_forward.15} parent=104 // loop_pre_header
                  _
                $region107: #{gpt_forward.15} parent=104 // loop_header
                  %s1304 = sphi 0, %s1308
                  %p1305 = scmp.ge.s32.totalorder %s1304, 1
                  %s1309 = sphi %s1244, %s1244
                  %s1310 = sphi %s1253, %s1253
                $region108: #{gpt_forward.15} parent=104 // loop_header_branch
                  %1307 = sbr.rel (%p1305) target = $region112
                $region109: #{gpt_forward.15} parent=104 // loop_body
                  %v1311 = vld [vmem:[%s1309] sm:$0xff]
                  %1312 = vst [vmem:[%s1310] sm:$0xff] %v1311
                  %v1313 = vld [vmem:[%s1309 + $0x8] sm:$0xff]
                  %1314 = vst [vmem:[%s1310 + $0x10] sm:$0xff] %v1313
                  %v1315 = vld [vmem:[%s1309 + $0x10] sm:$0xff]
                  %1316 = vst [vmem:[%s1310 + $0x20] sm:$0xff] %v1315
                  %v1317 = vld [vmem:[%s1309 + $0x18] sm:$0xff]
                  %1318 = vst [vmem:[%s1310 + $0x30] sm:$0xff] %v1317
                  %v1319 = vld [vmem:[%s1309 + $0x20] sm:$0xff]
                  %1320 = vst [vmem:[%s1310 + $0x40] sm:$0xff] %v1319
                  %v1321 = vld [vmem:[%s1309 + $0x28] sm:$0xff]
                  %1322 = vst [vmem:[%s1310 + $0x50] sm:$0xff] %v1321
                  %v1323 = vld [vmem:[%s1309 + $0x30] sm:$0xff]
                  %1324 = vst [vmem:[%s1310 + $0x60] sm:$0xff] %v1323
                  %v1325 = vld [vmem:[%s1309 + $0x38] sm:$0xff]
                  %1326 = vst [vmem:[%s1310 + $0x70] sm:$0xff] %v1325
                  %v1327 = vld [vmem:[%s1309 + $0x40] sm:$0xff]
                  %1328 = vst [vmem:[%s1310 + $0x80] sm:$0xff] %v1327
                  %v1329 = vld [vmem:[%s1309 + $0x48] sm:$0xff]
                  %1330 = vst [vmem:[%s1310 + $0x90] sm:$0xff] %v1329
                  %v1331 = vld [vmem:[%s1309 + $0x50] sm:$0xff]
                  %1332 = vst [vmem:[%s1310 + $0xa0] sm:$0xff] %v1331
                  %v1333 = vld [vmem:[%s1309 + $0x58] sm:$0xff]
                  %1334 = vst [vmem:[%s1310 + $0xb0] sm:$0xff] %v1333
                  %v1335 = vld [vmem:[%s1309 + $0x60] sm:$0xff]
                  %1336 = vst [vmem:[%s1310 + $0xc0] sm:$0xff] %v1335
                  %v1337 = vld [vmem:[%s1309 + $0x68] sm:$0xff]
                  %1338 = vst [vmem:[%s1310 + $0xd0] sm:$0xff] %v1337
                  %v1339 = vld [vmem:[%s1309 + $0x70] sm:$0xff]
                  %1340 = vst [vmem:[%s1310 + $0xe0] sm:$0xff] %v1339
                  %v1341 = vld [vmem:[%s1309 + $0x78] sm:$0xff]
                  %1342 = vst [vmem:[%s1310 + $0xf0] sm:$0xff] %v1341
                $region110: #{gpt_forward.15} parent=104 // loop_footer
                  %s1308 = sadd.s32 1, %s1304
                $region111: #{gpt_forward.15} parent=104 // loop_footer_branch
                  %1303 = sbr.rel target = $region107
                $region112: #{gpt_forward.15} parent=104 // loop_exit
                  _
              $region105: #{gpt_forward.15} parent=89 // pred_fallthru
                _
              // Predicated region
              $region113: #{gpt_forward.15} parent=89 // pred_check
                _
              $region114: #{gpt_forward.15} parent=89 // pred_check_branch
                %1344 = sbr.rel target = $region116
              $region115: #{gpt_forward.15} parent=89 // pred_region
                _
              $region116: #{gpt_forward.15} parent=89 // pred_fallthru
                _
            $region90: #{gpt_forward.15} parent=85 // pred_fallthru
              _
            // Predicated region
            $region91: #{gpt_forward.15} parent=85 // pred_check
              _
            $region92: #{gpt_forward.15} parent=85 // pred_check_branch
              %1259 = sbr.rel target = $region94
            $region93: #{gpt_forward.15} parent=85 // pred_region
              loop: start=0, step=1, limit=1
              $region95: #{gpt_forward.15} parent=93 // loop_pre_header
                _
              $region96: #{gpt_forward.15} parent=93 // loop_header
                %s1262 = sphi 0, %s1266
                %p1263 = scmp.ge.s32.totalorder %s1262, 1
                %s1267 = sphi %s1244, %s1244
                %s1268 = sphi %s1253, %s1253
              $region97: #{gpt_forward.15} parent=93 // loop_header_branch
                %1265 = sbr.rel (%p1263) target = $region101
              $region98: #{gpt_forward.15} parent=93 // loop_body
                %v1269 = vld [vmem:[%s1267] sm:$0xff]
                %1270 = vst [vmem:[%s1268] sm:$0xff] %v1269
                %v1271 = vld [vmem:[%s1267 + $0x8] sm:$0xff]
                %1272 = vst [vmem:[%s1268 + $0x10] sm:$0xff] %v1271
                %v1273 = vld [vmem:[%s1267 + $0x10] sm:$0xff]
                %1274 = vst [vmem:[%s1268 + $0x20] sm:$0xff] %v1273
                %v1275 = vld [vmem:[%s1267 + $0x18] sm:$0xff]
                %1276 = vst [vmem:[%s1268 + $0x30] sm:$0xff] %v1275
                %v1277 = vld [vmem:[%s1267 + $0x20] sm:$0xff]
                %1278 = vst [vmem:[%s1268 + $0x40] sm:$0xff] %v1277
                %v1279 = vld [vmem:[%s1267 + $0x28] sm:$0xff]
                %1280 = vst [vmem:[%s1268 + $0x50] sm:$0xff] %v1279
                %v1281 = vld [vmem:[%s1267 + $0x30] sm:$0xff]
                %1282 = vst [vmem:[%s1268 + $0x60] sm:$0xff] %v1281
                %v1283 = vld [vmem:[%s1267 + $0x38] sm:$0xff]
                %1284 = vst [vmem:[%s1268 + $0x70] sm:$0xff] %v1283
                %v1285 = vld [vmem:[%s1267 + $0x40] sm:$0xff]
                %1286 = vst [vmem:[%s1268 + $0x80] sm:$0xff] %v1285
                %v1287 = vld [vmem:[%s1267 + $0x48] sm:$0xff]
                %1288 = vst [vmem:[%s1268 + $0x90] sm:$0xff] %v1287
                %v1289 = vld [vmem:[%s1267 + $0x50] sm:$0xff]
                %1290 = vst [vmem:[%s1268 + $0xa0] sm:$0xff] %v1289
                %v1291 = vld [vmem:[%s1267 + $0x58] sm:$0xff]
                %1292 = vst [vmem:[%s1268 + $0xb0] sm:$0xff] %v1291
                %v1293 = vld [vmem:[%s1267 + $0x60] sm:$0xff]
                %1294 = vst [vmem:[%s1268 + $0xc0] sm:$0xff] %v1293
                %v1295 = vld [vmem:[%s1267 + $0x68] sm:$0xff]
                %1296 = vst [vmem:[%s1268 + $0xd0] sm:$0xff] %v1295
                %v1297 = vld [vmem:[%s1267 + $0x70] sm:$0xff]
                %1298 = vst [vmem:[%s1268 + $0xe0] sm:$0xff] %v1297
                %v1299 = vld [vmem:[%s1267 + $0x78] sm:$0xff]
                %1300 = vst [vmem:[%s1268 + $0xf0] sm:$0xff] %v1299
              $region99: #{gpt_forward.15} parent=93 // loop_footer
                %s1266 = sadd.s32 1, %s1262
              $region100: #{gpt_forward.15} parent=93 // loop_footer_branch
                %1261 = sbr.rel target = $region96
              $region101: #{gpt_forward.15} parent=93 // loop_exit
                _
            $region94: #{gpt_forward.15} parent=85 // pred_fallthru
              _
          $region86: #{gpt_forward.15} parent=81 // pred_fallthru
            _
          %1345 = vnop
        $region82: #{gpt_forward.15} parent=73 // pred_fallthru
          _
      $region74: #{gpt_forward.15} parent=5 // pred_fallthru
        _
      %p1346 = scmp.le.s32.totalorder 2, %s11
      // Predicated region
      $region117: #{gpt_forward.15} parent=5 // pred_check
        %p1347 = pneg %p1346
      $region118: #{gpt_forward.15} parent=5 // pred_check_branch
        %1349 = sbr.rel (%p1347) target = $region120
      $region119: #{gpt_forward.15} parent=5 // pred_region
        %s1350 = ssub.s32 %s11, 2
        // Predicated region
        $region121: #{gpt_forward.15} parent=119 // pred_check
          %p1351 = pneg %p174
        $region122: #{gpt_forward.15} parent=119 // pred_check_branch
          %1353 = sbr.rel (%p1351) target = $region124
        $region123: #{gpt_forward.15} parent=119 // pred_region
          %s1354 = sand.u32 %s159, 1
          %s1355 = sand.u32 %s159, 1
          %s1356 = smul.addr %s1355, 128
          %s1357 = scalar_lea.vmem [#allocation3], %s1356
        $region124: #{gpt_forward.15} parent=119 // pred_fallthru
          _
      $region120: #{gpt_forward.15} parent=5 // pred_fallthru
        _
    $region6: #{gpt_forward.15} parent=1 // loop_footer
      %s15 = sadd.s32 1, %s11
    $region7: #{gpt_forward.15} parent=1 // loop_footer_branch
      %10 = sbr.rel target = $region3
    $region8: #{gpt_forward.15} parent=1 // loop_exit
      _

// kernel: gpt_forward.13
$region0: #{gpt_forward.13}
  #allocation0 [shape = 'u32[]', space=smem, size = 0x4, offset = 0x4, fixed_abs, tag = 'smem constant byte address 0x4 - core index']
  #allocation1 [shape = 'u32[144,128]{1,0:T(1,128)}', space=vmem, size = 0x12000, scoped, tag = 'internal scratch']
  %s0 = inlined_call_operand.vmem [shape: bf16[2,64,384], index: 0, kind: input, shape index: {}]
  %s1 = inlined_call_operand.vmem [shape: bf16[2,64,128], index: 1, kind: output, shape index: {}]
  %s2 = sld [smem:[#allocation0]]
  $region37: #{gpt_forward.13} parent=0
    _
  %s4 = ssub.s32 1, %s2
  %s5 = scalar_select 0, %s4, %s2
  loop: start=0, step=1, limit=4
  $region2: #{gpt_forward.13} parent=0 // loop_pre_header
    _
  $region3: #{gpt_forward.13} parent=0 // loop_header
    %s7 = sphi 0, %s11
    %p8 = scmp.ge.s32.totalorder %s7, 4
    %s17 = sphi 0, %s19
    %s20 = sphi 0, %s17
    %s21 = sphi 0, %s20
    %s37 = sphi 0, %s21
    %s43 = sphi 0, %s45
    %s46 = sphi 0, %s43
    %s47 = sphi 0, %s46
    %s63 = sphi 0, %s47
  $region4: #{gpt_forward.13} parent=0 // loop_header_branch
    %10 = sbr.rel (%p8) target = $region8
  $region5: #{gpt_forward.13} parent=0 // loop_body
    %s12 = ssub.s32 %s7, 1
    %s13 = ssub.s32 %s7, 2
    %s14 = sadd.s32 %s7, 1
    %s15 = ssub.s32 %s7, %s14
    %p16 = scmp.eq.s32.totalorder %s15, 0
    %s18 = sadd.s32 %s17, 1
    %s19 = scalar_select %p16, %s17, %s18
    %p22 = pneg %p16
    %p23 = scmp.eq.s32.totalorder %s7, 1
    %p24 = por %p22, %p23
    %p25 = scmp.ne.s32.totalorder %s17, %s20
    %p26 = scmp.eq.s32.totalorder %s7, 0
    %p27 = por %p25, %p26
    %p28 = scmp.ne.s32.totalorder %s17, %s20
    %p29 = scmp.eq.s32.totalorder %s12, 1
    %p30 = por %p28, %p29
    %p31 = scmp.ne.s32.totalorder %s20, %s21
    %p32 = scmp.eq.s32.totalorder %s12, 0
    %p33 = por %p31, %p32
    %p34 = scmp.ne.s32.totalorder %s20, %s21
    %p35 = scmp.eq.s32.totalorder %s13, 1
    %p36 = por %p34, %p35
    %p38 = scmp.ne.s32.totalorder %s21, %s37
    %p39 = scmp.eq.s32.totalorder %s13, 0
    %p40 = por %p38, %p39
    %s41 = ssub.s32 %s7, %s14
    %p42 = scmp.eq.s32.totalorder %s41, 0
    %s44 = sadd.s32 %s43, 1
    %s45 = scalar_select %p42, %s43, %s44
    %p48 = pneg %p42
    %p49 = scmp.eq.s32.totalorder %s7, 1
    %p50 = por %p48, %p49
    %p51 = scmp.ne.s32.totalorder %s43, %s46
    %p52 = scmp.eq.s32.totalorder %s7, 0
    %p53 = por %p51, %p52
    %p54 = scmp.ne.s32.totalorder %s43, %s46
    %p55 = scmp.eq.s32.totalorder %s12, 1
    %p56 = por %p54, %p55
    %p57 = scmp.ne.s32.totalorder %s46, %s47
    %p58 = scmp.eq.s32.totalorder %s12, 0
    %p59 = por %p57, %p58
    %p60 = scmp.ne.s32.totalorder %s46, %s47
    %p61 = scmp.eq.s32.totalorder %s13, 1
    %p62 = por %p60, %p61
    %p64 = scmp.ne.s32.totalorder %s47, %s63
    %p65 = scmp.eq.s32.totalorder %s13, 0
    %p66 = por %p64, %p65
    %p67 = scmp.le.s32.totalorder 1, %s7
    %p68 = scmp.lt.s32.totalorder %s7, 3
    %p69 = pnand %p67, %p68
    %p70 = pneg %p69
    // Predicated region
    $region9: #{gpt_forward.13} parent=5 // pred_check
      _
    $region10: #{gpt_forward.13} parent=5 // pred_check_branch
      %72 = sbr.rel (%p69) target = $region12
    $region11: #{gpt_forward.13} parent=5 // pred_region
      %s73 = ssub.s32 %s7, 1
    $region12: #{gpt_forward.13} parent=5 // pred_fallthru
      _
    %p74 = scmp.lt.s32.totalorder %s7, 2
    // Predicated region
    $region13: #{gpt_forward.13} parent=5 // pred_check
      %p75 = pneg %p74
    $region14: #{gpt_forward.13} parent=5 // pred_check_branch
      %77 = sbr.rel (%p75) target = $region16
    $region15: #{gpt_forward.13} parent=5 // pred_region
      // Predicated region
      $region17: #{gpt_forward.13} parent=15 // pred_check
        %p78 = pneg %p27
      $region18: #{gpt_forward.13} parent=15 // pred_check_branch
        %80 = sbr.rel (%p78) target = $region20
      $region19: #{gpt_forward.13} parent=15 // pred_region
        %p81 = scmp.lt.s32.totalorder %s7, 1
        %s82 = scalar_select %p81, %s7, 1
        %s83 = smul.addr %s82, 24
        %s84 = smul.addr %s83, 4
        %s85 = scalar_lea.vmem %s0, %s84
      $region20: #{gpt_forward.13} parent=15 // pred_fallthru
        _
    $region16: #{gpt_forward.13} parent=5 // pred_fallthru
      _
    %p86 = scmp.le.s32.totalorder 1, %s7
    %p87 = scmp.lt.s32.totalorder %s7, 3
    %p88 = pnand %p86, %p87
    %p89 = pneg %p88
    // Predicated region
    $region21: #{gpt_forward.13} parent=5 // pred_check
      _
    $region22: #{gpt_forward.13} parent=5 // pred_check_branch
      %91 = sbr.rel (%p88) target = $region24
    $region23: #{gpt_forward.13} parent=5 // pred_region
      %s92 = ssub.s32 %s7, 1
      %p93 = scmp.lt.s32.totalorder %s12, 1
      %s94 = scalar_select %p93, %s12, 1
      %s95 = smul.addr %s94, 24
      %s96 = smul.addr %s95, 4
      %s97 = scalar_lea.vmem %s0, %s96
      %p98 = pneg %p33
      %p99 = pneg %p30
      %p100 = pneg %p59
      %p101 = pneg %p56
      %p102 = scmp.lt.s32.totalorder %s12, 1
      %s103 = scalar_select %p102, %s12, 1
      %s104 = smul.addr %s103, 8
      %s105 = smul.addr %s104, 4
      %s106 = scalar_lea.vmem %s1, %s105
      %p107 = scmp.lt.s32.totalorder %s12, 1
      %s108 = scalar_select %p107, %s12, 1
      %s109 = smul.addr %s108, 24
      %s110 = smul.addr %s109, 4
      %s111 = scalar_lea.vmem %s0, %s110
      %p112 = scmp.lt.s32.totalorder %s12, 1
      %s113 = scalar_select %p112, %s12, 1
      %s114 = smul.addr %s113, 8
      %s115 = smul.addr %s114, 4
      %s116 = scalar_lea.vmem %s1, %s115
      %v118 = vld [vmem:[%s111] sm:$0xff]
      %v119 = vld [vmem:[%s111 + $0x8] sm:$0xf]
      %v120 = vld [vmem:[%s111 + $0xc] sm:$0xff]
      %v121 = vld [vmem:[%s111 + $0x14] sm:$0xf]
      %v122 = vld [vmem:[%s111 + $0x18] sm:$0xff]
      %v123 = vld [vmem:[%s111 + $0x20] sm:$0xf]
      %v124 = vld [vmem:[%s111 + $0x24] sm:$0xff]
      %v125 = vld [vmem:[%s111 + $0x2c] sm:$0xf]
      %v126 = vld [vmem:[%s111 + $0x30] sm:$0xff]
      %v127 = vld [vmem:[%s111 + $0x38] sm:$0xf]
      %v128 = vld [vmem:[%s111 + $0x3c] sm:$0xff]
      %v129 = vld [vmem:[%s111 + $0x44] sm:$0xf]
      %v130 = vld [vmem:[%s111 + $0x48] sm:$0xff]
      %v131 = vld [vmem:[%s111 + $0x50] sm:$0xf]
      %v132 = vld [vmem:[%s111 + $0x54] sm:$0xff]
      %v133 = vld [vmem:[%s111 + $0x5c] sm:$0xf]
      %v134 = vlaneseq
      %v135 = vshrl.u32 %v134, 7
      %v136 = vadd.s32 %v135, 8
      %v137 = vadd.s32 %v135, 16
      %v138 = vadd.s32 %v135, 24
      %v139 = vadd.s32 %v135, 32
      %v140 = vadd.s32 %v135, 40
      %v141 = vadd.s32 %v135, 48
      %v142 = vadd.s32 %v135, 56
      %v143 = vlaneseq
      %v144 = vand.u32 %v143, 127
      %vm145 = vcmp.le.s32.totalorder %v144, %v135
      %vm146 = vcmp.le.s32.totalorder %v144, %v136
      %vm147 = vcmp.le.s32.totalorder %v144, %v137
      %vm148 = vcmp.le.s32.totalorder %v144, %v138
      %vm149 = vcmp.le.s32.totalorder %v144, %v139
      %vm150 = vcmp.le.s32.totalorder %v144, %v140
      %vm151 = vcmp.le.s32.totalorder %v144, %v141
      %vm152 = vcmp.le.s32.totalorder %v144, %v142
      %v161 = vunpack.c.l.b16 %v118
      %v162 = vunpack.c.l.b16 %v120
      %v163 = vunpack.c.l.b16 %v122
      %v164 = vunpack.c.l.b16 %v124
      %v165 = vunpack.c.l.b16 %v126
      %v166 = vunpack.c.l.b16 %v128
      %v167 = vunpack.c.l.b16 %v130
      %v168 = vunpack.c.l.b16 %v132
      %v169 = vpack.c.b16 %v162, %v161
      %v170 = vpack.c.b16 %v164, %v163
      %v171 = vpack.c.b16 %v166, %v165
      %v172 = vpack.c.b16 %v168, %v167
      %v173 = vunpack.c.h.b16 %v118
      %v174 = vunpack.c.h.b16 %v120
      %v175 = vunpack.c.h.b16 %v122
      %v176 = vunpack.c.h.b16 %v124
      %v177 = vunpack.c.h.b16 %v126
      %v178 = vunpack.c.h.b16 %v128
      %v179 = vunpack.c.h.b16 %v130
      %v180 = vunpack.c.h.b16 %v132
      %v181 = vpack.c.b16 %v174, %v173
      %v182 = vpack.c.b16 %v176, %v175
      %v183 = vpack.c.b16 %v178, %v177
      %v184 = vpack.c.b16 %v180, %v179
      %vm185 = vcmask 261120
      %v187 = vsel %vm185, %v169, 0
      %v190 = vsel %vm185, %v170, 0
      %v193 = vsel %vm185, %v171, 0
      %v196 = vsel %vm185, %v172, 0
      %v199 = vsel %vm185, %v181, 0
      %v202 = vsel %vm185, %v182, 0
      %v205 = vsel %vm185, %v183, 0
      %v208 = vsel %vm185, %v184, 0
      %210 = vmatprep.subr.bf16.mxu0 0
      %211 = vmatpush1.bf16.xpose.msra.mxu0 %v199
      %212 = vmatprep.subr.bf16.mxu0 0
      %213 = vmatpush1.bf16.xpose.msra.mxu0 %v202
      %214 = vmatprep.subr.bf16.mxu0 0
      %215 = vmatpush1.bf16.xpose.msra.mxu0 %v205
      %216 = vmatprep.subr.bf16.mxu0 0
      %217 = vmatpush1.bf16.xpose.msra.mxu0 %v208
      %218 = vmatprep.subr.bf16.mxu0 0
      %219 = vmatpush1.bf16.xpose.msra.mxu0 0
      %220 = vmatprep.subr.bf16.mxu0 0
      %221 = vmatpush1.bf16.xpose.msra.mxu0 0
      %222 = vmatprep.subr.bf16.mxu0 0
      %223 = vmatpush1.bf16.xpose.msra.mxu0 0
      %224 = vmatprep.subr.bf16.mxu0 0
      %225 = vmatpush1.bf16.xpose.msra.mxu0 0
      %226 = vmatprep.subr.bf16.mxu0 0
      %227 = vmatpush1.bf16.xpose.msra.mxu0 0
      %228 = vmatprep.subr.bf16.mxu0 0
      %229 = vmatpush1.bf16.xpose.msra.mxu0 0
      %230 = vmatprep.subr.bf16.mxu0 0
      %231 = vmatpush1.bf16.xpose.msra.mxu0 0
      %232 = vmatprep.subr.bf16.mxu0 0
      %233 = vmatpush1.bf16.xpose.msra.mxu0 0
      %234 = vmatprep.subr.bf16.mxu0 0
      %235 = vmatpush1.bf16.xpose.msra.mxu0 0
      %236 = vmatprep.subr.bf16.mxu0 0
      %237 = vmatpush1.bf16.xpose.msra.mxu0 0
      %238 = vmatprep.subr.bf16.mxu0 0
      %239 = vmatpush1.bf16.xpose.msra.mxu0 0
      %240 = vmatprep.subr.bf16.mxu0 0
      %241 = vmatpush1.bf16.xpose.msra.mxu0 0
      %242 = vmatprep.mubr.bf16.mxu0 0
      %243 = vmatmul.mubr.bf16.gmra.mrb[0].mxu0 %v187
      %v244 = vpop.f32.mrb[0].mxu0
      %v245 = vadd.f32 0.0, %v244
      %v246 = vpop.f32.mrb[0].mxu0
      %v247 = vpop.f32.mrb[0].mxu0
      %v248 = vadd.f32 0.0, %v247
      %v249 = vpop.f32.mrb[0].mxu0
      %250 = vmatprep.mubr.bf16.mxu0 0
      %251 = vmatmul.mubr.bf16.gmra.mrb[0].mxu0 %v190
      %v252 = vpop.f32.mrb[0].mxu0
      %v253 = vadd.f32 0.0, %v252
      %v254 = vpop.f32.mrb[0].mxu0
      %v255 = vpop.f32.mrb[0].mxu0
      %v256 = vadd.f32 0.0, %v255
      %v257 = vpop.f32.mrb[0].mxu0
      %258 = vmatprep.mubr.bf16.mxu0 0
      %259 = vmatmul.mubr.bf16.gmra.mrb[0].mxu0 %v193
      %v260 = vpop.f32.mrb[0].mxu0
      %v261 = vadd.f32 0.0, %v260
      %v262 = vpop.f32.mrb[0].mxu0
      %v263 = vpop.f32.mrb[0].mxu0
      %v264 = vadd.f32 0.0, %v263
      %v265 = vpop.f32.mrb[0].mxu0
      %266 = vmatprep.mubr.bf16.mxu0 0
      %267 = vmatmul.mubr.bf16.gmra.mrb[0].mxu0 %v196
      %v268 = vpop.f32.mrb[0].mxu0
      %v269 = vadd.f32 0.0, %v268
      %v270 = vpop.f32.mrb[0].mxu0
      %v271 = vpop.f32.mrb[0].mxu0
      %v272 = vadd.f32 0.0, %v271
      %v273 = vpop.f32.mrb[0].mxu0
      %274 = vdwg.mxu0
      %v275 = vmul.f32 %v245, 0.17677669
      %v276 = vmul.f32 %v248, 0.17677669
      %v277 = vmul.f32 %v253, 0.17677669
      %v278 = vmul.f32 %v256, 0.17677669
      %v279 = vmul.f32 %v261, 0.17677669
      %v280 = vmul.f32 %v264, 0.17677669
      %v281 = vmul.f32 %v269, 0.17677669
      %v282 = vmul.f32 %v272, 0.17677669
      %v283 = vsel %vm145, %v275, -1e+30
      %v284 = vsel %vm146, %v276, -1e+30
      %v285 = vsel %vm147, %v277, -1e+30
      %v286 = vsel %vm148, %v278, -1e+30
      %v287 = vsel %vm149, %v279, -1e+30
      %v288 = vsel %vm150, %v280, -1e+30
      %v289 = vsel %vm151, %v281, -1e+30
      %v290 = vsel %vm152, %v282, -1e+30
      %vm291 = vcmask 523264
      %v292 = vsel %vm291, %v283, -inf
      %293 = vmax.xlane.f32.xlu0 %v292
      %v294 = vpop.xlane.xlu0 %293
      %v295 = vsel %vm291, %v284, -inf
      %296 = vmax.xlane.f32.xlu0 %v295
      %v297 = vpop.xlane.xlu0 %296
      %v298 = vsel %vm291, %v285, -inf
      %299 = vmax.xlane.f32.xlu0 %v298
      %v300 = vpop.xlane.xlu0 %299
      %v301 = vsel %vm291, %v286, -inf
      %302 = vmax.xlane.f32.xlu0 %v301
      %v303 = vpop.xlane.xlu0 %302
      %v304 = vsel %vm291, %v287, -inf
      %305 = vmax.xlane.f32.xlu0 %v304
      %v306 = vpop.xlane.xlu0 %305
      %v307 = vsel %vm291, %v288, -inf
      %308 = vmax.xlane.f32.xlu0 %v307
      %v309 = vpop.xlane.xlu0 %308
      %v310 = vsel %vm291, %v289, -inf
      %311 = vmax.xlane.f32.xlu0 %v310
      %v312 = vpop.xlane.xlu0 %311
      %v313 = vsel %vm291, %v290, -inf
      %314 = vmax.xlane.f32.xlu0 %v313
      %v315 = vpop.xlane.xlu0 %314
      %v316 = vsub.f32 %v283, %v294
      %v317 = vsub.f32 %v284, %v297
      %v318 = vsub.f32 %v285, %v300
      %v319 = vsub.f32 %v286, %v303
      %v320 = vsub.f32 %v287, %v306
      %v321 = vsub.f32 %v288, %v309
      %v322 = vsub.f32 %v289, %v312
      %v323 = vsub.f32 %v290, %v315
      %v324 = vmul.f32 %v316, 1.442695
      %v325 = vpow.pop %v324
      %v326 = vmul.f32 %v317, 1.442695
      %v327 = vpow.pop %v326
      %v328 = vmul.f32 %v318, 1.442695
      %v329 = vpow.pop %v328
      %v330 = vmul.f32 %v319, 1.442695
      %v331 = vpow.pop %v330
      %v332 = vmul.f32 %v320, 1.442695
      %v333 = vpow.pop %v332
      %v334 = vmul.f32 %v321, 1.442695
      %v335 = vpow.pop %v334
      %v336 = vmul.f32 %v322, 1.442695
      %v337 = vpow.pop %v336
      %v338 = vmul.f32 %v323, 1.442695
      %v339 = vpow.pop %v338
      %v340 = vsel %vm291, %v325, 0.0
      %341 = vadd.xlane.f32.xlu0 %v340
      %v342 = vpop.xlane.xlu0 %341
      %v343 = vsel %vm291, %v327, 0.0
      %344 = vadd.xlane.f32.xlu0 %v343
      %v345 = vpop.xlane.xlu0 %344
      %v346 = vsel %vm291, %v329, 0.0
      %347 = vadd.xlane.f32.xlu0 %v346
      %v348 = vpop.xlane.xlu0 %347
      %v349 = vsel %vm291, %v331, 0.0
      %350 = vadd.xlane.f32.xlu0 %v349
      %v351 = vpop.xlane.xlu0 %350
      %v352 = vsel %vm291, %v333, 0.0
      %353 = vadd.xlane.f32.xlu0 %v352
      %v354 = vpop.xlane.xlu0 %353
      %v355 = vsel %vm291, %v335, 0.0
      %356 = vadd.xlane.f32.xlu0 %v355
      %v357 = vpop.xlane.xlu0 %356
      %v358 = vsel %vm291, %v337, 0.0
      %359 = vadd.xlane.f32.xlu0 %v358
      %v360 = vpop.xlane.xlu0 %359
      %v361 = vsel %vm291, %v339, 0.0
      %362 = vadd.xlane.f32.xlu0 %v361
      %v363 = vpop.xlane.xlu0 %362
      %v364 = vrcp.pop %v342
      %v365 = vrcp.pop %v345
      %v366 = vrcp.pop %v348
      %v367 = vrcp.pop %v351
      %v368 = vrcp.pop %v354
      %v369 = vrcp.pop %v357
      %v370 = vrcp.pop %v360
      %v371 = vrcp.pop %v363
      %v372 = vmul.f32 %v325, %v364
      %v373 = vmul.f32 %v327, %v365
      %v374 = vmul.f32 %v329, %v366
      %v375 = vmul.f32 %v331, %v367
      %v376 = vmul.f32 %v333, %v368
      %v377 = vmul.f32 %v335, %v369
      %v378 = vmul.f32 %v337, %v370
      %v379 = vmul.f32 %v339, %v371
      %v380 = vpack.c.bf16 %v373, %v372
      %v381 = vpack.c.bf16 %v375, %v374
      %v382 = vpack.c.bf16 %v377, %v376
      %v383 = vpack.c.bf16 %v379, %v378
      %v392 = vunpack.c.l.b16 %v119
      %v393 = vunpack.c.l.b16 %v121
      %v394 = vunpack.c.l.b16 %v123
      %v395 = vunpack.c.l.b16 %v125
      %v396 = vunpack.c.l.b16 %v127
      %v397 = vunpack.c.l.b16 %v129
      %v398 = vunpack.c.l.b16 %v131
      %v399 = vunpack.c.l.b16 %v133
      %v400 = vpack.c.b16 %v393, %v392
      %v401 = vpack.c.b16 %v395, %v394
      %v402 = vpack.c.b16 %v397, %v396
      %v403 = vpack.c.b16 %v399, %v398
      %v409 = vsel %vm291, %v380, 0
      %v412 = vsel %vm291, %v381, 0
      %v415 = vsel %vm291, %v382, 0
      %v418 = vsel %vm291, %v383, 0
      %420 = vmatprep.subr.bf16.mxu0 0
      %421 = vmatpush1.bf16.msra.mxu0 %v400
      %422 = vmatprep.subr.bf16.mxu0 0
      %423 = vmatpush1.bf16.msra.mxu0 %v401
      %424 = vmatprep.subr.bf16.mxu0 0
      %425 = vmatpush1.bf16.msra.mxu0 %v402
      %426 = vmatprep.subr.bf16.mxu0 0
      %427 = vmatpush1.bf16.msra.mxu0 %v403
      %428 = vmatprep.subr.bf16.mxu0 0
      %429 = vmatpush1.bf16.msra.mxu0 0
      %430 = vmatprep.subr.bf16.mxu0 0
      %431 = vmatpush1.bf16.msra.mxu0 0
      %432 = vmatprep.subr.bf16.mxu0 0
      %433 = vmatpush1.bf16.msra.mxu0 0
      %434 = vmatprep.subr.bf16.mxu0 0
      %435 = vmatpush1.bf16.msra.mxu0 0
      %436 = vmatprep.subr.bf16.mxu0 0
      %437 = vmatpush1.bf16.msra.mxu0 0
      %438 = vmatprep.subr.bf16.mxu0 0
      %439 = vmatpush1.bf16.msra.mxu0 0
      %440 = vmatprep.subr.bf16.mxu0 0
      %441 = vmatpush1.bf16.msra.mxu0 0
      %442 = vmatprep.subr.bf16.mxu0 0
      %443 = vmatpush1.bf16.msra.mxu0 0
      %444 = vmatprep.subr.bf16.mxu0 0
      %445 = vmatpush1.bf16.msra.mxu0 0
      %446 = vmatprep.subr.bf16.mxu0 0
      %447 = vmatpush1.bf16.msra.mxu0 0
      %448 = vmatprep.subr.bf16.mxu0 0
      %449 = vmatpush1.bf16.msra.mxu0 0
      %450 = vmatprep.subr.bf16.mxu0 0
      %451 = vmatpush1.bf16.msra.mxu0 0
      %452 = vmatprep.mubr.bf16.mxu0 0
      %453 = vmatmul.mubr.bf16.gmra.mrb[0].mxu0 %v409
      %v454 = vpop.f32.mrb[0].mxu0
      %v455 = vadd.f32 0.0, %v454
      %v456 = vpop.f32.mrb[0].mxu0
      %v457 = vpop.f32.mrb[0].mxu0
      %v458 = vadd.f32 0.0, %v457
      %v459 = vpop.f32.mrb[0].mxu0
      %460 = vmatprep.mubr.bf16.mxu0 0
      %461 = vmatmul.mubr.bf16.gmra.mrb[0].mxu0 %v412
      %v462 = vpop.f32.mrb[0].mxu0
      %v463 = vadd.f32 0.0, %v462
      %v464 = vpop.f32.mrb[0].mxu0
      %v465 = vpop.f32.mrb[0].mxu0
      %v466 = vadd.f32 0.0, %v465
      %v467 = vpop.f32.mrb[0].mxu0
      %468 = vmatprep.mubr.bf16.mxu0 0
      %469 = vmatmul.mubr.bf16.gmra.mrb[0].mxu0 %v415
      %v470 = vpop.f32.mrb[0].mxu0
      %v471 = vadd.f32 0.0, %v470
      %v472 = vpop.f32.mrb[0].mxu0
      %v473 = vpop.f32.mrb[0].mxu0
      %v474 = vadd.f32 0.0, %v473
      %v475 = vpop.f32.mrb[0].mxu0
      %476 = vmatprep.mubr.bf16.mxu0 0
      %477 = vmatmul.mubr.bf16.gmra.mrb[0].mxu0 %v418
      %v478 = vpop.f32.mrb[0].mxu0
      %v479 = vadd.f32 0.0, %v478
      %v480 = vpop.f32.mrb[0].mxu0
      %v481 = vpop.f32.mrb[0].mxu0
      %v482 = vadd.f32 0.0, %v481
      %v483 = vpop.f32.mrb[0].mxu0
      %484 = vdwg.mxu0
      %485 = vrot.lane.b32.xlu0 %v169, 96
      %v486 = vpop.permute.xlu0 %485
      %487 = vrot.lane.b32.xlu0 %v170, 96
      %v488 = vpop.permute.xlu0 %487
      %489 = vrot.lane.b32.xlu0 %v171, 96
      %v490 = vpop.permute.xlu0 %489
      %491 = vrot.lane.b32.xlu0 %v172, 96
      %v492 = vpop.permute.xlu0 %491
      %493 = vrot.lane.b32.xlu0 %v181, 96
      %v494 = vpop.permute.xlu0 %493
      %495 = vrot.lane.b32.xlu0 %v182, 96
      %v496 = vpop.permute.xlu0 %495
      %497 = vrot.lane.b32.xlu0 %v183, 96
      %v498 = vpop.permute.xlu0 %497
      %499 = vrot.lane.b32.xlu0 %v184, 96
      %v500 = vpop.permute.xlu0 %499
      %v502 = vsel %vm185, %v486, 0
      %v505 = vsel %vm185, %v488, 0
      %v508 = vsel %vm185, %v490, 0
      %v511 = vsel %vm185, %v492, 0
      %v514 = vsel %vm185, %v494, 0
      %v517 = vsel %vm185, %v496, 0
      %v520 = vsel %vm185, %v498, 0
      %v523 = vsel %vm185, %v500, 0
      %525 = vmatprep.subr.bf16.mxu0 0
      %526 = vmatpush1.bf16.xpose.msra.mxu0 %v514
      %527 = vmatprep.subr.bf16.mxu0 0
      %528 = vmatpush1.bf16.xpose.msra.mxu0 %v517
      %529 = vmatprep.subr.bf16.mxu0 0
      %530 = vmatpush1.bf16.xpose.msra.mxu0 %v520
      %531 = vmatprep.subr.bf16.mxu0 0
      %532 = vmatpush1.bf16.xpose.msra.mxu0 %v523
      %533 = vmatprep.subr.bf16.mxu0 0
      %534 = vmatpush1.bf16.xpose.msra.mxu0 0
      %535 = vmatprep.subr.bf16.mxu0 0
      %536 = vmatpush1.bf16.xpose.msra.mxu0 0
      %537 = vmatprep.subr.bf16.mxu0 0
      %538 = vmatpush1.bf16.xpose.msra.mxu0 0
      %539 = vmatprep.subr.bf16.mxu0 0
      %540 = vmatpush1.bf16.xpose.msra.mxu0 0
      %541 = vmatprep.subr.bf16.mxu0 0
      %542 = vmatpush1.bf16.xpose.msra.mxu0 0
      %543 = vmatprep.subr.bf16.mxu0 0
      %544 = vmatpush1.bf16.xpose.msra.mxu0 0
      %545 = vmatprep.subr.bf16.mxu0 0
      %546 = vmatpush1.bf16.xpose.msra.mxu0 0
      %547 = vmatprep.subr.bf16.mxu0 0
      %548 = vmatpush1.bf16.xpose.msra.mxu0 0
      %549 = vmatprep.subr.bf16.mxu0 0
      %550 = vmatpush1.bf16.xpose.msra.mxu0 0
      %551 = vmatprep.subr.bf16.mxu0 0
      %552 = vmatpush1.bf16.xpose.msra.mxu0 0
      %553 = vmatprep.subr.bf16.mxu0 0
      %554 = vmatpush1.bf16.xpose.msra.mxu0 0
      %555 = vmatprep.subr.bf16.mxu0 0
      %556 = vmatpush1.bf16.xpose.msra.mxu0 0
      %557 = vmatprep.mubr.bf16.mxu0 0
      %558 = vmatmul.mubr.bf16.gmra.mrb[0].mxu0 %v502
      %v559 = vpop.f32.mrb[0].mxu0
      %v560 = vadd.f32 0.0, %v559
      %v561 = vpop.f32.mrb[0].mxu0
      %v562 = vpop.f32.mrb[0].mxu0
      %v563 = vadd.f32 0.0, %v562
      %v564 = vpop.f32.mrb[0].mxu0
      %565 = vmatprep.mubr.bf16.mxu0 0
      %566 = vmatmul.mubr.bf16.gmra.mrb[0].mxu0 %v505
      %v567 = vpop.f32.mrb[0].mxu0
      %v568 = vadd.f32 0.0, %v567
      %v569 = vpop.f32.mrb[0].mxu0
      %v570 = vpop.f32.mrb[0].mxu0
      %v571 = vadd.f32 0.0, %v570
      %v572 = vpop.f32.mrb[0].mxu0
      %573 = vmatprep.mubr.bf16.mxu0 0
      %574 = vmatmul.mubr.bf16.gmra.mrb[0].mxu0 %v508
      %v575 = vpop.f32.mrb[0].mxu0
      %v576 = vadd.f32 0.0, %v575
      %v577 = vpop.f32.mrb[0].mxu0
      %v578 = vpop.f32.mrb[0].mxu0
      %v579 = vadd.f32 0.0, %v578
      %v580 = vpop.f32.mrb[0].mxu0
      %581 = vmatprep.mubr.bf16.mxu0 0
      %582 = vmatmul.mubr.bf16.gmra.mrb[0].mxu0 %v511
      %v583 = vpop.f32.mrb[0].mxu0
      %v584 = vadd.f32 0.0, %v583
      %v585 = vpop.f32.mrb[0].mxu0
      %v586 = vpop.f32.mrb[0].mxu0
      %v587 = vadd.f32 0.0, %v586
      %v588 = vpop.f32.mrb[0].mxu0
      %589 = vdwg.mxu0
      %v590 = vmul.f32 %v560, 0.17677669
      %v591 = vmul.f32 %v563, 0.17677669
      %v592 = vmul.f32 %v568, 0.17677669
      %v593 = vmul.f32 %v571, 0.17677669
      %v594 = vmul.f32 %v576, 0.17677669
      %v595 = vmul.f32 %v579, 0.17677669
      %v596 = vmul.f32 %v584, 0.17677669
      %v597 = vmul.f32 %v587, 0.17677669
      %v598 = vsel %vm145, %v590, -1e+30
      %v599 = vsel %vm146, %v591, -1e+30
      %v600 = vsel %vm147, %v592, -1e+30
      %v601 = vsel %vm148, %v593, -1e+30
      %v602 = vsel %vm149, %v594, -1e+30
      %v603 = vsel %vm150, %v595, -1e+30
      %v604 = vsel %vm151, %v596, -1e+30
      %v605 = vsel %vm152, %v597, -1e+30
      %v606 = vsel %vm291, %v598, -inf
      %607 = vmax.xlane.f32.xlu0 %v606
      %v608 = vpop.xlane.xlu0 %607
      %v609 = vsel %vm291, %v599, -inf
      %610 = vmax.xlane.f32.xlu0 %v609
      %v611 = vpop.xlane.xlu0 %610
      %v612 = vsel %vm291, %v600, -inf
      %613 = vmax.xlane.f32.xlu0 %v612
      %v614 = vpop.xlane.xlu0 %613
      %v615 = vsel %vm291, %v601, -inf
      %616 = vmax.xlane.f32.xlu0 %v615
      %v617 = vpop.xlane.xlu0 %616
      %v618 = vsel %vm291, %v602, -inf
      %619 = vmax.xlane.f32.xlu0 %v618
      %v620 = vpop.xlane.xlu0 %619
      %v621 = vsel %vm291, %v603, -inf
      %622 = vmax.xlane.f32.xlu0 %v621
      %v623 = vpop.xlane.xlu0 %622
      %v624 = vsel %vm291, %v604, -inf
      %625 = vmax.xlane.f32.xlu0 %v624
      %v626 = vpop.xlane.xlu0 %625
      %v627 = vsel %vm291, %v605, -inf
      %628 = vmax.xlane.f32.xlu0 %v627
      %v629 = vpop.xlane.xlu0 %628
      %v630 = vsub.f32 %v598, %v608
      %v631 = vsub.f32 %v599, %v611
      %v632 = vsub.f32 %v600, %v614
      %v633 = vsub.f32 %v601, %v617
      %v634 = vsub.f32 %v602, %v620
      %v635 = vsub.f32 %v603, %v623
      %v636 = vsub.f32 %v604, %v626
      %v637 = vsub.f32 %v605, %v629
      %v638 = vmul.f32 %v630, 1.442695
      %v639 = vpow.pop %v638
      %v640 = vmul.f32 %v631, 1.442695
      %v641 = vpow.pop %v640
      %v642 = vmul.f32 %v632, 1.442695
      %v643 = vpow.pop %v642
      %v644 = vmul.f32 %v633, 1.442695
      %v645 = vpow.pop %v644
      %v646 = vmul.f32 %v634, 1.442695
      %v647 = vpow.pop %v646
      %v648 = vmul.f32 %v635, 1.442695
      %v649 = vpow.pop %v648
      %v650 = vmul.f32 %v636, 1.442695
      %v651 = vpow.pop %v650
      %v652 = vmul.f32 %v637, 1.442695
      %v653 = vpow.pop %v652
      %v654 = vsel %vm291, %v639, 0.0
      %655 = vadd.xlane.f32.xlu0 %v654
      %v656 = vpop.xlane.xlu0 %655
      %v657 = vsel %vm291, %v641, 0.0
      %658 = vadd.xlane.f32.xlu0 %v657
      %v659 = vpop.xlane.xlu0 %658
      %v660 = vsel %vm291, %v643, 0.0
      %661 = vadd.xlane.f32.xlu0 %v660
      %v662 = vpop.xlane.xlu0 %661
      %v663 = vsel %vm291, %v645, 0.0
      %664 = vadd.xlane.f32.xlu0 %v663
      %v665 = vpop.xlane.xlu0 %664
      %v666 = vsel %vm291, %v647, 0.0
      %667 = vadd.xlane.f32.xlu0 %v666
      %v668 = vpop.xlane.xlu0 %667
      %v669 = vsel %vm291, %v649, 0.0
      %670 = vadd.xlane.f32.xlu0 %v669
      %v671 = vpop.xlane.xlu0 %670
      %v672 = vsel %vm291, %v651, 0.0
      %673 = vadd.xlane.f32.xlu0 %v672
      %v674 = vpop.xlane.xlu0 %673
      %v675 = vsel %vm291, %v653, 0.0
      %676 = vadd.xlane.f32.xlu0 %v675
      %v677 = vpop.xlane.xlu0 %676
      %v678 = vrcp.pop %v656
      %v679 = vrcp.pop %v659
      %v680 = vrcp.pop %v662
      %v681 = vrcp.pop %v665
      %v682 = vrcp.pop %v668
      %v683 = vrcp.pop %v671
      %v684 = vrcp.pop %v674
      %v685 = vrcp.pop %v677
      %v686 = vmul.f32 %v639, %v678
      %v687 = vmul.f32 %v641, %v679
      %v688 = vmul.f32 %v643, %v680
      %v689 = vmul.f32 %v645, %v681
      %v690 = vmul.f32 %v647, %v682
      %v691 = vmul.f32 %v649, %v683
      %v692 = vmul.f32 %v651, %v684
      %v693 = vmul.f32 %v653, %v685
      %v694 = vpack.c.bf16 %v687, %v686
      %v695 = vpack.c.bf16 %v689, %v688
      %v696 = vpack.c.bf16 %v691, %v690
      %v697 = vpack.c.bf16 %v693, %v692
      %698 = vrot.lane.b32.xlu0 %v400, 96
      %v699 = vpop.permute.xlu0 %698
      %700 = vrot.lane.b32.xlu0 %v401, 96
      %v701 = vpop.permute.xlu0 %700
      %702 = vrot.lane.b32.xlu0 %v402, 96
      %v703 = vpop.permute.xlu0 %702
      %704 = vrot.lane.b32.xlu0 %v403, 96
      %v705 = vpop.permute.xlu0 %704
      %v711 = vsel %vm291, %v694, 0
      %v714 = vsel %vm291, %v695, 0
      %v717 = vsel %vm291, %v696, 0
      %v720 = vsel %vm291, %v697, 0
      %722 = vmatprep.subr.bf16.mxu0 0
      %723 = vmatpush1.bf16.msra.mxu0 %v699
      %724 = vmatprep.subr.bf16.mxu0 0
      %725 = vmatpush1.bf16.msra.mxu0 %v701
      %726 = vmatprep.subr.bf16.mxu0 0
      %727 = vmatpush1.bf16.msra.mxu0 %v703
      %728 = vmatprep.subr.bf16.mxu0 0
      %729 = vmatpush1.bf16.msra.mxu0 %v705
      %730 = vmatprep.subr.bf16.mxu0 0
      %731 = vmatpush1.bf16.msra.mxu0 0
      %732 = vmatprep.subr.bf16.mxu0 0
      %733 = vmatpush1.bf16.msra.mxu0 0
      %734 = vmatprep.subr.bf16.mxu0 0
      %735 = vmatpush1.bf16.msra.mxu0 0
      %736 = vmatprep.subr.bf16.mxu0 0
      %737 = vmatpush1.bf16.msra.mxu0 0
      %738 = vmatprep.subr.bf16.mxu0 0
      %739 = vmatpush1.bf16.msra.mxu0 0
      %740 = vmatprep.subr.bf16.mxu0 0
      %741 = vmatpush1.bf16.msra.mxu0 0
      %742 = vmatprep.subr.bf16.mxu0 0
      %743 = vmatpush1.bf16.msra.mxu0 0
      %744 = vmatprep.subr.bf16.mxu0 0
      %745 = vmatpush1.bf16.msra.mxu0 0
      %746 = vmatprep.subr.bf16.mxu0 0
      %747 = vmatpush1.bf16.msra.mxu0 0
      %748 = vmatprep.subr.bf16.mxu0 0
      %749 = vmatpush1.bf16.msra.mxu0 0
      %750 = vmatprep.subr.bf16.mxu0 0
      %751 = vmatpush1.bf16.msra.mxu0 0
      %752 = vmatprep.subr.bf16.mxu0 0
      %753 = vmatpush1.bf16.msra.mxu0 0
      %754 = vmatprep.mubr.bf16.mxu0 0
      %755 = vmatmul.mubr.bf16.gmra.mrb[0].mxu0 %v711
      %v756 = vpop.f32.mrb[0].mxu0
      %v757 = vadd.f32 0.0, %v756
      %v758 = vpop.f32.mrb[0].mxu0
      %v759 = vpop.f32.mrb[0].mxu0
      %v760 = vadd.f32 0.0, %v759
      %v761 = vpop.f32.mrb[0].mxu0
      %762 = vmatprep.mubr.bf16.mxu0 0
      %763 = vmatmul.mubr.bf16.gmra.mrb[0].mxu0 %v714
      %v764 = vpop.f32.mrb[0].mxu0
      %v765 = vadd.f32 0.0, %v764
      %v766 = vpop.f32.mrb[0].mxu0
      %v767 = vpop.f32.mrb[0].mxu0
      %v768 = vadd.f32 0.0, %v767
      %v769 = vpop.f32.mrb[0].mxu0
      %770 = vmatprep.mubr.bf16.mxu0 0
      %771 = vmatmul.mubr.bf16.gmra.mrb[0].mxu0 %v717
      %v772 = vpop.f32.mrb[0].mxu0
      %v773 = vadd.f32 0.0, %v772
      %v774 = vpop.f32.mrb[0].mxu0
      %v775 = vpop.f32.mrb[0].mxu0
      %v776 = vadd.f32 0.0, %v775
      %v777 = vpop.f32.mrb[0].mxu0
      %778 = vmatprep.mubr.bf16.mxu0 0
      %779 = vmatmul.mubr.bf16.gmra.mrb[0].mxu0 %v720
      %v780 = vpop.f32.mrb[0].mxu0
      %v781 = vadd.f32 0.0, %v780
      %v782 = vpop.f32.mrb[0].mxu0
      %v783 = vpop.f32.mrb[0].mxu0
      %v784 = vadd.f32 0.0, %v783
      %v785 = vpop.f32.mrb[0].mxu0
      %786 = vdwg.mxu0
      %787 = vrot.lane.b32.xlu0 %v169, 64
      %v788 = vpop.permute.xlu0 %787
      %789 = vrot.lane.b32.xlu0 %v170, 64
      %v790 = vpop.permute.xlu0 %789
      %791 = vrot.lane.b32.xlu0 %v171, 64
      %v792 = vpop.permute.xlu0 %791
      %793 = vrot.lane.b32.xlu0 %v172, 64
      %v794 = vpop.permute.xlu0 %793
      %795 = vrot.lane.b32.xlu0 %v181, 64
      %v796 = vpop.permute.xlu0 %795
      %797 = vrot.lane.b32.xlu0 %v182, 64
      %v798 = vpop.permute.xlu0 %797
      %799 = vrot.lane.b32.xlu0 %v183, 64
      %v800 = vpop.permute.xlu0 %799
      %801 = vrot.lane.b32.xlu0 %v184, 64
      %v802 = vpop.permute.xlu0 %801
      %v804 = vsel %vm185, %v788, 0
      %v807 = vsel %vm185, %v790, 0
      %v810 = vsel %vm185, %v792, 0
      %v813 = vsel %vm185, %v794, 0
      %v816 = vsel %vm185, %v796, 0
      %v819 = vsel %vm185, %v798, 0
      %v822 = vsel %vm185, %v800, 0
      %v825 = vsel %vm185, %v802, 0
      %827 = vmatprep.subr.bf16.mxu0 0
      %828 = vmatpush1.bf16.xpose.msra.mxu0 %v816
      %829 = vmatprep.subr.bf16.mxu0 0
      %830 = vmatpush1.bf16.xpose.msra.mxu0 %v819
      %831 = vmatprep.subr.bf16.mxu0 0
      %832 = vmatpush1.bf16.xpose.msra.mxu0 %v822
      %833 = vmatprep.subr.bf16.mxu0 0
      %834 = vmatpush1.bf16.xpose.msra.mxu0 %v825
      %835 = vmatprep.subr.bf16.mxu0 0
      %836 = vmatpush1.bf16.xpose.msra.mxu0 0
      %837 = vmatprep.subr.bf16.mxu0 0
      %838 = vmatpush1.bf16.xpose.msra.mxu0 0
      %839 = vmatprep.subr.bf16.mxu0 0
      %840 = vmatpush1.bf16.xpose.msra.mxu0 0
      %841 = vmatprep.subr.bf16.mxu0 0
      %842 = vmatpush1.bf16.xpose.msra.mxu0 0
      %843 = vmatprep.subr.bf16.mxu0 0
      %844 = vmatpush1.bf16.xpose.msra.mxu0 0
      %845 = vmatprep.subr.bf16.mxu0 0
      %846 = vmatpush1.bf16.xpose.msra.mxu0 0
      %847 = vmatprep.subr.bf16.mxu0 0
      %848 = vmatpush1.bf16.xpose.msra.mxu0 0
      %849 = vmatprep.subr.bf16.mxu0 0
      %850 = vmatpush1.bf16.xpose.msra.mxu0 0
      %851 = vmatprep.subr.bf16.mxu0 0
      %852 = vmatpush1.bf16.xpose.msra.mxu0 0
      %853 = vmatprep.subr.bf16.mxu0 0
      %854 = vmatpush1.bf16.xpose.msra.mxu0 0
      %855 = vmatprep.subr.bf16.mxu0 0
      %856 = vmatpush1.bf16.xpose.msra.mxu0 0
      %857 = vmatprep.subr.bf16.mxu0 0
      %858 = vmatpush1.bf16.xpose.msra.mxu0 0
      %859 = vmatprep.mubr.bf16.mxu0 0
      %860 = vmatmul.mubr.bf16.gmra.mrb[0].mxu0 %v804
      %v861 = vpop.f32.mrb[0].mxu0
      %v862 = vadd.f32 0.0, %v861
      %v863 = vpop.f32.mrb[0].mxu0
      %v864 = vpop.f32.mrb[0].mxu0
      %v865 = vadd.f32 0.0, %v864
      %v866 = vpop.f32.mrb[0].mxu0
      %867 = vmatprep.mubr.bf16.mxu0 0
      %868 = vmatmul.mubr.bf16.gmra.mrb[0].mxu0 %v807
      %v869 = vpop.f32.mrb[0].mxu0
      %v870 = vadd.f32 0.0, %v869
      %v871 = vpop.f32.mrb[0].mxu0
      %v872 = vpop.f32.mrb[0].mxu0
      %v873 = vadd.f32 0.0, %v872
      %v874 = vpop.f32.mrb[0].mxu0
      %875 = vmatprep.mubr.bf16.mxu0 0
      %876 = vmatmul.mubr.bf16.gmra.mrb[0].mxu0 %v810
      %v877 = vpop.f32.mrb[0].mxu0
      %v878 = vadd.f32 0.0, %v877
      %v879 = vpop.f32.mrb[0].mxu0
      %v880 = vpop.f32.mrb[0].mxu0
      %v881 = vadd.f32 0.0, %v880
      %v882 = vpop.f32.mrb[0].mxu0
      %883 = vmatprep.mubr.bf16.mxu0 0
      %884 = vmatmul.mubr.bf16.gmra.mrb[0].mxu0 %v813
      %v885 = vpop.f32.mrb[0].mxu0
      %v886 = vadd.f32 0.0, %v885
      %v887 = vpop.f32.mrb[0].mxu0
      %v888 = vpop.f32.mrb[0].mxu0
      %v889 = vadd.f32 0.0, %v888
      %v890 = vpop.f32.mrb[0].mxu0
      %891 = vdwg.mxu0
      %v892 = vmul.f32 %v862, 0.17677669
      %v893 = vmul.f32 %v865, 0.17677669
      %v894 = vmul.f32 %v870, 0.17677669
      %v895 = vmul.f32 %v873, 0.17677669
      %v896 = vmul.f32 %v878, 0.17677669
      %v897 = vmul.f32 %v881, 0.17677669
      %v898 = vmul.f32 %v886, 0.17677669
      %v899 = vmul.f32 %v889, 0.17677669
      %v900 = vsel %vm145, %v892, -1e+30
      %v901 = vsel %vm146, %v893, -1e+30
      %v902 = vsel %vm147, %v894, -1e+30
      %v903 = vsel %vm148, %v895, -1e+30
      %v904 = vsel %vm149, %v896, -1e+30
      %v905 = vsel %vm150, %v897, -1e+30
      %v906 = vsel %vm151, %v898, -1e+30
      %v907 = vsel %vm152, %v899, -1e+30
      %v908 = vsel %vm291, %v900, -inf
      %909 = vmax.xlane.f32.xlu0 %v908
      %v910 = vpop.xlane.xlu0 %909
      %v911 = vsel %vm291, %v901, -inf
      %912 = vmax.xlane.f32.xlu0 %v911
      %v913 = vpop.xlane.xlu0 %912
      %v914 = vsel %vm291, %v902, -inf
      %915 = vmax.xlane.f32.xlu0 %v914
      %v916 = vpop.xlane.xlu0 %915
      %v917 = vsel %vm291, %v903, -inf
      %918 = vmax.xlane.f32.xlu0 %v917
      %v919 = vpop.xlane.xlu0 %918
      %v920 = vsel %vm291, %v904, -inf
      %921 = vmax.xlane.f32.xlu0 %v920
      %v922 = vpop.xlane.xlu0 %921
      %v923 = vsel %vm291, %v905, -inf
      %924 = vmax.xlane.f32.xlu0 %v923
      %v925 = vpop.xlane.xlu0 %924
      %v926 = vsel %vm291, %v906, -inf
      %927 = vmax.xlane.f32.xlu0 %v926
      %v928 = vpop.xlane.xlu0 %927
      %v929 = vsel %vm291, %v907, -inf
      %930 = vmax.xlane.f32.xlu0 %v929
      %v931 = vpop.xlane.xlu0 %930
      %v932 = vsub.f32 %v900, %v910
      %v933 = vsub.f32 %v901, %v913
      %v934 = vsub.f32 %v902, %v916
      %v935 = vsub.f32 %v903, %v919
      %v936 = vsub.f32 %v904, %v922
      %v937 = vsub.f32 %v905, %v925
      %v938 = vsub.f32 %v906, %v928
      %v939 = vsub.f32 %v907, %v931
      %v940 = vmul.f32 %v932, 1.442695
      %v941 = vpow.pop %v940
      %v942 = vmul.f32 %v933, 1.442695
      %v943 = vpow.pop %v942
      %v944 = vmul.f32 %v934, 1.442695
      %v945 = vpow.pop %v944
      %v946 = vmul.f32 %v935, 1.442695
      %v947 = vpow.pop %v946
      %v948 = vmul.f32 %v936, 1.442695
      %v949 = vpow.pop %v948
      %v950 = vmul.f32 %v937, 1.442695
      %v951 = vpow.pop %v950
      %v952 = vmul.f32 %v938, 1.442695
      %v953 = vpow.pop %v952
      %v954 = vmul.f32 %v939, 1.442695
      %v955 = vpow.pop %v954
      %v956 = vsel %vm291, %v941, 0.0
      %957 = vadd.xlane.f32.xlu0 %v956
      %v958 = vpop.xlane.xlu0 %957
      %v959 = vsel %vm291, %v943, 0.0
      %960 = vadd.xlane.f32.xlu0 %v959
      %v961 = vpop.xlane.xlu0 %960
      %v962 = vsel %vm291, %v945, 0.0
      %963 = vadd.xlane.f32.xlu0 %v962
      %v964 = vpop.xlane.xlu0 %963
      %v965 = vsel %vm291, %v947, 0.0
      %966 = vadd.xlane.f32.xlu0 %v965
      %v967 = vpop.xlane.xlu0 %966
      %v968 = vsel %vm291, %v949, 0.0
      %969 = vadd.xlane.f32.xlu0 %v968
      %v970 = vpop.xlane.xlu0 %969
      %v971 = vsel %vm291, %v951, 0.0
      %972 = vadd.xlane.f32.xlu0 %v971
      %v973 = vpop.xlane.xlu0 %972
      %v974 = vsel %vm291, %v953, 0.0
      %975 = vadd.xlane.f32.xlu0 %v974
      %v976 = vpop.xlane.xlu0 %975
      %v977 = vsel %vm291, %v955, 0.0
      %978 = vadd.xlane.f32.xlu0 %v977
      %v979 = vpop.xlane.xlu0 %978
      %v980 = vrcp.pop %v958
      %v981 = vrcp.pop %v961
      %v982 = vrcp.pop %v964
      %v983 = vrcp.pop %v967
      %v984 = vrcp.pop %v970
      %v985 = vrcp.pop %v973
      %v986 = vrcp.pop %v976
      %v987 = vrcp.pop %v979
      %v988 = vmul.f32 %v941, %v980
      %v989 = vmul.f32 %v943, %v981
      %v990 = vmul.f32 %v945, %v982
      %v991 = vmul.f32 %v947, %v983
      %v992 = vmul.f32 %v949, %v984
      %v993 = vmul.f32 %v951, %v985
      %v994 = vmul.f32 %v953, %v986
      %v995 = vmul.f32 %v955, %v987
      %v996 = vpack.c.bf16 %v989, %v988
      %v997 = vpack.c.bf16 %v991, %v990
      %v998 = vpack.c.bf16 %v993, %v992
      %v999 = vpack.c.bf16 %v995, %v994
      %1000 = vrot.lane.b32.xlu0 %v400, 64
      %v1001 = vpop.permute.xlu0 %1000
      %1002 = vrot.lane.b32.xlu0 %v401, 64
      %v1003 = vpop.permute.xlu0 %1002
      %1004 = vrot.lane.b32.xlu0 %v402, 64
      %v1005 = vpop.permute.xlu0 %1004
      %1006 = vrot.lane.b32.xlu0 %v403, 64
      %v1007 = vpop.permute.xlu0 %1006
      %v1013 = vsel %vm291, %v996, 0
      %v1016 = vsel %vm291, %v997, 0
      %v1019 = vsel %vm291, %v998, 0
      %v1022 = vsel %vm291, %v999, 0
      %1024 = vmatprep.subr.bf16.mxu0 0
      %1025 = vmatpush1.bf16.msra.mxu0 %v1001
      %1026 = vmatprep.subr.bf16.mxu0 0
      %1027 = vmatpush1.bf16.msra.mxu0 %v1003
      %1028 = vmatprep.subr.bf16.mxu0 0
      %1029 = vmatpush1.bf16.msra.mxu0 %v1005
      %1030 = vmatprep.subr.bf16.mxu0 0
      %1031 = vmatpush1.bf16.msra.mxu0 %v1007
      %1032 = vmatprep.subr.bf16.mxu0 0
      %1033 = vmatpush1.bf16.msra.mxu0 0
      %1034 = vmatprep.subr.bf16.mxu0 0
      %1035 = vmatpush1.bf16.msra.mxu0 0
      %1036 = vmatprep.subr.bf16.mxu0 0
      %1037 = vmatpush1.bf16.msra.mxu0 0
      %1038 = vmatprep.subr.bf16.mxu0 0
      %1039 = vmatpush1.bf16.msra.mxu0 0
      %1040 = vmatprep.subr.bf16.mxu0 0
      %1041 = vmatpush1.bf16.msra.mxu0 0
      %1042 = vmatprep.subr.bf16.mxu0 0
      %1043 = vmatpush1.bf16.msra.mxu0 0
      %1044 = vmatprep.subr.bf16.mxu0 0
      %1045 = vmatpush1.bf16.msra.mxu0 0
      %1046 = vmatprep.subr.bf16.mxu0 0
      %1047 = vmatpush1.bf16.msra.mxu0 0
      %1048 = vmatprep.subr.bf16.mxu0 0
      %1049 = vmatpush1.bf16.msra.mxu0 0
      %1050 = vmatprep.subr.bf16.mxu0 0
      %1051 = vmatpush1.bf16.msra.mxu0 0
      %1052 = vmatprep.subr.bf16.mxu0 0
      %1053 = vmatpush1.bf16.msra.mxu0 0
      %1054 = vmatprep.subr.bf16.mxu0 0
      %1055 = vmatpush1.bf16.msra.mxu0 0
      %1056 = vmatprep.mubr.bf16.mxu0 0
      %1057 = vmatmul.mubr.bf16.gmra.mrb[0].mxu0 %v1013
      %v1058 = vpop.f32.mrb[0].mxu0
      %v1059 = vadd.f32 0.0, %v1058
      %v1060 = vpop.f32.mrb[0].mxu0
      %v1061 = vpop.f32.mrb[0].mxu0
      %v1062 = vadd.f32 0.0, %v1061
      %v1063 = vpop.f32.mrb[0].mxu0
      %1064 = vmatprep.mubr.bf16.mxu0 0
      %1065 = vmatmul.mubr.bf16.gmra.mrb[0].mxu0 %v1016
      %v1066 = vpop.f32.mrb[0].mxu0
      %v1067 = vadd.f32 0.0, %v1066
      %v1068 = vpop.f32.mrb[0].mxu0
      %v1069 = vpop.f32.mrb[0].mxu0
      %v1070 = vadd.f32 0.0, %v1069
      %v1071 = vpop.f32.mrb[0].mxu0
      %1072 = vmatprep.mubr.bf16.mxu0 0
      %1073 = vmatmul.mubr.bf16.gmra.mrb[0].mxu0 %v1019
      %v1074 = vpop.f32.mrb[0].mxu0
      %v1075 = vadd.f32 0.0, %v1074
      %v1076 = vpop.f32.mrb[0].mxu0
      %v1077 = vpop.f32.mrb[0].mxu0
      %v1078 = vadd.f32 0.0, %v1077
      %v1079 = vpop.f32.mrb[0].mxu0
      %1080 = vmatprep.mubr.bf16.mxu0 0
      %1081 = vmatmul.mubr.bf16.gmra.mrb[0].mxu0 %v1022
      %v1082 = vpop.f32.mrb[0].mxu0
      %v1083 = vadd.f32 0.0, %v1082
      %v1084 = vpop.f32.mrb[0].mxu0
      %v1085 = vpop.f32.mrb[0].mxu0
      %v1086 = vadd.f32 0.0, %v1085
      %v1087 = vpop.f32.mrb[0].mxu0
      %1088 = vdwg.mxu0
      %1089 = vrot.lane.b32.xlu0 %v169, 32
      %v1090 = vpop.permute.xlu0 %1089
      %1091 = vrot.lane.b32.xlu0 %v170, 32
      %v1092 = vpop.permute.xlu0 %1091
      %1093 = vrot.lane.b32.xlu0 %v171, 32
      %v1094 = vpop.permute.xlu0 %1093
      %1095 = vrot.lane.b32.xlu0 %v172, 32
      %v1096 = vpop.permute.xlu0 %1095
      %1097 = vrot.lane.b32.xlu0 %v181, 32
      %v1098 = vpop.permute.xlu0 %1097
      %1099 = vrot.lane.b32.xlu0 %v182, 32
      %v1100 = vpop.permute.xlu0 %1099
      %1101 = vrot.lane.b32.xlu0 %v183, 32
      %v1102 = vpop.permute.xlu0 %1101
      %1103 = vrot.lane.b32.xlu0 %v184, 32
      %v1104 = vpop.permute.xlu0 %1103
      %v1106 = vsel %vm185, %v1090, 0
      %v1109 = vsel %vm185, %v1092, 0
      %v1112 = vsel %vm185, %v1094, 0
      %v1115 = vsel %vm185, %v1096, 0
      %v1118 = vsel %vm185, %v1098, 0
      %v1121 = vsel %vm185, %v1100, 0
      %v1124 = vsel %vm185, %v1102, 0
      %v1127 = vsel %vm185, %v1104, 0
      %1129 = vmatprep.subr.bf16.mxu0 0
      %1130 = vmatpush1.bf16.xpose.msra.mxu0 %v1118
      %1131 = vmatprep.subr.bf16.mxu0 0
      %1132 = vmatpush1.bf16.xpose.msra.mxu0 %v1121
      %1133 = vmatprep.subr.bf16.mxu0 0
      %1134 = vmatpush1.bf16.xpose.msra.mxu0 %v1124
      %1135 = vmatprep.subr.bf16.mxu0 0
      %1136 = vmatpush1.bf16.xpose.msra.mxu0 %v1127
      %1137 = vmatprep.subr.bf16.mxu0 0
      %1138 = vmatpush1.bf16.xpose.msra.mxu0 0
      %1139 = vmatprep.subr.bf16.mxu0 0
      %1140 = vmatpush1.bf16.xpose.msra.mxu0 0
      %1141 = vmatprep.subr.bf16.mxu0 0
      %1142 = vmatpush1.bf16.xpose.msra.mxu0 0
      %1143 = vmatprep.subr.bf16.mxu0 0
      %1144 = vmatpush1.bf16.xpose.msra.mxu0 0
      %1145 = vmatprep.subr.bf16.mxu0 0
      %1146 = vmatpush1.bf16.xpose.msra.mxu0 0
      %1147 = vmatprep.subr.bf16.mxu0 0
      %1148 = vmatpush1.bf16.xpose.msra.mxu0 0
      %1149 = vmatprep.subr.bf16.mxu0 0
      %1150 = vmatpush1.bf16.xpose.msra.mxu0 0
      %1151 = vmatprep.subr.bf16.mxu0 0
      %1152 = vmatpush1.bf16.xpose.msra.mxu0 0
      %1153 = vmatprep.subr.bf16.mxu0 0
      %1154 = vmatpush1.bf16.xpose.msra.mxu0 0
      %1155 = vmatprep.subr.bf16.mxu0 0
      %1156 = vmatpush1.bf16.xpose.msra.mxu0 0
      %1157 = vmatprep.subr.bf16.mxu0 0
      %1158 = vmatpush1.bf16.xpose.msra.mxu0 0
      %1159 = vmatprep.subr.bf16.mxu0 0
      %1160 = vmatpush1.bf16.xpose.msra.mxu0 0
      %1161 = vmatprep.mubr.bf16.mxu0 0
      %1162 = vmatmul.mubr.bf16.gmra.mrb[0].mxu0 %v1106
      %v1163 = vpop.f32.mrb[0].mxu0
      %v1164 = vadd.f32 0.0, %v1163
      %v1165 = vpop.f32.mrb[0].mxu0
      %v1166 = vpop.f32.mrb[0].mxu0
      %v1167 = vadd.f32 0.0, %v1166
      %v1168 = vpop.f32.mrb[0].mxu0
      %1169 = vmatprep.mubr.bf16.mxu0 0
      %1170 = vmatmul.mubr.bf16.gmra.mrb[0].mxu0 %v1109
      %v1171 = vpop.f32.mrb[0].mxu0
      %v1172 = vadd.f32 0.0, %v1171
      %v1173 = vpop.f32.mrb[0].mxu0
      %v1174 = vpop.f32.mrb[0].mxu0
      %v1175 = vadd.f32 0.0, %v1174
      %v1176 = vpop.f32.mrb[0].mxu0
      %1177 = vmatprep.mubr.bf16.mxu0 0
      %1178 = vmatmul.mubr.bf16.gmra.mrb[0].mxu0 %v1112
      %v1179 = vpop.f32.mrb[0].mxu0
      %v1180 = vadd.f32 0.0, %v1179
      %v1181 = vpop.f32.mrb[0].mxu0
      %v1182 = vpop.f32.mrb[0].mxu0
      %v1183 = vadd.f32 0.0, %v1182
      %v1184 = vpop.f32.mrb[0].mxu0
      %1185 = vmatprep.mubr.bf16.mxu0 0
      %1186 = vmatmul.mubr.bf16.gmra.mrb[0].mxu0 %v1115
      %v1187 = vpop.f32.mrb[0].mxu0
      %v1188 = vadd.f32 0.0, %v1187
      %v1189 = vpop.f32.mrb[0].mxu0
      %v1190 = vpop.f32.mrb[0].mxu0
      %v1191 = vadd.f32 0.0, %v1190
      %v1192 = vpop.f32.mrb[0].mxu0
      %1193 = vdwg.mxu0
      %v1194 = vmul.f32 %v1164, 0.17677669
      %v1195 = vmul.f32 %v1167, 0.17677669
      %v1196 = vmul.f32 %v1172, 0.17677669
      %v1197 = vmul.f32 %v1175, 0.17677669
      %v1198 = vmul.f32 %v1180, 0.17677669
      %v1199 = vmul.f32 %v1183, 0.17677669
      %v1200 = vmul.f32 %v1188, 0.17677669
      %v1201 = vmul.f32 %v1191, 0.17677669
      %v1202 = vsel %vm145, %v1194, -1e+30
      %v1203 = vsel %vm146, %v1195, -1e+30
      %v1204 = vsel %vm147, %v1196, -1e+30
      %v1205 = vsel %vm148, %v1197, -1e+30
      %v1206 = vsel %vm149, %v1198, -1e+30
      %v1207 = vsel %vm150, %v1199, -1e+30
      %v1208 = vsel %vm151, %v1200, -1e+30
      %v1209 = vsel %vm152, %v1201, -1e+30
      %v1210 = vsel %vm291, %v1202, -inf
      %1211 = vmax.xlane.f32.xlu0 %v1210
      %v1212 = vpop.xlane.xlu0 %1211
      %v1213 = vsel %vm291, %v1203, -inf
      %1214 = vmax.xlane.f32.xlu0 %v1213
      %v1215 = vpop.xlane.xlu0 %1214
      %v1216 = vsel %vm291, %v1204, -inf
      %1217 = vmax.xlane.f32.xlu0 %v1216
      %v1218 = vpop.xlane.xlu0 %1217
      %v1219 = vsel %vm291, %v1205, -inf
      %1220 = vmax.xlane.f32.xlu0 %v1219
      %v1221 = vpop.xlane.xlu0 %1220
      %v1222 = vsel %vm291, %v1206, -inf
      %1223 = vmax.xlane.f32.xlu0 %v1222
      %v1224 = vpop.xlane.xlu0 %1223
      %v1225 = vsel %vm291, %v1207, -inf
      %1226 = vmax.xlane.f32.xlu0 %v1225
      %v1227 = vpop.xlane.xlu0 %1226
      %v1228 = vsel %vm291, %v1208, -inf
      %1229 = vmax.xlane.f32.xlu0 %v1228
      %v1230 = vpop.xlane.xlu0 %1229
      %v1231 = vsel %vm291, %v1209, -inf
      %1232 = vmax.xlane.f32.xlu0 %v1231
      %v1233 = vpop.xlane.xlu0 %1232
      %v1234 = vsub.f32 %v1202, %v1212
      %v1235 = vsub.f32 %v1203, %v1215
      %v1236 = vsub.f32 %v1204, %v1218
      %v1237 = vsub.f32 %v1205, %v1221
      %v1238 = vsub.f32 %v1206, %v1224
      %v1239 = vsub.f32 %v1207, %v1227
      %v1240 = vsub.f32 %v1208, %v1230
      %v1241 = vsub.f32 %v1209, %v1233
      %v1242 = vmul.f32 %v1234, 1.442695
      %v1243 = vpow.pop %v1242
      %v1244 = vmul.f32 %v1235, 1.442695
      %v1245 = vpow.pop %v1244
      %v1246 = vmul.f32 %v1236, 1.442695
      %v1247 = vpow.pop %v1246
      %v1248 = vmul.f32 %v1237, 1.442695
      %v1249 = vpow.pop %v1248
      %v1250 = vmul.f32 %v1238, 1.442695
      %v1251 = vpow.pop %v1250
      %v1252 = vmul.f32 %v1239, 1.442695
      %v1253 = vpow.pop %v1252
      %v1254 = vmul.f32 %v1240, 1.442695
      %v1255 = vpow.pop %v1254
      %v1256 = vmul.f32 %v1241, 1.442695
      %v1257 = vpow.pop %v1256
      %v1258 = vsel %vm291, %v1243, 0.0
      %1259 = vadd.xlane.f32.xlu0 %v1258
      %v1260 = vpop.xlane.xlu0 %1259
      %v1261 = vsel %vm291, %v1245, 0.0
      %1262 = vadd.xlane.f32.xlu0 %v1261
      %v1263 = vpop.xlane.xlu0 %1262
      %v1264 = vsel %vm291, %v1247, 0.0
      %1265 = vadd.xlane.f32.xlu0 %v1264
      %v1266 = vpop.xlane.xlu0 %1265
      %v1267 = vsel %vm291, %v1249, 0.0
      %1268 = vadd.xlane.f32.xlu0 %v1267
      %v1269 = vpop.xlane.xlu0 %1268
      %v1270 = vsel %vm291, %v1251, 0.0
      %1271 = vadd.xlane.f32.xlu0 %v1270
      %v1272 = vpop.xlane.xlu0 %1271
      %v1273 = vsel %vm291, %v1253, 0.0
      %1274 = vadd.xlane.f32.xlu0 %v1273
      %v1275 = vpop.xlane.xlu0 %1274
      %v1276 = vsel %vm291, %v1255, 0.0
      %1277 = vadd.xlane.f32.xlu0 %v1276
      %v1278 = vpop.xlane.xlu0 %1277
      %v1279 = vsel %vm291, %v1257, 0.0
      %1280 = vadd.xlane.f32.xlu0 %v1279
      %v1281 = vpop.xlane.xlu0 %1280
      %v1282 = vrcp.pop %v1260
      %v1283 = vrcp.pop %v1263
      %v1284 = vrcp.pop %v1266
      %v1285 = vrcp.pop %v1269
      %v1286 = vrcp.pop %v1272
      %v1287 = vrcp.pop %v1275
      %v1288 = vrcp.pop %v1278
      %v1289 = vrcp.pop %v1281
      %v1290 = vmul.f32 %v1243, %v1282
      %v1291 = vmul.f32 %v1245, %v1283
      %v1292 = vmul.f32 %v1247, %v1284
      %v1293 = vmul.f32 %v1249, %v1285
      %v1294 = vmul.f32 %v1251, %v1286
      %v1295 = vmul.f32 %v1253, %v1287
      %v1296 = vmul.f32 %v1255, %v1288
      %v1297 = vmul.f32 %v1257, %v1289
      %v1298 = vpack.c.bf16 %v1291, %v1290
      %v1299 = vpack.c.bf16 %v1293, %v1292
      %v1300 = vpack.c.bf16 %v1295, %v1294
      %v1301 = vpack.c.bf16 %v1297, %v1296
      %1302 = vrot.lane.b32.xlu0 %v400, 32
      %v1303 = vpop.permute.xlu0 %1302
      %1304 = vrot.lane.b32.xlu0 %v401, 32
      %v1305 = vpop.permute.xlu0 %1304
      %1306 = vrot.lane.b32.xlu0 %v402, 32
      %v1307 = vpop.permute.xlu0 %1306
      %1308 = vrot.lane.b32.xlu0 %v403, 32
      %v1309 = vpop.permute.xlu0 %1308
      %v1315 = vsel %vm291, %v1298, 0
      %v1318 = vsel %vm291, %v1299, 0
      %v1321 = vsel %vm291, %v1300, 0
      %v1324 = vsel %vm291, %v1301, 0
      %1326 = vmatprep.subr.bf16.mxu0 0
      %1327 = vmatpush1.bf16.msra.mxu0 %v1303
      %1328 = vmatprep.subr.bf16.mxu0 0
      %1329 = vmatpush1.bf16.msra.mxu0 %v1305
      %1330 = vmatprep.subr.bf16.mxu0 0
      %1331 = vmatpush1.bf16.msra.mxu0 %v1307
      %1332 = vmatprep.subr.bf16.mxu0 0
      %1333 = vmatpush1.bf16.msra.mxu0 %v1309
      %1334 = vmatprep.subr.bf16.mxu0 0
      %1335 = vmatpush1.bf16.msra.mxu0 0
      %1336 = vmatprep.subr.bf16.mxu0 0
      %1337 = vmatpush1.bf16.msra.mxu0 0
      %1338 = vmatprep.subr.bf16.mxu0 0
      %1339 = vmatpush1.bf16.msra.mxu0 0
      %1340 = vmatprep.subr.bf16.mxu0 0
      %1341 = vmatpush1.bf16.msra.mxu0 0
      %1342 = vmatprep.subr.bf16.mxu0 0
      %1343 = vmatpush1.bf16.msra.mxu0 0
      %1344 = vmatprep.subr.bf16.mxu0 0
      %1345 = vmatpush1.bf16.msra.mxu0 0
      %1346 = vmatprep.subr.bf16.mxu0 0
      %1347 = vmatpush1.bf16.msra.mxu0 0
      %1348 = vmatprep.subr.bf16.mxu0 0
      %1349 = vmatpush1.bf16.msra.mxu0 0
      %1350 = vmatprep.subr.bf16.mxu0 0
      %1351 = vmatpush1.bf16.msra.mxu0 0
      %1352 = vmatprep.subr.bf16.mxu0 0
      %1353 = vmatpush1.bf16.msra.mxu0 0
      %1354 = vmatprep.subr.bf16.mxu0 0
      %1355 = vmatpush1.bf16.msra.mxu0 0
      %1356 = vmatprep.subr.bf16.mxu0 0
      %1357 = vmatpush1.bf16.msra.mxu0 0
      %1358 = vmatprep.mubr.bf16.mxu0 0
      %1359 = vmatmul.mubr.bf16.gmra.mrb[0].mxu0 %v1315
      %v1360 = vpop.f32.mrb[0].mxu0
      %v1361 = vadd.f32 0.0, %v1360
      %v1362 = vpop.f32.mrb[0].mxu0
      %v1363 = vpop.f32.mrb[0].mxu0
      %v1364 = vadd.f32 0.0, %v1363
      %v1365 = vpop.f32.mrb[0].mxu0
      %1366 = vmatprep.mubr.bf16.mxu0 0
      %1367 = vmatmul.mubr.bf16.gmra.mrb[0].mxu0 %v1318
      %v1368 = vpop.f32.mrb[0].mxu0
      %v1369 = vadd.f32 0.0, %v1368
      %v1370 = vpop.f32.mrb[0].mxu0
      %v1371 = vpop.f32.mrb[0].mxu0
      %v1372 = vadd.f32 0.0, %v1371
      %v1373 = vpop.f32.mrb[0].mxu0
      %1374 = vmatprep.mubr.bf16.mxu0 0
      %1375 = vmatmul.mubr.bf16.gmra.mrb[0].mxu0 %v1321
      %v1376 = vpop.f32.mrb[0].mxu0
      %v1377 = vadd.f32 0.0, %v1376
      %v1378 = vpop.f32.mrb[0].mxu0
      %v1379 = vpop.f32.mrb[0].mxu0
      %v1380 = vadd.f32 0.0, %v1379
      %v1381 = vpop.f32.mrb[0].mxu0
      %1382 = vmatprep.mubr.bf16.mxu0 0
      %1383 = vmatmul.mubr.bf16.gmra.mrb[0].mxu0 %v1324
      %v1384 = vpop.f32.mrb[0].mxu0
      %v1385 = vadd.f32 0.0, %v1384
      %v1386 = vpop.f32.mrb[0].mxu0
      %v1387 = vpop.f32.mrb[0].mxu0
      %v1388 = vadd.f32 0.0, %v1387
      %v1389 = vpop.f32.mrb[0].mxu0
      %1390 = vdwg.mxu0
      %1399 = vrot.lane.b32.xlu0 %v757, 32
      %v1400 = vpop.permute.xlu0 %1399
      %1401 = vrot.lane.b32.xlu0 %v760, 32
      %v1402 = vpop.permute.xlu0 %1401
      %1403 = vrot.lane.b32.xlu0 %v765, 32
      %v1404 = vpop.permute.xlu0 %1403
      %1405 = vrot.lane.b32.xlu0 %v768, 32
      %v1406 = vpop.permute.xlu0 %1405
      %1407 = vrot.lane.b32.xlu0 %v773, 32
      %v1408 = vpop.permute.xlu0 %1407
      %1409 = vrot.lane.b32.xlu0 %v776, 32
      %v1410 = vpop.permute.xlu0 %1409
      %1411 = vrot.lane.b32.xlu0 %v781, 32
      %v1412 = vpop.permute.xlu0 %1411
      %1413 = vrot.lane.b32.xlu0 %v784, 32
      %v1414 = vpop.permute.xlu0 %1413
      %1431 = vrot.lane.b32.xlu0 %v1059, 64
      %v1432 = vpop.permute.xlu0 %1431
      %1433 = vrot.lane.b32.xlu0 %v1062, 64
      %v1434 = vpop.permute.xlu0 %1433
      %1435 = vrot.lane.b32.xlu0 %v1067, 64
      %v1436 = vpop.permute.xlu0 %1435
      %1437 = vrot.lane.b32.xlu0 %v1070, 64
      %v1438 = vpop.permute.xlu0 %1437
      %1439 = vrot.lane.b32.xlu0 %v1075, 64
      %v1440 = vpop.permute.xlu0 %1439
      %1441 = vrot.lane.b32.xlu0 %v1078, 64
      %v1442 = vpop.permute.xlu0 %1441
      %1443 = vrot.lane.b32.xlu0 %v1083, 64
      %v1444 = vpop.permute.xlu0 %1443
      %1445 = vrot.lane.b32.xlu0 %v1086, 64
      %v1446 = vpop.permute.xlu0 %1445
      %1463 = vrot.lane.b32.xlu0 %v1361, 96
      %v1464 = vpop.permute.xlu0 %1463
      %1465 = vrot.lane.b32.xlu0 %v1364, 96
      %v1466 = vpop.permute.xlu0 %1465
      %1467 = vrot.lane.b32.xlu0 %v1369, 96
      %v1468 = vpop.permute.xlu0 %1467
      %1469 = vrot.lane.b32.xlu0 %v1372, 96
      %v1470 = vpop.permute.xlu0 %1469
      %1471 = vrot.lane.b32.xlu0 %v1377, 96
      %v1472 = vpop.permute.xlu0 %1471
      %1473 = vrot.lane.b32.xlu0 %v1380, 96
      %v1474 = vpop.permute.xlu0 %1473
      %1475 = vrot.lane.b32.xlu0 %v1385, 96
      %v1476 = vpop.permute.xlu0 %1475
      %1477 = vrot.lane.b32.xlu0 %v1388, 96
      %v1478 = vpop.permute.xlu0 %1477
      %v1487 = vsel %vm185, %v455, %v1400
      %v1488 = vsel %vm185, %v458, %v1402
      %v1489 = vsel %vm185, %v463, %v1404
      %v1490 = vsel %vm185, %v466, %v1406
      %v1491 = vsel %vm185, %v471, %v1408
      %v1492 = vsel %vm185, %v474, %v1410
      %v1493 = vsel %vm185, %v479, %v1412
      %v1494 = vsel %vm185, %v482, %v1414
      %v1495 = vsel %vm291, %v1487, %v1432
      %v1496 = vsel %vm291, %v1488, %v1434
      %v1497 = vsel %vm291, %v1489, %v1436
      %v1498 = vsel %vm291, %v1490, %v1438
      %v1499 = vsel %vm291, %v1491, %v1440
      %v1500 = vsel %vm291, %v1492, %v1442
      %v1501 = vsel %vm291, %v1493, %v1444
      %v1502 = vsel %vm291, %v1494, %v1446
      %vm1503 = vcmask 785408
      %v1504 = vsel %vm1503, %v1495, %v1464
      %v1505 = vsel %vm1503, %v1496, %v1466
      %v1506 = vsel %vm1503, %v1497, %v1468
      %v1507 = vsel %vm1503, %v1498, %v1470
      %v1508 = vsel %vm1503, %v1499, %v1472
      %v1509 = vsel %vm1503, %v1500, %v1474
      %v1510 = vsel %vm1503, %v1501, %v1476
      %v1511 = vsel %vm1503, %v1502, %v1478
      %v1512 = vpack.c.bf16 %v1505, %v1504
      %v1513 = vpack.c.bf16 %v1507, %v1506
      %v1514 = vpack.c.bf16 %v1509, %v1508
      %v1515 = vpack.c.bf16 %v1511, %v1510
      %v1520 = vunpack.c.l.b16 %v1512
      %v1521 = vunpack.c.h.b16 %v1512
      %v1522 = vunpack.c.l.b16 %v1513
      %v1523 = vunpack.c.h.b16 %v1513
      %v1524 = vunpack.c.l.b16 %v1514
      %v1525 = vunpack.c.h.b16 %v1514
      %v1526 = vunpack.c.l.b16 %v1515
      %v1527 = vunpack.c.h.b16 %v1515
      %v1528 = vpack.c.b16 %v1520, %v1520
      %v1529 = vpack.c.b16 %v1521, %v1521
      %v1530 = vpack.c.b16 %v1522, %v1522
      %v1531 = vpack.c.b16 %v1523, %v1523
      %v1532 = vpack.c.b16 %v1524, %v1524
      %v1533 = vpack.c.b16 %v1525, %v1525
      %v1534 = vpack.c.b16 %v1526, %v1526
      %v1535 = vpack.c.b16 %v1527, %v1527
      %1544 = vst [vmem:[%s116] sm:$0xf] %v1528
      %1545 = vst [vmem:[%s116 + $0x4] sm:$0xf] %v1529
      %1546 = vst [vmem:[%s116 + $0x8] sm:$0xf] %v1530
      %1547 = vst [vmem:[%s116 + $0xc] sm:$0xf] %v1531
      %1548 = vst [vmem:[%s116 + $0x10] sm:$0xf] %v1532
      %1549 = vst [vmem:[%s116 + $0x14] sm:$0xf] %v1533
      %1550 = vst [vmem:[%s116 + $0x18] sm:$0xf] %v1534
      %1551 = vst [vmem:[%s116 + $0x1c] sm:$0xf] %v1535
      %p1552 = scmp.lt.s32.totalorder %s12, 1
      %s1553 = scalar_select %p1552, %s12, 1
      %s1554 = smul.addr %s1553, 8
      %s1555 = smul.addr %s1554, 4
      %s1556 = scalar_lea.vmem %s1, %s1555
      // Predicated region
      $region25: #{gpt_forward.13} parent=23 // pred_check
        %p1557 = pneg %p56
      $region26: #{gpt_forward.13} parent=23 // pred_check_branch
        %1559 = sbr.rel (%p1557) target = $region28
      $region27: #{gpt_forward.13} parent=23 // pred_region
        _
      $region28: #{gpt_forward.13} parent=23 // pred_fallthru
        _
    $region24: #{gpt_forward.13} parent=5 // pred_fallthru
      _
    %p1560 = scmp.le.s32.totalorder 2, %s7
    // Predicated region
    $region29: #{gpt_forward.13} parent=5 // pred_check
      %p1561 = pneg %p1560
    $region30: #{gpt_forward.13} parent=5 // pred_check_branch
      %1563 = sbr.rel (%p1561) target = $region32
    $region31: #{gpt_forward.13} parent=5 // pred_region
      %s1564 = ssub.s32 %s7, 2
      // Predicated region
      $region33: #{gpt_forward.13} parent=31 // pred_check
        %p1565 = pneg %p62
      $region34: #{gpt_forward.13} parent=31 // pred_check_branch
        %1567 = sbr.rel (%p1565) target = $region36
      $region35: #{gpt_forward.13} parent=31 // pred_region
        %p1568 = scmp.lt.s32.totalorder %s13, 1
        %s1569 = scalar_select %p1568, %s13, 1
        %s1570 = smul.addr %s1569, 8
        %s1571 = smul.addr %s1570, 4
        %s1572 = scalar_lea.vmem %s1, %s1571
      $region36: #{gpt_forward.13} parent=31 // pred_fallthru
        _
    $region32: #{gpt_forward.13} parent=5 // pred_fallthru
      _
  $region6: #{gpt_forward.13} parent=0 // loop_footer
    %s11 = sadd.s32 1, %s7
  $region7: #{gpt_forward.13} parent=0 // loop_footer_branch
    %6 = sbr.rel target = $region3
  $region8: #{gpt_forward.13} parent=0 // loop_exit
    _

// kernel: gpt_forward.22
$region0: #{gpt_forward.22}
  #allocation0 [shape = 'u32[]', space=smem, size = 0x4, offset = 0x4, fixed_abs, tag = 'smem constant byte address 0x4 - core index']
  #allocation1 [shape = 'u32[144,128]{1,0:T(1,128)}', space=vmem, size = 0x12000, scoped, tag = 'internal scratch']
  %s0 = inlined_call_operand.vmem [shape: f32[128,128], index: 0, kind: input, shape index: {}]
  %s1 = inlined_call_operand.vmem [shape: f32[1,128], index: 1, kind: input, shape index: {}]
  %s2 = inlined_call_operand.vmem [shape: f32[1,128], index: 2, kind: input, shape index: {}]
  %s3 = inlined_call_operand.vmem [shape: bf16[128,512], index: 3, kind: input, shape index: {}]
  %s4 = inlined_call_operand.vmem [shape: f32[128,512], index: 4, kind: output, shape index: {}]
  %s5 = sld [smem:[#allocation0]]
  $region106: #{gpt_forward.22} parent=0
    _
  %s7 = ssub.s32 1, %s5
  %s8 = scalar_select 0, %s7, %s5
  $region1: #{gpt_forward.22} parent=0
    #allocation2 [shape = 'u8[131072]{0}', space=vmem, size = 0x20000, scoped, tag = 'input window, operand 3']
    #allocation3 [shape = 'u8[262144]{0}', space=vmem, size = 0x40000, scoped, tag = 'output window, operand 0']
    loop: start=0, step=1, limit=4
    $region2: #{gpt_forward.22} parent=1 // loop_pre_header
      _
    $region3: #{gpt_forward.22} parent=1 // loop_header
      %s10 = sphi 0, %s14
      %p11 = scmp.ge.s32.totalorder %s10, 4
      %s17 = sphi 0, %s29
      %s18 = sphi 0, %s25
      %s19 = sphi 0, %s17
      %s20 = sphi 0, %s18
      %s21 = sphi 0, %s19
      %s22 = sphi 0, %s20
      %s32 = sphi 0, %s34
      %s35 = sphi 0, %s32
      %s36 = sphi 0, %s35
      %s52 = sphi 0, %s36
      %s56 = sphi 0, %s56
      %s58 = sphi 0, %s56
      %s59 = sphi 0, %s58
      %s73 = sphi 0, %s59
      %s77 = sphi 0, %s77
      %s79 = sphi 0, %s77
      %s80 = sphi 0, %s79
      %s94 = sphi 0, %s80
      %s100 = sphi 0, %s102
      %s103 = sphi 0, %s100
      %s104 = sphi 0, %s103
      %s120 = sphi 0, %s104
      %s128 = sphi 0, %s130
      %s131 = sphi 0, %s128
      %s132 = sphi 0, %s131
      %s148 = sphi 0, %s132
    $region4: #{gpt_forward.22} parent=1 // loop_header_branch
      %13 = sbr.rel (%p11) target = $region8
    $region5: #{gpt_forward.22} parent=1 // loop_body
      %s15 = ssub.s32 %s10, 1
      %s16 = ssub.s32 %s10, 2
      %s23 = sadd.s32 1, %s18
      %p24 = scmp.ge.s32.totalorder %s23, 2
      %s25 = scalar_select %p24, 0, %s23
      %s26 = sadd.s32 1, %s17
      %s27 = scalar_select %p24, %s26, %s17
      %p28 = scmp.ge.s32.totalorder %s27, 1
      %s29 = scalar_select %p28, 0, %s27
      %s30 = ssub.s32 %s17, %s29
      %p31 = scmp.eq.s32.totalorder %s30, 0
      %s33 = sadd.s32 %s32, 1
      %s34 = scalar_select %p31, %s32, %s33
      %p37 = pneg %p31
      %p38 = scmp.eq.s32.totalorder %s10, 1
      %p39 = por %p37, %p38
      %p40 = scmp.ne.s32.totalorder %s32, %s35
      %p41 = scmp.eq.s32.totalorder %s10, 0
      %p42 = por %p40, %p41
      %p43 = scmp.ne.s32.totalorder %s32, %s35
      %p44 = scmp.eq.s32.totalorder %s15, 1
      %p45 = por %p43, %p44
      %p46 = scmp.ne.s32.totalorder %s35, %s36
      %p47 = scmp.eq.s32.totalorder %s15, 0
      %p48 = por %p46, %p47
      %p49 = scmp.ne.s32.totalorder %s35, %s36
      %p50 = scmp.eq.s32.totalorder %s16, 1
      %p51 = por %p49, %p50
      %p53 = scmp.ne.s32.totalorder %s36, %s52
      %p54 = scmp.eq.s32.totalorder %s16, 0
      %p55 = por %p53, %p54
      %s57 = sadd.s32 %s56, 1
      %p60 = scmp.eq.s32.totalorder %s10, 1
      %p61 = scmp.ne.s32.totalorder %s56, %s58
      %p62 = scmp.eq.s32.totalorder %s10, 0
      %p63 = por %p61, %p62
      %p64 = scmp.ne.s32.totalorder %s56, %s58
      %p65 = scmp.eq.s32.totalorder %s15, 1
      %p66 = por %p64, %p65
      %p67 = scmp.ne.s32.totalorder %s58, %s59
      %p68 = scmp.eq.s32.totalorder %s15, 0
      %p69 = por %p67, %p68
      %p70 = scmp.ne.s32.totalorder %s58, %s59
      %p71 = scmp.eq.s32.totalorder %s16, 1
      %p72 = por %p70, %p71
      %p74 = scmp.ne.s32.totalorder %s59, %s73
      %p75 = scmp.eq.s32.totalorder %s16, 0
      %p76 = por %p74, %p75
      %s78 = sadd.s32 %s77, 1
      %p81 = scmp.eq.s32.totalorder %s10, 1
      %p82 = scmp.ne.s32.totalorder %s77, %s79
      %p83 = scmp.eq.s32.totalorder %s10, 0
      %p84 = por %p82, %p83
      %p85 = scmp.ne.s32.totalorder %s77, %s79
      %p86 = scmp.eq.s32.totalorder %s15, 1
      %p87 = por %p85, %p86
      %p88 = scmp.ne.s32.totalorder %s79, %s80
      %p89 = scmp.eq.s32.totalorder %s15, 0
      %p90 = por %p88, %p89
      %p91 = scmp.ne.s32.totalorder %s79, %s80
      %p92 = scmp.eq.s32.totalorder %s16, 1
      %p93 = por %p91, %p92
      %p95 = scmp.ne.s32.totalorder %s80, %s94
      %p96 = scmp.eq.s32.totalorder %s16, 0
      %p97 = por %p95, %p96
      %s98 = ssub.s32 %s18, %s25
      %p99 = scmp.eq.s32.totalorder %s98, 0
      %s101 = sadd.s32 %s100, 1
      %s102 = scalar_select %p99, %s100, %s101
      %p105 = pneg %p99
      %p106 = scmp.eq.s32.totalorder %s10, 1
      %p107 = por %p105, %p106
      %p108 = scmp.ne.s32.totalorder %s100, %s103
      %p109 = scmp.eq.s32.totalorder %s10, 0
      %p110 = por %p108, %p109
      %p111 = scmp.ne.s32.totalorder %s100, %s103
      %p112 = scmp.eq.s32.totalorder %s15, 1
      %p113 = por %p111, %p112
      %p114 = scmp.ne.s32.totalorder %s103, %s104
      %p115 = scmp.eq.s32.totalorder %s15, 0
      %p116 = por %p114, %p115
      %p117 = scmp.ne.s32.totalorder %s103, %s104
      %p118 = scmp.eq.s32.totalorder %s16, 1
      %p119 = por %p117, %p118
      %p121 = scmp.ne.s32.totalorder %s104, %s120
      %p122 = scmp.eq.s32.totalorder %s16, 0
      %p123 = por %p121, %p122
      %s124 = ssub.s32 %s17, %s29
      %s125 = ssub.s32 %s18, %s25
      %s126 = sor.u32 %s124, %s125
      %p127 = scmp.eq.s32.totalorder %s126, 0
      %s129 = sadd.s32 %s128, 1
      %s130 = scalar_select %p127, %s128, %s129
      %p133 = pneg %p127
      %p134 = scmp.eq.s32.totalorder %s10, 1
      %p135 = por %p133, %p134
      %p136 = scmp.ne.s32.totalorder %s128, %s131
      %p137 = scmp.eq.s32.totalorder %s10, 0
      %p138 = por %p136, %p137
      %p139 = scmp.ne.s32.totalorder %s128, %s131
      %p140 = scmp.eq.s32.totalorder %s15, 1
      %p141 = por %p139, %p140
      %p142 = scmp.ne.s32.totalorder %s131, %s132
      %p143 = scmp.eq.s32.totalorder %s15, 0
      %p144 = por %p142, %p143
      %p145 = scmp.ne.s32.totalorder %s131, %s132
      %p146 = scmp.eq.s32.totalorder %s16, 1
      %p147 = por %p145, %p146
      %p149 = scmp.ne.s32.totalorder %s132, %s148
      %p150 = scmp.eq.s32.totalorder %s16, 0
      %p151 = por %p149, %p150
      %p152 = scmp.le.s32.totalorder 1, %s10
      %p153 = scmp.lt.s32.totalorder %s10, 3
      %p154 = pnand %p152, %p153
      %p155 = pneg %p154
      // Predicated region
      $region9: #{gpt_forward.22} parent=5 // pred_check
        _
      $region10: #{gpt_forward.22} parent=5 // pred_check_branch
        %157 = sbr.rel (%p154) target = $region12
      $region11: #{gpt_forward.22} parent=5 // pred_region
        %s158 = ssub.s32 %s10, 1
        // Predicated region
        $region13: #{gpt_forward.22} parent=11 // pred_check
          %p159 = pneg %p48
        $region14: #{gpt_forward.22} parent=11 // pred_check_branch
          %161 = sbr.rel (%p159) target = $region16
        $region15: #{gpt_forward.22} parent=11 // pred_region
          %s162 = smul.u32 16, %s19
          %p163 = scmp.lt.s32.totalorder %s162, 15
          %s164 = scalar_select %p163, %s162, 15
          %s165 = smul.addr %s164, 8
          %s166 = scalar_lea.vmem %s0, %s165
          %s167 = smul.u32 16, %s19
        $region16: #{gpt_forward.22} parent=11 // pred_fallthru
          _
        // Predicated region
        $region17: #{gpt_forward.22} parent=11 // pred_check
          %p168 = pneg %p69
        $region18: #{gpt_forward.22} parent=11 // pred_check_branch
          %170 = sbr.rel (%p168) target = $region20
        $region19: #{gpt_forward.22} parent=11 // pred_region
          _
        $region20: #{gpt_forward.22} parent=11 // pred_fallthru
          _
        // Predicated region
        $region21: #{gpt_forward.22} parent=11 // pred_check
          %p171 = pneg %p90
        $region22: #{gpt_forward.22} parent=11 // pred_check_branch
          %173 = sbr.rel (%p171) target = $region24
        $region23: #{gpt_forward.22} parent=11 // pred_region
          _
        $region24: #{gpt_forward.22} parent=11 // pred_fallthru
          _
      $region12: #{gpt_forward.22} parent=5 // pred_fallthru
        _
      %p174 = scmp.lt.s32.totalorder %s10, 2
      // Predicated region
      $region25: #{gpt_forward.22} parent=5 // pred_check
        %p175 = pneg %p174
      $region26: #{gpt_forward.22} parent=5 // pred_check_branch
        %177 = sbr.rel (%p175) target = $region28
      $region27: #{gpt_forward.22} parent=5 // pred_region
        // Predicated region
        $region29: #{gpt_forward.22} parent=27 // pred_check
          %p178 = pneg %p110
        $region30: #{gpt_forward.22} parent=27 // pred_check_branch
          %180 = sbr.rel (%p178) target = $region32
        $region31: #{gpt_forward.22} parent=27 // pred_region
          %s181 = sand.u32 %s100, 1
          %s182 = sand.u32 %s100, 1
          %s183 = smul.addr %s182, 128
          %s184 = scalar_lea.vmem [#allocation2], %s183
          %s185 = smul.u32 2, %s18
          %s186 = smul.addr %s185, 4
          %s187 = scalar_lea.vmem %s3, %s186
          // Predicated region
          $region33: #{gpt_forward.22} parent=31 // pred_check
            _
          $region34: #{gpt_forward.22} parent=31 // pred_check_branch
            %189 = sbr.rel (0) target = $region36
          $region35: #{gpt_forward.22} parent=31 // pred_region
            // Predicated region
            $region37: #{gpt_forward.22} parent=35 // pred_check
              _
            $region38: #{gpt_forward.22} parent=35 // pred_check_branch
              %191 = sbr.rel (0) target = $region40
            $region39: #{gpt_forward.22} parent=35 // pred_region
              // Predicated region
              $region52: #{gpt_forward.22} parent=39 // pred_check
                _
              $region53: #{gpt_forward.22} parent=39 // pred_check_branch
                %236 = sbr.rel (0) target = $region55
              $region54: #{gpt_forward.22} parent=39 // pred_region
                loop: start=0, step=1, limit=1
                $region56: #{gpt_forward.22} parent=54 // loop_pre_header
                  _
                $region57: #{gpt_forward.22} parent=54 // loop_header
                  %s238 = sphi 0, %s242
                  %p239 = scmp.ge.s32.totalorder %s238, 1
                  %s243 = sphi %s187, %s187
                  %s244 = sphi %s184, %s184
                $region58: #{gpt_forward.22} parent=54 // loop_header_branch
                  %241 = sbr.rel (%p239) target = $region62
                $region59: #{gpt_forward.22} parent=54 // loop_body
                  %v245 = vld [vmem:[%s243] sm:$0xff]
                  %246 = vst [vmem:[%s244] sm:$0xff] %v245
                  %v247 = vld [vmem:[%s243 + $0x10] sm:$0xff]
                  %248 = vst [vmem:[%s244 + $0x8] sm:$0xff] %v247
                  %v249 = vld [vmem:[%s243 + $0x20] sm:$0xff]
                  %250 = vst [vmem:[%s244 + $0x10] sm:$0xff] %v249
                  %v251 = vld [vmem:[%s243 + $0x30] sm:$0xff]
                  %252 = vst [vmem:[%s244 + $0x18] sm:$0xff] %v251
                  %v253 = vld [vmem:[%s243 + $0x40] sm:$0xff]
                  %254 = vst [vmem:[%s244 + $0x20] sm:$0xff] %v253
                  %v255 = vld [vmem:[%s243 + $0x50] sm:$0xff]
                  %256 = vst [vmem:[%s244 + $0x28] sm:$0xff] %v255
                  %v257 = vld [vmem:[%s243 + $0x60] sm:$0xff]
                  %258 = vst [vmem:[%s244 + $0x30] sm:$0xff] %v257
                  %v259 = vld [vmem:[%s243 + $0x70] sm:$0xff]
                  %260 = vst [vmem:[%s244 + $0x38] sm:$0xff] %v259
                  %v261 = vld [vmem:[%s243 + $0x80] sm:$0xff]
                  %262 = vst [vmem:[%s244 + $0x40] sm:$0xff] %v261
                  %v263 = vld [vmem:[%s243 + $0x90] sm:$0xff]
                  %264 = vst [vmem:[%s244 + $0x48] sm:$0xff] %v263
                  %v265 = vld [vmem:[%s243 + $0xa0] sm:$0xff]
                  %266 = vst [vmem:[%s244 + $0x50] sm:$0xff] %v265
                  %v267 = vld [vmem:[%s243 + $0xb0] sm:$0xff]
                  %268 = vst [vmem:[%s244 + $0x58] sm:$0xff] %v267
                  %v269 = vld [vmem:[%s243 + $0xc0] sm:$0xff]
                  %270 = vst [vmem:[%s244 + $0x60] sm:$0xff] %v269
                  %v271 = vld [vmem:[%s243 + $0xd0] sm:$0xff]
                  %272 = vst [vmem:[%s244 + $0x68] sm:$0xff] %v271
                  %v273 = vld [vmem:[%s243 + $0xe0] sm:$0xff]
                  %274 = vst [vmem:[%s244 + $0x70] sm:$0xff] %v273
                  %v275 = vld [vmem:[%s243 + $0xf0] sm:$0xff]
                  %276 = vst [vmem:[%s244 + $0x78] sm:$0xff] %v275
                $region60: #{gpt_forward.22} parent=54 // loop_footer
                  %s242 = sadd.s32 1, %s238
                $region61: #{gpt_forward.22} parent=54 // loop_footer_branch
                  %237 = sbr.rel target = $region57
                $region62: #{gpt_forward.22} parent=54 // loop_exit
                  _
              $region55: #{gpt_forward.22} parent=39 // pred_fallthru
                _
              // Predicated region
              $region63: #{gpt_forward.22} parent=39 // pred_check
                _
              $region64: #{gpt_forward.22} parent=39 // pred_check_branch
                %278 = sbr.rel target = $region66
              $region65: #{gpt_forward.22} parent=39 // pred_region
                _
              $region66: #{gpt_forward.22} parent=39 // pred_fallthru
                _
            $region40: #{gpt_forward.22} parent=35 // pred_fallthru
              _
            // Predicated region
            $region41: #{gpt_forward.22} parent=35 // pred_check
              _
            $region42: #{gpt_forward.22} parent=35 // pred_check_branch
              %193 = sbr.rel target = $region44
            $region43: #{gpt_forward.22} parent=35 // pred_region
              loop: start=0, step=1, limit=1
              $region45: #{gpt_forward.22} parent=43 // loop_pre_header
                _
              $region46: #{gpt_forward.22} parent=43 // loop_header
                %s196 = sphi 0, %s200
                %p197 = scmp.ge.s32.totalorder %s196, 1
                %s201 = sphi %s187, %s187
                %s202 = sphi %s184, %s184
              $region47: #{gpt_forward.22} parent=43 // loop_header_branch
                %199 = sbr.rel (%p197) target = $region51
              $region48: #{gpt_forward.22} parent=43 // loop_body
                %v203 = vld [vmem:[%s201] sm:$0xff]
                %204 = vst [vmem:[%s202] sm:$0xff] %v203
                %v205 = vld [vmem:[%s201 + $0x10] sm:$0xff]
                %206 = vst [vmem:[%s202 + $0x8] sm:$0xff] %v205
                %v207 = vld [vmem:[%s201 + $0x20] sm:$0xff]
                %208 = vst [vmem:[%s202 + $0x10] sm:$0xff] %v207
                %v209 = vld [vmem:[%s201 + $0x30] sm:$0xff]
                %210 = vst [vmem:[%s202 + $0x18] sm:$0xff] %v209
                %v211 = vld [vmem:[%s201 + $0x40] sm:$0xff]
                %212 = vst [vmem:[%s202 + $0x20] sm:$0xff] %v211
                %v213 = vld [vmem:[%s201 + $0x50] sm:$0xff]
                %214 = vst [vmem:[%s202 + $0x28] sm:$0xff] %v213
                %v215 = vld [vmem:[%s201 + $0x60] sm:$0xff]
                %216 = vst [vmem:[%s202 + $0x30] sm:$0xff] %v215
                %v217 = vld [vmem:[%s201 + $0x70] sm:$0xff]
                %218 = vst [vmem:[%s202 + $0x38] sm:$0xff] %v217
                %v219 = vld [vmem:[%s201 + $0x80] sm:$0xff]
                %220 = vst [vmem:[%s202 + $0x40] sm:$0xff] %v219
                %v221 = vld [vmem:[%s201 + $0x90] sm:$0xff]
                %222 = vst [vmem:[%s202 + $0x48] sm:$0xff] %v221
                %v223 = vld [vmem:[%s201 + $0xa0] sm:$0xff]
                %224 = vst [vmem:[%s202 + $0x50] sm:$0xff] %v223
                %v225 = vld [vmem:[%s201 + $0xb0] sm:$0xff]
                %226 = vst [vmem:[%s202 + $0x58] sm:$0xff] %v225
                %v227 = vld [vmem:[%s201 + $0xc0] sm:$0xff]
                %228 = vst [vmem:[%s202 + $0x60] sm:$0xff] %v227
                %v229 = vld [vmem:[%s201 + $0xd0] sm:$0xff]
                %230 = vst [vmem:[%s202 + $0x68] sm:$0xff] %v229
                %v231 = vld [vmem:[%s201 + $0xe0] sm:$0xff]
                %232 = vst [vmem:[%s202 + $0x70] sm:$0xff] %v231
                %v233 = vld [vmem:[%s201 + $0xf0] sm:$0xff]
                %234 = vst [vmem:[%s202 + $0x78] sm:$0xff] %v233
              $region49: #{gpt_forward.22} parent=43 // loop_footer
                %s200 = sadd.s32 1, %s196
              $region50: #{gpt_forward.22} parent=43 // loop_footer_branch
                %195 = sbr.rel target = $region46
              $region51: #{gpt_forward.22} parent=43 // loop_exit
                _
            $region44: #{gpt_forward.22} parent=35 // pred_fallthru
              _
          $region36: #{gpt_forward.22} parent=31 // pred_fallthru
            _
          %279 = vnop
        $region32: #{gpt_forward.22} parent=27 // pred_fallthru
          _
      $region28: #{gpt_forward.22} parent=5 // pred_fallthru
        _
      %p280 = scmp.le.s32.totalorder 1, %s10
      %p281 = scmp.lt.s32.totalorder %s10, 3
      %p282 = pnand %p280, %p281
      %p283 = pneg %p282
      // Predicated region
      $region67: #{gpt_forward.22} parent=5 // pred_check
        _
      $region68: #{gpt_forward.22} parent=5 // pred_check_branch
        %285 = sbr.rel (%p282) target = $region70
      $region69: #{gpt_forward.22} parent=5 // pred_region
        %s286 = ssub.s32 %s10, 1
        %s287 = sand.u32 %s103, 1
        %s288 = sand.u32 %s103, 1
        %s289 = smul.addr %s288, 128
        %s290 = scalar_lea.vmem [#allocation2], %s289
        // Predicated region
        $region71: #{gpt_forward.22} parent=69 // pred_check
          %p291 = pneg %p116
        $region72: #{gpt_forward.22} parent=69 // pred_check_branch
          %293 = sbr.rel (%p291) target = $region74
        $region73: #{gpt_forward.22} parent=69 // pred_region
          _
        $region74: #{gpt_forward.22} parent=69 // pred_fallthru
          _
        %s294 = smul.u32 16, %s19
        %p295 = scmp.lt.s32.totalorder %s294, 15
        %s296 = scalar_select %p295, %s294, 15
        %s297 = smul.addr %s296, 8
        %s298 = scalar_lea.vmem %s0, %s297
        %p299 = pneg %p48
        %p300 = pneg %p45
        %p301 = pneg %p69
        %p302 = pneg %p66
        %p303 = pneg %p90
        %p304 = pneg %p87
        %s305 = sand.u32 %s103, 1
        %s306 = sand.u32 %s103, 1
        %s307 = smul.addr %s306, 128
        %s308 = scalar_lea.vmem [#allocation2], %s307
        %p309 = pneg %p116
        %p310 = pneg %p113
        %p311 = pneg %p144
        %p312 = pneg %p141
        %s313 = sand.u32 %s131, 1
        %s314 = sand.u32 %s131, 1
        %s315 = smul.addr %s314, 256
        %s316 = scalar_lea.vmem [#allocation3], %s315
        %s317 = smul.u32 16, %s19
        %p318 = scmp.lt.s32.totalorder %s317, 15
        %s319 = scalar_select %p318, %s317, 15
        %s320 = smul.addr %s319, 8
        %s321 = scalar_lea.vmem %s0, %s320
        %s322 = smul.u32 16, %s19
        %s323 = smul.u32 2, %s20
        %s324 = smul.u32 16, %s19
        %s325 = smul.u32 2, %s20
        %v327 = vld [vmem:[%s321] sm:$0xff]
        %v328 = vld [vmem:[%s321 + $0x8] sm:$0xff]
        %v329 = vld [vmem:[%s321 + $0x10] sm:$0xff]
        %v330 = vld [vmem:[%s321 + $0x18] sm:$0xff]
        %v331 = vld [vmem:[%s321 + $0x20] sm:$0xff]
        %v332 = vld [vmem:[%s321 + $0x28] sm:$0xff]
        %v333 = vld [vmem:[%s321 + $0x30] sm:$0xff]
        %v334 = vld [vmem:[%s321 + $0x38] sm:$0xff]
        %v335 = vld [vmem:[%s321 + $0x40] sm:$0xff]
        %v336 = vld [vmem:[%s321 + $0x48] sm:$0xff]
        %v337 = vld [vmem:[%s321 + $0x50] sm:$0xff]
        %v338 = vld [vmem:[%s321 + $0x58] sm:$0xff]
        %v339 = vld [vmem:[%s321 + $0x60] sm:$0xff]
        %v340 = vld [vmem:[%s321 + $0x68] sm:$0xff]
        %v341 = vld [vmem:[%s321 + $0x70] sm:$0xff]
        %v342 = vld [vmem:[%s321 + $0x78] sm:$0xff]
        %343 = vadd.xlane.f32.xlu0 %v327
        %v344 = vpop.xlane.xlu0 %343
        %345 = vadd.xlane.f32.xlu0 %v328
        %v346 = vpop.xlane.xlu0 %345
        %347 = vadd.xlane.f32.xlu0 %v329
        %v348 = vpop.xlane.xlu0 %347
        %349 = vadd.xlane.f32.xlu0 %v330
        %v350 = vpop.xlane.xlu0 %349
        %351 = vadd.xlane.f32.xlu0 %v331
        %v352 = vpop.xlane.xlu0 %351
        %353 = vadd.xlane.f32.xlu0 %v332
        %v354 = vpop.xlane.xlu0 %353
        %355 = vadd.xlane.f32.xlu0 %v333
        %v356 = vpop.xlane.xlu0 %355
        %357 = vadd.xlane.f32.xlu0 %v334
        %v358 = vpop.xlane.xlu0 %357
        %359 = vadd.xlane.f32.xlu0 %v335
        %v360 = vpop.xlane.xlu0 %359
        %361 = vadd.xlane.f32.xlu0 %v336
        %v362 = vpop.xlane.xlu0 %361
        %363 = vadd.xlane.f32.xlu0 %v337
        %v364 = vpop.xlane.xlu0 %363
        %365 = vadd.xlane.f32.xlu0 %v338
        %v366 = vpop.xlane.xlu0 %365
        %367 = vadd.xlane.f32.xlu0 %v339
        %v368 = vpop.xlane.xlu0 %367
        %369 = vadd.xlane.f32.xlu0 %v340
        %v370 = vpop.xlane.xlu0 %369
        %371 = vadd.xlane.f32.xlu0 %v341
        %v372 = vpop.xlane.xlu0 %371
        %373 = vadd.xlane.f32.xlu0 %v342
        %v374 = vpop.xlane.xlu0 %373
        %v375 = vrcp.pop 128.0
        %v376 = vmul.f32 %v344, %v375
        %v377 = vmul.f32 %v346, %v375
        %v378 = vmul.f32 %v348, %v375
        %v379 = vmul.f32 %v350, %v375
        %v380 = vmul.f32 %v352, %v375
        %v381 = vmul.f32 %v354, %v375
        %v382 = vmul.f32 %v356, %v375
        %v383 = vmul.f32 %v358, %v375
        %v384 = vmul.f32 %v360, %v375
        %v385 = vmul.f32 %v362, %v375
        %v386 = vmul.f32 %v364, %v375
        %v387 = vmul.f32 %v366, %v375
        %v388 = vmul.f32 %v368, %v375
        %v389 = vmul.f32 %v370, %v375
        %v390 = vmul.f32 %v372, %v375
        %v391 = vmul.f32 %v374, %v375
        %v392 = vsub.f32 %v327, %v376
        %v393 = vsub.f32 %v328, %v377
        %v394 = vsub.f32 %v329, %v378
        %v395 = vsub.f32 %v330, %v379
        %v396 = vsub.f32 %v331, %v380
        %v397 = vsub.f32 %v332, %v381
        %v398 = vsub.f32 %v333, %v382
        %v399 = vsub.f32 %v334, %v383
        %v400 = vsub.f32 %v335, %v384
        %v401 = vsub.f32 %v336, %v385
        %v402 = vsub.f32 %v337, %v386
        %v403 = vsub.f32 %v338, %v387
        %v404 = vsub.f32 %v339, %v388
        %v405 = vsub.f32 %v340, %v389
        %v406 = vsub.f32 %v341, %v390
        %v407 = vsub.f32 %v342, %v391
        %v408 = vmul.f32 %v392, %v392
        %v409 = vmul.f32 %v393, %v393
        %v410 = vmul.f32 %v394, %v394
        %v411 = vmul.f32 %v395, %v395
        %v412 = vmul.f32 %v396, %v396
        %v413 = vmul.f32 %v397, %v397
        %v414 = vmul.f32 %v398, %v398
        %v415 = vmul.f32 %v399, %v399
        %v416 = vmul.f32 %v400, %v400
        %v417 = vmul.f32 %v401, %v401
        %v418 = vmul.f32 %v402, %v402
        %v419 = vmul.f32 %v403, %v403
        %v420 = vmul.f32 %v404, %v404
        %v421 = vmul.f32 %v405, %v405
        %v422 = vmul.f32 %v406, %v406
        %v423 = vmul.f32 %v407, %v407
        %424 = vadd.xlane.f32.xlu0 %v408
        %v425 = vpop.xlane.xlu0 %424
        %426 = vadd.xlane.f32.xlu0 %v409
        %v427 = vpop.xlane.xlu0 %426
        %428 = vadd.xlane.f32.xlu0 %v410
        %v429 = vpop.xlane.xlu0 %428
        %430 = vadd.xlane.f32.xlu0 %v411
        %v431 = vpop.xlane.xlu0 %430
        %432 = vadd.xlane.f32.xlu0 %v412
        %v433 = vpop.xlane.xlu0 %432
        %434 = vadd.xlane.f32.xlu0 %v413
        %v435 = vpop.xlane.xlu0 %434
        %436 = vadd.xlane.f32.xlu0 %v414
        %v437 = vpop.xlane.xlu0 %436
        %438 = vadd.xlane.f32.xlu0 %v415
        %v439 = vpop.xlane.xlu0 %438
        %440 = vadd.xlane.f32.xlu0 %v416
        %v441 = vpop.xlane.xlu0 %440
        %442 = vadd.xlane.f32.xlu0 %v417
        %v443 = vpop.xlane.xlu0 %442
        %444 = vadd.xlane.f32.xlu0 %v418
        %v445 = vpop.xlane.xlu0 %444
        %446 = vadd.xlane.f32.xlu0 %v419
        %v447 = vpop.xlane.xlu0 %446
        %448 = vadd.xlane.f32.xlu0 %v420
        %v449 = vpop.xlane.xlu0 %448
        %450 = vadd.xlane.f32.xlu0 %v421
        %v451 = vpop.xlane.xlu0 %450
        %452 = vadd.xlane.f32.xlu0 %v422
        %v453 = vpop.xlane.xlu0 %452
        %454 = vadd.xlane.f32.xlu0 %v423
        %v455 = vpop.xlane.xlu0 %454
        %v456 = vmul.f32 %v425, %v375
        %v457 = vmul.f32 %v427, %v375
        %v458 = vmul.f32 %v429, %v375
        %v459 = vmul.f32 %v431, %v375
        %v460 = vmul.f32 %v433, %v375
        %v461 = vmul.f32 %v435, %v375
        %v462 = vmul.f32 %v437, %v375
        %v463 = vmul.f32 %v439, %v375
        %v464 = vmul.f32 %v441, %v375
        %v465 = vmul.f32 %v443, %v375
        %v466 = vmul.f32 %v445, %v375
        %v467 = vmul.f32 %v447, %v375
        %v468 = vmul.f32 %v449, %v375
        %v469 = vmul.f32 %v451, %v375
        %v470 = vmul.f32 %v453, %v375
        %v471 = vmul.f32 %v455, %v375
        %v472 = vadd.f32 %v456, 1e-05
        %v473 = vadd.f32 %v457, 1e-05
        %v474 = vadd.f32 %v458, 1e-05
        %v475 = vadd.f32 %v459, 1e-05
        %v476 = vadd.f32 %v460, 1e-05
        %v477 = vadd.f32 %v461, 1e-05
        %v478 = vadd.f32 %v462, 1e-05
        %v479 = vadd.f32 %v463, 1e-05
        %v480 = vadd.f32 %v464, 1e-05
        %v481 = vadd.f32 %v465, 1e-05
        %v482 = vadd.f32 %v466, 1e-05
        %v483 = vadd.f32 %v467, 1e-05
        %v484 = vadd.f32 %v468, 1e-05
        %v485 = vadd.f32 %v469, 1e-05
        %v486 = vadd.f32 %v470, 1e-05
        %v487 = vadd.f32 %v471, 1e-05
        %v488 = vrsqrt.pop %v472
        %v489 = vrsqrt.pop %v473
        %v490 = vrsqrt.pop %v474
        %v491 = vrsqrt.pop %v475
        %v492 = vrsqrt.pop %v476
        %v493 = vrsqrt.pop %v477
        %v494 = vrsqrt.pop %v478
        %v495 = vrsqrt.pop %v479
        %v496 = vrsqrt.pop %v480
        %v497 = vrsqrt.pop %v481
        %v498 = vrsqrt.pop %v482
        %v499 = vrsqrt.pop %v483
        %v500 = vrsqrt.pop %v484
        %v501 = vrsqrt.pop %v485
        %v502 = vrsqrt.pop %v486
        %v503 = vrsqrt.pop %v487
        %v504 = vmul.f32 %v392, %v488
        %v505 = vmul.f32 %v393, %v489
        %v506 = vmul.f32 %v394, %v490
        %v507 = vmul.f32 %v395, %v491
        %v508 = vmul.f32 %v396, %v492
        %v509 = vmul.f32 %v397, %v493
        %v510 = vmul.f32 %v398, %v494
        %v511 = vmul.f32 %v399, %v495
        %v512 = vmul.f32 %v400, %v496
        %v513 = vmul.f32 %v401, %v497
        %v514 = vmul.f32 %v402, %v498
        %v515 = vmul.f32 %v403, %v499
        %v516 = vmul.f32 %v404, %v500
        %v517 = vmul.f32 %v405, %v501
        %v518 = vmul.f32 %v406, %v502
        %v519 = vmul.f32 %v407, %v503
        %v520 = vld [vmem:[%s1] sm:$0x1]
        %v522 = vlaneseq
        %v523 = vshrl.u32 %v522, 7
        %v524 = vsub.s32 0, %v523
        %v525 = vrot.slane %v520, %v524
        %v527 = vmul.f32 %v504, %v525
        %v528 = vmul.f32 %v505, %v525
        %v529 = vmul.f32 %v506, %v525
        %v530 = vmul.f32 %v507, %v525
        %v531 = vmul.f32 %v508, %v525
        %v532 = vmul.f32 %v509, %v525
        %v533 = vmul.f32 %v510, %v525
        %v534 = vmul.f32 %v511, %v525
        %v535 = vmul.f32 %v512, %v525
        %v536 = vmul.f32 %v513, %v525
        %v537 = vmul.f32 %v514, %v525
        %v538 = vmul.f32 %v515, %v525
        %v539 = vmul.f32 %v516, %v525
        %v540 = vmul.f32 %v517, %v525
        %v541 = vmul.f32 %v518, %v525
        %v542 = vmul.f32 %v519, %v525
        %v543 = vld [vmem:[%s2] sm:$0x1]
        %v545 = vlaneseq
        %v546 = vshrl.u32 %v545, 7
        %v547 = vsub.s32 0, %v546
        %v548 = vrot.slane %v543, %v547
        %v550 = vadd.f32 %v527, %v548
        %v551 = vadd.f32 %v528, %v548
        %v552 = vadd.f32 %v529, %v548
        %v553 = vadd.f32 %v530, %v548
        %v554 = vadd.f32 %v531, %v548
        %v555 = vadd.f32 %v532, %v548
        %v556 = vadd.f32 %v533, %v548
        %v557 = vadd.f32 %v534, %v548
        %v558 = vadd.f32 %v535, %v548
        %v559 = vadd.f32 %v536, %v548
        %v560 = vadd.f32 %v537, %v548
        %v561 = vadd.f32 %v538, %v548
        %v562 = vadd.f32 %v539, %v548
        %v563 = vadd.f32 %v540, %v548
        %v564 = vadd.f32 %v541, %v548
        %v565 = vadd.f32 %v542, %v548
        %v566 = vpack.c.bf16 %v551, %v550
        %v567 = vpack.c.bf16 %v553, %v552
        %v568 = vpack.c.bf16 %v555, %v554
        %v569 = vpack.c.bf16 %v557, %v556
        %v570 = vpack.c.bf16 %v559, %v558
        %v571 = vpack.c.bf16 %v561, %v560
        %v572 = vpack.c.bf16 %v563, %v562
        %v573 = vpack.c.bf16 %v565, %v564
        %v574 = vld [vmem:[%s290] sm:$0xff]
        %v575 = vld [vmem:[%s290 + $0x8] sm:$0xff]
        %v576 = vld [vmem:[%s290 + $0x10] sm:$0xff]
        %v577 = vld [vmem:[%s290 + $0x18] sm:$0xff]
        %v578 = vld [vmem:[%s290 + $0x20] sm:$0xff]
        %v579 = vld [vmem:[%s290 + $0x28] sm:$0xff]
        %v580 = vld [vmem:[%s290 + $0x30] sm:$0xff]
        %v581 = vld [vmem:[%s290 + $0x38] sm:$0xff]
        %v582 = vld [vmem:[%s290 + $0x40] sm:$0xff]
        %v583 = vld [vmem:[%s290 + $0x48] sm:$0xff]
        %v584 = vld [vmem:[%s290 + $0x50] sm:$0xff]
        %v585 = vld [vmem:[%s290 + $0x58] sm:$0xff]
        %v586 = vld [vmem:[%s290 + $0x60] sm:$0xff]
        %v587 = vld [vmem:[%s290 + $0x68] sm:$0xff]
        %v588 = vld [vmem:[%s290 + $0x70] sm:$0xff]
        %v589 = vld [vmem:[%s290 + $0x78] sm:$0xff]
        %v606 = vunpack.c.l.b16 %v574
        %v607 = vunpack.c.h.b16 %v574
        %v608 = vunpack.c.l.b16 %v575
        %v609 = vunpack.c.h.b16 %v575
        %v610 = vunpack.c.l.b16 %v576
        %v611 = vunpack.c.h.b16 %v576
        %v612 = vunpack.c.l.b16 %v577
        %v613 = vunpack.c.h.b16 %v577
        %v614 = vunpack.c.l.b16 %v578
        %v615 = vunpack.c.h.b16 %v578
        %v616 = vunpack.c.l.b16 %v579
        %v617 = vunpack.c.h.b16 %v579
        %v618 = vunpack.c.l.b16 %v580
        %v619 = vunpack.c.h.b16 %v580
        %v620 = vunpack.c.l.b16 %v581
        %v621 = vunpack.c.h.b16 %v581
        %v622 = vunpack.c.l.b16 %v582
        %v623 = vunpack.c.h.b16 %v582
        %v624 = vunpack.c.l.b16 %v583
        %v625 = vunpack.c.h.b16 %v583
        %v626 = vunpack.c.l.b16 %v584
        %v627 = vunpack.c.h.b16 %v584
        %v628 = vunpack.c.l.b16 %v585
        %v629 = vunpack.c.h.b16 %v585
        %v630 = vunpack.c.l.b16 %v586
        %v631 = vunpack.c.h.b16 %v586
        %v632 = vunpack.c.l.b16 %v587
        %v633 = vunpack.c.h.b16 %v587
        %v634 = vunpack.c.l.b16 %v588
        %v635 = vunpack.c.h.b16 %v588
        %v636 = vunpack.c.l.b16 %v589
        %v637 = vunpack.c.h.b16 %v589
        %v638 = vpack.c.b16 %v608, %v606
        %v639 = vpack.c.b16 %v609, %v607
        %v640 = vpack.c.b16 %v612, %v610
        %v641 = vpack.c.b16 %v613, %v611
        %v642 = vpack.c.b16 %v616, %v614
        %v643 = vpack.c.b16 %v617, %v615
        %v644 = vpack.c.b16 %v620, %v618
        %v645 = vpack.c.b16 %v621, %v619
        %v646 = vpack.c.b16 %v624, %v622
        %v647 = vpack.c.b16 %v625, %v623
        %v648 = vpack.c.b16 %v628, %v626
        %v649 = vpack.c.b16 %v629, %v627
        %v650 = vpack.c.b16 %v632, %v630
        %v651 = vpack.c.b16 %v633, %v631
        %v652 = vpack.c.b16 %v636, %v634
        %v653 = vpack.c.b16 %v637, %v635
        %670 = vmatprep.subr.bf16.mxu0 %v639
        %671 = vmatpush1.bf16.msra.mxu0 %v638
        %672 = vmatprep.subr.bf16.mxu0 %v641
        %673 = vmatpush1.bf16.msra.mxu0 %v640
        %674 = vmatprep.subr.bf16.mxu0 %v643
        %675 = vmatpush1.bf16.msra.mxu0 %v642
        %676 = vmatprep.subr.bf16.mxu0 %v645
        %677 = vmatpush1.bf16.msra.mxu0 %v644
        %678 = vmatprep.subr.bf16.mxu0 %v647
        %679 = vmatpush1.bf16.msra.mxu0 %v646
        %680 = vmatprep.subr.bf16.mxu0 %v649
        %681 = vmatpush1.bf16.msra.mxu0 %v648
        %682 = vmatprep.subr.bf16.mxu0 %v651
        %683 = vmatpush1.bf16.msra.mxu0 %v650
        %684 = vmatprep.subr.bf16.mxu0 %v653
        %685 = vmatpush1.bf16.msra.mxu0 %v652
        %686 = vmatprep.subr.bf16.mxu0 0
        %687 = vmatpush1.bf16.msra.mxu0 0
        %688 = vmatprep.subr.bf16.mxu0 0
        %689 = vmatpush1.bf16.msra.mxu0 0
        %690 = vmatprep.subr.bf16.mxu0 0
        %691 = vmatpush1.bf16.msra.mxu0 0
        %692 = vmatprep.subr.bf16.mxu0 0
        %693 = vmatpush1.bf16.msra.mxu0 0
        %694 = vmatprep.subr.bf16.mxu0 0
        %695 = vmatpush1.bf16.msra.mxu0 0
        %696 = vmatprep.subr.bf16.mxu0 0
        %697 = vmatpush1.bf16.msra.mxu0 0
        %698 = vmatprep.subr.bf16.mxu0 0
        %699 = vmatpush1.bf16.msra.mxu0 0
        %700 = vmatprep.subr.bf16.mxu0 0
        %701 = vmatpush1.bf16.msra.mxu0 0
        %702 = vmatprep.mubr.bf16.mxu0 0
        %703 = vmatmul.mubr.bf16.gmra.mrb[0].mxu0 %v566
        %v704 = vpop.f32.mrb[0].mxu0
        %v705 = vadd.f32 0.0, %v704
        %v706 = vpop.f32.mrb[0].mxu0
        %v707 = vadd.f32 0.0, %v706
        %v708 = vpop.f32.mrb[0].mxu0
        %v709 = vadd.f32 0.0, %v708
        %v710 = vpop.f32.mrb[0].mxu0
        %v711 = vadd.f32 0.0, %v710
        %712 = vmatprep.mubr.bf16.mxu0 0
        %713 = vmatmul.mubr.bf16.gmra.mrb[0].mxu0 %v567
        %v714 = vpop.f32.mrb[0].mxu0
        %v715 = vadd.f32 0.0, %v714
        %v716 = vpop.f32.mrb[0].mxu0
        %v717 = vadd.f32 0.0, %v716
        %v718 = vpop.f32.mrb[0].mxu0
        %v719 = vadd.f32 0.0, %v718
        %v720 = vpop.f32.mrb[0].mxu0
        %v721 = vadd.f32 0.0, %v720
        %722 = vmatprep.mubr.bf16.mxu0 0
        %723 = vmatmul.mubr.bf16.gmra.mrb[0].mxu0 %v568
        %v724 = vpop.f32.mrb[0].mxu0
        %v725 = vadd.f32 0.0, %v724
        %v726 = vpop.f32.mrb[0].mxu0
        %v727 = vadd.f32 0.0, %v726
        %v728 = vpop.f32.mrb[0].mxu0
        %v729 = vadd.f32 0.0, %v728
        %v730 = vpop.f32.mrb[0].mxu0
        %v731 = vadd.f32 0.0, %v730
        %732 = vmatprep.mubr.bf16.mxu0 0
        %733 = vmatmul.mubr.bf16.gmra.mrb[0].mxu0 %v569
        %v734 = vpop.f32.mrb[0].mxu0
        %v735 = vadd.f32 0.0, %v734
        %v736 = vpop.f32.mrb[0].mxu0
        %v737 = vadd.f32 0.0, %v736
        %v738 = vpop.f32.mrb[0].mxu0
        %v739 = vadd.f32 0.0, %v738
        %v740 = vpop.f32.mrb[0].mxu0
        %v741 = vadd.f32 0.0, %v740
        %742 = vmatprep.mubr.bf16.mxu0 0
        %743 = vmatmul.mubr.bf16.gmra.mrb[0].mxu0 %v570
        %v744 = vpop.f32.mrb[0].mxu0
        %v745 = vadd.f32 0.0, %v744
        %v746 = vpop.f32.mrb[0].mxu0
        %v747 = vadd.f32 0.0, %v746
        %v748 = vpop.f32.mrb[0].mxu0
        %v749 = vadd.f32 0.0, %v748
        %v750 = vpop.f32.mrb[0].mxu0
        %v751 = vadd.f32 0.0, %v750
        %752 = vmatprep.mubr.bf16.mxu0 0
        %753 = vmatmul.mubr.bf16.gmra.mrb[0].mxu0 %v571
        %v754 = vpop.f32.mrb[0].mxu0
        %v755 = vadd.f32 0.0, %v754
        %v756 = vpop.f32.mrb[0].mxu0
        %v757 = vadd.f32 0.0, %v756
        %v758 = vpop.f32.mrb[0].mxu0
        %v759 = vadd.f32 0.0, %v758
        %v760 = vpop.f32.mrb[0].mxu0
        %v761 = vadd.f32 0.0, %v760
        %762 = vmatprep.mubr.bf16.mxu0 0
        %763 = vmatmul.mubr.bf16.gmra.mrb[0].mxu0 %v572
        %v764 = vpop.f32.mrb[0].mxu0
        %v765 = vadd.f32 0.0, %v764
        %v766 = vpop.f32.mrb[0].mxu0
        %v767 = vadd.f32 0.0, %v766
        %v768 = vpop.f32.mrb[0].mxu0
        %v769 = vadd.f32 0.0, %v768
        %v770 = vpop.f32.mrb[0].mxu0
        %v771 = vadd.f32 0.0, %v770
        %772 = vmatprep.mubr.bf16.mxu0 0
        %773 = vmatmul.mubr.bf16.gmra.mrb[0].mxu0 %v573
        %v774 = vpop.f32.mrb[0].mxu0
        %v775 = vadd.f32 0.0, %v774
        %v776 = vpop.f32.mrb[0].mxu0
        %v777 = vadd.f32 0.0, %v776
        %v778 = vpop.f32.mrb[0].mxu0
        %v779 = vadd.f32 0.0, %v778
        %v780 = vpop.f32.mrb[0].mxu0
        %v781 = vadd.f32 0.0, %v780
        %782 = vdwg.mxu0
        %783 = vst [vmem:[%s316] sm:$0xff] %v705
        %784 = vst [vmem:[%s316 + $0x8] sm:$0xff] %v707
        %785 = vst [vmem:[%s316 + $0x10] sm:$0xff] %v709
        %786 = vst [vmem:[%s316 + $0x18] sm:$0xff] %v711
        %787 = vst [vmem:[%s316 + $0x20] sm:$0xff] %v715
        %788 = vst [vmem:[%s316 + $0x28] sm:$0xff] %v717
        %789 = vst [vmem:[%s316 + $0x30] sm:$0xff] %v719
        %790 = vst [vmem:[%s316 + $0x38] sm:$0xff] %v721
        %791 = vst [vmem:[%s316 + $0x40] sm:$0xff] %v725
        %792 = vst [vmem:[%s316 + $0x48] sm:$0xff] %v727
        %793 = vst [vmem:[%s316 + $0x50] sm:$0xff] %v729
        %794 = vst [vmem:[%s316 + $0x58] sm:$0xff] %v731
        %795 = vst [vmem:[%s316 + $0x60] sm:$0xff] %v735
        %796 = vst [vmem:[%s316 + $0x68] sm:$0xff] %v737
        %797 = vst [vmem:[%s316 + $0x70] sm:$0xff] %v739
        %798 = vst [vmem:[%s316 + $0x78] sm:$0xff] %v741
        %799 = vst [vmem:[%s316 + $0x80] sm:$0xff] %v745
        %800 = vst [vmem:[%s316 + $0x88] sm:$0xff] %v747
        %801 = vst [vmem:[%s316 + $0x90] sm:$0xff] %v749
        %802 = vst [vmem:[%s316 + $0x98] sm:$0xff] %v751
        %803 = vst [vmem:[%s316 + $0xa0] sm:$0xff] %v755
        %804 = vst [vmem:[%s316 + $0xa8] sm:$0xff] %v757
        %805 = vst [vmem:[%s316 + $0xb0] sm:$0xff] %v759
        %806 = vst [vmem:[%s316 + $0xb8] sm:$0xff] %v761
        %807 = vst [vmem:[%s316 + $0xc0] sm:$0xff] %v765
        %808 = vst [vmem:[%s316 + $0xc8] sm:$0xff] %v767
        %809 = vst [vmem:[%s316 + $0xd0] sm:$0xff] %v769
        %810 = vst [vmem:[%s316 + $0xd8] sm:$0xff] %v771
        %811 = vst [vmem:[%s316 + $0xe0] sm:$0xff] %v775
        %812 = vst [vmem:[%s316 + $0xe8] sm:$0xff] %v777
        %813 = vst [vmem:[%s316 + $0xf0] sm:$0xff] %v779
        %814 = vst [vmem:[%s316 + $0xf8] sm:$0xff] %v781
        %s815 = sand.u32 %s131, 1
        %s816 = sand.u32 %s131, 1
        %s817 = smul.addr %s816, 256
        %s818 = scalar_lea.vmem [#allocation3], %s817
        // Predicated region
        $region75: #{gpt_forward.22} parent=69 // pred_check
          %p819 = pneg %p141
        $region76: #{gpt_forward.22} parent=69 // pred_check_branch
          %821 = sbr.rel (%p819) target = $region78
        $region77: #{gpt_forward.22} parent=69 // pred_region
          %s822 = smul.u32 16, %s19
          %s823 = smul.u32 2, %s20
          %s824 = smul.addr %s822, 4
          %s825 = sadd.s32 %s823, %s824
          %s826 = smul.addr %s825, 8
          %s827 = scalar_lea.vmem %s4, %s826
          // Predicated region
          $region79: #{gpt_forward.22} parent=77 // pred_check
            _
          $region80: #{gpt_forward.22} parent=77 // pred_check_branch
            %829 = sbr.rel (0) target = $region82
          $region81: #{gpt_forward.22} parent=77 // pred_region
            // Predicated region
            $region83: #{gpt_forward.22} parent=81 // pred_check
              _
            $region84: #{gpt_forward.22} parent=81 // pred_check_branch
              %831 = sbr.rel (0) target = $region86
            $region85: #{gpt_forward.22} parent=81 // pred_region
              loop: start=0, step=1, limit=1
              $region87: #{gpt_forward.22} parent=85 // loop_pre_header
                _
              $region88: #{gpt_forward.22} parent=85 // loop_header
                %s833 = sphi 0, %s837
                %p834 = scmp.ge.s32.totalorder %s833, 1
                %s838 = sphi %s818, %s818
                %s839 = sphi %s827, %s827
              $region89: #{gpt_forward.22} parent=85 // loop_header_branch
                %836 = sbr.rel (%p834) target = $region93
              $region90: #{gpt_forward.22} parent=85 // loop_body
                %v840 = vld [vmem:[%s838] sm:$0xff]
                %841 = vst [vmem:[%s839] sm:$0xff] %v840
                %v842 = vld [vmem:[%s838 + $0x8] sm:$0xff]
                %843 = vst [vmem:[%s839 + $0x8] sm:$0xff] %v842
                %v844 = vld [vmem:[%s838 + $0x10] sm:$0xff]
                %845 = vst [vmem:[%s839 + $0x20] sm:$0xff] %v844
                %v846 = vld [vmem:[%s838 + $0x18] sm:$0xff]
                %847 = vst [vmem:[%s839 + $0x28] sm:$0xff] %v846
                %v848 = vld [vmem:[%s838 + $0x20] sm:$0xff]
                %849 = vst [vmem:[%s839 + $0x40] sm:$0xff] %v848
                %v850 = vld [vmem:[%s838 + $0x28] sm:$0xff]
                %851 = vst [vmem:[%s839 + $0x48] sm:$0xff] %v850
                %v852 = vld [vmem:[%s838 + $0x30] sm:$0xff]
                %853 = vst [vmem:[%s839 + $0x60] sm:$0xff] %v852
                %v854 = vld [vmem:[%s838 + $0x38] sm:$0xff]
                %855 = vst [vmem:[%s839 + $0x68] sm:$0xff] %v854
                %v856 = vld [vmem:[%s838 + $0x40] sm:$0xff]
                %857 = vst [vmem:[%s839 + $0x80] sm:$0xff] %v856
                %v858 = vld [vmem:[%s838 + $0x48] sm:$0xff]
                %859 = vst [vmem:[%s839 + $0x88] sm:$0xff] %v858
                %v860 = vld [vmem:[%s838 + $0x50] sm:$0xff]
                %861 = vst [vmem:[%s839 + $0xa0] sm:$0xff] %v860
                %v862 = vld [vmem:[%s838 + $0x58] sm:$0xff]
                %863 = vst [vmem:[%s839 + $0xa8] sm:$0xff] %v862
                %v864 = vld [vmem:[%s838 + $0x60] sm:$0xff]
                %865 = vst [vmem:[%s839 + $0xc0] sm:$0xff] %v864
                %v866 = vld [vmem:[%s838 + $0x68] sm:$0xff]
                %867 = vst [vmem:[%s839 + $0xc8] sm:$0xff] %v866
                %v868 = vld [vmem:[%s838 + $0x70] sm:$0xff]
                %869 = vst [vmem:[%s839 + $0xe0] sm:$0xff] %v868
                %v870 = vld [vmem:[%s838 + $0x78] sm:$0xff]
                %871 = vst [vmem:[%s839 + $0xe8] sm:$0xff] %v870
                %v872 = vld [vmem:[%s838 + $0x80] sm:$0xff]
                %873 = vst [vmem:[%s839 + $0x100] sm:$0xff] %v872
                %v874 = vld [vmem:[%s838 + $0x88] sm:$0xff]
                %875 = vst [vmem:[%s839 + $0x108] sm:$0xff] %v874
                %v876 = vld [vmem:[%s838 + $0x90] sm:$0xff]
                %877 = vst [vmem:[%s839 + $0x120] sm:$0xff] %v876
                %v878 = vld [vmem:[%s838 + $0x98] sm:$0xff]
                %879 = vst [vmem:[%s839 + $0x128] sm:$0xff] %v878
                %v880 = vld [vmem:[%s838 + $0xa0] sm:$0xff]
                %881 = vst [vmem:[%s839 + $0x140] sm:$0xff] %v880
                %v882 = vld [vmem:[%s838 + $0xa8] sm:$0xff]
                %883 = vst [vmem:[%s839 + $0x148] sm:$0xff] %v882
                %v884 = vld [vmem:[%s838 + $0xb0] sm:$0xff]
                %885 = vst [vmem:[%s839 + $0x160] sm:$0xff] %v884
                %v886 = vld [vmem:[%s838 + $0xb8] sm:$0xff]
                %887 = vst [vmem:[%s839 + $0x168] sm:$0xff] %v886
                %v888 = vld [vmem:[%s838 + $0xc0] sm:$0xff]
                %889 = vst [vmem:[%s839 + $0x180] sm:$0xff] %v888
                %v890 = vld [vmem:[%s838 + $0xc8] sm:$0xff]
                %891 = vst [vmem:[%s839 + $0x188] sm:$0xff] %v890
                %v892 = vld [vmem:[%s838 + $0xd0] sm:$0xff]
                %893 = vst [vmem:[%s839 + $0x1a0] sm:$0xff] %v892
                %v894 = vld [vmem:[%s838 + $0xd8] sm:$0xff]
                %895 = vst [vmem:[%s839 + $0x1a8] sm:$0xff] %v894
                %v896 = vld [vmem:[%s838 + $0xe0] sm:$0xff]
                %897 = vst [vmem:[%s839 + $0x1c0] sm:$0xff] %v896
                %v898 = vld [vmem:[%s838 + $0xe8] sm:$0xff]
                %899 = vst [vmem:[%s839 + $0x1c8] sm:$0xff] %v898
                %v900 = vld [vmem:[%s838 + $0xf0] sm:$0xff]
                %901 = vst [vmem:[%s839 + $0x1e0] sm:$0xff] %v900
                %v902 = vld [vmem:[%s838 + $0xf8] sm:$0xff]
                %903 = vst [vmem:[%s839 + $0x1e8] sm:$0xff] %v902
              $region91: #{gpt_forward.22} parent=85 // loop_footer
                %s837 = sadd.s32 1, %s833
              $region92: #{gpt_forward.22} parent=85 // loop_footer_branch
                %832 = sbr.rel target = $region88
              $region93: #{gpt_forward.22} parent=85 // loop_exit
                _
            $region86: #{gpt_forward.22} parent=81 // pred_fallthru
              _
            // Predicated region
            $region94: #{gpt_forward.22} parent=81 // pred_check
              _
            $region95: #{gpt_forward.22} parent=81 // pred_check_branch
              %905 = sbr.rel target = $region97
            $region96: #{gpt_forward.22} parent=81 // pred_region
              _
            $region97: #{gpt_forward.22} parent=81 // pred_fallthru
              _
          $region82: #{gpt_forward.22} parent=77 // pred_fallthru
            _
          %906 = vnop
        $region78: #{gpt_forward.22} parent=69 // pred_fallthru
          _
      $region70: #{gpt_forward.22} parent=5 // pred_fallthru
        _
      %p907 = scmp.le.s32.totalorder 2, %s10
      // Predicated region
      $region98: #{gpt_forward.22} parent=5 // pred_check
        %p908 = pneg %p907
      $region99: #{gpt_forward.22} parent=5 // pred_check_branch
        %910 = sbr.rel (%p908) target = $region101
      $region100: #{gpt_forward.22} parent=5 // pred_region
        %s911 = ssub.s32 %s10, 2
        // Predicated region
        $region102: #{gpt_forward.22} parent=100 // pred_check
          %p912 = pneg %p147
        $region103: #{gpt_forward.22} parent=100 // pred_check_branch
          %914 = sbr.rel (%p912) target = $region105
        $region104: #{gpt_forward.22} parent=100 // pred_region
          %s915 = sand.u32 %s132, 1
          %s916 = sand.u32 %s132, 1
          %s917 = smul.addr %s916, 256
          %s918 = scalar_lea.vmem [#allocation3], %s917
        $region105: #{gpt_forward.22} parent=100 // pred_fallthru
          _
      $region101: #{gpt_forward.22} parent=5 // pred_fallthru
        _
    $region6: #{gpt_forward.22} parent=1 // loop_footer
      %s14 = sadd.s32 1, %s10
    $region7: #{gpt_forward.22} parent=1 // loop_footer_branch
      %9 = sbr.rel target = $region3
    $region8: #{gpt_forward.22} parent=1 // loop_exit
      _

// kernel: gpt_forward.16
$region0: #{gpt_forward.16}
  #allocation0 [shape = 'u32[]', space=smem, size = 0x4, offset = 0x4, fixed_abs, tag = 'smem constant byte address 0x4 - core index']
  #allocation1 [shape = 'u32[144,128]{1,0:T(1,128)}', space=vmem, size = 0x12000, scoped, tag = 'internal scratch']
  %s0 = inlined_call_operand.vmem [shape: bf16[128,512], index: 0, kind: input, shape index: {}]
  %s1 = inlined_call_operand.vmem [shape: bf16[512,128], index: 1, kind: input, shape index: {}]
  %s2 = inlined_call_operand.vmem [shape: f32[1,128], index: 2, kind: input, shape index: {}]
  %s3 = inlined_call_operand.vmem [shape: f32[128,128], index: 3, kind: input, shape index: {}]
  %s4 = inlined_call_operand.vmem [shape: f32[128,128], index: 4, kind: output, shape index: {}]
  %s5 = sld [smem:[#allocation0]]
  $region26: #{gpt_forward.16} parent=0
    _
  %s7 = ssub.s32 1, %s5
  %s8 = scalar_select 0, %s7, %s5
  // Predicated region
  $region2: #{gpt_forward.16} parent=0 // pred_check
    _
  $region3: #{gpt_forward.16} parent=0 // pred_check_branch
    %10 = sbr.rel (0) target = $region5
  $region4: #{gpt_forward.16} parent=0 // pred_region
    _
  $region5: #{gpt_forward.16} parent=0 // pred_fallthru
    _
  // Predicated region
  $region6: #{gpt_forward.16} parent=0 // pred_check
    _
  $region7: #{gpt_forward.16} parent=0 // pred_check_branch
    %12 = sbr.rel (0) target = $region9
  $region8: #{gpt_forward.16} parent=0 // pred_region
    _
  $region9: #{gpt_forward.16} parent=0 // pred_fallthru
    _
  // Predicated region
  $region10: #{gpt_forward.16} parent=0 // pred_check
    _
  $region11: #{gpt_forward.16} parent=0 // pred_check_branch
    %14 = sbr.rel (0) target = $region13
  $region12: #{gpt_forward.16} parent=0 // pred_region
    _
  $region13: #{gpt_forward.16} parent=0 // pred_fallthru
    _
  // Predicated region
  $region14: #{gpt_forward.16} parent=0 // pred_check
    _
  $region15: #{gpt_forward.16} parent=0 // pred_check_branch
    %16 = sbr.rel (0) target = $region17
  $region16: #{gpt_forward.16} parent=0 // pred_region
    _
  $region17: #{gpt_forward.16} parent=0 // pred_fallthru
    _
  %v18 = vld [vmem:[%s0] sm:$0xff]
  %v19 = vld [vmem:[%s0 + $0x8] sm:$0xff]
  %v20 = vld [vmem:[%s0 + $0x10] sm:$0xff]
  %v21 = vld [vmem:[%s0 + $0x18] sm:$0xff]
  %v22 = vld [vmem:[%s0 + $0x20] sm:$0xff]
  %v23 = vld [vmem:[%s0 + $0x28] sm:$0xff]
  %v24 = vld [vmem:[%s0 + $0x30] sm:$0xff]
  %v25 = vld [vmem:[%s0 + $0x38] sm:$0xff]
  %v26 = vld [vmem:[%s0 + $0x40] sm:$0xff]
  %v27 = vld [vmem:[%s0 + $0x48] sm:$0xff]
  %v28 = vld [vmem:[%s0 + $0x50] sm:$0xff]
  %v29 = vld [vmem:[%s0 + $0x58] sm:$0xff]
  %v30 = vld [vmem:[%s0 + $0x60] sm:$0xff]
  %v31 = vld [vmem:[%s0 + $0x68] sm:$0xff]
  %v32 = vld [vmem:[%s0 + $0x70] sm:$0xff]
  %v33 = vld [vmem:[%s0 + $0x78] sm:$0xff]
  %v34 = vld [vmem:[%s0 + $0x80] sm:$0xff]
  %v35 = vld [vmem:[%s0 + $0x88] sm:$0xff]
  %v36 = vld [vmem:[%s0 + $0x90] sm:$0xff]
  %v37 = vld [vmem:[%s0 + $0x98] sm:$0xff]
  %v38 = vld [vmem:[%s0 + $0xa0] sm:$0xff]
  %v39 = vld [vmem:[%s0 + $0xa8] sm:$0xff]
  %v40 = vld [vmem:[%s0 + $0xb0] sm:$0xff]
  %v41 = vld [vmem:[%s0 + $0xb8] sm:$0xff]
  %v42 = vld [vmem:[%s0 + $0xc0] sm:$0xff]
  %v43 = vld [vmem:[%s0 + $0xc8] sm:$0xff]
  %v44 = vld [vmem:[%s0 + $0xd0] sm:$0xff]
  %v45 = vld [vmem:[%s0 + $0xd8] sm:$0xff]
  %v46 = vld [vmem:[%s0 + $0xe0] sm:$0xff]
  %v47 = vld [vmem:[%s0 + $0xe8] sm:$0xff]
  %v48 = vld [vmem:[%s0 + $0xf0] sm:$0xff]
  %v49 = vld [vmem:[%s0 + $0xf8] sm:$0xff]
  %v50 = vld [vmem:[%s1] sm:$0xf]
  %v51 = vld [vmem:[%s1 + $0x4] sm:$0xf]
  %v52 = vld [vmem:[%s1 + $0x8] sm:$0xf]
  %v53 = vld [vmem:[%s1 + $0xc] sm:$0xf]
  %v54 = vld [vmem:[%s1 + $0x10] sm:$0xf]
  %v55 = vld [vmem:[%s1 + $0x14] sm:$0xf]
  %v56 = vld [vmem:[%s1 + $0x18] sm:$0xf]
  %v57 = vld [vmem:[%s1 + $0x1c] sm:$0xf]
  %v58 = vld [vmem:[%s1 + $0x20] sm:$0xf]
  %v59 = vld [vmem:[%s1 + $0x24] sm:$0xf]
  %v60 = vld [vmem:[%s1 + $0x28] sm:$0xf]
  %v61 = vld [vmem:[%s1 + $0x2c] sm:$0xf]
  %v62 = vld [vmem:[%s1 + $0x30] sm:$0xf]
  %v63 = vld [vmem:[%s1 + $0x34] sm:$0xf]
  %v64 = vld [vmem:[%s1 + $0x38] sm:$0xf]
  %v65 = vld [vmem:[%s1 + $0x3c] sm:$0xf]
  %v66 = vld [vmem:[%s1 + $0x40] sm:$0xf]
  %v67 = vld [vmem:[%s1 + $0x44] sm:$0xf]
  %v68 = vld [vmem:[%s1 + $0x48] sm:$0xf]
  %v69 = vld [vmem:[%s1 + $0x4c] sm:$0xf]
  %v70 = vld [vmem:[%s1 + $0x50] sm:$0xf]
  %v71 = vld [vmem:[%s1 + $0x54] sm:$0xf]
  %v72 = vld [vmem:[%s1 + $0x58] sm:$0xf]
  %v73 = vld [vmem:[%s1 + $0x5c] sm:$0xf]
  %v74 = vld [vmem:[%s1 + $0x60] sm:$0xf]
  %v75 = vld [vmem:[%s1 + $0x64] sm:$0xf]
  %v76 = vld [vmem:[%s1 + $0x68] sm:$0xf]
  %v77 = vld [vmem:[%s1 + $0x6c] sm:$0xf]
  %v78 = vld [vmem:[%s1 + $0x70] sm:$0xf]
  %v79 = vld [vmem:[%s1 + $0x74] sm:$0xf]
  %v80 = vld [vmem:[%s1 + $0x78] sm:$0xf]
  %v81 = vld [vmem:[%s1 + $0x7c] sm:$0xf]
  %v82 = vld [vmem:[%s1 + $0x80] sm:$0xf]
  %v83 = vld [vmem:[%s1 + $0x84] sm:$0xf]
  %v84 = vld [vmem:[%s1 + $0x88] sm:$0xf]
  %v85 = vld [vmem:[%s1 + $0x8c] sm:$0xf]
  %v86 = vld [vmem:[%s1 + $0x90] sm:$0xf]
  %v87 = vld [vmem:[%s1 + $0x94] sm:$0xf]
  %v88 = vld [vmem:[%s1 + $0x98] sm:$0xf]
  %v89 = vld [vmem:[%s1 + $0x9c] sm:$0xf]
  %v90 = vld [vmem:[%s1 + $0xa0] sm:$0xf]
  %v91 = vld [vmem:[%s1 + $0xa4] sm:$0xf]
  %v92 = vld [vmem:[%s1 + $0xa8] sm:$0xf]
  %v93 = vld [vmem:[%s1 + $0xac] sm:$0xf]
  %v94 = vld [vmem:[%s1 + $0xb0] sm:$0xf]
  %v95 = vld [vmem:[%s1 + $0xb4] sm:$0xf]
  %v96 = vld [vmem:[%s1 + $0xb8] sm:$0xf]
  %v97 = vld [vmem:[%s1 + $0xbc] sm:$0xf]
  %v98 = vld [vmem:[%s1 + $0xc0] sm:$0xf]
  %v99 = vld [vmem:[%s1 + $0xc4] sm:$0xf]
  %v100 = vld [vmem:[%s1 + $0xc8] sm:$0xf]
  %v101 = vld [vmem:[%s1 + $0xcc] sm:$0xf]
  %v102 = vld [vmem:[%s1 + $0xd0] sm:$0xf]
  %v103 = vld [vmem:[%s1 + $0xd4] sm:$0xf]
  %v104 = vld [vmem:[%s1 + $0xd8] sm:$0xf]
  %v105 = vld [vmem:[%s1 + $0xdc] sm:$0xf]
  %v106 = vld [vmem:[%s1 + $0xe0] sm:$0xf]
  %v107 = vld [vmem:[%s1 + $0xe4] sm:$0xf]
  %v108 = vld [vmem:[%s1 + $0xe8] sm:$0xf]
  %v109 = vld [vmem:[%s1 + $0xec] sm:$0xf]
  %v110 = vld [vmem:[%s1 + $0xf0] sm:$0xf]
  %v111 = vld [vmem:[%s1 + $0xf4] sm:$0xf]
  %v112 = vld [vmem:[%s1 + $0xf8] sm:$0xf]
  %v113 = vld [vmem:[%s1 + $0xfc] sm:$0xf]
  %v114 = vld [vmem:[%s2] sm:$0x1]
  %v116 = vlaneseq
  %v117 = vshrl.u32 %v116, 7
  %v118 = vsub.s32 0, %v117
  %v119 = vrot.slane %v114, %v118
  %v153 = vunpack.c.l.b16 %v18
  %v154 = vunpack.c.h.b16 %v18
  %v155 = vunpack.c.l.b16 %v19
  %v156 = vunpack.c.h.b16 %v19
  %v157 = vunpack.c.l.b16 %v20
  %v158 = vunpack.c.h.b16 %v20
  %v159 = vunpack.c.l.b16 %v21
  %v160 = vunpack.c.h.b16 %v21
  %v161 = vunpack.c.l.b16 %v22
  %v162 = vunpack.c.h.b16 %v22
  %v163 = vunpack.c.l.b16 %v23
  %v164 = vunpack.c.h.b16 %v23
  %v165 = vunpack.c.l.b16 %v24
  %v166 = vunpack.c.h.b16 %v24
  %v167 = vunpack.c.l.b16 %v25
  %v168 = vunpack.c.h.b16 %v25
  %v169 = vunpack.c.l.b16 %v26
  %v170 = vunpack.c.h.b16 %v26
  %v171 = vunpack.c.l.b16 %v27
  %v172 = vunpack.c.h.b16 %v27
  %v173 = vunpack.c.l.b16 %v28
  %v174 = vunpack.c.h.b16 %v28
  %v175 = vunpack.c.l.b16 %v29
  %v176 = vunpack.c.h.b16 %v29
  %v177 = vunpack.c.l.b16 %v30
  %v178 = vunpack.c.h.b16 %v30
  %v179 = vunpack.c.l.b16 %v31
  %v180 = vunpack.c.h.b16 %v31
  %v181 = vunpack.c.l.b16 %v32
  %v182 = vunpack.c.h.b16 %v32
  %v183 = vunpack.c.l.b16 %v33
  %v184 = vunpack.c.h.b16 %v33
  %v185 = vunpack.c.l.b16 %v34
  %v186 = vunpack.c.h.b16 %v34
  %v187 = vunpack.c.l.b16 %v35
  %v188 = vunpack.c.h.b16 %v35
  %v189 = vunpack.c.l.b16 %v36
  %v190 = vunpack.c.h.b16 %v36
  %v191 = vunpack.c.l.b16 %v37
  %v192 = vunpack.c.h.b16 %v37
  %v193 = vunpack.c.l.b16 %v38
  %v194 = vunpack.c.h.b16 %v38
  %v195 = vunpack.c.l.b16 %v39
  %v196 = vunpack.c.h.b16 %v39
  %v197 = vunpack.c.l.b16 %v40
  %v198 = vunpack.c.h.b16 %v40
  %v199 = vunpack.c.l.b16 %v41
  %v200 = vunpack.c.h.b16 %v41
  %v201 = vunpack.c.l.b16 %v42
  %v202 = vunpack.c.h.b16 %v42
  %v203 = vunpack.c.l.b16 %v43
  %v204 = vunpack.c.h.b16 %v43
  %v205 = vunpack.c.l.b16 %v44
  %v206 = vunpack.c.h.b16 %v44
  %v207 = vunpack.c.l.b16 %v45
  %v208 = vunpack.c.h.b16 %v45
  %v209 = vunpack.c.l.b16 %v46
  %v210 = vunpack.c.h.b16 %v46
  %v211 = vunpack.c.l.b16 %v47
  %v212 = vunpack.c.h.b16 %v47
  %v213 = vunpack.c.l.b16 %v48
  %v214 = vunpack.c.h.b16 %v48
  %v215 = vunpack.c.l.b16 %v49
  %v216 = vunpack.c.h.b16 %v49
  %v217 = vpack.c.b16 %v157, %v153
  %v218 = vpack.c.b16 %v158, %v154
  %v219 = vpack.c.b16 %v159, %v155
  %v220 = vpack.c.b16 %v160, %v156
  %v221 = vpack.c.b16 %v165, %v161
  %v222 = vpack.c.b16 %v166, %v162
  %v223 = vpack.c.b16 %v167, %v163
  %v224 = vpack.c.b16 %v168, %v164
  %v225 = vpack.c.b16 %v173, %v169
  %v226 = vpack.c.b16 %v174, %v170
  %v227 = vpack.c.b16 %v175, %v171
  %v228 = vpack.c.b16 %v176, %v172
  %v229 = vpack.c.b16 %v181, %v177
  %v230 = vpack.c.b16 %v182, %v178
  %v231 = vpack.c.b16 %v183, %v179
  %v232 = vpack.c.b16 %v184, %v180
  %v233 = vpack.c.b16 %v189, %v185
  %v234 = vpack.c.b16 %v190, %v186
  %v235 = vpack.c.b16 %v191, %v187
  %v236 = vpack.c.b16 %v192, %v188
  %v237 = vpack.c.b16 %v197, %v193
  %v238 = vpack.c.b16 %v198, %v194
  %v239 = vpack.c.b16 %v199, %v195
  %v240 = vpack.c.b16 %v200, %v196
  %v241 = vpack.c.b16 %v205, %v201
  %v242 = vpack.c.b16 %v206, %v202
  %v243 = vpack.c.b16 %v207, %v203
  %v244 = vpack.c.b16 %v208, %v204
  %v245 = vpack.c.b16 %v213, %v209
  %v246 = vpack.c.b16 %v214, %v210
  %v247 = vpack.c.b16 %v215, %v211
  %v248 = vpack.c.b16 %v216, %v212
  %v345 = vunpack.c.l.b16 %v50
  %v346 = vunpack.c.l.b16 %v51
  %v347 = vunpack.c.l.b16 %v52
  %v348 = vunpack.c.l.b16 %v53
  %v349 = vunpack.c.l.b16 %v54
  %v350 = vunpack.c.l.b16 %v55
  %v351 = vunpack.c.l.b16 %v56
  %v352 = vunpack.c.l.b16 %v57
  %v353 = vunpack.c.l.b16 %v58
  %v354 = vunpack.c.l.b16 %v59
  %v355 = vunpack.c.l.b16 %v60
  %v356 = vunpack.c.l.b16 %v61
  %v357 = vunpack.c.l.b16 %v62
  %v358 = vunpack.c.l.b16 %v63
  %v359 = vunpack.c.l.b16 %v64
  %v360 = vunpack.c.l.b16 %v65
  %v361 = vunpack.c.l.b16 %v66
  %v362 = vunpack.c.l.b16 %v67
  %v363 = vunpack.c.l.b16 %v68
  %v364 = vunpack.c.l.b16 %v69
  %v365 = vunpack.c.l.b16 %v70
  %v366 = vunpack.c.l.b16 %v71
  %v367 = vunpack.c.l.b16 %v72
  %v368 = vunpack.c.l.b16 %v73
  %v369 = vunpack.c.l.b16 %v74
  %v370 = vunpack.c.l.b16 %v75
  %v371 = vunpack.c.l.b16 %v76
  %v372 = vunpack.c.l.b16 %v77
  %v373 = vunpack.c.l.b16 %v78
  %v374 = vunpack.c.l.b16 %v79
  %v375 = vunpack.c.l.b16 %v80
  %v376 = vunpack.c.l.b16 %v81
  %v377 = vunpack.c.l.b16 %v82
  %v378 = vunpack.c.l.b16 %v83
  %v379 = vunpack.c.l.b16 %v84
  %v380 = vunpack.c.l.b16 %v85
  %v381 = vunpack.c.l.b16 %v86
  %v382 = vunpack.c.l.b16 %v87
  %v383 = vunpack.c.l.b16 %v88
  %v384 = vunpack.c.l.b16 %v89
  %v385 = vunpack.c.l.b16 %v90
  %v386 = vunpack.c.l.b16 %v91
  %v387 = vunpack.c.l.b16 %v92
  %v388 = vunpack.c.l.b16 %v93
  %v389 = vunpack.c.l.b16 %v94
  %v390 = vunpack.c.l.b16 %v95
  %v391 = vunpack.c.l.b16 %v96
  %v392 = vunpack.c.l.b16 %v97
  %v393 = vunpack.c.l.b16 %v98
  %v394 = vunpack.c.l.b16 %v99
  %v395 = vunpack.c.l.b16 %v100
  %v396 = vunpack.c.l.b16 %v101
  %v397 = vunpack.c.l.b16 %v102
  %v398 = vunpack.c.l.b16 %v103
  %v399 = vunpack.c.l.b16 %v104
  %v400 = vunpack.c.l.b16 %v105
  %v401 = vunpack.c.l.b16 %v106
  %v402 = vunpack.c.l.b16 %v107
  %v403 = vunpack.c.l.b16 %v108
  %v404 = vunpack.c.l.b16 %v109
  %v405 = vunpack.c.l.b16 %v110
  %v406 = vunpack.c.l.b16 %v111
  %v407 = vunpack.c.l.b16 %v112
  %v408 = vunpack.c.l.b16 %v113
  %v409 = vpack.c.b16 %v346, %v345
  %v410 = vpack.c.b16 %v348, %v347
  %v411 = vpack.c.b16 %v350, %v349
  %v412 = vpack.c.b16 %v352, %v351
  %v413 = vpack.c.b16 %v354, %v353
  %v414 = vpack.c.b16 %v356, %v355
  %v415 = vpack.c.b16 %v358, %v357
  %v416 = vpack.c.b16 %v360, %v359
  %v417 = vpack.c.b16 %v362, %v361
  %v418 = vpack.c.b16 %v364, %v363
  %v419 = vpack.c.b16 %v366, %v365
  %v420 = vpack.c.b16 %v368, %v367
  %v421 = vpack.c.b16 %v370, %v369
  %v422 = vpack.c.b16 %v372, %v371
  %v423 = vpack.c.b16 %v374, %v373
  %v424 = vpack.c.b16 %v376, %v375
  %v425 = vpack.c.b16 %v378, %v377
  %v426 = vpack.c.b16 %v380, %v379
  %v427 = vpack.c.b16 %v382, %v381
  %v428 = vpack.c.b16 %v384, %v383
  %v429 = vpack.c.b16 %v386, %v385
  %v430 = vpack.c.b16 %v388, %v387
  %v431 = vpack.c.b16 %v390, %v389
  %v432 = vpack.c.b16 %v392, %v391
  %v433 = vpack.c.b16 %v394, %v393
  %v434 = vpack.c.b16 %v396, %v395
  %v435 = vpack.c.b16 %v398, %v397
  %v436 = vpack.c.b16 %v400, %v399
  %v437 = vpack.c.b16 %v402, %v401
  %v438 = vpack.c.b16 %v404, %v403
  %v439 = vpack.c.b16 %v406, %v405
  %v440 = vpack.c.b16 %v408, %v407
  %473 = vmatprep.subr.bf16.mxu0 0
  %474 = vmatpush1.bf16.msra.mxu0 %v409
  %475 = vmatprep.subr.bf16.mxu0 0
  %476 = vmatpush1.bf16.msra.mxu0 %v410
  %477 = vmatprep.subr.bf16.mxu0 0
  %478 = vmatpush1.bf16.msra.mxu0 %v411
  %479 = vmatprep.subr.bf16.mxu0 0
  %480 = vmatpush1.bf16.msra.mxu0 %v412
  %481 = vmatprep.subr.bf16.mxu0 0
  %482 = vmatpush1.bf16.msra.mxu0 %v413
  %483 = vmatprep.subr.bf16.mxu0 0
  %484 = vmatpush1.bf16.msra.mxu0 %v414
  %485 = vmatprep.subr.bf16.mxu0 0
  %486 = vmatpush1.bf16.msra.mxu0 %v415
  %487 = vmatprep.subr.bf16.mxu0 0
  %488 = vmatpush1.bf16.msra.mxu0 %v416
  %489 = vmatprep.subr.bf16.mxu0 0
  %490 = vmatpush1.bf16.msra.mxu0 %v417
  %491 = vmatprep.subr.bf16.mxu0 0
  %492 = vmatpush1.bf16.msra.mxu0 %v418
  %493 = vmatprep.subr.bf16.mxu0 0
  %494 = vmatpush1.bf16.msra.mxu0 %v419
  %495 = vmatprep.subr.bf16.mxu0 0
  %496 = vmatpush1.bf16.msra.mxu0 %v420
  %497 = vmatprep.subr.bf16.mxu0 0
  %498 = vmatpush1.bf16.msra.mxu0 %v421
  %499 = vmatprep.subr.bf16.mxu0 0
  %500 = vmatpush1.bf16.msra.mxu0 %v422
  %501 = vmatprep.subr.bf16.mxu0 0
  %502 = vmatpush1.bf16.msra.mxu0 %v423
  %503 = vmatprep.subr.bf16.mxu0 0
  %504 = vmatpush1.bf16.msra.mxu0 %v424
  %505 = vmatprep.mubr.bf16.mxu0 %v218
  %506 = vmatmul.mubr.bf16.gmra.mrb[0].mxu0 %v217
  %v507 = vpop.f32.mrb[0].mxu0
  %v508 = vadd.f32 %v119, %v507
  %v509 = vpop.f32.mrb[0].mxu0
  %v510 = vpop.f32.mrb[0].mxu0
  %v511 = vadd.f32 %v119, %v510
  %v512 = vpop.f32.mrb[0].mxu0
  %513 = vmatprep.mubr.bf16.mxu0 %v222
  %514 = vmatmul.mubr.bf16.gmra.mrb[0].mxu0 %v221
  %v515 = vpop.f32.mrb[0].mxu0
  %v516 = vadd.f32 %v119, %v515
  %v517 = vpop.f32.mrb[0].mxu0
  %v518 = vpop.f32.mrb[0].mxu0
  %v519 = vadd.f32 %v119, %v518
  %v520 = vpop.f32.mrb[0].mxu0
  %521 = vmatprep.mubr.bf16.mxu0 %v226
  %522 = vmatmul.mubr.bf16.gmra.mrb[0].mxu0 %v225
  %v523 = vpop.f32.mrb[0].mxu0
  %v524 = vadd.f32 %v119, %v523
  %v525 = vpop.f32.mrb[0].mxu0
  %v526 = vpop.f32.mrb[0].mxu0
  %v527 = vadd.f32 %v119, %v526
  %v528 = vpop.f32.mrb[0].mxu0
  %529 = vmatprep.mubr.bf16.mxu0 %v230
  %530 = vmatmul.mubr.bf16.gmra.mrb[0].mxu0 %v229
  %v531 = vpop.f32.mrb[0].mxu0
  %v532 = vadd.f32 %v119, %v531
  %v533 = vpop.f32.mrb[0].mxu0
  %v534 = vpop.f32.mrb[0].mxu0
  %v535 = vadd.f32 %v119, %v534
  %v536 = vpop.f32.mrb[0].mxu0
  %537 = vmatprep.mubr.bf16.mxu0 %v234
  %538 = vmatmul.mubr.bf16.gmra.mrb[0].mxu0 %v233
  %v539 = vpop.f32.mrb[0].mxu0
  %v540 = vadd.f32 %v119, %v539
  %v541 = vpop.f32.mrb[0].mxu0
  %v542 = vpop.f32.mrb[0].mxu0
  %v543 = vadd.f32 %v119, %v542
  %v544 = vpop.f32.mrb[0].mxu0
  %545 = vmatprep.mubr.bf16.mxu0 %v238
  %546 = vmatmul.mubr.bf16.gmra.mrb[0].mxu0 %v237
  %v547 = vpop.f32.mrb[0].mxu0
  %v548 = vadd.f32 %v119, %v547
  %v549 = vpop.f32.mrb[0].mxu0
  %v550 = vpop.f32.mrb[0].mxu0
  %v551 = vadd.f32 %v119, %v550
  %v552 = vpop.f32.mrb[0].mxu0
  %553 = vmatprep.mubr.bf16.mxu0 %v242
  %554 = vmatmul.mubr.bf16.gmra.mrb[0].mxu0 %v241
  %v555 = vpop.f32.mrb[0].mxu0
  %v556 = vadd.f32 %v119, %v555
  %v557 = vpop.f32.mrb[0].mxu0
  %v558 = vpop.f32.mrb[0].mxu0
  %v559 = vadd.f32 %v119, %v558
  %v560 = vpop.f32.mrb[0].mxu0
  %561 = vmatprep.mubr.bf16.mxu0 %v246
  %562 = vmatmul.mubr.bf16.gmra.mrb[0].mxu0 %v245
  %v563 = vpop.f32.mrb[0].mxu0
  %v564 = vadd.f32 %v119, %v563
  %v565 = vpop.f32.mrb[0].mxu0
  %v566 = vpop.f32.mrb[0].mxu0
  %v567 = vadd.f32 %v119, %v566
  %v568 = vpop.f32.mrb[0].mxu0
  %569 = vdwg.mxu0
  %570 = vmatprep.subr.bf16.mxu0 0
  %571 = vmatpush1.bf16.msra.mxu0 %v425
  %572 = vmatprep.subr.bf16.mxu0 0
  %573 = vmatpush1.bf16.msra.mxu0 %v426
  %574 = vmatprep.subr.bf16.mxu0 0
  %575 = vmatpush1.bf16.msra.mxu0 %v427
  %576 = vmatprep.subr.bf16.mxu0 0
  %577 = vmatpush1.bf16.msra.mxu0 %v428
  %578 = vmatprep.subr.bf16.mxu0 0
  %579 = vmatpush1.bf16.msra.mxu0 %v429
  %580 = vmatprep.subr.bf16.mxu0 0
  %581 = vmatpush1.bf16.msra.mxu0 %v430
  %582 = vmatprep.subr.bf16.mxu0 0
  %583 = vmatpush1.bf16.msra.mxu0 %v431
  %584 = vmatprep.subr.bf16.mxu0 0
  %585 = vmatpush1.bf16.msra.mxu0 %v432
  %586 = vmatprep.subr.bf16.mxu0 0
  %587 = vmatpush1.bf16.msra.mxu0 %v433
  %588 = vmatprep.subr.bf16.mxu0 0
  %589 = vmatpush1.bf16.msra.mxu0 %v434
  %590 = vmatprep.subr.bf16.mxu0 0
  %591 = vmatpush1.bf16.msra.mxu0 %v435
  %592 = vmatprep.subr.bf16.mxu0 0
  %593 = vmatpush1.bf16.msra.mxu0 %v436
  %594 = vmatprep.subr.bf16.mxu0 0
  %595 = vmatpush1.bf16.msra.mxu0 %v437
  %596 = vmatprep.subr.bf16.mxu0 0
  %597 = vmatpush1.bf16.msra.mxu0 %v438
  %598 = vmatprep.subr.bf16.mxu0 0
  %599 = vmatpush1.bf16.msra.mxu0 %v439
  %600 = vmatprep.subr.bf16.mxu0 0
  %601 = vmatpush1.bf16.msra.mxu0 %v440
  %602 = vmatprep.mubr.bf16.mxu0 %v220
  %603 = vmatmul.mubr.bf16.gmra.mrb[0].mxu0 %v219
  %v604 = vpop.f32.mrb[0].mxu0
  %v605 = vadd.f32 %v508, %v604
  %v606 = vpop.f32.mrb[0].mxu0
  %v607 = vpop.f32.mrb[0].mxu0
  %v608 = vadd.f32 %v511, %v607
  %v609 = vpop.f32.mrb[0].mxu0
  %610 = vmatprep.mubr.bf16.mxu0 %v224
  %611 = vmatmul.mubr.bf16.gmra.mrb[0].mxu0 %v223
  %v612 = vpop.f32.mrb[0].mxu0
  %v613 = vadd.f32 %v516, %v612
  %v614 = vpop.f32.mrb[0].mxu0
  %v615 = vpop.f32.mrb[0].mxu0
  %v616 = vadd.f32 %v519, %v615
  %v617 = vpop.f32.mrb[0].mxu0
  %618 = vmatprep.mubr.bf16.mxu0 %v228
  %619 = vmatmul.mubr.bf16.gmra.mrb[0].mxu0 %v227
  %v620 = vpop.f32.mrb[0].mxu0
  %v621 = vadd.f32 %v524, %v620
  %v622 = vpop.f32.mrb[0].mxu0
  %v623 = vpop.f32.mrb[0].mxu0
  %v624 = vadd.f32 %v527, %v623
  %v625 = vpop.f32.mrb[0].mxu0
  %626 = vmatprep.mubr.bf16.mxu0 %v232
  %627 = vmatmul.mubr.bf16.gmra.mrb[0].mxu0 %v231
  %v628 = vpop.f32.mrb[0].mxu0
  %v629 = vadd.f32 %v532, %v628
  %v630 = vpop.f32.mrb[0].mxu0
  %v631 = vpop.f32.mrb[0].mxu0
  %v632 = vadd.f32 %v535, %v631
  %v633 = vpop.f32.mrb[0].mxu0
  %634 = vmatprep.mubr.bf16.mxu0 %v236
  %635 = vmatmul.mubr.bf16.gmra.mrb[0].mxu0 %v235
  %v636 = vpop.f32.mrb[0].mxu0
  %v637 = vadd.f32 %v540, %v636
  %v638 = vpop.f32.mrb[0].mxu0
  %v639 = vpop.f32.mrb[0].mxu0
  %v640 = vadd.f32 %v543, %v639
  %v641 = vpop.f32.mrb[0].mxu0
  %642 = vmatprep.mubr.bf16.mxu0 %v240
  %643 = vmatmul.mubr.bf16.gmra.mrb[0].mxu0 %v239
  %v644 = vpop.f32.mrb[0].mxu0
  %v645 = vadd.f32 %v548, %v644
  %v646 = vpop.f32.mrb[0].mxu0
  %v647 = vpop.f32.mrb[0].mxu0
  %v648 = vadd.f32 %v551, %v647
  %v649 = vpop.f32.mrb[0].mxu0
  %650 = vmatprep.mubr.bf16.mxu0 %v244
  %651 = vmatmul.mubr.bf16.gmra.mrb[0].mxu0 %v243
  %v652 = vpop.f32.mrb[0].mxu0
  %v653 = vadd.f32 %v556, %v652
  %v654 = vpop.f32.mrb[0].mxu0
  %v655 = vpop.f32.mrb[0].mxu0
  %v656 = vadd.f32 %v559, %v655
  %v657 = vpop.f32.mrb[0].mxu0
  %658 = vmatprep.mubr.bf16.mxu0 %v248
  %659 = vmatmul.mubr.bf16.gmra.mrb[0].mxu0 %v247
  %v660 = vpop.f32.mrb[0].mxu0
  %v661 = vadd.f32 %v564, %v660
  %v662 = vpop.f32.mrb[0].mxu0
  %v663 = vpop.f32.mrb[0].mxu0
  %v664 = vadd.f32 %v567, %v663
  %v665 = vpop.f32.mrb[0].mxu0
  %666 = vdwg.mxu0
  %v667 = vld [vmem:[%s3] sm:$0xff]
  %v668 = vld [vmem:[%s3 + $0x8] sm:$0xff]
  %v669 = vld [vmem:[%s3 + $0x10] sm:$0xff]
  %v670 = vld [vmem:[%s3 + $0x18] sm:$0xff]
  %v671 = vld [vmem:[%s3 + $0x20] sm:$0xff]
  %v672 = vld [vmem:[%s3 + $0x28] sm:$0xff]
  %v673 = vld [vmem:[%s3 + $0x30] sm:$0xff]
  %v674 = vld [vmem:[%s3 + $0x38] sm:$0xff]
  %v675 = vld [vmem:[%s3 + $0x40] sm:$0xff]
  %v676 = vld [vmem:[%s3 + $0x48] sm:$0xff]
  %v677 = vld [vmem:[%s3 + $0x50] sm:$0xff]
  %v678 = vld [vmem:[%s3 + $0x58] sm:$0xff]
  %v679 = vld [vmem:[%s3 + $0x60] sm:$0xff]
  %v680 = vld [vmem:[%s3 + $0x68] sm:$0xff]
  %v681 = vld [vmem:[%s3 + $0x70] sm:$0xff]
  %v682 = vld [vmem:[%s3 + $0x78] sm:$0xff]
  %v683 = vadd.f32 %v605, %v667
  %v684 = vadd.f32 %v608, %v668
  %v685 = vadd.f32 %v613, %v669
  %v686 = vadd.f32 %v616, %v670
  %v687 = vadd.f32 %v621, %v671
  %v688 = vadd.f32 %v624, %v672
  %v689 = vadd.f32 %v629, %v673
  %v690 = vadd.f32 %v632, %v674
  %v691 = vadd.f32 %v637, %v675
  %v692 = vadd.f32 %v640, %v676
  %v693 = vadd.f32 %v645, %v677
  %v694 = vadd.f32 %v648, %v678
  %v695 = vadd.f32 %v653, %v679
  %v696 = vadd.f32 %v656, %v680
  %v697 = vadd.f32 %v661, %v681
  %v698 = vadd.f32 %v664, %v682
  %699 = vst [vmem:[%s4] sm:$0xff] %v683
  %700 = vst [vmem:[%s4 + $0x8] sm:$0xff] %v684
  %701 = vst [vmem:[%s4 + $0x10] sm:$0xff] %v685
  %702 = vst [vmem:[%s4 + $0x18] sm:$0xff] %v686
  %703 = vst [vmem:[%s4 + $0x20] sm:$0xff] %v687
  %704 = vst [vmem:[%s4 + $0x28] sm:$0xff] %v688
  %705 = vst [vmem:[%s4 + $0x30] sm:$0xff] %v689
  %706 = vst [vmem:[%s4 + $0x38] sm:$0xff] %v690
  %707 = vst [vmem:[%s4 + $0x40] sm:$0xff] %v691
  %708 = vst [vmem:[%s4 + $0x48] sm:$0xff] %v692
  %709 = vst [vmem:[%s4 + $0x50] sm:$0xff] %v693
  %710 = vst [vmem:[%s4 + $0x58] sm:$0xff] %v694
  %711 = vst [vmem:[%s4 + $0x60] sm:$0xff] %v695
  %712 = vst [vmem:[%s4 + $0x68] sm:$0xff] %v696
  %713 = vst [vmem:[%s4 + $0x70] sm:$0xff] %v697
  %714 = vst [vmem:[%s4 + $0x78] sm:$0xff] %v698
  // Predicated region
  $region18: #{gpt_forward.16} parent=0 // pred_check
    _
  $region19: #{gpt_forward.16} parent=0 // pred_check_branch
    %716 = sbr.rel (0) target = $region21
  $region20: #{gpt_forward.16} parent=0 // pred_region
    _
  $region21: #{gpt_forward.16} parent=0 // pred_fallthru
    _
  // Predicated region
  $region22: #{gpt_forward.16} parent=0 // pred_check
    _
  $region23: #{gpt_forward.16} parent=0 // pred_check_branch
    %718 = sbr.rel (0) target = $region25
  $region24: #{gpt_forward.16} parent=0 // pred_region
    _
  $region25: #{gpt_forward.16} parent=0 // pred_fallthru
    _

// kernel: gpt_forward.23
$region0: #{gpt_forward.23}
  #allocation0 [shape = 'u32[]', space=smem, size = 0x4, offset = 0x4, fixed_abs, tag = 'smem constant byte address 0x4 - core index']
  #allocation1 [shape = 'u32[144,128]{1,0:T(1,128)}', space=vmem, size = 0x12000, scoped, tag = 'internal scratch']
  %s0 = inlined_call_operand.vmem [shape: f32[128,512], index: 0, kind: input, shape index: {}]
  %s1 = inlined_call_operand.vmem [shape: s32[128,1], index: 1, kind: input, shape index: {}]
  %s2 = inlined_call_operand.vmem [shape: f32[128,1], index: 2, kind: output, shape index: {}]
  %s3 = sld [smem:[#allocation0]]
  $region18: #{gpt_forward.23} parent=0
    _
  %s5 = ssub.s32 1, %s3
  %s6 = scalar_select 0, %s5, %s3
  // Predicated region
  $region2: #{gpt_forward.23} parent=0 // pred_check
    _
  $region3: #{gpt_forward.23} parent=0 // pred_check_branch
    %8 = sbr.rel (0) target = $region5
  $region4: #{gpt_forward.23} parent=0 // pred_region
    _
  $region5: #{gpt_forward.23} parent=0 // pred_fallthru
    _
  // Predicated region
  $region6: #{gpt_forward.23} parent=0 // pred_check
    _
  $region7: #{gpt_forward.23} parent=0 // pred_check_branch
    %10 = sbr.rel (0) target = $region9
  $region8: #{gpt_forward.23} parent=0 // pred_region
    _
  $region9: #{gpt_forward.23} parent=0 // pred_fallthru
    _
  %v11 = vld [vmem:[%s0] sm:$0xff]
  %v12 = vld [vmem:[%s0 + $0x8] sm:$0xff]
  %v13 = vld [vmem:[%s0 + $0x10] sm:$0xff]
  %v14 = vld [vmem:[%s0 + $0x18] sm:$0xff]
  %v15 = vld [vmem:[%s0 + $0x20] sm:$0xff]
  %v16 = vld [vmem:[%s0 + $0x28] sm:$0xff]
  %v17 = vld [vmem:[%s0 + $0x30] sm:$0xff]
  %v18 = vld [vmem:[%s0 + $0x38] sm:$0xff]
  %v19 = vld [vmem:[%s0 + $0x40] sm:$0xff]
  %v20 = vld [vmem:[%s0 + $0x48] sm:$0xff]
  %v21 = vld [vmem:[%s0 + $0x50] sm:$0xff]
  %v22 = vld [vmem:[%s0 + $0x58] sm:$0xff]
  %v23 = vld [vmem:[%s0 + $0x60] sm:$0xff]
  %v24 = vld [vmem:[%s0 + $0x68] sm:$0xff]
  %v25 = vld [vmem:[%s0 + $0x70] sm:$0xff]
  %v26 = vld [vmem:[%s0 + $0x78] sm:$0xff]
  %v27 = vld [vmem:[%s0 + $0x80] sm:$0xff]
  %v28 = vld [vmem:[%s0 + $0x88] sm:$0xff]
  %v29 = vld [vmem:[%s0 + $0x90] sm:$0xff]
  %v30 = vld [vmem:[%s0 + $0x98] sm:$0xff]
  %v31 = vld [vmem:[%s0 + $0xa0] sm:$0xff]
  %v32 = vld [vmem:[%s0 + $0xa8] sm:$0xff]
  %v33 = vld [vmem:[%s0 + $0xb0] sm:$0xff]
  %v34 = vld [vmem:[%s0 + $0xb8] sm:$0xff]
  %v35 = vld [vmem:[%s0 + $0xc0] sm:$0xff]
  %v36 = vld [vmem:[%s0 + $0xc8] sm:$0xff]
  %v37 = vld [vmem:[%s0 + $0xd0] sm:$0xff]
  %v38 = vld [vmem:[%s0 + $0xd8] sm:$0xff]
  %v39 = vld [vmem:[%s0 + $0xe0] sm:$0xff]
  %v40 = vld [vmem:[%s0 + $0xe8] sm:$0xff]
  %v41 = vld [vmem:[%s0 + $0xf0] sm:$0xff]
  %v42 = vld [vmem:[%s0 + $0xf8] sm:$0xff]
  %v43 = vld [vmem:[%s0 + $0x100] sm:$0xff]
  %v44 = vld [vmem:[%s0 + $0x108] sm:$0xff]
  %v45 = vld [vmem:[%s0 + $0x110] sm:$0xff]
  %v46 = vld [vmem:[%s0 + $0x118] sm:$0xff]
  %v47 = vld [vmem:[%s0 + $0x120] sm:$0xff]
  %v48 = vld [vmem:[%s0 + $0x128] sm:$0xff]
  %v49 = vld [vmem:[%s0 + $0x130] sm:$0xff]
  %v50 = vld [vmem:[%s0 + $0x138] sm:$0xff]
  %v51 = vld [vmem:[%s0 + $0x140] sm:$0xff]
  %v52 = vld [vmem:[%s0 + $0x148] sm:$0xff]
  %v53 = vld [vmem:[%s0 + $0x150] sm:$0xff]
  %v54 = vld [vmem:[%s0 + $0x158] sm:$0xff]
  %v55 = vld [vmem:[%s0 + $0x160] sm:$0xff]
  %v56 = vld [vmem:[%s0 + $0x168] sm:$0xff]
  %v57 = vld [vmem:[%s0 + $0x170] sm:$0xff]
  %v58 = vld [vmem:[%s0 + $0x178] sm:$0xff]
  %v59 = vld [vmem:[%s0 + $0x180] sm:$0xff]
  %v60 = vld [vmem:[%s0 + $0x188] sm:$0xff]
  %v61 = vld [vmem:[%s0 + $0x190] sm:$0xff]
  %v62 = vld [vmem:[%s0 + $0x198] sm:$0xff]
  %v63 = vld [vmem:[%s0 + $0x1a0] sm:$0xff]
  %v64 = vld [vmem:[%s0 + $0x1a8] sm:$0xff]
  %v65 = vld [vmem:[%s0 + $0x1b0] sm:$0xff]
  %v66 = vld [vmem:[%s0 + $0x1b8] sm:$0xff]
  %v67 = vld [vmem:[%s0 + $0x1c0] sm:$0xff]
  %v68 = vld [vmem:[%s0 + $0x1c8] sm:$0xff]
  %v69 = vld [vmem:[%s0 + $0x1d0] sm:$0xff]
  %v70 = vld [vmem:[%s0 + $0x1d8] sm:$0xff]
  %v71 = vld [vmem:[%s0 + $0x1e0] sm:$0xff]
  %v72 = vld [vmem:[%s0 + $0x1e8] sm:$0xff]
  %v73 = vld [vmem:[%s0 + $0x1f0] sm:$0xff]
  %v74 = vld [vmem:[%s0 + $0x1f8] sm:$0xff]
  %v75 = vld [vmem:[%s1] sm:$0xff]
  %v76 = vld [vmem:[%s1 + $0x8] sm:$0xff]
  %v77 = vld [vmem:[%s1 + $0x10] sm:$0xff]
  %v78 = vld [vmem:[%s1 + $0x18] sm:$0xff]
  %v79 = vld [vmem:[%s1 + $0x20] sm:$0xff]
  %v80 = vld [vmem:[%s1 + $0x28] sm:$0xff]
  %v81 = vld [vmem:[%s1 + $0x30] sm:$0xff]
  %v82 = vld [vmem:[%s1 + $0x38] sm:$0xff]
  %v83 = vld [vmem:[%s1 + $0x40] sm:$0xff]
  %v84 = vld [vmem:[%s1 + $0x48] sm:$0xff]
  %v85 = vld [vmem:[%s1 + $0x50] sm:$0xff]
  %v86 = vld [vmem:[%s1 + $0x58] sm:$0xff]
  %v87 = vld [vmem:[%s1 + $0x60] sm:$0xff]
  %v88 = vld [vmem:[%s1 + $0x68] sm:$0xff]
  %v89 = vld [vmem:[%s1 + $0x70] sm:$0xff]
  %v90 = vld [vmem:[%s1 + $0x78] sm:$0xff]
  %v91 = vmax.f32 %v11, %v12
  %v92 = vmax.f32 %v91, %v13
  %v93 = vmax.f32 %v92, %v14
  %94 = vmax.xlane.f32.xlu0 %v93
  %v95 = vpop.xlane.xlu0 %94
  %v96 = vmax.f32 %v15, %v16
  %v97 = vmax.f32 %v96, %v17
  %v98 = vmax.f32 %v97, %v18
  %99 = vmax.xlane.f32.xlu0 %v98
  %v100 = vpop.xlane.xlu0 %99
  %v101 = vmax.f32 %v19, %v20
  %v102 = vmax.f32 %v101, %v21
  %v103 = vmax.f32 %v102, %v22
  %104 = vmax.xlane.f32.xlu0 %v103
  %v105 = vpop.xlane.xlu0 %104
  %v106 = vmax.f32 %v23, %v24
  %v107 = vmax.f32 %v106, %v25
  %v108 = vmax.f32 %v107, %v26
  %109 = vmax.xlane.f32.xlu0 %v108
  %v110 = vpop.xlane.xlu0 %109
  %v111 = vmax.f32 %v27, %v28
  %v112 = vmax.f32 %v111, %v29
  %v113 = vmax.f32 %v112, %v30
  %114 = vmax.xlane.f32.xlu0 %v113
  %v115 = vpop.xlane.xlu0 %114
  %v116 = vmax.f32 %v31, %v32
  %v117 = vmax.f32 %v116, %v33
  %v118 = vmax.f32 %v117, %v34
  %119 = vmax.xlane.f32.xlu0 %v118
  %v120 = vpop.xlane.xlu0 %119
  %v121 = vmax.f32 %v35, %v36
  %v122 = vmax.f32 %v121, %v37
  %v123 = vmax.f32 %v122, %v38
  %124 = vmax.xlane.f32.xlu0 %v123
  %v125 = vpop.xlane.xlu0 %124
  %v126 = vmax.f32 %v39, %v40
  %v127 = vmax.f32 %v126, %v41
  %v128 = vmax.f32 %v127, %v42
  %129 = vmax.xlane.f32.xlu0 %v128
  %v130 = vpop.xlane.xlu0 %129
  %v131 = vmax.f32 %v43, %v44
  %v132 = vmax.f32 %v131, %v45
  %v133 = vmax.f32 %v132, %v46
  %134 = vmax.xlane.f32.xlu0 %v133
  %v135 = vpop.xlane.xlu0 %134
  %v136 = vmax.f32 %v47, %v48
  %v137 = vmax.f32 %v136, %v49
  %v138 = vmax.f32 %v137, %v50
  %139 = vmax.xlane.f32.xlu0 %v138
  %v140 = vpop.xlane.xlu0 %139
  %v141 = vmax.f32 %v51, %v52
  %v142 = vmax.f32 %v141, %v53
  %v143 = vmax.f32 %v142, %v54
  %144 = vmax.xlane.f32.xlu0 %v143
  %v145 = vpop.xlane.xlu0 %144
  %v146 = vmax.f32 %v55, %v56
  %v147 = vmax.f32 %v146, %v57
  %v148 = vmax.f32 %v147, %v58
  %149 = vmax.xlane.f32.xlu0 %v148
  %v150 = vpop.xlane.xlu0 %149
  %v151 = vmax.f32 %v59, %v60
  %v152 = vmax.f32 %v151, %v61
  %v153 = vmax.f32 %v152, %v62
  %154 = vmax.xlane.f32.xlu0 %v153
  %v155 = vpop.xlane.xlu0 %154
  %v156 = vmax.f32 %v63, %v64
  %v157 = vmax.f32 %v156, %v65
  %v158 = vmax.f32 %v157, %v66
  %159 = vmax.xlane.f32.xlu0 %v158
  %v160 = vpop.xlane.xlu0 %159
  %v161 = vmax.f32 %v67, %v68
  %v162 = vmax.f32 %v161, %v69
  %v163 = vmax.f32 %v162, %v70
  %164 = vmax.xlane.f32.xlu0 %v163
  %v165 = vpop.xlane.xlu0 %164
  %v166 = vmax.f32 %v71, %v72
  %v167 = vmax.f32 %v166, %v73
  %v168 = vmax.f32 %v167, %v74
  %169 = vmax.xlane.f32.xlu0 %v168
  %v170 = vpop.xlane.xlu0 %169
  %v171 = vsub.f32 %v11, %v95
  %v172 = vsub.f32 %v12, %v95
  %v173 = vsub.f32 %v13, %v95
  %v174 = vsub.f32 %v14, %v95
  %v175 = vsub.f32 %v15, %v100
  %v176 = vsub.f32 %v16, %v100
  %v177 = vsub.f32 %v17, %v100
  %v178 = vsub.f32 %v18, %v100
  %v179 = vsub.f32 %v19, %v105
  %v180 = vsub.f32 %v20, %v105
  %v181 = vsub.f32 %v21, %v105
  %v182 = vsub.f32 %v22, %v105
  %v183 = vsub.f32 %v23, %v110
  %v184 = vsub.f32 %v24, %v110
  %v185 = vsub.f32 %v25, %v110
  %v186 = vsub.f32 %v26, %v110
  %v187 = vsub.f32 %v27, %v115
  %v188 = vsub.f32 %v28, %v115
  %v189 = vsub.f32 %v29, %v115
  %v190 = vsub.f32 %v30, %v115
  %v191 = vsub.f32 %v31, %v120
  %v192 = vsub.f32 %v32, %v120
  %v193 = vsub.f32 %v33, %v120
  %v194 = vsub.f32 %v34, %v120
  %v195 = vsub.f32 %v35, %v125
  %v196 = vsub.f32 %v36, %v125
  %v197 = vsub.f32 %v37, %v125
  %v198 = vsub.f32 %v38, %v125
  %v199 = vsub.f32 %v39, %v130
  %v200 = vsub.f32 %v40, %v130
  %v201 = vsub.f32 %v41, %v130
  %v202 = vsub.f32 %v42, %v130
  %v203 = vsub.f32 %v43, %v135
  %v204 = vsub.f32 %v44, %v135
  %v205 = vsub.f32 %v45, %v135
  %v206 = vsub.f32 %v46, %v135
  %v207 = vsub.f32 %v47, %v140
  %v208 = vsub.f32 %v48, %v140
  %v209 = vsub.f32 %v49, %v140
  %v210 = vsub.f32 %v50, %v140
  %v211 = vsub.f32 %v51, %v145
  %v212 = vsub.f32 %v52, %v145
  %v213 = vsub.f32 %v53, %v145
  %v214 = vsub.f32 %v54, %v145
  %v215 = vsub.f32 %v55, %v150
  %v216 = vsub.f32 %v56, %v150
  %v217 = vsub.f32 %v57, %v150
  %v218 = vsub.f32 %v58, %v150
  %v219 = vsub.f32 %v59, %v155
  %v220 = vsub.f32 %v60, %v155
  %v221 = vsub.f32 %v61, %v155
  %v222 = vsub.f32 %v62, %v155
  %v223 = vsub.f32 %v63, %v160
  %v224 = vsub.f32 %v64, %v160
  %v225 = vsub.f32 %v65, %v160
  %v226 = vsub.f32 %v66, %v160
  %v227 = vsub.f32 %v67, %v165
  %v228 = vsub.f32 %v68, %v165
  %v229 = vsub.f32 %v69, %v165
  %v230 = vsub.f32 %v70, %v165
  %v231 = vsub.f32 %v71, %v170
  %v232 = vsub.f32 %v72, %v170
  %v233 = vsub.f32 %v73, %v170
  %v234 = vsub.f32 %v74, %v170
  %v235 = vmul.f32 %v171, 1.442695
  %v236 = vpow.pop %v235
  %v237 = vmul.f32 %v172, 1.442695
  %v238 = vpow.pop %v237
  %v239 = vmul.f32 %v173, 1.442695
  %v240 = vpow.pop %v239
  %v241 = vmul.f32 %v174, 1.442695
  %v242 = vpow.pop %v241
  %v243 = vmul.f32 %v175, 1.442695
  %v244 = vpow.pop %v243
  %v245 = vmul.f32 %v176, 1.442695
  %v246 = vpow.pop %v245
  %v247 = vmul.f32 %v177, 1.442695
  %v248 = vpow.pop %v247
  %v249 = vmul.f32 %v178, 1.442695
  %v250 = vpow.pop %v249
  %v251 = vmul.f32 %v179, 1.442695
  %v252 = vpow.pop %v251
  %v253 = vmul.f32 %v180, 1.442695
  %v254 = vpow.pop %v253
  %v255 = vmul.f32 %v181, 1.442695
  %v256 = vpow.pop %v255
  %v257 = vmul.f32 %v182, 1.442695
  %v258 = vpow.pop %v257
  %v259 = vmul.f32 %v183, 1.442695
  %v260 = vpow.pop %v259
  %v261 = vmul.f32 %v184, 1.442695
  %v262 = vpow.pop %v261
  %v263 = vmul.f32 %v185, 1.442695
  %v264 = vpow.pop %v263
  %v265 = vmul.f32 %v186, 1.442695
  %v266 = vpow.pop %v265
  %v267 = vmul.f32 %v187, 1.442695
  %v268 = vpow.pop %v267
  %v269 = vmul.f32 %v188, 1.442695
  %v270 = vpow.pop %v269
  %v271 = vmul.f32 %v189, 1.442695
  %v272 = vpow.pop %v271
  %v273 = vmul.f32 %v190, 1.442695
  %v274 = vpow.pop %v273
  %v275 = vmul.f32 %v191, 1.442695
  %v276 = vpow.pop %v275
  %v277 = vmul.f32 %v192, 1.442695
  %v278 = vpow.pop %v277
  %v279 = vmul.f32 %v193, 1.442695
  %v280 = vpow.pop %v279
  %v281 = vmul.f32 %v194, 1.442695
  %v282 = vpow.pop %v281
  %v283 = vmul.f32 %v195, 1.442695
  %v284 = vpow.pop %v283
  %v285 = vmul.f32 %v196, 1.442695
  %v286 = vpow.pop %v285
  %v287 = vmul.f32 %v197, 1.442695
  %v288 = vpow.pop %v287
  %v289 = vmul.f32 %v198, 1.442695
  %v290 = vpow.pop %v289
  %v291 = vmul.f32 %v199, 1.442695
  %v292 = vpow.pop %v291
  %v293 = vmul.f32 %v200, 1.442695
  %v294 = vpow.pop %v293
  %v295 = vmul.f32 %v201, 1.442695
  %v296 = vpow.pop %v295
  %v297 = vmul.f32 %v202, 1.442695
  %v298 = vpow.pop %v297
  %v299 = vmul.f32 %v203, 1.442695
  %v300 = vpow.pop %v299
  %v301 = vmul.f32 %v204, 1.442695
  %v302 = vpow.pop %v301
  %v303 = vmul.f32 %v205, 1.442695
  %v304 = vpow.pop %v303
  %v305 = vmul.f32 %v206, 1.442695
  %v306 = vpow.pop %v305
  %v307 = vmul.f32 %v207, 1.442695
  %v308 = vpow.pop %v307
  %v309 = vmul.f32 %v208, 1.442695
  %v310 = vpow.pop %v309
  %v311 = vmul.f32 %v209, 1.442695
  %v312 = vpow.pop %v311
  %v313 = vmul.f32 %v210, 1.442695
  %v314 = vpow.pop %v313
  %v315 = vmul.f32 %v211, 1.442695
  %v316 = vpow.pop %v315
  %v317 = vmul.f32 %v212, 1.442695
  %v318 = vpow.pop %v317
  %v319 = vmul.f32 %v213, 1.442695
  %v320 = vpow.pop %v319
  %v321 = vmul.f32 %v214, 1.442695
  %v322 = vpow.pop %v321
  %v323 = vmul.f32 %v215, 1.442695
  %v324 = vpow.pop %v323
  %v325 = vmul.f32 %v216, 1.442695
  %v326 = vpow.pop %v325
  %v327 = vmul.f32 %v217, 1.442695
  %v328 = vpow.pop %v327
  %v329 = vmul.f32 %v218, 1.442695
  %v330 = vpow.pop %v329
  %v331 = vmul.f32 %v219, 1.442695
  %v332 = vpow.pop %v331
  %v333 = vmul.f32 %v220, 1.442695
  %v334 = vpow.pop %v333
  %v335 = vmul.f32 %v221, 1.442695
  %v336 = vpow.pop %v335
  %v337 = vmul.f32 %v222, 1.442695
  %v338 = vpow.pop %v337
  %v339 = vmul.f32 %v223, 1.442695
  %v340 = vpow.pop %v339
  %v341 = vmul.f32 %v224, 1.442695
  %v342 = vpow.pop %v341
  %v343 = vmul.f32 %v225, 1.442695
  %v344 = vpow.pop %v343
  %v345 = vmul.f32 %v226, 1.442695
  %v346 = vpow.pop %v345
  %v347 = vmul.f32 %v227, 1.442695
  %v348 = vpow.pop %v347
  %v349 = vmul.f32 %v228, 1.442695
  %v350 = vpow.pop %v349
  %v351 = vmul.f32 %v229, 1.442695
  %v352 = vpow.pop %v351
  %v353 = vmul.f32 %v230, 1.442695
  %v354 = vpow.pop %v353
  %v355 = vmul.f32 %v231, 1.442695
  %v356 = vpow.pop %v355
  %v357 = vmul.f32 %v232, 1.442695
  %v358 = vpow.pop %v357
  %v359 = vmul.f32 %v233, 1.442695
  %v360 = vpow.pop %v359
  %v361 = vmul.f32 %v234, 1.442695
  %v362 = vpow.pop %v361
  %v363 = vadd.f32 %v236, %v238
  %v364 = vadd.f32 %v363, %v240
  %v365 = vadd.f32 %v364, %v242
  %366 = vadd.xlane.f32.xlu0 %v365
  %v367 = vpop.xlane.xlu0 %366
  %v368 = vadd.f32 %v244, %v246
  %v369 = vadd.f32 %v368, %v248
  %v370 = vadd.f32 %v369, %v250
  %371 = vadd.xlane.f32.xlu0 %v370
  %v372 = vpop.xlane.xlu0 %371
  %v373 = vadd.f32 %v252, %v254
  %v374 = vadd.f32 %v373, %v256
  %v375 = vadd.f32 %v374, %v258
  %376 = vadd.xlane.f32.xlu0 %v375
  %v377 = vpop.xlane.xlu0 %376
  %v378 = vadd.f32 %v260, %v262
  %v379 = vadd.f32 %v378, %v264
  %v380 = vadd.f32 %v379, %v266
  %381 = vadd.xlane.f32.xlu0 %v380
  %v382 = vpop.xlane.xlu0 %381
  %v383 = vadd.f32 %v268, %v270
  %v384 = vadd.f32 %v383, %v272
  %v385 = vadd.f32 %v384, %v274
  %386 = vadd.xlane.f32.xlu0 %v385
  %v387 = vpop.xlane.xlu0 %386
  %v388 = vadd.f32 %v276, %v278
  %v389 = vadd.f32 %v388, %v280
  %v390 = vadd.f32 %v389, %v282
  %391 = vadd.xlane.f32.xlu0 %v390
  %v392 = vpop.xlane.xlu0 %391
  %v393 = vadd.f32 %v284, %v286
  %v394 = vadd.f32 %v393, %v288
  %v395 = vadd.f32 %v394, %v290
  %396 = vadd.xlane.f32.xlu0 %v395
  %v397 = vpop.xlane.xlu0 %396
  %v398 = vadd.f32 %v292, %v294
  %v399 = vadd.f32 %v398, %v296
  %v400 = vadd.f32 %v399, %v298
  %401 = vadd.xlane.f32.xlu0 %v400
  %v402 = vpop.xlane.xlu0 %401
  %v403 = vadd.f32 %v300, %v302
  %v404 = vadd.f32 %v403, %v304
  %v405 = vadd.f32 %v404, %v306
  %406 = vadd.xlane.f32.xlu0 %v405
  %v407 = vpop.xlane.xlu0 %406
  %v408 = vadd.f32 %v308, %v310
  %v409 = vadd.f32 %v408, %v312
  %v410 = vadd.f32 %v409, %v314
  %411 = vadd.xlane.f32.xlu0 %v410
  %v412 = vpop.xlane.xlu0 %411
  %v413 = vadd.f32 %v316, %v318
  %v414 = vadd.f32 %v413, %v320
  %v415 = vadd.f32 %v414, %v322
  %416 = vadd.xlane.f32.xlu0 %v415
  %v417 = vpop.xlane.xlu0 %416
  %v418 = vadd.f32 %v324, %v326
  %v419 = vadd.f32 %v418, %v328
  %v420 = vadd.f32 %v419, %v330
  %421 = vadd.xlane.f32.xlu0 %v420
  %v422 = vpop.xlane.xlu0 %421
  %v423 = vadd.f32 %v332, %v334
  %v424 = vadd.f32 %v423, %v336
  %v425 = vadd.f32 %v424, %v338
  %426 = vadd.xlane.f32.xlu0 %v425
  %v427 = vpop.xlane.xlu0 %426
  %v428 = vadd.f32 %v340, %v342
  %v429 = vadd.f32 %v428, %v344
  %v430 = vadd.f32 %v429, %v346
  %431 = vadd.xlane.f32.xlu0 %v430
  %v432 = vpop.xlane.xlu0 %431
  %v433 = vadd.f32 %v348, %v350
  %v434 = vadd.f32 %v433, %v352
  %v435 = vadd.f32 %v434, %v354
  %436 = vadd.xlane.f32.xlu0 %v435
  %v437 = vpop.xlane.xlu0 %436
  %v438 = vadd.f32 %v356, %v358
  %v439 = vadd.f32 %v438, %v360
  %v440 = vadd.f32 %v439, %v362
  %441 = vadd.xlane.f32.xlu0 %v440
  %v442 = vpop.xlane.xlu0 %441
  %v443 = vlog2.pop %v367
  %v444 = vmul.f32 %v443, 0.6931472
  %v445 = vlog2.pop %v372
  %v446 = vmul.f32 %v445, 0.6931472
  %v447 = vlog2.pop %v377
  %v448 = vmul.f32 %v447, 0.6931472
  %v449 = vlog2.pop %v382
  %v450 = vmul.f32 %v449, 0.6931472
  %v451 = vlog2.pop %v387
  %v452 = vmul.f32 %v451, 0.6931472
  %v453 = vlog2.pop %v392
  %v454 = vmul.f32 %v453, 0.6931472
  %v455 = vlog2.pop %v397
  %v456 = vmul.f32 %v455, 0.6931472
  %v457 = vlog2.pop %v402
  %v458 = vmul.f32 %v457, 0.6931472
  %v459 = vlog2.pop %v407
  %v460 = vmul.f32 %v459, 0.6931472
  %v461 = vlog2.pop %v412
  %v462 = vmul.f32 %v461, 0.6931472
  %v463 = vlog2.pop %v417
  %v464 = vmul.f32 %v463, 0.6931472
  %v465 = vlog2.pop %v422
  %v466 = vmul.f32 %v465, 0.6931472
  %v467 = vlog2.pop %v427
  %v468 = vmul.f32 %v467, 0.6931472
  %v469 = vlog2.pop %v432
  %v470 = vmul.f32 %v469, 0.6931472
  %v471 = vlog2.pop %v437
  %v472 = vmul.f32 %v471, 0.6931472
  %v473 = vlog2.pop %v442
  %v474 = vmul.f32 %v473, 0.6931472
  %v475 = vadd.f32 %v95, %v444
  %v476 = vadd.f32 %v100, %v446
  %v477 = vadd.f32 %v105, %v448
  %v478 = vadd.f32 %v110, %v450
  %v479 = vadd.f32 %v115, %v452
  %v480 = vadd.f32 %v120, %v454
  %v481 = vadd.f32 %v125, %v456
  %v482 = vadd.f32 %v130, %v458
  %v483 = vadd.f32 %v135, %v460
  %v484 = vadd.f32 %v140, %v462
  %v485 = vadd.f32 %v145, %v464
  %v486 = vadd.f32 %v150, %v466
  %v487 = vadd.f32 %v155, %v468
  %v488 = vadd.f32 %v160, %v470
  %v489 = vadd.f32 %v165, %v472
  %v490 = vadd.f32 %v170, %v474
  %v491 = vlaneseq
  %v492 = vand.u32 %v491, 127
  %v493 = vadd.s32 %v492, 128
  %v494 = vadd.s32 %v492, 256
  %v495 = vadd.s32 %v492, 384
  %496 = vset.pattern.permute.xlu0 0
  %497 = vperm.xlu0 %496, %v75
  %v498 = vpop.permute.xlu0 %497
  %499 = vset.pattern.permute.xlu0 0
  %500 = vperm.xlu0 %499, %v76
  %v501 = vpop.permute.xlu0 %500
  %502 = vset.pattern.permute.xlu0 0
  %503 = vperm.xlu0 %502, %v77
  %v504 = vpop.permute.xlu0 %503
  %505 = vset.pattern.permute.xlu0 0
  %506 = vperm.xlu0 %505, %v78
  %v507 = vpop.permute.xlu0 %506
  %508 = vset.pattern.permute.xlu0 0
  %509 = vperm.xlu0 %508, %v79
  %v510 = vpop.permute.xlu0 %509
  %511 = vset.pattern.permute.xlu0 0
  %512 = vperm.xlu0 %511, %v80
  %v513 = vpop.permute.xlu0 %512
  %514 = vset.pattern.permute.xlu0 0
  %515 = vperm.xlu0 %514, %v81
  %v516 = vpop.permute.xlu0 %515
  %517 = vset.pattern.permute.xlu0 0
  %518 = vperm.xlu0 %517, %v82
  %v519 = vpop.permute.xlu0 %518
  %520 = vset.pattern.permute.xlu0 0
  %521 = vperm.xlu0 %520, %v83
  %v522 = vpop.permute.xlu0 %521
  %523 = vset.pattern.permute.xlu0 0
  %524 = vperm.xlu0 %523, %v84
  %v525 = vpop.permute.xlu0 %524
  %526 = vset.pattern.permute.xlu0 0
  %527 = vperm.xlu0 %526, %v85
  %v528 = vpop.permute.xlu0 %527
  %529 = vset.pattern.permute.xlu0 0
  %530 = vperm.xlu0 %529, %v86
  %v531 = vpop.permute.xlu0 %530
  %532 = vset.pattern.permute.xlu0 0
  %533 = vperm.xlu0 %532, %v87
  %v534 = vpop.permute.xlu0 %533
  %535 = vset.pattern.permute.xlu0 0
  %536 = vperm.xlu0 %535, %v88
  %v537 = vpop.permute.xlu0 %536
  %538 = vset.pattern.permute.xlu0 0
  %539 = vperm.xlu0 %538, %v89
  %v540 = vpop.permute.xlu0 %539
  %541 = vset.pattern.permute.xlu0 0
  %542 = vperm.xlu0 %541, %v90
  %v543 = vpop.permute.xlu0 %542
  %vm544 = vcmp.eq.s32.totalorder %v492, %v498
  %vm545 = vcmp.eq.s32.totalorder %v493, %v498
  %vm546 = vcmp.eq.s32.totalorder %v494, %v498
  %vm547 = vcmp.eq.s32.totalorder %v495, %v498
  %vm548 = vcmp.eq.s32.totalorder %v492, %v501
  %vm549 = vcmp.eq.s32.totalorder %v493, %v501
  %vm550 = vcmp.eq.s32.totalorder %v494, %v501
  %vm551 = vcmp.eq.s32.totalorder %v495, %v501
  %vm552 = vcmp.eq.s32.totalorder %v492, %v504
  %vm553 = vcmp.eq.s32.totalorder %v493, %v504
  %vm554 = vcmp.eq.s32.totalorder %v494, %v504
  %vm555 = vcmp.eq.s32.totalorder %v495, %v504
  %vm556 = vcmp.eq.s32.totalorder %v492, %v507
  %vm557 = vcmp.eq.s32.totalorder %v493, %v507
  %vm558 = vcmp.eq.s32.totalorder %v494, %v507
  %vm559 = vcmp.eq.s32.totalorder %v495, %v507
  %vm560 = vcmp.eq.s32.totalorder %v492, %v510
  %vm561 = vcmp.eq.s32.totalorder %v493, %v510
  %vm562 = vcmp.eq.s32.totalorder %v494, %v510
  %vm563 = vcmp.eq.s32.totalorder %v495, %v510
  %vm564 = vcmp.eq.s32.totalorder %v492, %v513
  %vm565 = vcmp.eq.s32.totalorder %v493, %v513
  %vm566 = vcmp.eq.s32.totalorder %v494, %v513
  %vm567 = vcmp.eq.s32.totalorder %v495, %v513
  %vm568 = vcmp.eq.s32.totalorder %v492, %v516
  %vm569 = vcmp.eq.s32.totalorder %v493, %v516
  %vm570 = vcmp.eq.s32.totalorder %v494, %v516
  %vm571 = vcmp.eq.s32.totalorder %v495, %v516
  %vm572 = vcmp.eq.s32.totalorder %v492, %v519
  %vm573 = vcmp.eq.s32.totalorder %v493, %v519
  %vm574 = vcmp.eq.s32.totalorder %v494, %v519
  %vm575 = vcmp.eq.s32.totalorder %v495, %v519
  %vm576 = vcmp.eq.s32.totalorder %v492, %v522
  %vm577 = vcmp.eq.s32.totalorder %v493, %v522
  %vm578 = vcmp.eq.s32.totalorder %v494, %v522
  %vm579 = vcmp.eq.s32.totalorder %v495, %v522
  %vm580 = vcmp.eq.s32.totalorder %v492, %v525
  %vm581 = vcmp.eq.s32.totalorder %v493, %v525
  %vm582 = vcmp.eq.s32.totalorder %v494, %v525
  %vm583 = vcmp.eq.s32.totalorder %v495, %v525
  %vm584 = vcmp.eq.s32.totalorder %v492, %v528
  %vm585 = vcmp.eq.s32.totalorder %v493, %v528
  %vm586 = vcmp.eq.s32.totalorder %v494, %v528
  %vm587 = vcmp.eq.s32.totalorder %v495, %v528
  %vm588 = vcmp.eq.s32.totalorder %v492, %v531
  %vm589 = vcmp.eq.s32.totalorder %v493, %v531
  %vm590 = vcmp.eq.s32.totalorder %v494, %v531
  %vm591 = vcmp.eq.s32.totalorder %v495, %v531
  %vm592 = vcmp.eq.s32.totalorder %v492, %v534
  %vm593 = vcmp.eq.s32.totalorder %v493, %v534
  %vm594 = vcmp.eq.s32.totalorder %v494, %v534
  %vm595 = vcmp.eq.s32.totalorder %v495, %v534
  %vm596 = vcmp.eq.s32.totalorder %v492, %v537
  %vm597 = vcmp.eq.s32.totalorder %v493, %v537
  %vm598 = vcmp.eq.s32.totalorder %v494, %v537
  %vm599 = vcmp.eq.s32.totalorder %v495, %v537
  %vm600 = vcmp.eq.s32.totalorder %v492, %v540
  %vm601 = vcmp.eq.s32.totalorder %v493, %v540
  %vm602 = vcmp.eq.s32.totalorder %v494, %v540
  %vm603 = vcmp.eq.s32.totalorder %v495, %v540
  %vm604 = vcmp.eq.s32.totalorder %v492, %v543
  %vm605 = vcmp.eq.s32.totalorder %v493, %v543
  %vm606 = vcmp.eq.s32.totalorder %v494, %v543
  %vm607 = vcmp.eq.s32.totalorder %v495, %v543
  %v608 = vsel %vm544, %v11, 0.0
  %v609 = vsel %vm545, %v12, 0.0
  %v610 = vsel %vm546, %v13, 0.0
  %v611 = vsel %vm547, %v14, 0.0
  %v612 = vsel %vm548, %v15, 0.0
  %v613 = vsel %vm549, %v16, 0.0
  %v614 = vsel %vm550, %v17, 0.0
  %v615 = vsel %vm551, %v18, 0.0
  %v616 = vsel %vm552, %v19, 0.0
  %v617 = vsel %vm553, %v20, 0.0
  %v618 = vsel %vm554, %v21, 0.0
  %v619 = vsel %vm555, %v22, 0.0
  %v620 = vsel %vm556, %v23, 0.0
  %v621 = vsel %vm557, %v24, 0.0
  %v622 = vsel %vm558, %v25, 0.0
  %v623 = vsel %vm559, %v26, 0.0
  %v624 = vsel %vm560, %v27, 0.0
  %v625 = vsel %vm561, %v28, 0.0
  %v626 = vsel %vm562, %v29, 0.0
  %v627 = vsel %vm563, %v30, 0.0
  %v628 = vsel %vm564, %v31, 0.0
  %v629 = vsel %vm565, %v32, 0.0
  %v630 = vsel %vm566, %v33, 0.0
  %v631 = vsel %vm567, %v34, 0.0
  %v632 = vsel %vm568, %v35, 0.0
  %v633 = vsel %vm569, %v36, 0.0
  %v634 = vsel %vm570, %v37, 0.0
  %v635 = vsel %vm571, %v38, 0.0
  %v636 = vsel %vm572, %v39, 0.0
  %v637 = vsel %vm573, %v40, 0.0
  %v638 = vsel %vm574, %v41, 0.0
  %v639 = vsel %vm575, %v42, 0.0
  %v640 = vsel %vm576, %v43, 0.0
  %v641 = vsel %vm577, %v44, 0.0
  %v642 = vsel %vm578, %v45, 0.0
  %v643 = vsel %vm579, %v46, 0.0
  %v644 = vsel %vm580, %v47, 0.0
  %v645 = vsel %vm581, %v48, 0.0
  %v646 = vsel %vm582, %v49, 0.0
  %v647 = vsel %vm583, %v50, 0.0
  %v648 = vsel %vm584, %v51, 0.0
  %v649 = vsel %vm585, %v52, 0.0
  %v650 = vsel %vm586, %v53, 0.0
  %v651 = vsel %vm587, %v54, 0.0
  %v652 = vsel %vm588, %v55, 0.0
  %v653 = vsel %vm589, %v56, 0.0
  %v654 = vsel %vm590, %v57, 0.0
  %v655 = vsel %vm591, %v58, 0.0
  %v656 = vsel %vm592, %v59, 0.0
  %v657 = vsel %vm593, %v60, 0.0
  %v658 = vsel %vm594, %v61, 0.0
  %v659 = vsel %vm595, %v62, 0.0
  %v660 = vsel %vm596, %v63, 0.0
  %v661 = vsel %vm597, %v64, 0.0
  %v662 = vsel %vm598, %v65, 0.0
  %v663 = vsel %vm599, %v66, 0.0
  %v664 = vsel %vm600, %v67, 0.0
  %v665 = vsel %vm601, %v68, 0.0
  %v666 = vsel %vm602, %v69, 0.0
  %v667 = vsel %vm603, %v70, 0.0
  %v668 = vsel %vm604, %v71, 0.0
  %v669 = vsel %vm605, %v72, 0.0
  %v670 = vsel %vm606, %v73, 0.0
  %v671 = vsel %vm607, %v74, 0.0
  %v672 = vadd.f32 %v608, %v609
  %v673 = vadd.f32 %v672, %v610
  %v674 = vadd.f32 %v673, %v611
  %675 = vadd.xlane.f32.xlu0 %v674
  %v676 = vpop.xlane.xlu0 %675
  %v677 = vadd.f32 %v612, %v613
  %v678 = vadd.f32 %v677, %v614
  %v679 = vadd.f32 %v678, %v615
  %680 = vadd.xlane.f32.xlu0 %v679
  %v681 = vpop.xlane.xlu0 %680
  %v682 = vadd.f32 %v616, %v617
  %v683 = vadd.f32 %v682, %v618
  %v684 = vadd.f32 %v683, %v619
  %685 = vadd.xlane.f32.xlu0 %v684
  %v686 = vpop.xlane.xlu0 %685
  %v687 = vadd.f32 %v620, %v621
  %v688 = vadd.f32 %v687, %v622
  %v689 = vadd.f32 %v688, %v623
  %690 = vadd.xlane.f32.xlu0 %v689
  %v691 = vpop.xlane.xlu0 %690
  %v692 = vadd.f32 %v624, %v625
  %v693 = vadd.f32 %v692, %v626
  %v694 = vadd.f32 %v693, %v627
  %695 = vadd.xlane.f32.xlu0 %v694
  %v696 = vpop.xlane.xlu0 %695
  %v697 = vadd.f32 %v628, %v629
  %v698 = vadd.f32 %v697, %v630
  %v699 = vadd.f32 %v698, %v631
  %700 = vadd.xlane.f32.xlu0 %v699
  %v701 = vpop.xlane.xlu0 %700
  %v702 = vadd.f32 %v632, %v633
  %v703 = vadd.f32 %v702, %v634
  %v704 = vadd.f32 %v703, %v635
  %705 = vadd.xlane.f32.xlu0 %v704
  %v706 = vpop.xlane.xlu0 %705
  %v707 = vadd.f32 %v636, %v637
  %v708 = vadd.f32 %v707, %v638
  %v709 = vadd.f32 %v708, %v639
  %710 = vadd.xlane.f32.xlu0 %v709
  %v711 = vpop.xlane.xlu0 %710
  %v712 = vadd.f32 %v640, %v641
  %v713 = vadd.f32 %v712, %v642
  %v714 = vadd.f32 %v713, %v643
  %715 = vadd.xlane.f32.xlu0 %v714
  %v716 = vpop.xlane.xlu0 %715
  %v717 = vadd.f32 %v644, %v645
  %v718 = vadd.f32 %v717, %v646
  %v719 = vadd.f32 %v718, %v647
  %720 = vadd.xlane.f32.xlu0 %v719
  %v721 = vpop.xlane.xlu0 %720
  %v722 = vadd.f32 %v648, %v649
  %v723 = vadd.f32 %v722, %v650
  %v724 = vadd.f32 %v723, %v651
  %725 = vadd.xlane.f32.xlu0 %v724
  %v726 = vpop.xlane.xlu0 %725
  %v727 = vadd.f32 %v652, %v653
  %v728 = vadd.f32 %v727, %v654
  %v729 = vadd.f32 %v728, %v655
  %730 = vadd.xlane.f32.xlu0 %v729
  %v731 = vpop.xlane.xlu0 %730
  %v732 = vadd.f32 %v656, %v657
  %v733 = vadd.f32 %v732, %v658
  %v734 = vadd.f32 %v733, %v659
  %735 = vadd.xlane.f32.xlu0 %v734
  %v736 = vpop.xlane.xlu0 %735
  %v737 = vadd.f32 %v660, %v661
  %v738 = vadd.f32 %v737, %v662
  %v739 = vadd.f32 %v738, %v663
  %740 = vadd.xlane.f32.xlu0 %v739
  %v741 = vpop.xlane.xlu0 %740
  %v742 = vadd.f32 %v664, %v665
  %v743 = vadd.f32 %v742, %v666
  %v744 = vadd.f32 %v743, %v667
  %745 = vadd.xlane.f32.xlu0 %v744
  %v746 = vpop.xlane.xlu0 %745
  %v747 = vadd.f32 %v668, %v669
  %v748 = vadd.f32 %v747, %v670
  %v749 = vadd.f32 %v748, %v671
  %750 = vadd.xlane.f32.xlu0 %v749
  %v751 = vpop.xlane.xlu0 %750
  %v752 = vsub.f32 %v475, %v676
  %v753 = vsub.f32 %v476, %v681
  %v754 = vsub.f32 %v477, %v686
  %v755 = vsub.f32 %v478, %v691
  %v756 = vsub.f32 %v479, %v696
  %v757 = vsub.f32 %v480, %v701
  %v758 = vsub.f32 %v481, %v706
  %v759 = vsub.f32 %v482, %v711
  %v760 = vsub.f32 %v483, %v716
  %v761 = vsub.f32 %v484, %v721
  %v762 = vsub.f32 %v485, %v726
  %v763 = vsub.f32 %v486, %v731
  %v764 = vsub.f32 %v487, %v736
  %v765 = vsub.f32 %v488, %v741
  %v766 = vsub.f32 %v489, %v746
  %v767 = vsub.f32 %v490, %v751
  %vm768 = vcmask 7168
  %769 = vst.msk [vmem:[%s2] sm:$0xff] %vm768, %v752
  %770 = vst.msk [vmem:[%s2 + $0x8] sm:$0xff] %vm768, %v753
  %771 = vst.msk [vmem:[%s2 + $0x10] sm:$0xff] %vm768, %v754
  %772 = vst.msk [vmem:[%s2 + $0x18] sm:$0xff] %vm768, %v755
  %773 = vst.msk [vmem:[%s2 + $0x20] sm:$0xff] %vm768, %v756
  %774 = vst.msk [vmem:[%s2 + $0x28] sm:$0xff] %vm768, %v757
  %775 = vst.msk [vmem:[%s2 + $0x30] sm:$0xff] %vm768, %v758
  %776 = vst.msk [vmem:[%s2 + $0x38] sm:$0xff] %vm768, %v759
  %777 = vst.msk [vmem:[%s2 + $0x40] sm:$0xff] %vm768, %v760
  %778 = vst.msk [vmem:[%s2 + $0x48] sm:$0xff] %vm768, %v761
  %779 = vst.msk [vmem:[%s2 + $0x50] sm:$0xff] %vm768, %v762
  %780 = vst.msk [vmem:[%s2 + $0x58] sm:$0xff] %vm768, %v763
  %781 = vst.msk [vmem:[%s2 + $0x60] sm:$0xff] %vm768, %v764
  %782 = vst.msk [vmem:[%s2 + $0x68] sm:$0xff] %vm768, %v765
  %783 = vst.msk [vmem:[%s2 + $0x70] sm:$0xff] %vm768, %v766
  %784 = vst.msk [vmem:[%s2 + $0x78] sm:$0xff] %vm768, %v767
  // Predicated region
  $region10: #{gpt_forward.23} parent=0 // pred_check
    _
  $region11: #{gpt_forward.23} parent=0 // pred_check_branch
    %786 = sbr.rel (0) target = $region13
  $region12: #{gpt_forward.23} parent=0 // pred_region
    _
  $region13: #{gpt_forward.23} parent=0 // pred_fallthru
    _
  // Predicated region
  $region14: #{gpt_forward.23} parent=0 // pred_check
    _
  $region15: #{gpt_forward.23} parent=0 // pred_check_branch
    %788 = sbr.rel (0) target = $region17
  $region16: #{gpt_forward.23} parent=0 // pred_region
    _
  $region17: #{gpt_forward.23} parent=0 // pred_fallthru
    _

</llo_original>
